<compile_context>
chip_gen: v7x
topology: tpu7x:2x2x1
jax: 0.10.0
libtpu: 0.0.40
codegen_flags: <defaults>
</compile_context>

<pallas_src>
import functools

import jax
import jax.numpy as jnp
from jax import lax
from jax.experimental import pallas as pl
from jax.experimental.pallas import tpu as pltpu

H = 16
W = 16
C_IN = 4            # CoFusion needs in_ch == out_ch for (x * attn)
C_MID = 64
N_GROUPS = 4
GROUP_SIZE = C_MID // N_GROUPS
EPS = 1e-5

HP = H + 2
WP = W + 2
P2 = HP * WP                       # 324 padded spatial positions per sample
P2_PAD = ((P2 + 7) // 8) * 8       # 328: per-sample row stride (8-aligned)
HEAD = 24                          # top guard rows in scratch (>= WP+1, mult of 8)
TAIL = 24                          # bottom guard rows (>= WP+1)
K1 = 9 * C_IN                      # 36: conv1 im2col contraction depth
MAX_B_TILE = 16                    # samples per grid step (VMEM-safe on v5e/v6e/v7x)


# ----------------------------- kernel helpers ------------------------------
def _conv3x3_from_buf(buf, w_ref, bias, m, cout):
    """9 shifted-row-slice matmuls over the (HEAD + m + TAIL, C_MID) scratch.

    Taps are cast to bf16 right before the dot; weights are already bf16;
    accumulation stays f32 (preferred_element_type).
    """
    acc = jnp.zeros((m, cout), dtype=jnp.float32)
    for ky in range(3):
        for kx in range(3):
            s = (ky - 1) * WP + (kx - 1)
            tap = buf[pl.ds(HEAD + s, m), :].astype(jnp.bfloat16)   # (m, C_MID)
            acc = acc + jnp.dot(tap, w_ref[ky * 3 + kx],
                                preferred_element_type=jnp.float32)
    return acc + bias                                               # bias (1, cout)


def _group_norm_relu(a, valid64, mg, gamma, beta, b_tile):
    """GroupNorm(4, 64) per sample over valid positions, then ReLU, re-masked.

    a:       (m, C_MID) raw conv output (m = b_tile * P2_PAD), f32
    valid64: (m, C_MID) bool — interior (non-border, non-dead) positions
             (lane-broadcast hoisted to the caller, computed once per block)
    mg:      (C_MID, C_MID) block-diagonal group-ones mask (precomputed)
    """
    m = b_tile * P2_PAD
    am = jnp.where(valid64, a, 0.0)            # select (not mul): kills NaN/garbage
    a3 = am.reshape(b_tile, P2_PAD, C_MID)     # layout-preserving (P2_PAD % 8 == 0)
    s = jnp.sum(a3, axis=1)                    # (b_tile, C_MID) per-sample sums
    q = jnp.sum(a3 * a3, axis=1)
    inv_n = 1.0 / float(H * W * GROUP_SIZE)
    # group-broadcast sums via one tiny f32 matmul each (mg hoisted to wrapper)
    mean = jnp.dot(s, mg, preferred_element_type=jnp.float32) * inv_n
    ex2 = jnp.dot(q, mg, preferred_element_type=jnp.float32) * inv_n
    # NOTE: one-pass E[x^2]-E[x]^2 variance; f32 is plenty at these magnitudes.
    rstd = lax.rsqrt(ex2 - mean * mean + EPS)                       # (b_tile, C_MID)
    out = (a3 - mean.reshape(b_tile, 1, C_MID)) * rstd.reshape(b_tile, 1, C_MID)
    out = out.reshape(m, C_MID) * gamma + beta
    return jnp.where(valid64, jnp.maximum(out, 0.0), 0.0)           # borders -> 0


# --------------------------------- kernel ----------------------------------
def cofusion_kernel(xcol_ref, mask_ref, mg_ref,
                    w1_ref, b1_ref, g1_ref, be1_ref,
                    w2_ref, b2_ref, g2_ref, be2_ref,
                    w3_ref, b3_ref,
                    out_ref, buf1, buf2, *, b_tile):
    m = b_tile * P2_PAD
    valid = mask_ref[...] > 0.5                                     # (m, 1) bool
    valid64 = jnp.broadcast_to(valid, (m, C_MID))                   # hoisted once
    mg = mg_ref[...]
    xcol = xcol_ref[...]                                            # (m, 36) f32

    # conv1: single im2col matmul (K = 36, kept f32 for accuracy), then GN + ReLU
    a1 = jnp.dot(xcol, w1_ref[...], preferred_element_type=jnp.float32) + b1_ref[...]
    a1 = _group_norm_relu(a1, valid64, mg, g1_ref[...], be1_ref[...], b_tile)
    # Guard rows [0, HEAD) and [HEAD+m, HEAD+m+TAIL) are never written (and never
    # need zeroing): they only feed masked border outputs.
    buf1[pl.ds(HEAD, m), :] = a1

    # conv2 (bf16 operands, f32 accumulate) + GN + ReLU
    a2 = _conv3x3_from_buf(buf1, w2_ref, b2_ref[...], m, C_MID)
    a2 = _group_norm_relu(a2, valid64, mg, g2_ref[...], be2_ref[...], b_tile)
    buf2[pl.ds(HEAD, m), :] = a2

    # conv3 (bf16 operands) + softmax over channel dim
    a3 = _conv3x3_from_buf(buf2, w3_ref, b3_ref[...], m, C_IN)
    a3 = a3 - jnp.max(a3, axis=-1, keepdims=True)
    e = jnp.exp(a3)
    attn = e * pl.reciprocal(jnp.sum(e, axis=-1, keepdims=True), approx=True)

    # fuse: (x * attn).sum(channel); raw x == centre tap of the conv1 im2col (f32)
    xv = xcol[:, 4 * C_IN:5 * C_IN]                                 # (m, C_IN)
    fused = jnp.sum(xv * attn, axis=-1, keepdims=True)              # (m, 1)
    # Zero the border/dead rows so no NaN/Inf from uninitialised guards escapes.
    out_ref[...] = jnp.where(valid, fused, 0.0)


# -------------------------------- wrapper -----------------------------------
def _build_xcol(x_nchw, n_pad):
    """conv1 im2col over the zero-padded image grid: (n_pad*P2_PAD, 9*C_IN)."""
    n = x_nchw.shape[0]
    x = jnp.transpose(x_nchw, (0, 2, 3, 1)).astype(jnp.float32)        # NHWC
    if n_pad > n:
        x = jnp.concatenate(
            [x, jnp.zeros((n_pad - n, H, W, C_IN), jnp.float32)], axis=0)
    xp = jnp.pad(x, ((0, 0), (1, 1), (1, 1), (0, 0)))                  # conv zero-pad
    xpp = jnp.pad(xp, ((0, 0), (1, 1), (1, 1), (0, 0)))                # halo for taps
    taps = [xpp[:, ky:ky + HP, kx:kx + WP, :]
            for ky in range(3) for kx in range(3)]
    xcol = jnp.concatenate(taps, axis=-1).reshape(n_pad, P2, K1)
    xcol = jnp.pad(xcol, ((0, 0), (0, P2_PAD - P2), (0, 0)))           # dead rows = 0
    return xcol.reshape(n_pad * P2_PAD, K1)


def _build_mask(b_tile):
    p = jnp.arange(P2_PAD)
    hp, wp = p // WP, p % WP
    valid = (p < P2) & (hp >= 1) & (hp <= H) & (wp >= 1) & (wp <= W)
    return jnp.tile(valid.astype(jnp.float32), b_tile).reshape(b_tile * P2_PAD, 1)


def _build_group_mask():
    ii = jnp.arange(C_MID)[:, None] // GROUP_SIZE
    jj = jnp.arange(C_MID)[None, :] // GROUP_SIZE
    return (ii == jj).astype(jnp.float32)                              # (64, 64)


def cofusion_forward(x_nchw, params):
    n = x_nchw.shape[0]
    # >= 2 blocks whenever n >= 2 (so v7x's two TensorCores both get work via the
    # "parallel" grid axis); cap the per-step batch so explicit scratch plus the
    # compiler-spilled (m, 64) f32 intermediates stay well inside scoped VMEM.
    b_tile = max(1, min(MAX_B_TILE, -(-n // 2)))
    n_blocks = -(-n // b_tile)
    n_pad = n_blocks * b_tile
    m = b_tile * P2_PAD                        # matmul M dimension per step
    rows = HEAD + m + TAIL                     # scratch rows (multiple of 8)

    (w1, b1, g1, be1, w2, b2, g2, be2, w3, b3) = params
    w1col = w1.reshape(K1, C_MID)              # conv1 stays f32
    w2b = w2.astype(jnp.bfloat16)              # conv2/conv3 weights pre-cast to bf16
    w3b = w3.astype(jnp.bfloat16)

    xcol = _build_xcol(x_nchw, n_pad)          # (n_pad*P2_PAD, 36) f32
    mask = _build_mask(b_tile)                 # (m, 1)
    mg = _build_group_mask()                   # (64, 64)

    def const_spec(shape):
        nd = len(shape)
        return pl.BlockSpec(shape, lambda i, _nd=nd: (0,) * _nd)

    kernel = functools.partial(cofusion_kernel, b_tile=b_tile)

    out = pl.pallas_call(
        kernel,
        out_shape=jax.ShapeDtypeStruct((n_pad * P2_PAD, 1), jnp.float32),
        grid=(n_blocks,),
        in_specs=[
            pl.BlockSpec((m, K1), lambda i: (i, 0)),     # conv1 im2col (per block)
            const_spec((m, 1)),                          # validity mask
            const_spec((C_MID, C_MID)),                  # group mask
            const_spec(w1col.shape), const_spec(b1.shape),
            const_spec(g1.shape), const_spec(be1.shape),
            const_spec(w2b.shape), const_spec(b2.shape),
            const_spec(g2.shape), const_spec(be2.shape),
            const_spec(w3b.shape), const_spec(b3.shape),
        ],
        out_specs=pl.BlockSpec((m, 1), lambda i: (i, 0)),
        scratch_shapes=[
            pltpu.VMEM((rows, C_MID), jnp.float32),
            pltpu.VMEM((rows, C_MID), jnp.float32),
        ],
        compiler_params=pltpu.CompilerParams(
            dimension_semantics=("parallel",)),          # shard blocks across TCs (v7x)
    )(xcol, mask, mg, w1col, b1, g1, be1, w2b, b2, g2, be2, w3b, b3)

    out = out.reshape(n_pad, P2_PAD)[:n, :P2].reshape(n, HP, WP)
    return out[:, 1:H + 1, 1:W + 1][:, None, :, :]               # (N, 1, H, W)


# ------------------------------- parameters ---------------------------------
def init_params(key):
    ks = jax.random.split(key, 10)
    w1 = 0.10 * jax.random.normal(ks[0], (9, C_IN, C_MID), jnp.float32)
    b1 = 0.10 * jax.random.normal(ks[1], (1, C_MID), jnp.float32)
    g1 = 1.0 + 0.10 * jax.random.normal(ks[2], (1, C_MID), jnp.float32)
    be1 = 0.10 * jax.random.normal(ks[3], (1, C_MID), jnp.float32)
    w2 = 0.05 * jax.random.normal(ks[4], (9, C_MID, C_MID), jnp.float32)
    b2 = 0.10 * jax.random.normal(ks[5], (1, C_MID), jnp.float32)
    g2 = 1.0 + 0.10 * jax.random.normal(ks[6], (1, C_MID), jnp.float32)
    be2 = 0.10 * jax.random.normal(ks[7], (1, C_MID), jnp.float32)
    w3 = 0.05 * jax.random.normal(ks[8], (9, C_MID, C_IN), jnp.float32)
    b3 = 0.10 * jax.random.normal(ks[9], (1, C_IN), jnp.float32)
    return (w1, b1, g1, be1, w2, b2, g2, be2, w3, b3)


# ------------------------- pure-JAX reference (check) ------------------------
def reference_forward(x_nchw, params):
    (w1, b1, g1, be1, w2, b2, g2, be2, w3, b3) = params

    def conv(x, w_tap, b):                                  # x: NHWC
        cin, cout = w_tap.shape[1], w_tap.shape[2]
        w_hwio = w_tap.reshape(3, 3, cin, cout)
        y = lax.conv_general_dilated(
            x, w_hwio, window_strides=(1, 1), padding=((1, 1), (1, 1)),
            dimension_numbers=("NHWC", "HWIO", "NHWC"),
            precision=lax.Precision.HIGHEST)
        return y + b.reshape(1, 1, 1, cout)

    def gn(x, gamma, beta):
        n_, h_, w_, c_ = x.shape
        xg = x.reshape(n_, h_, w_, N_GROUPS, GROUP_SIZE)
        mean = xg.mean(axis=(1, 2, 4), keepdims=True)
        var = ((xg - mean) ** 2).mean(axis=(1, 2, 4), keepdims=True)
        xn = ((xg - mean) / jnp.sqrt(var + EPS)).reshape(n_, h_, w_, c_)
        return xn * gamma.reshape(1, 1, 1, c_) + beta.reshape(1, 1, 1, c_)

    x = jnp.transpose(x_nchw, (0, 2, 3, 1)).astype(jnp.float32)
    a = jax.nn.relu(gn(conv(x, w1, b1), g1, be1))
    a = jax.nn.relu(gn(conv(a, w2, b2), g2, be2))
    attn = jax.nn.softmax(conv(a, w3, b3), axis=-1)
    fused = jnp.sum(x * attn, axis=-1)                      # (N, H, W)
    return fused[:, None, :, :]


if __name__ == "__main__":
    key = jax.random.PRNGKey(0)
    kx, kp = jax.random.split(key)
    x = jax.random.normal(kx, (2, C_IN, H, W), jnp.float32)
    params = init_params(kp)

    out = cofusion_forward(x, params)
    out = jax.block_until_ready(out)
    assert out.shape == (2, 1, H, W), out.shape

    ref = reference_forward(x, params)
    max_err = float(jnp.max(jnp.abs(out - ref)))
    if max_err > 2e-2:
        raise AssertionError(f"mismatch vs pure-JAX reference, max abs err={max_err}")

    print("KERNEL_OK")
</pallas_src>

<mosaic_0001>
module attributes {stable_mosaic.version = 11 : i64} {
  func.func @cofusion_kernel(%arg0: i32, %arg1: memref<328x36xf32, #tpu.memory_space<vmem>>, %arg2: memref<328x1xf32, #tpu.memory_space<vmem>>, %arg3: memref<64x64xf32, #tpu.memory_space<vmem>>, %arg4: memref<36x64xf32, #tpu.memory_space<vmem>>, %arg5: memref<1x64xf32, #tpu.memory_space<vmem>>, %arg6: memref<1x64xf32, #tpu.memory_space<vmem>>, %arg7: memref<1x64xf32, #tpu.memory_space<vmem>>, %arg8: memref<9x64x64xbf16, #tpu.memory_space<vmem>>, %arg9: memref<1x64xf32, #tpu.memory_space<vmem>>, %arg10: memref<1x64xf32, #tpu.memory_space<vmem>>, %arg11: memref<1x64xf32, #tpu.memory_space<vmem>>, %arg12: memref<9x64x4xbf16, #tpu.memory_space<vmem>>, %arg13: memref<1x4xf32, #tpu.memory_space<vmem>>, %arg14: memref<328x1xf32, #tpu.memory_space<vmem>>, %arg15: memref<376x64xf32, #tpu.memory_space<vmem>>, %arg16: memref<376x64xf32, #tpu.memory_space<vmem>>) attributes {dimension_semantics = [#tpu.dimension_semantics<parallel>], iteration_bounds = array<i64: 2>, scalar_prefetch = 0 : i64, scratch_operands = 2 : i64, tpu.core_type = #tpu.core_type<tc>, window_params = [{transform_indices = @transform_0, window_bounds = array<i64: 328, 36>}, {pipeline_mode = #tpu.pipeline_mode<synchronous>, transform_indices = @transform_1, window_bounds = array<i64: 328, 1>}, {pipeline_mode = #tpu.pipeline_mode<synchronous>, transform_indices = @transform_2, window_bounds = array<i64: 64, 64>}, {pipeline_mode = #tpu.pipeline_mode<synchronous>, transform_indices = @transform_3, window_bounds = array<i64: 36, 64>}, {pipeline_mode = #tpu.pipeline_mode<synchronous>, transform_indices = @transform_4, window_bounds = array<i64: 1, 64>}, {pipeline_mode = #tpu.pipeline_mode<synchronous>, transform_indices = @transform_5, window_bounds = array<i64: 1, 64>}, {pipeline_mode = #tpu.pipeline_mode<synchronous>, transform_indices = @transform_6, window_bounds = array<i64: 1, 64>}, {pipeline_mode = #tpu.pipeline_mode<synchronous>, transform_indices = @transform_7, window_bounds = array<i64: 9, 64, 64>}, {pipeline_mode = #tpu.pipeline_mode<synchronous>, transform_indices = @transform_8, window_bounds = array<i64: 1, 64>}, {pipeline_mode = #tpu.pipeline_mode<synchronous>, transform_indices = @transform_9, window_bounds = array<i64: 1, 64>}, {pipeline_mode = #tpu.pipeline_mode<synchronous>, transform_indices = @transform_10, window_bounds = array<i64: 1, 64>}, {pipeline_mode = #tpu.pipeline_mode<synchronous>, transform_indices = @transform_11, window_bounds = array<i64: 9, 64, 4>}, {pipeline_mode = #tpu.pipeline_mode<synchronous>, transform_indices = @transform_12, window_bounds = array<i64: 1, 4>}, {transform_indices = @transform_13, window_bounds = array<i64: 328, 1>}]} {
    %c0 = arith.constant 0 : index
    %c0_0 = arith.constant 0 : index
    %0 = vector.load %arg2[%c0, %c0_0] : memref<328x1xf32, #tpu.memory_space<vmem>>, vector<328x1xf32>
    %cst = arith.constant 5.000000e-01 : f32
    %1 = vector.broadcast %cst : f32 to vector<328x1xf32>
    %2 = arith.cmpf ogt, %0, %1 : vector<328x1xf32>
    %3 = vector.shape_cast %2 : vector<328x1xi1> to vector<328x1xi1>
    %4 = vector.broadcast %3 : vector<328x1xi1> to vector<328x64xi1>
    %c0_1 = arith.constant 0 : index
    %c0_2 = arith.constant 0 : index
    %5 = vector.load %arg3[%c0_1, %c0_2] : memref<64x64xf32, #tpu.memory_space<vmem>>, vector<64x64xf32>
    %c0_3 = arith.constant 0 : index
    %c0_4 = arith.constant 0 : index
    %6 = vector.load %arg1[%c0_3, %c0_4] : memref<328x36xf32, #tpu.memory_space<vmem>>, vector<328x36xf32>
    %c0_5 = arith.constant 0 : index
    %c0_6 = arith.constant 0 : index
    %7 = vector.load %arg4[%c0_5, %c0_6] : memref<36x64xf32, #tpu.memory_space<vmem>>, vector<36x64xf32>
    %cst_7 = arith.constant dense<0.000000e+00> : vector<328x64xf32>
    %8 = tpu.matmul %6, %7, %cst_7 {dimension_numbers = #tpu.dot_dimension_numbers<[1], [0], [0], [1], [0, 0, 1, 1], [], []>} : vector<328x36xf32>, vector<36x64xf32>, vector<328x64xf32> -> vector<328x64xf32>
    %c0_8 = arith.constant 0 : index
    %c0_9 = arith.constant 0 : index
    %9 = vector.load %arg5[%c0_8, %c0_9] : memref<1x64xf32, #tpu.memory_space<vmem>>, vector<1x64xf32>
    %10 = vector.broadcast %9 : vector<1x64xf32> to vector<328x64xf32>
    %11 = arith.addf %8, %10 : vector<328x64xf32>
    %c0_10 = arith.constant 0 : index
    %c0_11 = arith.constant 0 : index
    %12 = vector.load %arg6[%c0_10, %c0_11] : memref<1x64xf32, #tpu.memory_space<vmem>>, vector<1x64xf32>
    %c0_12 = arith.constant 0 : index
    %c0_13 = arith.constant 0 : index
    %13 = vector.load %arg7[%c0_12, %c0_13] : memref<1x64xf32, #tpu.memory_space<vmem>>, vector<1x64xf32>
    %cst_14 = arith.constant 0.000000e+00 : f32
    %14 = vector.broadcast %cst_14 : f32 to vector<328x64xf32>
    %15 = arith.select %4, %11, %14 : vector<328x64xi1>, vector<328x64xf32>
    %16 = vector.shape_cast %15 : vector<328x64xf32> to vector<1x328x64xf32>
    %cst_15 = arith.constant dense<0.000000e+00> : vector<1x64xf32>
    %17 = vector.multi_reduction <add>, %16, %cst_15 [1] : vector<1x328x64xf32> to vector<1x64xf32>
    %18 = arith.mulf %16, %16 : vector<1x328x64xf32>
    %cst_16 = arith.constant dense<0.000000e+00> : vector<1x64xf32>
    %19 = vector.multi_reduction <add>, %18, %cst_16 [1] : vector<1x328x64xf32> to vector<1x64xf32>
    %cst_17 = arith.constant dense<0.000000e+00> : vector<1x64xf32>
    %20 = tpu.matmul %17, %5, %cst_17 {dimension_numbers = #tpu.dot_dimension_numbers<[1], [0], [0], [1], [0, 0, 1, 1], [], []>} : vector<1x64xf32>, vector<64x64xf32>, vector<1x64xf32> -> vector<1x64xf32>
    %cst_18 = arith.constant 2.44140625E-4 : f32
    %21 = vector.broadcast %cst_18 : f32 to vector<1x64xf32>
    %22 = arith.mulf %20, %21 : vector<1x64xf32>
    %cst_19 = arith.constant dense<0.000000e+00> : vector<1x64xf32>
    %23 = tpu.matmul %19, %5, %cst_19 {dimension_numbers = #tpu.dot_dimension_numbers<[1], [0], [0], [1], [0, 0, 1, 1], [], []>} : vector<1x64xf32>, vector<64x64xf32>, vector<1x64xf32> -> vector<1x64xf32>
    %cst_20 = arith.constant 2.44140625E-4 : f32
    %24 = vector.broadcast %cst_20 : f32 to vector<1x64xf32>
    %25 = arith.mulf %23, %24 : vector<1x64xf32>
    %26 = arith.mulf %22, %22 : vector<1x64xf32>
    %27 = arith.subf %25, %26 : vector<1x64xf32>
    %cst_21 = arith.constant 9.99999974E-6 : f32
    %28 = vector.broadcast %cst_21 : f32 to vector<1x64xf32>
    %29 = arith.addf %27, %28 : vector<1x64xf32>
    %30 = math.rsqrt %29 : vector<1x64xf32>
    %31 = vector.shape_cast %22 : vector<1x64xf32> to vector<1x1x64xf32>
    %32 = vector.broadcast %31 : vector<1x1x64xf32> to vector<1x328x64xf32>
    %33 = arith.subf %16, %32 : vector<1x328x64xf32>
    %34 = vector.shape_cast %30 : vector<1x64xf32> to vector<1x1x64xf32>
    %35 = vector.broadcast %34 : vector<1x1x64xf32> to vector<1x328x64xf32>
    %36 = arith.mulf %33, %35 : vector<1x328x64xf32>
    %37 = vector.shape_cast %36 : vector<1x328x64xf32> to vector<328x64xf32>
    %38 = vector.broadcast %12 : vector<1x64xf32> to vector<328x64xf32>
    %39 = arith.mulf %37, %38 : vector<328x64xf32>
    %40 = vector.broadcast %13 : vector<1x64xf32> to vector<328x64xf32>
    %41 = arith.addf %39, %40 : vector<328x64xf32>
    %cst_22 = arith.constant 0.000000e+00 : f32
    %42 = vector.broadcast %cst_22 : f32 to vector<328x64xf32>
    %43 = arith.maximumf %41, %42 : vector<328x64xf32>
    %cst_23 = arith.constant 0.000000e+00 : f32
    %44 = vector.broadcast %cst_23 : f32 to vector<328x64xf32>
    %45 = arith.select %4, %43, %44 : vector<328x64xi1>, vector<328x64xf32>
    %c24 = arith.constant 24 : index
    %c0_24 = arith.constant 0 : index
    %46 = vector.load %arg15[%c24, %c0_24] : memref<376x64xf32, #tpu.memory_space<vmem>>, vector<328x64xf32>
    tpu.vector_store %arg15[%c24, %c0_24], %45 {strides = array<i32>} : memref<376x64xf32, #tpu.memory_space<vmem>>, vector<328x64xf32>,
    %c0_25 = arith.constant 0 : index
    %c0_26 = arith.constant 0 : index
    %47 = vector.load %arg9[%c0_25, %c0_26] : memref<1x64xf32, #tpu.memory_space<vmem>>, vector<1x64xf32>
    %cst_27 = arith.constant 0.000000e+00 : f32
    %48 = vector.broadcast %cst_27 : f32 to vector<328x64xf32>
    %c5 = arith.constant 5 : index
    %c0_28 = arith.constant 0 : index
    %49 = vector.load %arg15[%c5, %c0_28] : memref<376x64xf32, #tpu.memory_space<vmem>>, vector<328x64xf32>
    %50 = arith.truncf %49 : vector<328x64xf32> to vector<328x64xbf16>
    %c0_29 = arith.constant 0 : index
    %c0_30 = arith.constant 0 : index
    %c0_31 = arith.constant 0 : index
    %51 = vector.load %arg8[%c0_29, %c0_30, %c0_31] : memref<9x64x64xbf16, #tpu.memory_space<vmem>>, vector<1x64x64xbf16>
    %52 = vector.shape_cast %51 : vector<1x64x64xbf16> to vector<64x64xbf16>
    %cst_32 = arith.constant dense<0.000000e+00> : vector<328x64xf32>
    %53 = tpu.matmul %50, %52, %cst_32 {dimension_numbers = #tpu.dot_dimension_numbers<[1], [0], [0], [1], [0, 0, 1, 1], [], []>} : vector<328x64xbf16>, vector<64x64xbf16>, vector<328x64xf32> -> vector<328x64xf32>
    %54 = arith.addf %48, %53 : vector<328x64xf32>
    %c6 = arith.constant 6 : index
    %c0_33 = arith.constant 0 : index
    %55 = vector.load %arg15[%c6, %c0_33] : memref<376x64xf32, #tpu.memory_space<vmem>>, vector<328x64xf32>
    %56 = arith.truncf %55 : vector<328x64xf32> to vector<328x64xbf16>
    %c1 = arith.constant 1 : index
    %c0_34 = arith.constant 0 : index
    %c0_35 = arith.constant 0 : index
    %57 = vector.load %arg8[%c1, %c0_34, %c0_35] : memref<9x64x64xbf16, #tpu.memory_space<vmem>>, vector<1x64x64xbf16>
    %58 = vector.shape_cast %57 : vector<1x64x64xbf16> to vector<64x64xbf16>
    %cst_36 = arith.constant dense<0.000000e+00> : vector<328x64xf32>
    %59 = tpu.matmul %56, %58, %cst_36 {dimension_numbers = #tpu.dot_dimension_numbers<[1], [0], [0], [1], [0, 0, 1, 1], [], []>} : vector<328x64xbf16>, vector<64x64xbf16>, vector<328x64xf32> -> vector<328x64xf32>
    %60 = arith.addf %54, %59 : vector<328x64xf32>
    %c7 = arith.constant 7 : index
    %c0_37 = arith.constant 0 : index
    %61 = vector.load %arg15[%c7, %c0_37] : memref<376x64xf32, #tpu.memory_space<vmem>>, vector<328x64xf32>
    %62 = arith.truncf %61 : vector<328x64xf32> to vector<328x64xbf16>
    %c2 = arith.constant 2 : index
    %c0_38 = arith.constant 0 : index
    %c0_39 = arith.constant 0 : index
    %63 = vector.load %arg8[%c2, %c0_38, %c0_39] : memref<9x64x64xbf16, #tpu.memory_space<vmem>>, vector<1x64x64xbf16>
    %64 = vector.shape_cast %63 : vector<1x64x64xbf16> to vector<64x64xbf16>
    %cst_40 = arith.constant dense<0.000000e+00> : vector<328x64xf32>
    %65 = tpu.matmul %62, %64, %cst_40 {dimension_numbers = #tpu.dot_dimension_numbers<[1], [0], [0], [1], [0, 0, 1, 1], [], []>} : vector<328x64xbf16>, vector<64x64xbf16>, vector<328x64xf32> -> vector<328x64xf32>
    %66 = arith.addf %60, %65 : vector<328x64xf32>
    %c23 = arith.constant 23 : index
    %c0_41 = arith.constant 0 : index
    %67 = vector.load %arg15[%c23, %c0_41] : memref<376x64xf32, #tpu.memory_space<vmem>>, vector<328x64xf32>
    %68 = arith.truncf %67 : vector<328x64xf32> to vector<328x64xbf16>
    %c3 = arith.constant 3 : index
    %c0_42 = arith.constant 0 : index
    %c0_43 = arith.constant 0 : index
    %69 = vector.load %arg8[%c3, %c0_42, %c0_43] : memref<9x64x64xbf16, #tpu.memory_space<vmem>>, vector<1x64x64xbf16>
    %70 = vector.shape_cast %69 : vector<1x64x64xbf16> to vector<64x64xbf16>
    %cst_44 = arith.constant dense<0.000000e+00> : vector<328x64xf32>
    %71 = tpu.matmul %68, %70, %cst_44 {dimension_numbers = #tpu.dot_dimension_numbers<[1], [0], [0], [1], [0, 0, 1, 1], [], []>} : vector<328x64xbf16>, vector<64x64xbf16>, vector<328x64xf32> -> vector<328x64xf32>
    %72 = arith.addf %66, %71 : vector<328x64xf32>
    %c24_45 = arith.constant 24 : index
    %c0_46 = arith.constant 0 : index
    %73 = vector.load %arg15[%c24_45, %c0_46] : memref<376x64xf32, #tpu.memory_space<vmem>>, vector<328x64xf32>
    %74 = arith.truncf %73 : vector<328x64xf32> to vector<328x64xbf16>
    %c4 = arith.constant 4 : index
    %c0_47 = arith.constant 0 : index
    %c0_48 = arith.constant 0 : index
    %75 = vector.load %arg8[%c4, %c0_47, %c0_48] : memref<9x64x64xbf16, #tpu.memory_space<vmem>>, vector<1x64x64xbf16>
    %76 = vector.shape_cast %75 : vector<1x64x64xbf16> to vector<64x64xbf16>
    %cst_49 = arith.constant dense<0.000000e+00> : vector<328x64xf32>
    %77 = tpu.matmul %74, %76, %cst_49 {dimension_numbers = #tpu.dot_dimension_numbers<[1], [0], [0], [1], [0, 0, 1, 1], [], []>} : vector<328x64xbf16>, vector<64x64xbf16>, vector<328x64xf32> -> vector<328x64xf32>
    %78 = arith.addf %72, %77 : vector<328x64xf32>
    %c25 = arith.constant 25 : index
    %c0_50 = arith.constant 0 : index
    %79 = vector.load %arg15[%c25, %c0_50] : memref<376x64xf32, #tpu.memory_space<vmem>>, vector<328x64xf32>
    %80 = arith.truncf %79 : vector<328x64xf32> to vector<328x64xbf16>
    %c5_51 = arith.constant 5 : index
    %c0_52 = arith.constant 0 : index
    %c0_53 = arith.constant 0 : index
    %81 = vector.load %arg8[%c5_51, %c0_52, %c0_53] : memref<9x64x64xbf16, #tpu.memory_space<vmem>>, vector<1x64x64xbf16>
    %82 = vector.shape_cast %81 : vector<1x64x64xbf16> to vector<64x64xbf16>
    %cst_54 = arith.constant dense<0.000000e+00> : vector<328x64xf32>
    %83 = tpu.matmul %80, %82, %cst_54 {dimension_numbers = #tpu.dot_dimension_numbers<[1], [0], [0], [1], [0, 0, 1, 1], [], []>} : vector<328x64xbf16>, vector<64x64xbf16>, vector<328x64xf32> -> vector<328x64xf32>
    %84 = arith.addf %78, %83 : vector<328x64xf32>
    %c41 = arith.constant 41 : index
    %c0_55 = arith.constant 0 : index
    %85 = vector.load %arg15[%c41, %c0_55] : memref<376x64xf32, #tpu.memory_space<vmem>>, vector<328x64xf32>
    %86 = arith.truncf %85 : vector<328x64xf32> to vector<328x64xbf16>
    %c6_56 = arith.constant 6 : index
    %c0_57 = arith.constant 0 : index
    %c0_58 = arith.constant 0 : index
    %87 = vector.load %arg8[%c6_56, %c0_57, %c0_58] : memref<9x64x64xbf16, #tpu.memory_space<vmem>>, vector<1x64x64xbf16>
    %88 = vector.shape_cast %87 : vector<1x64x64xbf16> to vector<64x64xbf16>
    %cst_59 = arith.constant dense<0.000000e+00> : vector<328x64xf32>
    %89 = tpu.matmul %86, %88, %cst_59 {dimension_numbers = #tpu.dot_dimension_numbers<[1], [0], [0], [1], [0, 0, 1, 1], [], []>} : vector<328x64xbf16>, vector<64x64xbf16>, vector<328x64xf32> -> vector<328x64xf32>
    %90 = arith.addf %84, %89 : vector<328x64xf32>
    %c42 = arith.constant 42 : index
    %c0_60 = arith.constant 0 : index
    %91 = vector.load %arg15[%c42, %c0_60] : memref<376x64xf32, #tpu.memory_space<vmem>>, vector<328x64xf32>
    %92 = arith.truncf %91 : vector<328x64xf32> to vector<328x64xbf16>
    %c7_61 = arith.constant 7 : index
    %c0_62 = arith.constant 0 : index
    %c0_63 = arith.constant 0 : index
    %93 = vector.load %arg8[%c7_61, %c0_62, %c0_63] : memref<9x64x64xbf16, #tpu.memory_space<vmem>>, vector<1x64x64xbf16>
    %94 = vector.shape_cast %93 : vector<1x64x64xbf16> to vector<64x64xbf16>
    %cst_64 = arith.constant dense<0.000000e+00> : vector<328x64xf32>
    %95 = tpu.matmul %92, %94, %cst_64 {dimension_numbers = #tpu.dot_dimension_numbers<[1], [0], [0], [1], [0, 0, 1, 1], [], []>} : vector<328x64xbf16>, vector<64x64xbf16>, vector<328x64xf32> -> vector<328x64xf32>
    %96 = arith.addf %90, %95 : vector<328x64xf32>
    %c43 = arith.constant 43 : index
    %c0_65 = arith.constant 0 : index
    %97 = vector.load %arg15[%c43, %c0_65] : memref<376x64xf32, #tpu.memory_space<vmem>>, vector<328x64xf32>
    %98 = arith.truncf %97 : vector<328x64xf32> to vector<328x64xbf16>
    %c8 = arith.constant 8 : index
    %c0_66 = arith.constant 0 : index
    %c0_67 = arith.constant 0 : index
    %99 = vector.load %arg8[%c8, %c0_66, %c0_67] : memref<9x64x64xbf16, #tpu.memory_space<vmem>>, vector<1x64x64xbf16>
    %100 = vector.shape_cast %99 : vector<1x64x64xbf16> to vector<64x64xbf16>
    %cst_68 = arith.constant dense<0.000000e+00> : vector<328x64xf32>
    %101 = tpu.matmul %98, %100, %cst_68 {dimension_numbers = #tpu.dot_dimension_numbers<[1], [0], [0], [1], [0, 0, 1, 1], [], []>} : vector<328x64xbf16>, vector<64x64xbf16>, vector<328x64xf32> -> vector<328x64xf32>
    %102 = arith.addf %96, %101 : vector<328x64xf32>
    %103 = vector.broadcast %47 : vector<1x64xf32> to vector<328x64xf32>
    %104 = arith.addf %102, %103 : vector<328x64xf32>
    %c0_69 = arith.constant 0 : index
    %c0_70 = arith.constant 0 : index
    %105 = vector.load %arg10[%c0_69, %c0_70] : memref<1x64xf32, #tpu.memory_space<vmem>>, vector<1x64xf32>
    %c0_71 = arith.constant 0 : index
    %c0_72 = arith.constant 0 : index
    %106 = vector.load %arg11[%c0_71, %c0_72] : memref<1x64xf32, #tpu.memory_space<vmem>>, vector<1x64xf32>
    %cst_73 = arith.constant 0.000000e+00 : f32
    %107 = vector.broadcast %cst_73 : f32 to vector<328x64xf32>
    %108 = arith.select %4, %104, %107 : vector<328x64xi1>, vector<328x64xf32>
    %109 = vector.shape_cast %108 : vector<328x64xf32> to vector<1x328x64xf32>
    %cst_74 = arith.constant dense<0.000000e+00> : vector<1x64xf32>
    %110 = vector.multi_reduction <add>, %109, %cst_74 [1] : vector<1x328x64xf32> to vector<1x64xf32>
    %111 = arith.mulf %109, %109 : vector<1x328x64xf32>
    %cst_75 = arith.constant dense<0.000000e+00> : vector<1x64xf32>
    %112 = vector.multi_reduction <add>, %111, %cst_75 [1] : vector<1x328x64xf32> to vector<1x64xf32>
    %cst_76 = arith.constant dense<0.000000e+00> : vector<1x64xf32>
    %113 = tpu.matmul %110, %5, %cst_76 {dimension_numbers = #tpu.dot_dimension_numbers<[1], [0], [0], [1], [0, 0, 1, 1], [], []>} : vector<1x64xf32>, vector<64x64xf32>, vector<1x64xf32> -> vector<1x64xf32>
    %cst_77 = arith.constant 2.44140625E-4 : f32
    %114 = vector.broadcast %cst_77 : f32 to vector<1x64xf32>
    %115 = arith.mulf %113, %114 : vector<1x64xf32>
    %cst_78 = arith.constant dense<0.000000e+00> : vector<1x64xf32>
    %116 = tpu.matmul %112, %5, %cst_78 {dimension_numbers = #tpu.dot_dimension_numbers<[1], [0], [0], [1], [0, 0, 1, 1], [], []>} : vector<1x64xf32>, vector<64x64xf32>, vector<1x64xf32> -> vector<1x64xf32>
    %cst_79 = arith.constant 2.44140625E-4 : f32
    %117 = vector.broadcast %cst_79 : f32 to vector<1x64xf32>
    %118 = arith.mulf %116, %117 : vector<1x64xf32>
    %119 = arith.mulf %115, %115 : vector<1x64xf32>
    %120 = arith.subf %118, %119 : vector<1x64xf32>
    %cst_80 = arith.constant 9.99999974E-6 : f32
    %121 = vector.broadcast %cst_80 : f32 to vector<1x64xf32>
    %122 = arith.addf %120, %121 : vector<1x64xf32>
    %123 = math.rsqrt %122 : vector<1x64xf32>
    %124 = vector.shape_cast %115 : vector<1x64xf32> to vector<1x1x64xf32>
    %125 = vector.broadcast %124 : vector<1x1x64xf32> to vector<1x328x64xf32>
    %126 = arith.subf %109, %125 : vector<1x328x64xf32>
    %127 = vector.shape_cast %123 : vector<1x64xf32> to vector<1x1x64xf32>
    %128 = vector.broadcast %127 : vector<1x1x64xf32> to vector<1x328x64xf32>
    %129 = arith.mulf %126, %128 : vector<1x328x64xf32>
    %130 = vector.shape_cast %129 : vector<1x328x64xf32> to vector<328x64xf32>
    %131 = vector.broadcast %105 : vector<1x64xf32> to vector<328x64xf32>
    %132 = arith.mulf %130, %131 : vector<328x64xf32>
    %133 = vector.broadcast %106 : vector<1x64xf32> to vector<328x64xf32>
    %134 = arith.addf %132, %133 : vector<328x64xf32>
    %cst_81 = arith.constant 0.000000e+00 : f32
    %135 = vector.broadcast %cst_81 : f32 to vector<328x64xf32>
    %136 = arith.maximumf %134, %135 : vector<328x64xf32>
    %cst_82 = arith.constant 0.000000e+00 : f32
    %137 = vector.broadcast %cst_82 : f32 to vector<328x64xf32>
    %138 = arith.select %4, %136, %137 : vector<328x64xi1>, vector<328x64xf32>
    %c24_83 = arith.constant 24 : index
    %c0_84 = arith.constant 0 : index
    %139 = vector.load %arg16[%c24_83, %c0_84] : memref<376x64xf32, #tpu.memory_space<vmem>>, vector<328x64xf32>
    tpu.vector_store %arg16[%c24_83, %c0_84], %138 {strides = array<i32>} : memref<376x64xf32, #tpu.memory_space<vmem>>, vector<328x64xf32>,
    %c0_85 = arith.constant 0 : index
    %c0_86 = arith.constant 0 : index
    %140 = vector.load %arg13[%c0_85, %c0_86] : memref<1x4xf32, #tpu.memory_space<vmem>>, vector<1x4xf32>
    %cst_87 = arith.constant 0.000000e+00 : f32
    %141 = vector.broadcast %cst_87 : f32 to vector<328x4xf32>
    %c5_88 = arith.constant 5 : index
    %c0_89 = arith.constant 0 : index
    %142 = vector.load %arg16[%c5_88, %c0_89] : memref<376x64xf32, #tpu.memory_space<vmem>>, vector<328x64xf32>
    %143 = arith.truncf %142 : vector<328x64xf32> to vector<328x64xbf16>
    %c0_90 = arith.constant 0 : index
    %c0_91 = arith.constant 0 : index
    %c0_92 = arith.constant 0 : index
    %144 = vector.load %arg12[%c0_90, %c0_91, %c0_92] : memref<9x64x4xbf16, #tpu.memory_space<vmem>>, vector<1x64x4xbf16>
    %145 = vector.shape_cast %144 : vector<1x64x4xbf16> to vector<64x4xbf16>
    %cst_93 = arith.constant dense<0.000000e+00> : vector<328x4xf32>
    %146 = tpu.matmul %143, %145, %cst_93 {dimension_numbers = #tpu.dot_dimension_numbers<[1], [0], [0], [1], [0, 0, 1, 1], [], []>} : vector<328x64xbf16>, vector<64x4xbf16>, vector<328x4xf32> -> vector<328x4xf32>
    %147 = arith.addf %141, %146 : vector<328x4xf32>
    %c6_94 = arith.constant 6 : index
    %c0_95 = arith.constant 0 : index
    %148 = vector.load %arg16[%c6_94, %c0_95] : memref<376x64xf32, #tpu.memory_space<vmem>>, vector<328x64xf32>
    %149 = arith.truncf %148 : vector<328x64xf32> to vector<328x64xbf16>
    %c1_96 = arith.constant 1 : index
    %c0_97 = arith.constant 0 : index
    %c0_98 = arith.constant 0 : index
    %150 = vector.load %arg12[%c1_96, %c0_97, %c0_98] : memref<9x64x4xbf16, #tpu.memory_space<vmem>>, vector<1x64x4xbf16>
    %151 = vector.shape_cast %150 : vector<1x64x4xbf16> to vector<64x4xbf16>
    %cst_99 = arith.constant dense<0.000000e+00> : vector<328x4xf32>
    %152 = tpu.matmul %149, %151, %cst_99 {dimension_numbers = #tpu.dot_dimension_numbers<[1], [0], [0], [1], [0, 0, 1, 1], [], []>} : vector<328x64xbf16>, vector<64x4xbf16>, vector<328x4xf32> -> vector<328x4xf32>
    %153 = arith.addf %147, %152 : vector<328x4xf32>
    %c7_100 = arith.constant 7 : index
    %c0_101 = arith.constant 0 : index
    %154 = vector.load %arg16[%c7_100, %c0_101] : memref<376x64xf32, #tpu.memory_space<vmem>>, vector<328x64xf32>
    %155 = arith.truncf %154 : vector<328x64xf32> to vector<328x64xbf16>
    %c2_102 = arith.constant 2 : index
    %c0_103 = arith.constant 0 : index
    %c0_104 = arith.constant 0 : index
    %156 = vector.load %arg12[%c2_102, %c0_103, %c0_104] : memref<9x64x4xbf16, #tpu.memory_space<vmem>>, vector<1x64x4xbf16>
    %157 = vector.shape_cast %156 : vector<1x64x4xbf16> to vector<64x4xbf16>
    %cst_105 = arith.constant dense<0.000000e+00> : vector<328x4xf32>
    %158 = tpu.matmul %155, %157, %cst_105 {dimension_numbers = #tpu.dot_dimension_numbers<[1], [0], [0], [1], [0, 0, 1, 1], [], []>} : vector<328x64xbf16>, vector<64x4xbf16>, vector<328x4xf32> -> vector<328x4xf32>
    %159 = arith.addf %153, %158 : vector<328x4xf32>
    %c23_106 = arith.constant 23 : index
    %c0_107 = arith.constant 0 : index
    %160 = vector.load %arg16[%c23_106, %c0_107] : memref<376x64xf32, #tpu.memory_space<vmem>>, vector<328x64xf32>
    %161 = arith.truncf %160 : vector<328x64xf32> to vector<328x64xbf16>
    %c3_108 = arith.constant 3 : index
    %c0_109 = arith.constant 0 : index
    %c0_110 = arith.constant 0 : index
    %162 = vector.load %arg12[%c3_108, %c0_109, %c0_110] : memref<9x64x4xbf16, #tpu.memory_space<vmem>>, vector<1x64x4xbf16>
    %163 = vector.shape_cast %162 : vector<1x64x4xbf16> to vector<64x4xbf16>
    %cst_111 = arith.constant dense<0.000000e+00> : vector<328x4xf32>
    %164 = tpu.matmul %161, %163, %cst_111 {dimension_numbers = #tpu.dot_dimension_numbers<[1], [0], [0], [1], [0, 0, 1, 1], [], []>} : vector<328x64xbf16>, vector<64x4xbf16>, vector<328x4xf32> -> vector<328x4xf32>
    %165 = arith.addf %159, %164 : vector<328x4xf32>
    %c24_112 = arith.constant 24 : index
    %c0_113 = arith.constant 0 : index
    %166 = vector.load %arg16[%c24_112, %c0_113] : memref<376x64xf32, #tpu.memory_space<vmem>>, vector<328x64xf32>
    %167 = arith.truncf %166 : vector<328x64xf32> to vector<328x64xbf16>
    %c4_114 = arith.constant 4 : index
    %c0_115 = arith.constant 0 : index
    %c0_116 = arith.constant 0 : index
    %168 = vector.load %arg12[%c4_114, %c0_115, %c0_116] : memref<9x64x4xbf16, #tpu.memory_space<vmem>>, vector<1x64x4xbf16>
    %169 = vector.shape_cast %168 : vector<1x64x4xbf16> to vector<64x4xbf16>
    %cst_117 = arith.constant dense<0.000000e+00> : vector<328x4xf32>
    %170 = tpu.matmul %167, %169, %cst_117 {dimension_numbers = #tpu.dot_dimension_numbers<[1], [0], [0], [1], [0, 0, 1, 1], [], []>} : vector<328x64xbf16>, vector<64x4xbf16>, vector<328x4xf32> -> vector<328x4xf32>
    %171 = arith.addf %165, %170 : vector<328x4xf32>
    %c25_118 = arith.constant 25 : index
    %c0_119 = arith.constant 0 : index
    %172 = vector.load %arg16[%c25_118, %c0_119] : memref<376x64xf32, #tpu.memory_space<vmem>>, vector<328x64xf32>
    %173 = arith.truncf %172 : vector<328x64xf32> to vector<328x64xbf16>
    %c5_120 = arith.constant 5 : index
    %c0_121 = arith.constant 0 : index
    %c0_122 = arith.constant 0 : index
    %174 = vector.load %arg12[%c5_120, %c0_121, %c0_122] : memref<9x64x4xbf16, #tpu.memory_space<vmem>>, vector<1x64x4xbf16>
    %175 = vector.shape_cast %174 : vector<1x64x4xbf16> to vector<64x4xbf16>
    %cst_123 = arith.constant dense<0.000000e+00> : vector<328x4xf32>
    %176 = tpu.matmul %173, %175, %cst_123 {dimension_numbers = #tpu.dot_dimension_numbers<[1], [0], [0], [1], [0, 0, 1, 1], [], []>} : vector<328x64xbf16>, vector<64x4xbf16>, vector<328x4xf32> -> vector<328x4xf32>
    %177 = arith.addf %171, %176 : vector<328x4xf32>
    %c41_124 = arith.constant 41 : index
    %c0_125 = arith.constant 0 : index
    %178 = vector.load %arg16[%c41_124, %c0_125] : memref<376x64xf32, #tpu.memory_space<vmem>>, vector<328x64xf32>
    %179 = arith.truncf %178 : vector<328x64xf32> to vector<328x64xbf16>
    %c6_126 = arith.constant 6 : index
    %c0_127 = arith.constant 0 : index
    %c0_128 = arith.constant 0 : index
    %180 = vector.load %arg12[%c6_126, %c0_127, %c0_128] : memref<9x64x4xbf16, #tpu.memory_space<vmem>>, vector<1x64x4xbf16>
    %181 = vector.shape_cast %180 : vector<1x64x4xbf16> to vector<64x4xbf16>
    %cst_129 = arith.constant dense<0.000000e+00> : vector<328x4xf32>
    %182 = tpu.matmul %179, %181, %cst_129 {dimension_numbers = #tpu.dot_dimension_numbers<[1], [0], [0], [1], [0, 0, 1, 1], [], []>} : vector<328x64xbf16>, vector<64x4xbf16>, vector<328x4xf32> -> vector<328x4xf32>
    %183 = arith.addf %177, %182 : vector<328x4xf32>
    %c42_130 = arith.constant 42 : index
    %c0_131 = arith.constant 0 : index
    %184 = vector.load %arg16[%c42_130, %c0_131] : memref<376x64xf32, #tpu.memory_space<vmem>>, vector<328x64xf32>
    %185 = arith.truncf %184 : vector<328x64xf32> to vector<328x64xbf16>
    %c7_132 = arith.constant 7 : index
    %c0_133 = arith.constant 0 : index
    %c0_134 = arith.constant 0 : index
    %186 = vector.load %arg12[%c7_132, %c0_133, %c0_134] : memref<9x64x4xbf16, #tpu.memory_space<vmem>>, vector<1x64x4xbf16>
    %187 = vector.shape_cast %186 : vector<1x64x4xbf16> to vector<64x4xbf16>
    %cst_135 = arith.constant dense<0.000000e+00> : vector<328x4xf32>
    %188 = tpu.matmul %185, %187, %cst_135 {dimension_numbers = #tpu.dot_dimension_numbers<[1], [0], [0], [1], [0, 0, 1, 1], [], []>} : vector<328x64xbf16>, vector<64x4xbf16>, vector<328x4xf32> -> vector<328x4xf32>
    %189 = arith.addf %183, %188 : vector<328x4xf32>
    %c43_136 = arith.constant 43 : index
    %c0_137 = arith.constant 0 : index
    %190 = vector.load %arg16[%c43_136, %c0_137] : memref<376x64xf32, #tpu.memory_space<vmem>>, vector<328x64xf32>
    %191 = arith.truncf %190 : vector<328x64xf32> to vector<328x64xbf16>
    %c8_138 = arith.constant 8 : index
    %c0_139 = arith.constant 0 : index
    %c0_140 = arith.constant 0 : index
    %192 = vector.load %arg12[%c8_138, %c0_139, %c0_140] : memref<9x64x4xbf16, #tpu.memory_space<vmem>>, vector<1x64x4xbf16>
    %193 = vector.shape_cast %192 : vector<1x64x4xbf16> to vector<64x4xbf16>
    %cst_141 = arith.constant dense<0.000000e+00> : vector<328x4xf32>
    %194 = tpu.matmul %191, %193, %cst_141 {dimension_numbers = #tpu.dot_dimension_numbers<[1], [0], [0], [1], [0, 0, 1, 1], [], []>} : vector<328x64xbf16>, vector<64x4xbf16>, vector<328x4xf32> -> vector<328x4xf32>
    %195 = arith.addf %189, %194 : vector<328x4xf32>
    %196 = vector.broadcast %140 : vector<1x4xf32> to vector<328x4xf32>
    %197 = arith.addf %195, %196 : vector<328x4xf32>
    %cst_142 = arith.constant dense<0xFF800000> : vector<328xf32>
    %198 = vector.multi_reduction <maximumf>, %197, %cst_142 [1] : vector<328x4xf32> to vector<328xf32>
    %199 = vector.shape_cast %198 : vector<328xf32> to vector<328x1xf32>
    %200 = vector.broadcast %199 : vector<328x1xf32> to vector<328x4xf32>
    %201 = arith.subf %197, %200 : vector<328x4xf32>
    %202 = math.exp %201 : vector<328x4xf32>
    %cst_143 = arith.constant dense<0.000000e+00> : vector<328xf32>
    %203 = vector.multi_reduction <add>, %202, %cst_143 [1] : vector<328x4xf32> to vector<328xf32>
    %204 = vector.shape_cast %203 : vector<328xf32> to vector<328x1xf32>
    %205 = tpu.reciprocal %204 {approx = true} : vector<328x1xf32> -> vector<328x1xf32>
    %206 = vector.broadcast %205 : vector<328x1xf32> to vector<328x4xf32>
    %207 = arith.mulf %202, %206 : vector<328x4xf32>
    %208 = vector.extract_strided_slice %6 {offsets = [0, 16], sizes = [328, 4], strides = [1, 1]} : vector<328x36xf32> to vector<328x4xf32>
    %209 = arith.mulf %208, %207 : vector<328x4xf32>
    %cst_144 = arith.constant dense<0.000000e+00> : vector<328xf32>
    %210 = vector.multi_reduction <add>, %209, %cst_144 [1] : vector<328x4xf32> to vector<328xf32>
    %211 = vector.shape_cast %210 : vector<328xf32> to vector<328x1xf32>
    %cst_145 = arith.constant 0.000000e+00 : f32
    %212 = vector.broadcast %cst_145 : f32 to vector<328x1xf32>
    %213 = arith.select %2, %211, %212 : vector<328x1xi1>, vector<328x1xf32>
    %c0_146 = arith.constant 0 : index
    %c0_147 = arith.constant 0 : index
    %214 = vector.load %arg14[%c0_146, %c0_147] : memref<328x1xf32, #tpu.memory_space<vmem>>, vector<328x1xf32>
    tpu.vector_store %arg14[%c0_146, %c0_147], %213 {strides = array<i32>} : memref<328x1xf32, #tpu.memory_space<vmem>>, vector<328x1xf32>,
    return
  }
  func.func @transform_0(%arg0: i32) -> (i32, i32) {
    %c0_i32 = arith.constant 0 : i32
    %c0_i32_0 = arith.constant 0 : i32
    return %arg0, %c0_i32 : i32, i32
  }
  func.func @transform_1(%arg0: i32) -> (i32, i32) {
    %c0_i32 = arith.constant 0 : i32
    %c0_i32_0 = arith.constant 0 : i32
    %c0_i32_1 = arith.constant 0 : i32
    return %c0_i32, %c0_i32_0 : i32, i32
  }
  func.func @transform_2(%arg0: i32) -> (i32, i32) {
    %c0_i32 = arith.constant 0 : i32
    %c0_i32_0 = arith.constant 0 : i32
    %c0_i32_1 = arith.constant 0 : i32
    return %c0_i32, %c0_i32_0 : i32, i32
  }
  func.func @transform_3(%arg0: i32) -> (i32, i32) {
    %c0_i32 = arith.constant 0 : i32
    %c0_i32_0 = arith.constant 0 : i32
    %c0_i32_1 = arith.constant 0 : i32
    return %c0_i32, %c0_i32_0 : i32, i32
  }
  func.func @transform_4(%arg0: i32) -> (i32, i32) {
    %c0_i32 = arith.constant 0 : i32
    %c0_i32_0 = arith.constant 0 : i32
    %c0_i32_1 = arith.constant 0 : i32
    return %c0_i32, %c0_i32_0 : i32, i32
  }
  func.func @transform_5(%arg0: i32) -> (i32, i32) {
    %c0_i32 = arith.constant 0 : i32
    %c0_i32_0 = arith.constant 0 : i32
    %c0_i32_1 = arith.constant 0 : i32
    return %c0_i32, %c0_i32_0 : i32, i32
  }
  func.func @transform_6(%arg0: i32) -> (i32, i32) {
    %c0_i32 = arith.constant 0 : i32
    %c0_i32_0 = arith.constant 0 : i32
    %c0_i32_1 = arith.constant 0 : i32
    return %c0_i32, %c0_i32_0 : i32, i32
  }
  func.func @transform_7(%arg0: i32) -> (i32, i32, i32) {
    %c0_i32 = arith.constant 0 : i32
    %c0_i32_0 = arith.constant 0 : i32
    %c0_i32_1 = arith.constant 0 : i32
    %c0_i32_2 = arith.constant 0 : i32
    return %c0_i32, %c0_i32_0, %c0_i32_1 : i32, i32, i32
  }
  func.func @transform_8(%arg0: i32) -> (i32, i32) {
    %c0_i32 = arith.constant 0 : i32
    %c0_i32_0 = arith.constant 0 : i32
    %c0_i32_1 = arith.constant 0 : i32
    return %c0_i32, %c0_i32_0 : i32, i32
  }
  func.func @transform_9(%arg0: i32) -> (i32, i32) {
    %c0_i32 = arith.constant 0 : i32
    %c0_i32_0 = arith.constant 0 : i32
    %c0_i32_1 = arith.constant 0 : i32
    return %c0_i32, %c0_i32_0 : i32, i32
  }
  func.func @transform_10(%arg0: i32) -> (i32, i32) {
    %c0_i32 = arith.constant 0 : i32
    %c0_i32_0 = arith.constant 0 : i32
    %c0_i32_1 = arith.constant 0 : i32
    return %c0_i32, %c0_i32_0 : i32, i32
  }
  func.func @transform_11(%arg0: i32) -> (i32, i32, i32) {
    %c0_i32 = arith.constant 0 : i32
    %c0_i32_0 = arith.constant 0 : i32
    %c0_i32_1 = arith.constant 0 : i32
    %c0_i32_2 = arith.constant 0 : i32
    return %c0_i32, %c0_i32_0, %c0_i32_1 : i32, i32, i32
  }
  func.func @transform_12(%arg0: i32) -> (i32, i32) {
    %c0_i32 = arith.constant 0 : i32
    %c0_i32_0 = arith.constant 0 : i32
    %c0_i32_1 = arith.constant 0 : i32
    return %c0_i32, %c0_i32_0 : i32, i32
  }
  func.func @transform_13(%arg0: i32) -> (i32, i32) {
    %c0_i32 = arith.constant 0 : i32
    %c0_i32_0 = arith.constant 0 : i32
    return %arg0, %c0_i32 : i32, i32
  }
}

</mosaic_0001>

<llo_original>
// kernel: tpu_custom_call.1
$region0: #{tpu_custom_call.1}
  #allocation0 [shape = 'u32[]', space=smem, size = 0x4, offset = 0x4, fixed_abs, tag = 'smem constant byte address 0x4 - core index']
  #allocation1 [shape = 'u32[144,128]{1,0:T(1,128)}', space=vmem, size = 0x12000, scoped, tag = 'internal scratch']
  #allocation2 [shape = 'f32[376,64]{1,0:T(8,128)}', space=vmem, size = 0x2f000, scoped, tag = 'scratch operand']
  #allocation3 [shape = 'f32[376,64]{1,0:T(8,128)}', space=vmem, size = 0x2f000, scoped, tag = 'scratch operand']
  %s0 = inlined_call_operand.vmem [shape: f32[656,36], index: 0, kind: input, shape index: {}]
  %s1 = inlined_call_operand.vmem [shape: f32[328,1], index: 1, kind: input, shape index: {}]
  %s2 = inlined_call_operand.vmem [shape: f32[64,64], index: 2, kind: input, shape index: {}]
  %s3 = inlined_call_operand.vmem [shape: f32[36,64], index: 3, kind: input, shape index: {}]
  %s4 = inlined_call_operand.vmem [shape: f32[1,64], index: 4, kind: input, shape index: {}]
  %s5 = inlined_call_operand.vmem [shape: f32[1,64], index: 5, kind: input, shape index: {}]
  %s6 = inlined_call_operand.vmem [shape: f32[1,64], index: 6, kind: input, shape index: {}]
  %s7 = inlined_call_operand.vmem [shape: bf16[9,64,64], index: 7, kind: input, shape index: {}]
  %s8 = inlined_call_operand.vmem [shape: f32[1,64], index: 8, kind: input, shape index: {}]
  %s9 = inlined_call_operand.vmem [shape: f32[1,64], index: 9, kind: input, shape index: {}]
  %s10 = inlined_call_operand.vmem [shape: f32[1,64], index: 10, kind: input, shape index: {}]
  %s11 = inlined_call_operand.vmem [shape: bf16[9,64,4], index: 11, kind: input, shape index: {}]
  %s12 = inlined_call_operand.vmem [shape: f32[1,4], index: 12, kind: input, shape index: {}]
  %s13 = inlined_call_operand.vmem [shape: f32[656,1], index: 13, kind: output, shape index: {}]
  %s14 = sld [smem:[#allocation0]]
  $region85: #{tpu_custom_call.1} parent=0
    _
  %s16 = ssub.s32 1, %s14
  %s17 = scalar_select 0, %s16, %s14
  loop: start=0, step=1, limit=4
  $region2: #{tpu_custom_call.1} parent=0 // loop_pre_header
    _
  $region3: #{tpu_custom_call.1} parent=0 // loop_header
    %s19 = sphi 0, %s23
    %p20 = scmp.ge.s32.totalorder %s19, 4
    %s29 = sphi 0, %s31
    %s32 = sphi 0, %s29
    %s33 = sphi 0, %s32
    %s49 = sphi 0, %s33
    %s53 = sphi 0, %s53
    %s55 = sphi 0, %s53
    %s56 = sphi 0, %s55
    %s70 = sphi 0, %s56
    %s74 = sphi 0, %s74
    %s76 = sphi 0, %s74
    %s77 = sphi 0, %s76
    %s91 = sphi 0, %s77
    %s95 = sphi 0, %s95
    %s97 = sphi 0, %s95
    %s98 = sphi 0, %s97
    %s112 = sphi 0, %s98
    %s116 = sphi 0, %s116
    %s118 = sphi 0, %s116
    %s119 = sphi 0, %s118
    %s133 = sphi 0, %s119
    %s137 = sphi 0, %s137
    %s139 = sphi 0, %s137
    %s140 = sphi 0, %s139
    %s154 = sphi 0, %s140
    %s158 = sphi 0, %s158
    %s160 = sphi 0, %s158
    %s161 = sphi 0, %s160
    %s175 = sphi 0, %s161
    %s179 = sphi 0, %s179
    %s181 = sphi 0, %s179
    %s182 = sphi 0, %s181
    %s196 = sphi 0, %s182
    %s200 = sphi 0, %s200
    %s202 = sphi 0, %s200
    %s203 = sphi 0, %s202
    %s217 = sphi 0, %s203
    %s221 = sphi 0, %s221
    %s223 = sphi 0, %s221
    %s224 = sphi 0, %s223
    %s238 = sphi 0, %s224
    %s242 = sphi 0, %s242
    %s244 = sphi 0, %s242
    %s245 = sphi 0, %s244
    %s259 = sphi 0, %s245
    %s263 = sphi 0, %s263
    %s265 = sphi 0, %s263
    %s266 = sphi 0, %s265
    %s280 = sphi 0, %s266
    %s284 = sphi 0, %s284
    %s286 = sphi 0, %s284
    %s287 = sphi 0, %s286
    %s301 = sphi 0, %s287
    %s307 = sphi 0, %s309
    %s310 = sphi 0, %s307
    %s311 = sphi 0, %s310
    %s327 = sphi 0, %s311
  $region4: #{tpu_custom_call.1} parent=0 // loop_header_branch
    %22 = sbr.rel (%p20) target = $region8
  $region5: #{tpu_custom_call.1} parent=0 // loop_body
    %s24 = ssub.s32 %s19, 1
    %s25 = ssub.s32 %s19, 2
    %s26 = sadd.s32 %s19, 1
    %s27 = ssub.s32 %s19, %s26
    %p28 = scmp.eq.s32.totalorder %s27, 0
    %s30 = sadd.s32 %s29, 1
    %s31 = scalar_select %p28, %s29, %s30
    %p34 = pneg %p28
    %p35 = scmp.eq.s32.totalorder %s19, 1
    %p36 = por %p34, %p35
    %p37 = scmp.ne.s32.totalorder %s29, %s32
    %p38 = scmp.eq.s32.totalorder %s19, 0
    %p39 = por %p37, %p38
    %p40 = scmp.ne.s32.totalorder %s29, %s32
    %p41 = scmp.eq.s32.totalorder %s24, 1
    %p42 = por %p40, %p41
    %p43 = scmp.ne.s32.totalorder %s32, %s33
    %p44 = scmp.eq.s32.totalorder %s24, 0
    %p45 = por %p43, %p44
    %p46 = scmp.ne.s32.totalorder %s32, %s33
    %p47 = scmp.eq.s32.totalorder %s25, 1
    %p48 = por %p46, %p47
    %p50 = scmp.ne.s32.totalorder %s33, %s49
    %p51 = scmp.eq.s32.totalorder %s25, 0
    %p52 = por %p50, %p51
    %s54 = sadd.s32 %s53, 1
    %p57 = scmp.eq.s32.totalorder %s19, 1
    %p58 = scmp.ne.s32.totalorder %s53, %s55
    %p59 = scmp.eq.s32.totalorder %s19, 0
    %p60 = por %p58, %p59
    %p61 = scmp.ne.s32.totalorder %s53, %s55
    %p62 = scmp.eq.s32.totalorder %s24, 1
    %p63 = por %p61, %p62
    %p64 = scmp.ne.s32.totalorder %s55, %s56
    %p65 = scmp.eq.s32.totalorder %s24, 0
    %p66 = por %p64, %p65
    %p67 = scmp.ne.s32.totalorder %s55, %s56
    %p68 = scmp.eq.s32.totalorder %s25, 1
    %p69 = por %p67, %p68
    %p71 = scmp.ne.s32.totalorder %s56, %s70
    %p72 = scmp.eq.s32.totalorder %s25, 0
    %p73 = por %p71, %p72
    %s75 = sadd.s32 %s74, 1
    %p78 = scmp.eq.s32.totalorder %s19, 1
    %p79 = scmp.ne.s32.totalorder %s74, %s76
    %p80 = scmp.eq.s32.totalorder %s19, 0
    %p81 = por %p79, %p80
    %p82 = scmp.ne.s32.totalorder %s74, %s76
    %p83 = scmp.eq.s32.totalorder %s24, 1
    %p84 = por %p82, %p83
    %p85 = scmp.ne.s32.totalorder %s76, %s77
    %p86 = scmp.eq.s32.totalorder %s24, 0
    %p87 = por %p85, %p86
    %p88 = scmp.ne.s32.totalorder %s76, %s77
    %p89 = scmp.eq.s32.totalorder %s25, 1
    %p90 = por %p88, %p89
    %p92 = scmp.ne.s32.totalorder %s77, %s91
    %p93 = scmp.eq.s32.totalorder %s25, 0
    %p94 = por %p92, %p93
    %s96 = sadd.s32 %s95, 1
    %p99 = scmp.eq.s32.totalorder %s19, 1
    %p100 = scmp.ne.s32.totalorder %s95, %s97
    %p101 = scmp.eq.s32.totalorder %s19, 0
    %p102 = por %p100, %p101
    %p103 = scmp.ne.s32.totalorder %s95, %s97
    %p104 = scmp.eq.s32.totalorder %s24, 1
    %p105 = por %p103, %p104
    %p106 = scmp.ne.s32.totalorder %s97, %s98
    %p107 = scmp.eq.s32.totalorder %s24, 0
    %p108 = por %p106, %p107
    %p109 = scmp.ne.s32.totalorder %s97, %s98
    %p110 = scmp.eq.s32.totalorder %s25, 1
    %p111 = por %p109, %p110
    %p113 = scmp.ne.s32.totalorder %s98, %s112
    %p114 = scmp.eq.s32.totalorder %s25, 0
    %p115 = por %p113, %p114
    %s117 = sadd.s32 %s116, 1
    %p120 = scmp.eq.s32.totalorder %s19, 1
    %p121 = scmp.ne.s32.totalorder %s116, %s118
    %p122 = scmp.eq.s32.totalorder %s19, 0
    %p123 = por %p121, %p122
    %p124 = scmp.ne.s32.totalorder %s116, %s118
    %p125 = scmp.eq.s32.totalorder %s24, 1
    %p126 = por %p124, %p125
    %p127 = scmp.ne.s32.totalorder %s118, %s119
    %p128 = scmp.eq.s32.totalorder %s24, 0
    %p129 = por %p127, %p128
    %p130 = scmp.ne.s32.totalorder %s118, %s119
    %p131 = scmp.eq.s32.totalorder %s25, 1
    %p132 = por %p130, %p131
    %p134 = scmp.ne.s32.totalorder %s119, %s133
    %p135 = scmp.eq.s32.totalorder %s25, 0
    %p136 = por %p134, %p135
    %s138 = sadd.s32 %s137, 1
    %p141 = scmp.eq.s32.totalorder %s19, 1
    %p142 = scmp.ne.s32.totalorder %s137, %s139
    %p143 = scmp.eq.s32.totalorder %s19, 0
    %p144 = por %p142, %p143
    %p145 = scmp.ne.s32.totalorder %s137, %s139
    %p146 = scmp.eq.s32.totalorder %s24, 1
    %p147 = por %p145, %p146
    %p148 = scmp.ne.s32.totalorder %s139, %s140
    %p149 = scmp.eq.s32.totalorder %s24, 0
    %p150 = por %p148, %p149
    %p151 = scmp.ne.s32.totalorder %s139, %s140
    %p152 = scmp.eq.s32.totalorder %s25, 1
    %p153 = por %p151, %p152
    %p155 = scmp.ne.s32.totalorder %s140, %s154
    %p156 = scmp.eq.s32.totalorder %s25, 0
    %p157 = por %p155, %p156
    %s159 = sadd.s32 %s158, 1
    %p162 = scmp.eq.s32.totalorder %s19, 1
    %p163 = scmp.ne.s32.totalorder %s158, %s160
    %p164 = scmp.eq.s32.totalorder %s19, 0
    %p165 = por %p163, %p164
    %p166 = scmp.ne.s32.totalorder %s158, %s160
    %p167 = scmp.eq.s32.totalorder %s24, 1
    %p168 = por %p166, %p167
    %p169 = scmp.ne.s32.totalorder %s160, %s161
    %p170 = scmp.eq.s32.totalorder %s24, 0
    %p171 = por %p169, %p170
    %p172 = scmp.ne.s32.totalorder %s160, %s161
    %p173 = scmp.eq.s32.totalorder %s25, 1
    %p174 = por %p172, %p173
    %p176 = scmp.ne.s32.totalorder %s161, %s175
    %p177 = scmp.eq.s32.totalorder %s25, 0
    %p178 = por %p176, %p177
    %s180 = sadd.s32 %s179, 1
    %p183 = scmp.eq.s32.totalorder %s19, 1
    %p184 = scmp.ne.s32.totalorder %s179, %s181
    %p185 = scmp.eq.s32.totalorder %s19, 0
    %p186 = por %p184, %p185
    %p187 = scmp.ne.s32.totalorder %s179, %s181
    %p188 = scmp.eq.s32.totalorder %s24, 1
    %p189 = por %p187, %p188
    %p190 = scmp.ne.s32.totalorder %s181, %s182
    %p191 = scmp.eq.s32.totalorder %s24, 0
    %p192 = por %p190, %p191
    %p193 = scmp.ne.s32.totalorder %s181, %s182
    %p194 = scmp.eq.s32.totalorder %s25, 1
    %p195 = por %p193, %p194
    %p197 = scmp.ne.s32.totalorder %s182, %s196
    %p198 = scmp.eq.s32.totalorder %s25, 0
    %p199 = por %p197, %p198
    %s201 = sadd.s32 %s200, 1
    %p204 = scmp.eq.s32.totalorder %s19, 1
    %p205 = scmp.ne.s32.totalorder %s200, %s202
    %p206 = scmp.eq.s32.totalorder %s19, 0
    %p207 = por %p205, %p206
    %p208 = scmp.ne.s32.totalorder %s200, %s202
    %p209 = scmp.eq.s32.totalorder %s24, 1
    %p210 = por %p208, %p209
    %p211 = scmp.ne.s32.totalorder %s202, %s203
    %p212 = scmp.eq.s32.totalorder %s24, 0
    %p213 = por %p211, %p212
    %p214 = scmp.ne.s32.totalorder %s202, %s203
    %p215 = scmp.eq.s32.totalorder %s25, 1
    %p216 = por %p214, %p215
    %p218 = scmp.ne.s32.totalorder %s203, %s217
    %p219 = scmp.eq.s32.totalorder %s25, 0
    %p220 = por %p218, %p219
    %s222 = sadd.s32 %s221, 1
    %p225 = scmp.eq.s32.totalorder %s19, 1
    %p226 = scmp.ne.s32.totalorder %s221, %s223
    %p227 = scmp.eq.s32.totalorder %s19, 0
    %p228 = por %p226, %p227
    %p229 = scmp.ne.s32.totalorder %s221, %s223
    %p230 = scmp.eq.s32.totalorder %s24, 1
    %p231 = por %p229, %p230
    %p232 = scmp.ne.s32.totalorder %s223, %s224
    %p233 = scmp.eq.s32.totalorder %s24, 0
    %p234 = por %p232, %p233
    %p235 = scmp.ne.s32.totalorder %s223, %s224
    %p236 = scmp.eq.s32.totalorder %s25, 1
    %p237 = por %p235, %p236
    %p239 = scmp.ne.s32.totalorder %s224, %s238
    %p240 = scmp.eq.s32.totalorder %s25, 0
    %p241 = por %p239, %p240
    %s243 = sadd.s32 %s242, 1
    %p246 = scmp.eq.s32.totalorder %s19, 1
    %p247 = scmp.ne.s32.totalorder %s242, %s244
    %p248 = scmp.eq.s32.totalorder %s19, 0
    %p249 = por %p247, %p248
    %p250 = scmp.ne.s32.totalorder %s242, %s244
    %p251 = scmp.eq.s32.totalorder %s24, 1
    %p252 = por %p250, %p251
    %p253 = scmp.ne.s32.totalorder %s244, %s245
    %p254 = scmp.eq.s32.totalorder %s24, 0
    %p255 = por %p253, %p254
    %p256 = scmp.ne.s32.totalorder %s244, %s245
    %p257 = scmp.eq.s32.totalorder %s25, 1
    %p258 = por %p256, %p257
    %p260 = scmp.ne.s32.totalorder %s245, %s259
    %p261 = scmp.eq.s32.totalorder %s25, 0
    %p262 = por %p260, %p261
    %s264 = sadd.s32 %s263, 1
    %p267 = scmp.eq.s32.totalorder %s19, 1
    %p268 = scmp.ne.s32.totalorder %s263, %s265
    %p269 = scmp.eq.s32.totalorder %s19, 0
    %p270 = por %p268, %p269
    %p271 = scmp.ne.s32.totalorder %s263, %s265
    %p272 = scmp.eq.s32.totalorder %s24, 1
    %p273 = por %p271, %p272
    %p274 = scmp.ne.s32.totalorder %s265, %s266
    %p275 = scmp.eq.s32.totalorder %s24, 0
    %p276 = por %p274, %p275
    %p277 = scmp.ne.s32.totalorder %s265, %s266
    %p278 = scmp.eq.s32.totalorder %s25, 1
    %p279 = por %p277, %p278
    %p281 = scmp.ne.s32.totalorder %s266, %s280
    %p282 = scmp.eq.s32.totalorder %s25, 0
    %p283 = por %p281, %p282
    %s285 = sadd.s32 %s284, 1
    %p288 = scmp.eq.s32.totalorder %s19, 1
    %p289 = scmp.ne.s32.totalorder %s284, %s286
    %p290 = scmp.eq.s32.totalorder %s19, 0
    %p291 = por %p289, %p290
    %p292 = scmp.ne.s32.totalorder %s284, %s286
    %p293 = scmp.eq.s32.totalorder %s24, 1
    %p294 = por %p292, %p293
    %p295 = scmp.ne.s32.totalorder %s286, %s287
    %p296 = scmp.eq.s32.totalorder %s24, 0
    %p297 = por %p295, %p296
    %p298 = scmp.ne.s32.totalorder %s286, %s287
    %p299 = scmp.eq.s32.totalorder %s25, 1
    %p300 = por %p298, %p299
    %p302 = scmp.ne.s32.totalorder %s287, %s301
    %p303 = scmp.eq.s32.totalorder %s25, 0
    %p304 = por %p302, %p303
    %s305 = ssub.s32 %s19, %s26
    %p306 = scmp.eq.s32.totalorder %s305, 0
    %s308 = sadd.s32 %s307, 1
    %s309 = scalar_select %p306, %s307, %s308
    %p312 = pneg %p306
    %p313 = scmp.eq.s32.totalorder %s19, 1
    %p314 = por %p312, %p313
    %p315 = scmp.ne.s32.totalorder %s307, %s310
    %p316 = scmp.eq.s32.totalorder %s19, 0
    %p317 = por %p315, %p316
    %p318 = scmp.ne.s32.totalorder %s307, %s310
    %p319 = scmp.eq.s32.totalorder %s24, 1
    %p320 = por %p318, %p319
    %p321 = scmp.ne.s32.totalorder %s310, %s311
    %p322 = scmp.eq.s32.totalorder %s24, 0
    %p323 = por %p321, %p322
    %p324 = scmp.ne.s32.totalorder %s310, %s311
    %p325 = scmp.eq.s32.totalorder %s25, 1
    %p326 = por %p324, %p325
    %p328 = scmp.ne.s32.totalorder %s311, %s327
    %p329 = scmp.eq.s32.totalorder %s25, 0
    %p330 = por %p328, %p329
    %p331 = scmp.le.s32.totalorder 1, %s19
    %p332 = scmp.lt.s32.totalorder %s19, 3
    %p333 = pnand %p331, %p332
    %p334 = pneg %p333
    // Predicated region
    $region9: #{tpu_custom_call.1} parent=5 // pred_check
      _
    $region10: #{tpu_custom_call.1} parent=5 // pred_check_branch
      %336 = sbr.rel (%p333) target = $region12
    $region11: #{tpu_custom_call.1} parent=5 // pred_region
      %s337 = ssub.s32 %s19, 1
      // Predicated region
      $region13: #{tpu_custom_call.1} parent=11 // pred_check
        %p338 = pneg %p66
      $region14: #{tpu_custom_call.1} parent=11 // pred_check_branch
        %340 = sbr.rel (%p338) target = $region16
      $region15: #{tpu_custom_call.1} parent=11 // pred_region
        _
      $region16: #{tpu_custom_call.1} parent=11 // pred_fallthru
        _
      // Predicated region
      $region17: #{tpu_custom_call.1} parent=11 // pred_check
        %p341 = pneg %p87
      $region18: #{tpu_custom_call.1} parent=11 // pred_check_branch
        %343 = sbr.rel (%p341) target = $region20
      $region19: #{tpu_custom_call.1} parent=11 // pred_region
        _
      $region20: #{tpu_custom_call.1} parent=11 // pred_fallthru
        _
      // Predicated region
      $region21: #{tpu_custom_call.1} parent=11 // pred_check
        %p344 = pneg %p108
      $region22: #{tpu_custom_call.1} parent=11 // pred_check_branch
        %346 = sbr.rel (%p344) target = $region24
      $region23: #{tpu_custom_call.1} parent=11 // pred_region
        _
      $region24: #{tpu_custom_call.1} parent=11 // pred_fallthru
        _
      // Predicated region
      $region25: #{tpu_custom_call.1} parent=11 // pred_check
        %p347 = pneg %p129
      $region26: #{tpu_custom_call.1} parent=11 // pred_check_branch
        %349 = sbr.rel (%p347) target = $region28
      $region27: #{tpu_custom_call.1} parent=11 // pred_region
        _
      $region28: #{tpu_custom_call.1} parent=11 // pred_fallthru
        _
      // Predicated region
      $region29: #{tpu_custom_call.1} parent=11 // pred_check
        %p350 = pneg %p150
      $region30: #{tpu_custom_call.1} parent=11 // pred_check_branch
        %352 = sbr.rel (%p350) target = $region32
      $region31: #{tpu_custom_call.1} parent=11 // pred_region
        _
      $region32: #{tpu_custom_call.1} parent=11 // pred_fallthru
        _
      // Predicated region
      $region33: #{tpu_custom_call.1} parent=11 // pred_check
        %p353 = pneg %p171
      $region34: #{tpu_custom_call.1} parent=11 // pred_check_branch
        %355 = sbr.rel (%p353) target = $region36
      $region35: #{tpu_custom_call.1} parent=11 // pred_region
        _
      $region36: #{tpu_custom_call.1} parent=11 // pred_fallthru
        _
      // Predicated region
      $region37: #{tpu_custom_call.1} parent=11 // pred_check
        %p356 = pneg %p192
      $region38: #{tpu_custom_call.1} parent=11 // pred_check_branch
        %358 = sbr.rel (%p356) target = $region40
      $region39: #{tpu_custom_call.1} parent=11 // pred_region
        _
      $region40: #{tpu_custom_call.1} parent=11 // pred_fallthru
        _
      // Predicated region
      $region41: #{tpu_custom_call.1} parent=11 // pred_check
        %p359 = pneg %p213
      $region42: #{tpu_custom_call.1} parent=11 // pred_check_branch
        %361 = sbr.rel (%p359) target = $region44
      $region43: #{tpu_custom_call.1} parent=11 // pred_region
        _
      $region44: #{tpu_custom_call.1} parent=11 // pred_fallthru
        _
      // Predicated region
      $region45: #{tpu_custom_call.1} parent=11 // pred_check
        %p362 = pneg %p234
      $region46: #{tpu_custom_call.1} parent=11 // pred_check_branch
        %364 = sbr.rel (%p362) target = $region48
      $region47: #{tpu_custom_call.1} parent=11 // pred_region
        _
      $region48: #{tpu_custom_call.1} parent=11 // pred_fallthru
        _
      // Predicated region
      $region49: #{tpu_custom_call.1} parent=11 // pred_check
        %p365 = pneg %p255
      $region50: #{tpu_custom_call.1} parent=11 // pred_check_branch
        %367 = sbr.rel (%p365) target = $region52
      $region51: #{tpu_custom_call.1} parent=11 // pred_region
        _
      $region52: #{tpu_custom_call.1} parent=11 // pred_fallthru
        _
      // Predicated region
      $region53: #{tpu_custom_call.1} parent=11 // pred_check
        %p368 = pneg %p276
      $region54: #{tpu_custom_call.1} parent=11 // pred_check_branch
        %370 = sbr.rel (%p368) target = $region56
      $region55: #{tpu_custom_call.1} parent=11 // pred_region
        _
      $region56: #{tpu_custom_call.1} parent=11 // pred_fallthru
        _
      // Predicated region
      $region57: #{tpu_custom_call.1} parent=11 // pred_check
        %p371 = pneg %p297
      $region58: #{tpu_custom_call.1} parent=11 // pred_check_branch
        %373 = sbr.rel (%p371) target = $region60
      $region59: #{tpu_custom_call.1} parent=11 // pred_region
        _
      $region60: #{tpu_custom_call.1} parent=11 // pred_fallthru
        _
    $region12: #{tpu_custom_call.1} parent=5 // pred_fallthru
      _
    %p374 = scmp.lt.s32.totalorder %s19, 2
    // Predicated region
    $region61: #{tpu_custom_call.1} parent=5 // pred_check
      %p375 = pneg %p374
    $region62: #{tpu_custom_call.1} parent=5 // pred_check_branch
      %377 = sbr.rel (%p375) target = $region64
    $region63: #{tpu_custom_call.1} parent=5 // pred_region
      // Predicated region
      $region65: #{tpu_custom_call.1} parent=63 // pred_check
        %p378 = pneg %p39
      $region66: #{tpu_custom_call.1} parent=63 // pred_check_branch
        %380 = sbr.rel (%p378) target = $region68
      $region67: #{tpu_custom_call.1} parent=63 // pred_region
        %s381 = smul.u32 41, %s19
        %p382 = scmp.lt.s32.totalorder %s381, 81
        %s383 = scalar_select %p382, %s381, 81
        %s384 = smul.addr %s383, 8
        %s385 = scalar_lea.vmem %s0, %s384
        %s386 = smul.u32 41, %s19
      $region68: #{tpu_custom_call.1} parent=63 // pred_fallthru
        _
    $region64: #{tpu_custom_call.1} parent=5 // pred_fallthru
      _
    %p387 = scmp.le.s32.totalorder 1, %s19
    %p388 = scmp.lt.s32.totalorder %s19, 3
    %p389 = pnand %p387, %p388
    %p390 = pneg %p389
    // Predicated region
    $region69: #{tpu_custom_call.1} parent=5 // pred_check
      _
    $region70: #{tpu_custom_call.1} parent=5 // pred_check_branch
      %392 = sbr.rel (%p389) target = $region72
    $region71: #{tpu_custom_call.1} parent=5 // pred_region
      %s393 = ssub.s32 %s19, 1
      %s394 = smul.u32 41, %s24
      %p395 = scmp.lt.s32.totalorder %s394, 81
      %s396 = scalar_select %p395, %s394, 81
      %s397 = smul.addr %s396, 8
      %s398 = scalar_lea.vmem %s0, %s397
      %p399 = pneg %p45
      %p400 = pneg %p42
      %p401 = pneg %p66
      %p402 = pneg %p63
      %p403 = pneg %p87
      %p404 = pneg %p84
      %p405 = pneg %p108
      %p406 = pneg %p105
      %p407 = pneg %p129
      %p408 = pneg %p126
      %p409 = pneg %p150
      %p410 = pneg %p147
      %p411 = pneg %p171
      %p412 = pneg %p168
      %p413 = pneg %p192
      %p414 = pneg %p189
      %p415 = pneg %p213
      %p416 = pneg %p210
      %p417 = pneg %p234
      %p418 = pneg %p231
      %p419 = pneg %p255
      %p420 = pneg %p252
      %p421 = pneg %p276
      %p422 = pneg %p273
      %p423 = pneg %p297
      %p424 = pneg %p294
      %p425 = pneg %p323
      %p426 = pneg %p320
      %s427 = smul.u32 41, %s24
      %p428 = scmp.lt.s32.totalorder %s427, 81
      %s429 = scalar_select %p428, %s427, 81
      %s430 = smul.addr %s429, 8
      %s431 = scalar_lea.vmem %s13, %s430
      %s432 = smul.u32 41, %s24
      %p433 = scmp.lt.s32.totalorder %s432, 81
      %s434 = scalar_select %p433, %s432, 81
      %s435 = smul.addr %s434, 8
      %s436 = scalar_lea.vmem %s0, %s435
      %s437 = smul.u32 41, %s24
      %s438 = smul.u32 41, %s24
      %p439 = scmp.lt.s32.totalorder %s438, 81
      %s440 = scalar_select %p439, %s438, 81
      %s441 = smul.addr %s440, 8
      %s442 = scalar_lea.vmem %s13, %s441
      %s443 = smul.u32 41, %s24
      %v445 = vld [vmem:[%s1] sm:$0xff]
      %v446 = vld [vmem:[%s1 + $0x8] sm:$0xff]
      %v447 = vld [vmem:[%s1 + $0x10] sm:$0xff]
      %v448 = vld [vmem:[%s1 + $0x18] sm:$0xff]
      %v449 = vld [vmem:[%s1 + $0x20] sm:$0xff]
      %v450 = vld [vmem:[%s1 + $0x28] sm:$0xff]
      %v451 = vld [vmem:[%s1 + $0x30] sm:$0xff]
      %v452 = vld [vmem:[%s1 + $0x38] sm:$0xff]
      %v453 = vld [vmem:[%s1 + $0x40] sm:$0xff]
      %v454 = vld [vmem:[%s1 + $0x48] sm:$0xff]
      %v455 = vld [vmem:[%s1 + $0x50] sm:$0xff]
      %v456 = vld [vmem:[%s1 + $0x58] sm:$0xff]
      %v457 = vld [vmem:[%s1 + $0x60] sm:$0xff]
      %v458 = vld [vmem:[%s1 + $0x68] sm:$0xff]
      %v459 = vld [vmem:[%s1 + $0x70] sm:$0xff]
      %v460 = vld [vmem:[%s1 + $0x78] sm:$0xff]
      %v461 = vld [vmem:[%s1 + $0x80] sm:$0xff]
      %v462 = vld [vmem:[%s1 + $0x88] sm:$0xff]
      %v463 = vld [vmem:[%s1 + $0x90] sm:$0xff]
      %v464 = vld [vmem:[%s1 + $0x98] sm:$0xff]
      %v465 = vld [vmem:[%s1 + $0xa0] sm:$0xff]
      %v466 = vld [vmem:[%s1 + $0xa8] sm:$0xff]
      %v467 = vld [vmem:[%s1 + $0xb0] sm:$0xff]
      %v468 = vld [vmem:[%s1 + $0xb8] sm:$0xff]
      %v469 = vld [vmem:[%s1 + $0xc0] sm:$0xff]
      %v470 = vld [vmem:[%s1 + $0xc8] sm:$0xff]
      %v471 = vld [vmem:[%s1 + $0xd0] sm:$0xff]
      %v472 = vld [vmem:[%s1 + $0xd8] sm:$0xff]
      %v473 = vld [vmem:[%s1 + $0xe0] sm:$0xff]
      %v474 = vld [vmem:[%s1 + $0xe8] sm:$0xff]
      %v475 = vld [vmem:[%s1 + $0xf0] sm:$0xff]
      %v476 = vld [vmem:[%s1 + $0xf8] sm:$0xff]
      %v477 = vld [vmem:[%s1 + $0x100] sm:$0xff]
      %v478 = vld [vmem:[%s1 + $0x108] sm:$0xff]
      %v479 = vld [vmem:[%s1 + $0x110] sm:$0xff]
      %v480 = vld [vmem:[%s1 + $0x118] sm:$0xff]
      %v481 = vld [vmem:[%s1 + $0x120] sm:$0xff]
      %v482 = vld [vmem:[%s1 + $0x128] sm:$0xff]
      %v483 = vld [vmem:[%s1 + $0x130] sm:$0xff]
      %v484 = vld [vmem:[%s1 + $0x138] sm:$0xff]
      %v485 = vld [vmem:[%s1 + $0x140] sm:$0xff]
      %vm486 = vcmp.gt.f32.partialorder %v445, 0.5
      %vm487 = vcmp.gt.f32.partialorder %v446, 0.5
      %vm488 = vcmp.gt.f32.partialorder %v447, 0.5
      %vm489 = vcmp.gt.f32.partialorder %v448, 0.5
      %vm490 = vcmp.gt.f32.partialorder %v449, 0.5
      %vm491 = vcmp.gt.f32.partialorder %v450, 0.5
      %vm492 = vcmp.gt.f32.partialorder %v451, 0.5
      %vm493 = vcmp.gt.f32.partialorder %v452, 0.5
      %vm494 = vcmp.gt.f32.partialorder %v453, 0.5
      %vm495 = vcmp.gt.f32.partialorder %v454, 0.5
      %vm496 = vcmp.gt.f32.partialorder %v455, 0.5
      %vm497 = vcmp.gt.f32.partialorder %v456, 0.5
      %vm498 = vcmp.gt.f32.partialorder %v457, 0.5
      %vm499 = vcmp.gt.f32.partialorder %v458, 0.5
      %vm500 = vcmp.gt.f32.partialorder %v459, 0.5
      %vm501 = vcmp.gt.f32.partialorder %v460, 0.5
      %vm502 = vcmp.gt.f32.partialorder %v461, 0.5
      %vm503 = vcmp.gt.f32.partialorder %v462, 0.5
      %vm504 = vcmp.gt.f32.partialorder %v463, 0.5
      %vm505 = vcmp.gt.f32.partialorder %v464, 0.5
      %vm506 = vcmp.gt.f32.partialorder %v465, 0.5
      %vm507 = vcmp.gt.f32.partialorder %v466, 0.5
      %vm508 = vcmp.gt.f32.partialorder %v467, 0.5
      %vm509 = vcmp.gt.f32.partialorder %v468, 0.5
      %vm510 = vcmp.gt.f32.partialorder %v469, 0.5
      %vm511 = vcmp.gt.f32.partialorder %v470, 0.5
      %vm512 = vcmp.gt.f32.partialorder %v471, 0.5
      %vm513 = vcmp.gt.f32.partialorder %v472, 0.5
      %vm514 = vcmp.gt.f32.partialorder %v473, 0.5
      %vm515 = vcmp.gt.f32.partialorder %v474, 0.5
      %vm516 = vcmp.gt.f32.partialorder %v475, 0.5
      %vm517 = vcmp.gt.f32.partialorder %v476, 0.5
      %vm518 = vcmp.gt.f32.partialorder %v477, 0.5
      %vm519 = vcmp.gt.f32.partialorder %v478, 0.5
      %vm520 = vcmp.gt.f32.partialorder %v479, 0.5
      %vm521 = vcmp.gt.f32.partialorder %v480, 0.5
      %vm522 = vcmp.gt.f32.partialorder %v481, 0.5
      %vm523 = vcmp.gt.f32.partialorder %v482, 0.5
      %vm524 = vcmp.gt.f32.partialorder %v483, 0.5
      %vm525 = vcmp.gt.f32.partialorder %v484, 0.5
      %vm526 = vcmp.gt.f32.partialorder %v485, 0.5
      %v527 = vsel %vm486, 1, 0
      %v528 = vsel %vm487, 1, 0
      %v529 = vsel %vm488, 1, 0
      %v530 = vsel %vm489, 1, 0
      %v531 = vsel %vm490, 1, 0
      %v532 = vsel %vm491, 1, 0
      %v533 = vsel %vm492, 1, 0
      %v534 = vsel %vm493, 1, 0
      %v535 = vsel %vm494, 1, 0
      %v536 = vsel %vm495, 1, 0
      %v537 = vsel %vm496, 1, 0
      %v538 = vsel %vm497, 1, 0
      %v539 = vsel %vm498, 1, 0
      %v540 = vsel %vm499, 1, 0
      %v541 = vsel %vm500, 1, 0
      %v542 = vsel %vm501, 1, 0
      %v543 = vsel %vm502, 1, 0
      %v544 = vsel %vm503, 1, 0
      %v545 = vsel %vm504, 1, 0
      %v546 = vsel %vm505, 1, 0
      %v547 = vsel %vm506, 1, 0
      %v548 = vsel %vm507, 1, 0
      %v549 = vsel %vm508, 1, 0
      %v550 = vsel %vm509, 1, 0
      %v551 = vsel %vm510, 1, 0
      %v552 = vsel %vm511, 1, 0
      %v553 = vsel %vm512, 1, 0
      %v554 = vsel %vm513, 1, 0
      %v555 = vsel %vm514, 1, 0
      %v556 = vsel %vm515, 1, 0
      %v557 = vsel %vm516, 1, 0
      %v558 = vsel %vm517, 1, 0
      %v559 = vsel %vm518, 1, 0
      %v560 = vsel %vm519, 1, 0
      %v561 = vsel %vm520, 1, 0
      %v562 = vsel %vm521, 1, 0
      %v563 = vsel %vm522, 1, 0
      %v564 = vsel %vm523, 1, 0
      %v565 = vsel %vm524, 1, 0
      %v566 = vsel %vm525, 1, 0
      %v567 = vsel %vm526, 1, 0
      %568 = vset.pattern.permute.xlu0 0
      %569 = vperm.xlu0 %568, %v527
      %v570 = vpop.permute.xlu0 %569
      %571 = vset.pattern.permute.xlu0 0
      %572 = vperm.xlu0 %571, %v528
      %v573 = vpop.permute.xlu0 %572
      %574 = vset.pattern.permute.xlu0 0
      %575 = vperm.xlu0 %574, %v529
      %v576 = vpop.permute.xlu0 %575
      %577 = vset.pattern.permute.xlu0 0
      %578 = vperm.xlu0 %577, %v530
      %v579 = vpop.permute.xlu0 %578
      %580 = vset.pattern.permute.xlu0 0
      %581 = vperm.xlu0 %580, %v531
      %v582 = vpop.permute.xlu0 %581
      %583 = vset.pattern.permute.xlu0 0
      %584 = vperm.xlu0 %583, %v532
      %v585 = vpop.permute.xlu0 %584
      %586 = vset.pattern.permute.xlu0 0
      %587 = vperm.xlu0 %586, %v533
      %v588 = vpop.permute.xlu0 %587
      %589 = vset.pattern.permute.xlu0 0
      %590 = vperm.xlu0 %589, %v534
      %v591 = vpop.permute.xlu0 %590
      %592 = vset.pattern.permute.xlu0 0
      %593 = vperm.xlu0 %592, %v535
      %v594 = vpop.permute.xlu0 %593
      %595 = vset.pattern.permute.xlu0 0
      %596 = vperm.xlu0 %595, %v536
      %v597 = vpop.permute.xlu0 %596
      %598 = vset.pattern.permute.xlu0 0
      %599 = vperm.xlu0 %598, %v537
      %v600 = vpop.permute.xlu0 %599
      %601 = vset.pattern.permute.xlu0 0
      %602 = vperm.xlu0 %601, %v538
      %v603 = vpop.permute.xlu0 %602
      %604 = vset.pattern.permute.xlu0 0
      %605 = vperm.xlu0 %604, %v539
      %v606 = vpop.permute.xlu0 %605
      %607 = vset.pattern.permute.xlu0 0
      %608 = vperm.xlu0 %607, %v540
      %v609 = vpop.permute.xlu0 %608
      %610 = vset.pattern.permute.xlu0 0
      %611 = vperm.xlu0 %610, %v541
      %v612 = vpop.permute.xlu0 %611
      %613 = vset.pattern.permute.xlu0 0
      %614 = vperm.xlu0 %613, %v542
      %v615 = vpop.permute.xlu0 %614
      %616 = vset.pattern.permute.xlu0 0
      %617 = vperm.xlu0 %616, %v543
      %v618 = vpop.permute.xlu0 %617
      %619 = vset.pattern.permute.xlu0 0
      %620 = vperm.xlu0 %619, %v544
      %v621 = vpop.permute.xlu0 %620
      %622 = vset.pattern.permute.xlu0 0
      %623 = vperm.xlu0 %622, %v545
      %v624 = vpop.permute.xlu0 %623
      %625 = vset.pattern.permute.xlu0 0
      %626 = vperm.xlu0 %625, %v546
      %v627 = vpop.permute.xlu0 %626
      %628 = vset.pattern.permute.xlu0 0
      %629 = vperm.xlu0 %628, %v547
      %v630 = vpop.permute.xlu0 %629
      %631 = vset.pattern.permute.xlu0 0
      %632 = vperm.xlu0 %631, %v548
      %v633 = vpop.permute.xlu0 %632
      %634 = vset.pattern.permute.xlu0 0
      %635 = vperm.xlu0 %634, %v549
      %v636 = vpop.permute.xlu0 %635
      %637 = vset.pattern.permute.xlu0 0
      %638 = vperm.xlu0 %637, %v550
      %v639 = vpop.permute.xlu0 %638
      %640 = vset.pattern.permute.xlu0 0
      %641 = vperm.xlu0 %640, %v551
      %v642 = vpop.permute.xlu0 %641
      %643 = vset.pattern.permute.xlu0 0
      %644 = vperm.xlu0 %643, %v552
      %v645 = vpop.permute.xlu0 %644
      %646 = vset.pattern.permute.xlu0 0
      %647 = vperm.xlu0 %646, %v553
      %v648 = vpop.permute.xlu0 %647
      %649 = vset.pattern.permute.xlu0 0
      %650 = vperm.xlu0 %649, %v554
      %v651 = vpop.permute.xlu0 %650
      %652 = vset.pattern.permute.xlu0 0
      %653 = vperm.xlu0 %652, %v555
      %v654 = vpop.permute.xlu0 %653
      %655 = vset.pattern.permute.xlu0 0
      %656 = vperm.xlu0 %655, %v556
      %v657 = vpop.permute.xlu0 %656
      %658 = vset.pattern.permute.xlu0 0
      %659 = vperm.xlu0 %658, %v557
      %v660 = vpop.permute.xlu0 %659
      %661 = vset.pattern.permute.xlu0 0
      %662 = vperm.xlu0 %661, %v558
      %v663 = vpop.permute.xlu0 %662
      %664 = vset.pattern.permute.xlu0 0
      %665 = vperm.xlu0 %664, %v559
      %v666 = vpop.permute.xlu0 %665
      %667 = vset.pattern.permute.xlu0 0
      %668 = vperm.xlu0 %667, %v560
      %v669 = vpop.permute.xlu0 %668
      %670 = vset.pattern.permute.xlu0 0
      %671 = vperm.xlu0 %670, %v561
      %v672 = vpop.permute.xlu0 %671
      %673 = vset.pattern.permute.xlu0 0
      %674 = vperm.xlu0 %673, %v562
      %v675 = vpop.permute.xlu0 %674
      %676 = vset.pattern.permute.xlu0 0
      %677 = vperm.xlu0 %676, %v563
      %v678 = vpop.permute.xlu0 %677
      %679 = vset.pattern.permute.xlu0 0
      %680 = vperm.xlu0 %679, %v564
      %v681 = vpop.permute.xlu0 %680
      %682 = vset.pattern.permute.xlu0 0
      %683 = vperm.xlu0 %682, %v565
      %v684 = vpop.permute.xlu0 %683
      %685 = vset.pattern.permute.xlu0 0
      %686 = vperm.xlu0 %685, %v566
      %v687 = vpop.permute.xlu0 %686
      %688 = vset.pattern.permute.xlu0 0
      %689 = vperm.xlu0 %688, %v567
      %v690 = vpop.permute.xlu0 %689
      %vm691 = vcmp.eq.s32.totalorder %v570, 1
      %vm692 = vcmp.eq.s32.totalorder %v573, 1
      %vm693 = vcmp.eq.s32.totalorder %v576, 1
      %vm694 = vcmp.eq.s32.totalorder %v579, 1
      %vm695 = vcmp.eq.s32.totalorder %v582, 1
      %vm696 = vcmp.eq.s32.totalorder %v585, 1
      %vm697 = vcmp.eq.s32.totalorder %v588, 1
      %vm698 = vcmp.eq.s32.totalorder %v591, 1
      %vm699 = vcmp.eq.s32.totalorder %v594, 1
      %vm700 = vcmp.eq.s32.totalorder %v597, 1
      %vm701 = vcmp.eq.s32.totalorder %v600, 1
      %vm702 = vcmp.eq.s32.totalorder %v603, 1
      %vm703 = vcmp.eq.s32.totalorder %v606, 1
      %vm704 = vcmp.eq.s32.totalorder %v609, 1
      %vm705 = vcmp.eq.s32.totalorder %v612, 1
      %vm706 = vcmp.eq.s32.totalorder %v615, 1
      %vm707 = vcmp.eq.s32.totalorder %v618, 1
      %vm708 = vcmp.eq.s32.totalorder %v621, 1
      %vm709 = vcmp.eq.s32.totalorder %v624, 1
      %vm710 = vcmp.eq.s32.totalorder %v627, 1
      %vm711 = vcmp.eq.s32.totalorder %v630, 1
      %vm712 = vcmp.eq.s32.totalorder %v633, 1
      %vm713 = vcmp.eq.s32.totalorder %v636, 1
      %vm714 = vcmp.eq.s32.totalorder %v639, 1
      %vm715 = vcmp.eq.s32.totalorder %v642, 1
      %vm716 = vcmp.eq.s32.totalorder %v645, 1
      %vm717 = vcmp.eq.s32.totalorder %v648, 1
      %vm718 = vcmp.eq.s32.totalorder %v651, 1
      %vm719 = vcmp.eq.s32.totalorder %v654, 1
      %vm720 = vcmp.eq.s32.totalorder %v657, 1
      %vm721 = vcmp.eq.s32.totalorder %v660, 1
      %vm722 = vcmp.eq.s32.totalorder %v663, 1
      %vm723 = vcmp.eq.s32.totalorder %v666, 1
      %vm724 = vcmp.eq.s32.totalorder %v669, 1
      %vm725 = vcmp.eq.s32.totalorder %v672, 1
      %vm726 = vcmp.eq.s32.totalorder %v675, 1
      %vm727 = vcmp.eq.s32.totalorder %v678, 1
      %vm728 = vcmp.eq.s32.totalorder %v681, 1
      %vm729 = vcmp.eq.s32.totalorder %v684, 1
      %vm730 = vcmp.eq.s32.totalorder %v687, 1
      %vm731 = vcmp.eq.s32.totalorder %v690, 1
      %v732 = vld [vmem:[%s2] sm:$0xff]
      %v733 = vld [vmem:[%s2 + $0x8] sm:$0xff]
      %v734 = vld [vmem:[%s2 + $0x10] sm:$0xff]
      %v735 = vld [vmem:[%s2 + $0x18] sm:$0xff]
      %v736 = vld [vmem:[%s2 + $0x20] sm:$0xff]
      %v737 = vld [vmem:[%s2 + $0x28] sm:$0xff]
      %v738 = vld [vmem:[%s2 + $0x30] sm:$0xff]
      %v739 = vld [vmem:[%s2 + $0x38] sm:$0xff]
      %v740 = vld [vmem:[%s436] sm:$0xff]
      %v741 = vld [vmem:[%s436 + $0x8] sm:$0xff]
      %v742 = vld [vmem:[%s436 + $0x10] sm:$0xff]
      %v743 = vld [vmem:[%s436 + $0x18] sm:$0xff]
      %v744 = vld [vmem:[%s436 + $0x20] sm:$0xff]
      %v745 = vld [vmem:[%s436 + $0x28] sm:$0xff]
      %v746 = vld [vmem:[%s436 + $0x30] sm:$0xff]
      %v747 = vld [vmem:[%s436 + $0x38] sm:$0xff]
      %v748 = vld [vmem:[%s436 + $0x40] sm:$0xff]
      %v749 = vld [vmem:[%s436 + $0x48] sm:$0xff]
      %v750 = vld [vmem:[%s436 + $0x50] sm:$0xff]
      %v751 = vld [vmem:[%s436 + $0x58] sm:$0xff]
      %v752 = vld [vmem:[%s436 + $0x60] sm:$0xff]
      %v753 = vld [vmem:[%s436 + $0x68] sm:$0xff]
      %v754 = vld [vmem:[%s436 + $0x70] sm:$0xff]
      %v755 = vld [vmem:[%s436 + $0x78] sm:$0xff]
      %v756 = vld [vmem:[%s436 + $0x80] sm:$0xff]
      %v757 = vld [vmem:[%s436 + $0x88] sm:$0xff]
      %v758 = vld [vmem:[%s436 + $0x90] sm:$0xff]
      %v759 = vld [vmem:[%s436 + $0x98] sm:$0xff]
      %v760 = vld [vmem:[%s436 + $0xa0] sm:$0xff]
      %v761 = vld [vmem:[%s436 + $0xa8] sm:$0xff]
      %v762 = vld [vmem:[%s436 + $0xb0] sm:$0xff]
      %v763 = vld [vmem:[%s436 + $0xb8] sm:$0xff]
      %v764 = vld [vmem:[%s436 + $0xc0] sm:$0xff]
      %v765 = vld [vmem:[%s436 + $0xc8] sm:$0xff]
      %v766 = vld [vmem:[%s436 + $0xd0] sm:$0xff]
      %v767 = vld [vmem:[%s436 + $0xd8] sm:$0xff]
      %v768 = vld [vmem:[%s436 + $0xe0] sm:$0xff]
      %v769 = vld [vmem:[%s436 + $0xe8] sm:$0xff]
      %v770 = vld [vmem:[%s436 + $0xf0] sm:$0xff]
      %v771 = vld [vmem:[%s436 + $0xf8] sm:$0xff]
      %v772 = vld [vmem:[%s436 + $0x100] sm:$0xff]
      %v773 = vld [vmem:[%s436 + $0x108] sm:$0xff]
      %v774 = vld [vmem:[%s436 + $0x110] sm:$0xff]
      %v775 = vld [vmem:[%s436 + $0x118] sm:$0xff]
      %v776 = vld [vmem:[%s436 + $0x120] sm:$0xff]
      %v777 = vld [vmem:[%s436 + $0x128] sm:$0xff]
      %v778 = vld [vmem:[%s436 + $0x130] sm:$0xff]
      %v779 = vld [vmem:[%s436 + $0x138] sm:$0xff]
      %v780 = vld [vmem:[%s436 + $0x140] sm:$0xff]
      %v781 = vld [vmem:[%s3] sm:$0xff]
      %v782 = vld [vmem:[%s3 + $0x8] sm:$0xff]
      %v783 = vld [vmem:[%s3 + $0x10] sm:$0xff]
      %v784 = vld [vmem:[%s3 + $0x18] sm:$0xff]
      %v785 = vld [vmem:[%s3 + $0x20] sm:$0xf]
      %v786 = vld [vmem:[%s4] sm:$0x1]
      %v788 = vlaneseq
      %v789 = vshrl.u32 %v788, 7
      %v790 = vsub.s32 0, %v789
      %v791 = vrot.slane %v786, %v790
      %vm793 = vcmask 293888
      %v795 = vsel %vm793, %v740, 0
      %v798 = vsel %vm793, %v741, 0
      %v801 = vsel %vm793, %v742, 0
      %v804 = vsel %vm793, %v743, 0
      %v807 = vsel %vm793, %v744, 0
      %v810 = vsel %vm793, %v745, 0
      %v813 = vsel %vm793, %v746, 0
      %v816 = vsel %vm793, %v747, 0
      %v819 = vsel %vm793, %v748, 0
      %v822 = vsel %vm793, %v749, 0
      %v825 = vsel %vm793, %v750, 0
      %v828 = vsel %vm793, %v751, 0
      %v831 = vsel %vm793, %v752, 0
      %v834 = vsel %vm793, %v753, 0
      %v837 = vsel %vm793, %v754, 0
      %v840 = vsel %vm793, %v755, 0
      %v843 = vsel %vm793, %v756, 0
      %v846 = vsel %vm793, %v757, 0
      %v849 = vsel %vm793, %v758, 0
      %v852 = vsel %vm793, %v759, 0
      %v855 = vsel %vm793, %v760, 0
      %v858 = vsel %vm793, %v761, 0
      %v861 = vsel %vm793, %v762, 0
      %v864 = vsel %vm793, %v763, 0
      %v867 = vsel %vm793, %v764, 0
      %v870 = vsel %vm793, %v765, 0
      %v873 = vsel %vm793, %v766, 0
      %v876 = vsel %vm793, %v767, 0
      %v879 = vsel %vm793, %v768, 0
      %v882 = vsel %vm793, %v769, 0
      %v885 = vsel %vm793, %v770, 0
      %v888 = vsel %vm793, %v771, 0
      %v891 = vsel %vm793, %v772, 0
      %v894 = vsel %vm793, %v773, 0
      %v897 = vsel %vm793, %v774, 0
      %v900 = vsel %vm793, %v775, 0
      %v903 = vsel %vm793, %v776, 0
      %v906 = vsel %vm793, %v777, 0
      %v909 = vsel %vm793, %v778, 0
      %v912 = vsel %vm793, %v779, 0
      %v915 = vsel %vm793, %v780, 0
      %vm917 = vcmask 1043456
      %v919 = vsel %vm917, %v785, 0
      %921 = vmatprep.subr.mxu0 0.0
      %922 = vmatpush1.msra.mxu0 %v781
      %923 = vmatprep.subr.mxu0 0.0
      %924 = vmatpush1.msra.mxu0 %v782
      %925 = vmatprep.subr.mxu0 0.0
      %926 = vmatpush1.msra.mxu0 %v783
      %927 = vmatprep.subr.mxu0 0.0
      %928 = vmatpush1.msra.mxu0 %v784
      %929 = vmatprep.subr.mxu0 0.0
      %930 = vmatpush1.msra.mxu0 %v919
      %931 = vmatprep.subr.mxu0 0.0
      %932 = vmatpush1.msra.mxu0 0.0
      %933 = vmatprep.subr.mxu0 0.0
      %934 = vmatpush1.msra.mxu0 0.0
      %935 = vmatprep.subr.mxu0 0.0
      %936 = vmatpush1.msra.mxu0 0.0
      %937 = vmatprep.subr.mxu0 0.0
      %938 = vmatpush1.msra.mxu0 0.0
      %939 = vmatprep.subr.mxu0 0.0
      %940 = vmatpush1.msra.mxu0 0.0
      %941 = vmatprep.subr.mxu0 0.0
      %942 = vmatpush1.msra.mxu0 0.0
      %943 = vmatprep.subr.mxu0 0.0
      %944 = vmatpush1.msra.mxu0 0.0
      %945 = vmatprep.subr.mxu0 0.0
      %946 = vmatpush1.msra.mxu0 0.0
      %947 = vmatprep.subr.mxu0 0.0
      %948 = vmatpush1.msra.mxu0 0.0
      %949 = vmatprep.subr.mxu0 0.0
      %950 = vmatpush1.msra.mxu0 0.0
      %951 = vmatprep.subr.mxu0 0.0
      %952 = vmatpush1.msra.mxu0 0.0
      %953 = vmatprep.subr.mxu0 0.0
      %954 = vmatpush1.msra.mxu0 0.0
      %955 = vmatprep.subr.mxu0 0.0
      %956 = vmatpush1.msra.mxu0 0.0
      %957 = vmatprep.subr.mxu0 0.0
      %958 = vmatpush1.msra.mxu0 0.0
      %959 = vmatprep.subr.mxu0 0.0
      %960 = vmatpush1.msra.mxu0 0.0
      %961 = vmatprep.subr.mxu0 0.0
      %962 = vmatpush1.msra.mxu0 0.0
      %963 = vmatprep.subr.mxu0 0.0
      %964 = vmatpush1.msra.mxu0 0.0
      %965 = vmatprep.subr.mxu0 0.0
      %966 = vmatpush1.msra.mxu0 0.0
      %967 = vmatprep.subr.mxu0 0.0
      %968 = vmatpush1.msra.mxu0 0.0
      %969 = vmatprep.subr.mxu0 0.0
      %970 = vmatpush1.msra.mxu0 0.0
      %971 = vmatprep.subr.mxu0 0.0
      %972 = vmatpush1.msra.mxu0 0.0
      %973 = vmatprep.subr.mxu0 0.0
      %974 = vmatpush1.msra.mxu0 0.0
      %975 = vmatprep.subr.mxu0 0.0
      %976 = vmatpush1.msra.mxu0 0.0
      %977 = vmatprep.subr.mxu0 0.0
      %978 = vmatpush1.msra.mxu0 0.0
      %979 = vmatprep.subr.mxu0 0.0
      %980 = vmatpush1.msra.mxu0 0.0
      %981 = vmatprep.subr.mxu0 0.0
      %982 = vmatpush1.msra.mxu0 0.0
      %983 = vmatprep.subr.mxu0 0.0
      %984 = vmatpush1.msra.mxu0 0.0
      %985 = vmatprep.mubr.f32.mxu0 0.0
      %986 = vmatmul.mubr.f32.gmra.mrb[0].mxu0 %v795
      %v987 = vpop.f32.mrb[0].mxu0
      %v988 = vadd.f32 %v791, %v987
      %v989 = vpop.f32.mrb[0].mxu0
      %990 = vmatprep.mubr.f32.mxu0 0.0
      %991 = vmatmul.mubr.f32.gmra.mrb[0].mxu0 %v798
      %v992 = vpop.f32.mrb[0].mxu0
      %v993 = vadd.f32 %v791, %v992
      %v994 = vpop.f32.mrb[0].mxu0
      %995 = vmatprep.mubr.f32.mxu0 0.0
      %996 = vmatmul.mubr.f32.gmra.mrb[0].mxu0 %v801
      %v997 = vpop.f32.mrb[0].mxu0
      %v998 = vadd.f32 %v791, %v997
      %v999 = vpop.f32.mrb[0].mxu0
      %1000 = vmatprep.mubr.f32.mxu0 0.0
      %1001 = vmatmul.mubr.f32.gmra.mrb[0].mxu0 %v804
      %v1002 = vpop.f32.mrb[0].mxu0
      %v1003 = vadd.f32 %v791, %v1002
      %v1004 = vpop.f32.mrb[0].mxu0
      %1005 = vmatprep.mubr.f32.mxu0 0.0
      %1006 = vmatmul.mubr.f32.gmra.mrb[0].mxu0 %v807
      %v1007 = vpop.f32.mrb[0].mxu0
      %v1008 = vadd.f32 %v791, %v1007
      %v1009 = vpop.f32.mrb[0].mxu0
      %1010 = vmatprep.mubr.f32.mxu0 0.0
      %1011 = vmatmul.mubr.f32.gmra.mrb[0].mxu0 %v810
      %v1012 = vpop.f32.mrb[0].mxu0
      %v1013 = vadd.f32 %v791, %v1012
      %v1014 = vpop.f32.mrb[0].mxu0
      %1015 = vmatprep.mubr.f32.mxu0 0.0
      %1016 = vmatmul.mubr.f32.gmra.mrb[0].mxu0 %v813
      %v1017 = vpop.f32.mrb[0].mxu0
      %v1018 = vadd.f32 %v791, %v1017
      %v1019 = vpop.f32.mrb[0].mxu0
      %1020 = vmatprep.mubr.f32.mxu0 0.0
      %1021 = vmatmul.mubr.f32.gmra.mrb[0].mxu0 %v816
      %v1022 = vpop.f32.mrb[0].mxu0
      %v1023 = vadd.f32 %v791, %v1022
      %v1024 = vpop.f32.mrb[0].mxu0
      %1025 = vmatprep.mubr.f32.mxu0 0.0
      %1026 = vmatmul.mubr.f32.gmra.mrb[0].mxu0 %v819
      %v1027 = vpop.f32.mrb[0].mxu0
      %v1028 = vadd.f32 %v791, %v1027
      %v1029 = vpop.f32.mrb[0].mxu0
      %1030 = vmatprep.mubr.f32.mxu0 0.0
      %1031 = vmatmul.mubr.f32.gmra.mrb[0].mxu0 %v822
      %v1032 = vpop.f32.mrb[0].mxu0
      %v1033 = vadd.f32 %v791, %v1032
      %v1034 = vpop.f32.mrb[0].mxu0
      %1035 = vmatprep.mubr.f32.mxu0 0.0
      %1036 = vmatmul.mubr.f32.gmra.mrb[0].mxu0 %v825
      %v1037 = vpop.f32.mrb[0].mxu0
      %v1038 = vadd.f32 %v791, %v1037
      %v1039 = vpop.f32.mrb[0].mxu0
      %1040 = vmatprep.mubr.f32.mxu0 0.0
      %1041 = vmatmul.mubr.f32.gmra.mrb[0].mxu0 %v828
      %v1042 = vpop.f32.mrb[0].mxu0
      %v1043 = vadd.f32 %v791, %v1042
      %v1044 = vpop.f32.mrb[0].mxu0
      %1045 = vmatprep.mubr.f32.mxu0 0.0
      %1046 = vmatmul.mubr.f32.gmra.mrb[0].mxu0 %v831
      %v1047 = vpop.f32.mrb[0].mxu0
      %v1048 = vadd.f32 %v791, %v1047
      %v1049 = vpop.f32.mrb[0].mxu0
      %1050 = vmatprep.mubr.f32.mxu0 0.0
      %1051 = vmatmul.mubr.f32.gmra.mrb[0].mxu0 %v834
      %v1052 = vpop.f32.mrb[0].mxu0
      %v1053 = vadd.f32 %v791, %v1052
      %v1054 = vpop.f32.mrb[0].mxu0
      %1055 = vmatprep.mubr.f32.mxu0 0.0
      %1056 = vmatmul.mubr.f32.gmra.mrb[0].mxu0 %v837
      %v1057 = vpop.f32.mrb[0].mxu0
      %v1058 = vadd.f32 %v791, %v1057
      %v1059 = vpop.f32.mrb[0].mxu0
      %1060 = vmatprep.mubr.f32.mxu0 0.0
      %1061 = vmatmul.mubr.f32.gmra.mrb[0].mxu0 %v840
      %v1062 = vpop.f32.mrb[0].mxu0
      %v1063 = vadd.f32 %v791, %v1062
      %v1064 = vpop.f32.mrb[0].mxu0
      %1065 = vmatprep.mubr.f32.mxu0 0.0
      %1066 = vmatmul.mubr.f32.gmra.mrb[0].mxu0 %v843
      %v1067 = vpop.f32.mrb[0].mxu0
      %v1068 = vadd.f32 %v791, %v1067
      %v1069 = vpop.f32.mrb[0].mxu0
      %1070 = vmatprep.mubr.f32.mxu0 0.0
      %1071 = vmatmul.mubr.f32.gmra.mrb[0].mxu0 %v846
      %v1072 = vpop.f32.mrb[0].mxu0
      %v1073 = vadd.f32 %v791, %v1072
      %v1074 = vpop.f32.mrb[0].mxu0
      %1075 = vmatprep.mubr.f32.mxu0 0.0
      %1076 = vmatmul.mubr.f32.gmra.mrb[0].mxu0 %v849
      %v1077 = vpop.f32.mrb[0].mxu0
      %v1078 = vadd.f32 %v791, %v1077
      %v1079 = vpop.f32.mrb[0].mxu0
      %1080 = vmatprep.mubr.f32.mxu0 0.0
      %1081 = vmatmul.mubr.f32.gmra.mrb[0].mxu0 %v852
      %v1082 = vpop.f32.mrb[0].mxu0
      %v1083 = vadd.f32 %v791, %v1082
      %v1084 = vpop.f32.mrb[0].mxu0
      %1085 = vmatprep.mubr.f32.mxu0 0.0
      %1086 = vmatmul.mubr.f32.gmra.mrb[0].mxu0 %v855
      %v1087 = vpop.f32.mrb[0].mxu0
      %v1088 = vadd.f32 %v791, %v1087
      %v1089 = vpop.f32.mrb[0].mxu0
      %1090 = vmatprep.mubr.f32.mxu0 0.0
      %1091 = vmatmul.mubr.f32.gmra.mrb[0].mxu0 %v858
      %v1092 = vpop.f32.mrb[0].mxu0
      %v1093 = vadd.f32 %v791, %v1092
      %v1094 = vpop.f32.mrb[0].mxu0
      %1095 = vmatprep.mubr.f32.mxu0 0.0
      %1096 = vmatmul.mubr.f32.gmra.mrb[0].mxu0 %v861
      %v1097 = vpop.f32.mrb[0].mxu0
      %v1098 = vadd.f32 %v791, %v1097
      %v1099 = vpop.f32.mrb[0].mxu0
      %1100 = vmatprep.mubr.f32.mxu0 0.0
      %1101 = vmatmul.mubr.f32.gmra.mrb[0].mxu0 %v864
      %v1102 = vpop.f32.mrb[0].mxu0
      %v1103 = vadd.f32 %v791, %v1102
      %v1104 = vpop.f32.mrb[0].mxu0
      %1105 = vmatprep.mubr.f32.mxu0 0.0
      %1106 = vmatmul.mubr.f32.gmra.mrb[0].mxu0 %v867
      %v1107 = vpop.f32.mrb[0].mxu0
      %v1108 = vadd.f32 %v791, %v1107
      %v1109 = vpop.f32.mrb[0].mxu0
      %1110 = vmatprep.mubr.f32.mxu0 0.0
      %1111 = vmatmul.mubr.f32.gmra.mrb[0].mxu0 %v870
      %v1112 = vpop.f32.mrb[0].mxu0
      %v1113 = vadd.f32 %v791, %v1112
      %v1114 = vpop.f32.mrb[0].mxu0
      %1115 = vmatprep.mubr.f32.mxu0 0.0
      %1116 = vmatmul.mubr.f32.gmra.mrb[0].mxu0 %v873
      %v1117 = vpop.f32.mrb[0].mxu0
      %v1118 = vadd.f32 %v791, %v1117
      %v1119 = vpop.f32.mrb[0].mxu0
      %1120 = vmatprep.mubr.f32.mxu0 0.0
      %1121 = vmatmul.mubr.f32.gmra.mrb[0].mxu0 %v876
      %v1122 = vpop.f32.mrb[0].mxu0
      %v1123 = vadd.f32 %v791, %v1122
      %v1124 = vpop.f32.mrb[0].mxu0
      %1125 = vmatprep.mubr.f32.mxu0 0.0
      %1126 = vmatmul.mubr.f32.gmra.mrb[0].mxu0 %v879
      %v1127 = vpop.f32.mrb[0].mxu0
      %v1128 = vadd.f32 %v791, %v1127
      %v1129 = vpop.f32.mrb[0].mxu0
      %1130 = vmatprep.mubr.f32.mxu0 0.0
      %1131 = vmatmul.mubr.f32.gmra.mrb[0].mxu0 %v882
      %v1132 = vpop.f32.mrb[0].mxu0
      %v1133 = vadd.f32 %v791, %v1132
      %v1134 = vpop.f32.mrb[0].mxu0
      %1135 = vmatprep.mubr.f32.mxu0 0.0
      %1136 = vmatmul.mubr.f32.gmra.mrb[0].mxu0 %v885
      %v1137 = vpop.f32.mrb[0].mxu0
      %v1138 = vadd.f32 %v791, %v1137
      %v1139 = vpop.f32.mrb[0].mxu0
      %1140 = vmatprep.mubr.f32.mxu0 0.0
      %1141 = vmatmul.mubr.f32.gmra.mrb[0].mxu0 %v888
      %v1142 = vpop.f32.mrb[0].mxu0
      %v1143 = vadd.f32 %v791, %v1142
      %v1144 = vpop.f32.mrb[0].mxu0
      %1145 = vmatprep.mubr.f32.mxu0 0.0
      %1146 = vmatmul.mubr.f32.gmra.mrb[0].mxu0 %v891
      %v1147 = vpop.f32.mrb[0].mxu0
      %v1148 = vadd.f32 %v791, %v1147
      %v1149 = vpop.f32.mrb[0].mxu0
      %1150 = vmatprep.mubr.f32.mxu0 0.0
      %1151 = vmatmul.mubr.f32.gmra.mrb[0].mxu0 %v894
      %v1152 = vpop.f32.mrb[0].mxu0
      %v1153 = vadd.f32 %v791, %v1152
      %v1154 = vpop.f32.mrb[0].mxu0
      %1155 = vmatprep.mubr.f32.mxu0 0.0
      %1156 = vmatmul.mubr.f32.gmra.mrb[0].mxu0 %v897
      %v1157 = vpop.f32.mrb[0].mxu0
      %v1158 = vadd.f32 %v791, %v1157
      %v1159 = vpop.f32.mrb[0].mxu0
      %1160 = vmatprep.mubr.f32.mxu0 0.0
      %1161 = vmatmul.mubr.f32.gmra.mrb[0].mxu0 %v900
      %v1162 = vpop.f32.mrb[0].mxu0
      %v1163 = vadd.f32 %v791, %v1162
      %v1164 = vpop.f32.mrb[0].mxu0
      %1165 = vmatprep.mubr.f32.mxu0 0.0
      %1166 = vmatmul.mubr.f32.gmra.mrb[0].mxu0 %v903
      %v1167 = vpop.f32.mrb[0].mxu0
      %v1168 = vadd.f32 %v791, %v1167
      %v1169 = vpop.f32.mrb[0].mxu0
      %1170 = vmatprep.mubr.f32.mxu0 0.0
      %1171 = vmatmul.mubr.f32.gmra.mrb[0].mxu0 %v906
      %v1172 = vpop.f32.mrb[0].mxu0
      %v1173 = vadd.f32 %v791, %v1172
      %v1174 = vpop.f32.mrb[0].mxu0
      %1175 = vmatprep.mubr.f32.mxu0 0.0
      %1176 = vmatmul.mubr.f32.gmra.mrb[0].mxu0 %v909
      %v1177 = vpop.f32.mrb[0].mxu0
      %v1178 = vadd.f32 %v791, %v1177
      %v1179 = vpop.f32.mrb[0].mxu0
      %1180 = vmatprep.mubr.f32.mxu0 0.0
      %1181 = vmatmul.mubr.f32.gmra.mrb[0].mxu0 %v912
      %v1182 = vpop.f32.mrb[0].mxu0
      %v1183 = vadd.f32 %v791, %v1182
      %v1184 = vpop.f32.mrb[0].mxu0
      %1185 = vmatprep.mubr.f32.mxu0 0.0
      %1186 = vmatmul.mubr.f32.gmra.mrb[0].mxu0 %v915
      %v1187 = vpop.f32.mrb[0].mxu0
      %v1188 = vadd.f32 %v791, %v1187
      %v1189 = vpop.f32.mrb[0].mxu0
      %1190 = vdwg.mxu0
      %v1191 = vld [vmem:[%s5] sm:$0x1]
      %v1192 = vld [vmem:[%s6] sm:$0x1]
      %v1193 = vsel %vm691, %v988, 0.0
      %v1194 = vsel %vm692, %v993, 0.0
      %v1195 = vsel %vm693, %v998, 0.0
      %v1196 = vsel %vm694, %v1003, 0.0
      %v1197 = vsel %vm695, %v1008, 0.0
      %v1198 = vsel %vm696, %v1013, 0.0
      %v1199 = vsel %vm697, %v1018, 0.0
      %v1200 = vsel %vm698, %v1023, 0.0
      %v1201 = vsel %vm699, %v1028, 0.0
      %v1202 = vsel %vm700, %v1033, 0.0
      %v1203 = vsel %vm701, %v1038, 0.0
      %v1204 = vsel %vm702, %v1043, 0.0
      %v1205 = vsel %vm703, %v1048, 0.0
      %v1206 = vsel %vm704, %v1053, 0.0
      %v1207 = vsel %vm705, %v1058, 0.0
      %v1208 = vsel %vm706, %v1063, 0.0
      %v1209 = vsel %vm707, %v1068, 0.0
      %v1210 = vsel %vm708, %v1073, 0.0
      %v1211 = vsel %vm709, %v1078, 0.0
      %v1212 = vsel %vm710, %v1083, 0.0
      %v1213 = vsel %vm711, %v1088, 0.0
      %v1214 = vsel %vm712, %v1093, 0.0
      %v1215 = vsel %vm713, %v1098, 0.0
      %v1216 = vsel %vm714, %v1103, 0.0
      %v1217 = vsel %vm715, %v1108, 0.0
      %v1218 = vsel %vm716, %v1113, 0.0
      %v1219 = vsel %vm717, %v1118, 0.0
      %v1220 = vsel %vm718, %v1123, 0.0
      %v1221 = vsel %vm719, %v1128, 0.0
      %v1222 = vsel %vm720, %v1133, 0.0
      %v1223 = vsel %vm721, %v1138, 0.0
      %v1224 = vsel %vm722, %v1143, 0.0
      %v1225 = vsel %vm723, %v1148, 0.0
      %v1226 = vsel %vm724, %v1153, 0.0
      %v1227 = vsel %vm725, %v1158, 0.0
      %v1228 = vsel %vm726, %v1163, 0.0
      %v1229 = vsel %vm727, %v1168, 0.0
      %v1230 = vsel %vm728, %v1173, 0.0
      %v1231 = vsel %vm729, %v1178, 0.0
      %v1232 = vsel %vm730, %v1183, 0.0
      %v1233 = vsel %vm731, %v1188, 0.0
      %vm1234 = vcmask 523264
      %v1235 = vsel %vm1234, %v1193, 0.0
      %v1236 = vsel %vm1234, %v1194, 0.0
      %v1237 = vadd.f32 %v1235, %v1236
      %v1238 = vsel %vm1234, %v1195, 0.0
      %v1239 = vadd.f32 %v1237, %v1238
      %v1240 = vsel %vm1234, %v1196, 0.0
      %v1241 = vadd.f32 %v1239, %v1240
      %v1242 = vsel %vm1234, %v1197, 0.0
      %v1243 = vadd.f32 %v1241, %v1242
      %v1244 = vsel %vm1234, %v1198, 0.0
      %v1245 = vadd.f32 %v1243, %v1244
      %v1246 = vsel %vm1234, %v1199, 0.0
      %v1247 = vadd.f32 %v1245, %v1246
      %v1248 = vsel %vm1234, %v1200, 0.0
      %v1249 = vadd.f32 %v1247, %v1248
      %v1250 = vsel %vm1234, %v1201, 0.0
      %v1251 = vadd.f32 %v1249, %v1250
      %v1252 = vsel %vm1234, %v1202, 0.0
      %v1253 = vadd.f32 %v1251, %v1252
      %v1254 = vsel %vm1234, %v1203, 0.0
      %v1255 = vadd.f32 %v1253, %v1254
      %v1256 = vsel %vm1234, %v1204, 0.0
      %v1257 = vadd.f32 %v1255, %v1256
      %v1258 = vsel %vm1234, %v1205, 0.0
      %v1259 = vadd.f32 %v1257, %v1258
      %v1260 = vsel %vm1234, %v1206, 0.0
      %v1261 = vadd.f32 %v1259, %v1260
      %v1262 = vsel %vm1234, %v1207, 0.0
      %v1263 = vadd.f32 %v1261, %v1262
      %v1264 = vsel %vm1234, %v1208, 0.0
      %v1265 = vadd.f32 %v1263, %v1264
      %v1266 = vsel %vm1234, %v1209, 0.0
      %v1267 = vadd.f32 %v1265, %v1266
      %v1268 = vsel %vm1234, %v1210, 0.0
      %v1269 = vadd.f32 %v1267, %v1268
      %v1270 = vsel %vm1234, %v1211, 0.0
      %v1271 = vadd.f32 %v1269, %v1270
      %v1272 = vsel %vm1234, %v1212, 0.0
      %v1273 = vadd.f32 %v1271, %v1272
      %v1274 = vsel %vm1234, %v1213, 0.0
      %v1275 = vadd.f32 %v1273, %v1274
      %v1276 = vsel %vm1234, %v1214, 0.0
      %v1277 = vadd.f32 %v1275, %v1276
      %v1278 = vsel %vm1234, %v1215, 0.0
      %v1279 = vadd.f32 %v1277, %v1278
      %v1280 = vsel %vm1234, %v1216, 0.0
      %v1281 = vadd.f32 %v1279, %v1280
      %v1282 = vsel %vm1234, %v1217, 0.0
      %v1283 = vadd.f32 %v1281, %v1282
      %v1284 = vsel %vm1234, %v1218, 0.0
      %v1285 = vadd.f32 %v1283, %v1284
      %v1286 = vsel %vm1234, %v1219, 0.0
      %v1287 = vadd.f32 %v1285, %v1286
      %v1288 = vsel %vm1234, %v1220, 0.0
      %v1289 = vadd.f32 %v1287, %v1288
      %v1290 = vsel %vm1234, %v1221, 0.0
      %v1291 = vadd.f32 %v1289, %v1290
      %v1292 = vsel %vm1234, %v1222, 0.0
      %v1293 = vadd.f32 %v1291, %v1292
      %v1294 = vsel %vm1234, %v1223, 0.0
      %v1295 = vadd.f32 %v1293, %v1294
      %v1296 = vsel %vm1234, %v1224, 0.0
      %v1297 = vadd.f32 %v1295, %v1296
      %v1298 = vsel %vm1234, %v1225, 0.0
      %v1299 = vadd.f32 %v1297, %v1298
      %v1300 = vsel %vm1234, %v1226, 0.0
      %v1301 = vadd.f32 %v1299, %v1300
      %v1302 = vsel %vm1234, %v1227, 0.0
      %v1303 = vadd.f32 %v1301, %v1302
      %v1304 = vsel %vm1234, %v1228, 0.0
      %v1305 = vadd.f32 %v1303, %v1304
      %v1306 = vsel %vm1234, %v1229, 0.0
      %v1307 = vadd.f32 %v1305, %v1306
      %v1308 = vsel %vm1234, %v1230, 0.0
      %v1309 = vadd.f32 %v1307, %v1308
      %v1310 = vsel %vm1234, %v1231, 0.0
      %v1311 = vadd.f32 %v1309, %v1310
      %v1312 = vsel %vm1234, %v1232, 0.0
      %v1313 = vadd.f32 %v1311, %v1312
      %v1314 = vsel %vm1234, %v1233, 0.0
      %v1315 = vadd.f32 %v1313, %v1314
      %v1316 = vrot.slane %v1315, 4
      %v1317 = vadd.f32 %v1315, %v1316
      %v1318 = vrot.slane %v1317, 2
      %v1319 = vadd.f32 %v1317, %v1318
      %v1320 = vrot.slane %v1319, 1
      %v1321 = vadd.f32 %v1319, %v1320
      %v1322 = vmul.f32 %v1193, %v1193
      %v1323 = vmul.f32 %v1194, %v1194
      %v1324 = vmul.f32 %v1195, %v1195
      %v1325 = vmul.f32 %v1196, %v1196
      %v1326 = vmul.f32 %v1197, %v1197
      %v1327 = vmul.f32 %v1198, %v1198
      %v1328 = vmul.f32 %v1199, %v1199
      %v1329 = vmul.f32 %v1200, %v1200
      %v1330 = vmul.f32 %v1201, %v1201
      %v1331 = vmul.f32 %v1202, %v1202
      %v1332 = vmul.f32 %v1203, %v1203
      %v1333 = vmul.f32 %v1204, %v1204
      %v1334 = vmul.f32 %v1205, %v1205
      %v1335 = vmul.f32 %v1206, %v1206
      %v1336 = vmul.f32 %v1207, %v1207
      %v1337 = vmul.f32 %v1208, %v1208
      %v1338 = vmul.f32 %v1209, %v1209
      %v1339 = vmul.f32 %v1210, %v1210
      %v1340 = vmul.f32 %v1211, %v1211
      %v1341 = vmul.f32 %v1212, %v1212
      %v1342 = vmul.f32 %v1213, %v1213
      %v1343 = vmul.f32 %v1214, %v1214
      %v1344 = vmul.f32 %v1215, %v1215
      %v1345 = vmul.f32 %v1216, %v1216
      %v1346 = vmul.f32 %v1217, %v1217
      %v1347 = vmul.f32 %v1218, %v1218
      %v1348 = vmul.f32 %v1219, %v1219
      %v1349 = vmul.f32 %v1220, %v1220
      %v1350 = vmul.f32 %v1221, %v1221
      %v1351 = vmul.f32 %v1222, %v1222
      %v1352 = vmul.f32 %v1223, %v1223
      %v1353 = vmul.f32 %v1224, %v1224
      %v1354 = vmul.f32 %v1225, %v1225
      %v1355 = vmul.f32 %v1226, %v1226
      %v1356 = vmul.f32 %v1227, %v1227
      %v1357 = vmul.f32 %v1228, %v1228
      %v1358 = vmul.f32 %v1229, %v1229
      %v1359 = vmul.f32 %v1230, %v1230
      %v1360 = vmul.f32 %v1231, %v1231
      %v1361 = vmul.f32 %v1232, %v1232
      %v1362 = vmul.f32 %v1233, %v1233
      %v1363 = vsel %vm1234, %v1322, 0.0
      %v1364 = vsel %vm1234, %v1323, 0.0
      %v1365 = vadd.f32 %v1363, %v1364
      %v1366 = vsel %vm1234, %v1324, 0.0
      %v1367 = vadd.f32 %v1365, %v1366
      %v1368 = vsel %vm1234, %v1325, 0.0
      %v1369 = vadd.f32 %v1367, %v1368
      %v1370 = vsel %vm1234, %v1326, 0.0
      %v1371 = vadd.f32 %v1369, %v1370
      %v1372 = vsel %vm1234, %v1327, 0.0
      %v1373 = vadd.f32 %v1371, %v1372
      %v1374 = vsel %vm1234, %v1328, 0.0
      %v1375 = vadd.f32 %v1373, %v1374
      %v1376 = vsel %vm1234, %v1329, 0.0
      %v1377 = vadd.f32 %v1375, %v1376
      %v1378 = vsel %vm1234, %v1330, 0.0
      %v1379 = vadd.f32 %v1377, %v1378
      %v1380 = vsel %vm1234, %v1331, 0.0
      %v1381 = vadd.f32 %v1379, %v1380
      %v1382 = vsel %vm1234, %v1332, 0.0
      %v1383 = vadd.f32 %v1381, %v1382
      %v1384 = vsel %vm1234, %v1333, 0.0
      %v1385 = vadd.f32 %v1383, %v1384
      %v1386 = vsel %vm1234, %v1334, 0.0
      %v1387 = vadd.f32 %v1385, %v1386
      %v1388 = vsel %vm1234, %v1335, 0.0
      %v1389 = vadd.f32 %v1387, %v1388
      %v1390 = vsel %vm1234, %v1336, 0.0
      %v1391 = vadd.f32 %v1389, %v1390
      %v1392 = vsel %vm1234, %v1337, 0.0
      %v1393 = vadd.f32 %v1391, %v1392
      %v1394 = vsel %vm1234, %v1338, 0.0
      %v1395 = vadd.f32 %v1393, %v1394
      %v1396 = vsel %vm1234, %v1339, 0.0
      %v1397 = vadd.f32 %v1395, %v1396
      %v1398 = vsel %vm1234, %v1340, 0.0
      %v1399 = vadd.f32 %v1397, %v1398
      %v1400 = vsel %vm1234, %v1341, 0.0
      %v1401 = vadd.f32 %v1399, %v1400
      %v1402 = vsel %vm1234, %v1342, 0.0
      %v1403 = vadd.f32 %v1401, %v1402
      %v1404 = vsel %vm1234, %v1343, 0.0
      %v1405 = vadd.f32 %v1403, %v1404
      %v1406 = vsel %vm1234, %v1344, 0.0
      %v1407 = vadd.f32 %v1405, %v1406
      %v1408 = vsel %vm1234, %v1345, 0.0
      %v1409 = vadd.f32 %v1407, %v1408
      %v1410 = vsel %vm1234, %v1346, 0.0
      %v1411 = vadd.f32 %v1409, %v1410
      %v1412 = vsel %vm1234, %v1347, 0.0
      %v1413 = vadd.f32 %v1411, %v1412
      %v1414 = vsel %vm1234, %v1348, 0.0
      %v1415 = vadd.f32 %v1413, %v1414
      %v1416 = vsel %vm1234, %v1349, 0.0
      %v1417 = vadd.f32 %v1415, %v1416
      %v1418 = vsel %vm1234, %v1350, 0.0
      %v1419 = vadd.f32 %v1417, %v1418
      %v1420 = vsel %vm1234, %v1351, 0.0
      %v1421 = vadd.f32 %v1419, %v1420
      %v1422 = vsel %vm1234, %v1352, 0.0
      %v1423 = vadd.f32 %v1421, %v1422
      %v1424 = vsel %vm1234, %v1353, 0.0
      %v1425 = vadd.f32 %v1423, %v1424
      %v1426 = vsel %vm1234, %v1354, 0.0
      %v1427 = vadd.f32 %v1425, %v1426
      %v1428 = vsel %vm1234, %v1355, 0.0
      %v1429 = vadd.f32 %v1427, %v1428
      %v1430 = vsel %vm1234, %v1356, 0.0
      %v1431 = vadd.f32 %v1429, %v1430
      %v1432 = vsel %vm1234, %v1357, 0.0
      %v1433 = vadd.f32 %v1431, %v1432
      %v1434 = vsel %vm1234, %v1358, 0.0
      %v1435 = vadd.f32 %v1433, %v1434
      %v1436 = vsel %vm1234, %v1359, 0.0
      %v1437 = vadd.f32 %v1435, %v1436
      %v1438 = vsel %vm1234, %v1360, 0.0
      %v1439 = vadd.f32 %v1437, %v1438
      %v1440 = vsel %vm1234, %v1361, 0.0
      %v1441 = vadd.f32 %v1439, %v1440
      %v1442 = vsel %vm1234, %v1362, 0.0
      %v1443 = vadd.f32 %v1441, %v1442
      %v1444 = vrot.slane %v1443, 4
      %v1445 = vadd.f32 %v1443, %v1444
      %v1446 = vrot.slane %v1445, 2
      %v1447 = vadd.f32 %v1445, %v1446
      %v1448 = vrot.slane %v1447, 1
      %v1449 = vadd.f32 %v1447, %v1448
      %v1451 = vsel %vm1234, %v1321, 0
      %1453 = vmatprep.subr.mxu0 0.0
      %1454 = vmatpush1.msra.mxu0 %v732
      %1455 = vmatprep.subr.mxu0 0.0
      %1456 = vmatpush1.msra.mxu0 %v733
      %1457 = vmatprep.subr.mxu0 0.0
      %1458 = vmatpush1.msra.mxu0 %v734
      %1459 = vmatprep.subr.mxu0 0.0
      %1460 = vmatpush1.msra.mxu0 %v735
      %1461 = vmatprep.subr.mxu0 0.0
      %1462 = vmatpush1.msra.mxu0 %v736
      %1463 = vmatprep.subr.mxu0 0.0
      %1464 = vmatpush1.msra.mxu0 %v737
      %1465 = vmatprep.subr.mxu0 0.0
      %1466 = vmatpush1.msra.mxu0 %v738
      %1467 = vmatprep.subr.mxu0 0.0
      %1468 = vmatpush1.msra.mxu0 %v739
      %1469 = vmatprep.subr.mxu0 0.0
      %1470 = vmatpush1.msra.mxu0 0.0
      %1471 = vmatprep.subr.mxu0 0.0
      %1472 = vmatpush1.msra.mxu0 0.0
      %1473 = vmatprep.subr.mxu0 0.0
      %1474 = vmatpush1.msra.mxu0 0.0
      %1475 = vmatprep.subr.mxu0 0.0
      %1476 = vmatpush1.msra.mxu0 0.0
      %1477 = vmatprep.subr.mxu0 0.0
      %1478 = vmatpush1.msra.mxu0 0.0
      %1479 = vmatprep.subr.mxu0 0.0
      %1480 = vmatpush1.msra.mxu0 0.0
      %1481 = vmatprep.subr.mxu0 0.0
      %1482 = vmatpush1.msra.mxu0 0.0
      %1483 = vmatprep.subr.mxu0 0.0
      %1484 = vmatpush1.msra.mxu0 0.0
      %1485 = vmatprep.subr.mxu0 0.0
      %1486 = vmatpush1.msra.mxu0 0.0
      %1487 = vmatprep.subr.mxu0 0.0
      %1488 = vmatpush1.msra.mxu0 0.0
      %1489 = vmatprep.subr.mxu0 0.0
      %1490 = vmatpush1.msra.mxu0 0.0
      %1491 = vmatprep.subr.mxu0 0.0
      %1492 = vmatpush1.msra.mxu0 0.0
      %1493 = vmatprep.subr.mxu0 0.0
      %1494 = vmatpush1.msra.mxu0 0.0
      %1495 = vmatprep.subr.mxu0 0.0
      %1496 = vmatpush1.msra.mxu0 0.0
      %1497 = vmatprep.subr.mxu0 0.0
      %1498 = vmatpush1.msra.mxu0 0.0
      %1499 = vmatprep.subr.mxu0 0.0
      %1500 = vmatpush1.msra.mxu0 0.0
      %1501 = vmatprep.subr.mxu0 0.0
      %1502 = vmatpush1.msra.mxu0 0.0
      %1503 = vmatprep.subr.mxu0 0.0
      %1504 = vmatpush1.msra.mxu0 0.0
      %1505 = vmatprep.subr.mxu0 0.0
      %1506 = vmatpush1.msra.mxu0 0.0
      %1507 = vmatprep.subr.mxu0 0.0
      %1508 = vmatpush1.msra.mxu0 0.0
      %1509 = vmatprep.subr.mxu0 0.0
      %1510 = vmatpush1.msra.mxu0 0.0
      %1511 = vmatprep.subr.mxu0 0.0
      %1512 = vmatpush1.msra.mxu0 0.0
      %1513 = vmatprep.subr.mxu0 0.0
      %1514 = vmatpush1.msra.mxu0 0.0
      %1515 = vmatprep.subr.mxu0 0.0
      %1516 = vmatpush1.msra.mxu0 0.0
      %1517 = vmatprep.mubr.f32.mxu0 0.0
      %1518 = vmatmul.mubr.f32.gmra.mrb[0].mxu0 %v1451
      %v1519 = vpop.f32.mrb[0].mxu0
      %v1520 = vadd.f32 0.0, %v1519
      %v1521 = vpop.f32.mrb[0].mxu0
      %1522 = vdwg.mxu0
      %v1523 = vmul.f32 %v1520, 0.00024414063
      %v1525 = vsel %vm1234, %v1449, 0
      %1527 = vmatprep.subr.mxu0 0.0
      %1528 = vmatpush1.msra.mxu0 %v732
      %1529 = vmatprep.subr.mxu0 0.0
      %1530 = vmatpush1.msra.mxu0 %v733
      %1531 = vmatprep.subr.mxu0 0.0
      %1532 = vmatpush1.msra.mxu0 %v734
      %1533 = vmatprep.subr.mxu0 0.0
      %1534 = vmatpush1.msra.mxu0 %v735
      %1535 = vmatprep.subr.mxu0 0.0
      %1536 = vmatpush1.msra.mxu0 %v736
      %1537 = vmatprep.subr.mxu0 0.0
      %1538 = vmatpush1.msra.mxu0 %v737
      %1539 = vmatprep.subr.mxu0 0.0
      %1540 = vmatpush1.msra.mxu0 %v738
      %1541 = vmatprep.subr.mxu0 0.0
      %1542 = vmatpush1.msra.mxu0 %v739
      %1543 = vmatprep.subr.mxu0 0.0
      %1544 = vmatpush1.msra.mxu0 0.0
      %1545 = vmatprep.subr.mxu0 0.0
      %1546 = vmatpush1.msra.mxu0 0.0
      %1547 = vmatprep.subr.mxu0 0.0
      %1548 = vmatpush1.msra.mxu0 0.0
      %1549 = vmatprep.subr.mxu0 0.0
      %1550 = vmatpush1.msra.mxu0 0.0
      %1551 = vmatprep.subr.mxu0 0.0
      %1552 = vmatpush1.msra.mxu0 0.0
      %1553 = vmatprep.subr.mxu0 0.0
      %1554 = vmatpush1.msra.mxu0 0.0
      %1555 = vmatprep.subr.mxu0 0.0
      %1556 = vmatpush1.msra.mxu0 0.0
      %1557 = vmatprep.subr.mxu0 0.0
      %1558 = vmatpush1.msra.mxu0 0.0
      %1559 = vmatprep.subr.mxu0 0.0
      %1560 = vmatpush1.msra.mxu0 0.0
      %1561 = vmatprep.subr.mxu0 0.0
      %1562 = vmatpush1.msra.mxu0 0.0
      %1563 = vmatprep.subr.mxu0 0.0
      %1564 = vmatpush1.msra.mxu0 0.0
      %1565 = vmatprep.subr.mxu0 0.0
      %1566 = vmatpush1.msra.mxu0 0.0
      %1567 = vmatprep.subr.mxu0 0.0
      %1568 = vmatpush1.msra.mxu0 0.0
      %1569 = vmatprep.subr.mxu0 0.0
      %1570 = vmatpush1.msra.mxu0 0.0
      %1571 = vmatprep.subr.mxu0 0.0
      %1572 = vmatpush1.msra.mxu0 0.0
      %1573 = vmatprep.subr.mxu0 0.0
      %1574 = vmatpush1.msra.mxu0 0.0
      %1575 = vmatprep.subr.mxu0 0.0
      %1576 = vmatpush1.msra.mxu0 0.0
      %1577 = vmatprep.subr.mxu0 0.0
      %1578 = vmatpush1.msra.mxu0 0.0
      %1579 = vmatprep.subr.mxu0 0.0
      %1580 = vmatpush1.msra.mxu0 0.0
      %1581 = vmatprep.subr.mxu0 0.0
      %1582 = vmatpush1.msra.mxu0 0.0
      %1583 = vmatprep.subr.mxu0 0.0
      %1584 = vmatpush1.msra.mxu0 0.0
      %1585 = vmatprep.subr.mxu0 0.0
      %1586 = vmatpush1.msra.mxu0 0.0
      %1587 = vmatprep.subr.mxu0 0.0
      %1588 = vmatpush1.msra.mxu0 0.0
      %1589 = vmatprep.subr.mxu0 0.0
      %1590 = vmatpush1.msra.mxu0 0.0
      %1591 = vmatprep.mubr.f32.mxu0 0.0
      %1592 = vmatmul.mubr.f32.gmra.mrb[0].mxu0 %v1525
      %v1593 = vpop.f32.mrb[0].mxu0
      %v1594 = vadd.f32 0.0, %v1593
      %v1595 = vpop.f32.mrb[0].mxu0
      %1596 = vdwg.mxu0
      %v1597 = vmul.f32 %v1594, 0.00024414063
      %v1598 = vmul.f32 %v1523, %v1523
      %v1599 = vsub.f32 %v1597, %v1598
      %v1600 = vadd.f32 %v1599, 1e-05
      %v1601 = vrsqrt.pop %v1600
      %v1602 = vlaneseq
      %v1603 = vshrl.u32 %v1602, 7
      %v1604 = vsub.s32 0, %v1603
      %v1605 = vrot.slane %v1523, %v1604
      %v1606 = vsub.f32 %v1193, %v1605
      %v1607 = vsub.f32 %v1194, %v1605
      %v1608 = vsub.f32 %v1195, %v1605
      %v1609 = vsub.f32 %v1196, %v1605
      %v1610 = vsub.f32 %v1197, %v1605
      %v1611 = vsub.f32 %v1198, %v1605
      %v1612 = vsub.f32 %v1199, %v1605
      %v1613 = vsub.f32 %v1200, %v1605
      %v1614 = vsub.f32 %v1201, %v1605
      %v1615 = vsub.f32 %v1202, %v1605
      %v1616 = vsub.f32 %v1203, %v1605
      %v1617 = vsub.f32 %v1204, %v1605
      %v1618 = vsub.f32 %v1205, %v1605
      %v1619 = vsub.f32 %v1206, %v1605
      %v1620 = vsub.f32 %v1207, %v1605
      %v1621 = vsub.f32 %v1208, %v1605
      %v1622 = vsub.f32 %v1209, %v1605
      %v1623 = vsub.f32 %v1210, %v1605
      %v1624 = vsub.f32 %v1211, %v1605
      %v1625 = vsub.f32 %v1212, %v1605
      %v1626 = vsub.f32 %v1213, %v1605
      %v1627 = vsub.f32 %v1214, %v1605
      %v1628 = vsub.f32 %v1215, %v1605
      %v1629 = vsub.f32 %v1216, %v1605
      %v1630 = vsub.f32 %v1217, %v1605
      %v1631 = vsub.f32 %v1218, %v1605
      %v1632 = vsub.f32 %v1219, %v1605
      %v1633 = vsub.f32 %v1220, %v1605
      %v1634 = vsub.f32 %v1221, %v1605
      %v1635 = vsub.f32 %v1222, %v1605
      %v1636 = vsub.f32 %v1223, %v1605
      %v1637 = vsub.f32 %v1224, %v1605
      %v1638 = vsub.f32 %v1225, %v1605
      %v1639 = vsub.f32 %v1226, %v1605
      %v1640 = vsub.f32 %v1227, %v1605
      %v1641 = vsub.f32 %v1228, %v1605
      %v1642 = vsub.f32 %v1229, %v1605
      %v1643 = vsub.f32 %v1230, %v1605
      %v1644 = vsub.f32 %v1231, %v1605
      %v1645 = vsub.f32 %v1232, %v1605
      %v1646 = vsub.f32 %v1233, %v1605
      %v1647 = vlaneseq
      %v1648 = vshrl.u32 %v1647, 7
      %v1649 = vsub.s32 0, %v1648
      %v1650 = vrot.slane %v1601, %v1649
      %v1651 = vmul.f32 %v1606, %v1650
      %v1652 = vmul.f32 %v1607, %v1650
      %v1653 = vmul.f32 %v1608, %v1650
      %v1654 = vmul.f32 %v1609, %v1650
      %v1655 = vmul.f32 %v1610, %v1650
      %v1656 = vmul.f32 %v1611, %v1650
      %v1657 = vmul.f32 %v1612, %v1650
      %v1658 = vmul.f32 %v1613, %v1650
      %v1659 = vmul.f32 %v1614, %v1650
      %v1660 = vmul.f32 %v1615, %v1650
      %v1661 = vmul.f32 %v1616, %v1650
      %v1662 = vmul.f32 %v1617, %v1650
      %v1663 = vmul.f32 %v1618, %v1650
      %v1664 = vmul.f32 %v1619, %v1650
      %v1665 = vmul.f32 %v1620, %v1650
      %v1666 = vmul.f32 %v1621, %v1650
      %v1667 = vmul.f32 %v1622, %v1650
      %v1668 = vmul.f32 %v1623, %v1650
      %v1669 = vmul.f32 %v1624, %v1650
      %v1670 = vmul.f32 %v1625, %v1650
      %v1671 = vmul.f32 %v1626, %v1650
      %v1672 = vmul.f32 %v1627, %v1650
      %v1673 = vmul.f32 %v1628, %v1650
      %v1674 = vmul.f32 %v1629, %v1650
      %v1675 = vmul.f32 %v1630, %v1650
      %v1676 = vmul.f32 %v1631, %v1650
      %v1677 = vmul.f32 %v1632, %v1650
      %v1678 = vmul.f32 %v1633, %v1650
      %v1679 = vmul.f32 %v1634, %v1650
      %v1680 = vmul.f32 %v1635, %v1650
      %v1681 = vmul.f32 %v1636, %v1650
      %v1682 = vmul.f32 %v1637, %v1650
      %v1683 = vmul.f32 %v1638, %v1650
      %v1684 = vmul.f32 %v1639, %v1650
      %v1685 = vmul.f32 %v1640, %v1650
      %v1686 = vmul.f32 %v1641, %v1650
      %v1687 = vmul.f32 %v1642, %v1650
      %v1688 = vmul.f32 %v1643, %v1650
      %v1689 = vmul.f32 %v1644, %v1650
      %v1690 = vmul.f32 %v1645, %v1650
      %v1691 = vmul.f32 %v1646, %v1650
      %v1693 = vlaneseq
      %v1694 = vshrl.u32 %v1693, 7
      %v1695 = vsub.s32 0, %v1694
      %v1696 = vrot.slane %v1191, %v1695
      %v1698 = vmul.f32 %v1651, %v1696
      %v1699 = vmul.f32 %v1652, %v1696
      %v1700 = vmul.f32 %v1653, %v1696
      %v1701 = vmul.f32 %v1654, %v1696
      %v1702 = vmul.f32 %v1655, %v1696
      %v1703 = vmul.f32 %v1656, %v1696
      %v1704 = vmul.f32 %v1657, %v1696
      %v1705 = vmul.f32 %v1658, %v1696
      %v1706 = vmul.f32 %v1659, %v1696
      %v1707 = vmul.f32 %v1660, %v1696
      %v1708 = vmul.f32 %v1661, %v1696
      %v1709 = vmul.f32 %v1662, %v1696
      %v1710 = vmul.f32 %v1663, %v1696
      %v1711 = vmul.f32 %v1664, %v1696
      %v1712 = vmul.f32 %v1665, %v1696
      %v1713 = vmul.f32 %v1666, %v1696
      %v1714 = vmul.f32 %v1667, %v1696
      %v1715 = vmul.f32 %v1668, %v1696
      %v1716 = vmul.f32 %v1669, %v1696
      %v1717 = vmul.f32 %v1670, %v1696
      %v1718 = vmul.f32 %v1671, %v1696
      %v1719 = vmul.f32 %v1672, %v1696
      %v1720 = vmul.f32 %v1673, %v1696
      %v1721 = vmul.f32 %v1674, %v1696
      %v1722 = vmul.f32 %v1675, %v1696
      %v1723 = vmul.f32 %v1676, %v1696
      %v1724 = vmul.f32 %v1677, %v1696
      %v1725 = vmul.f32 %v1678, %v1696
      %v1726 = vmul.f32 %v1679, %v1696
      %v1727 = vmul.f32 %v1680, %v1696
      %v1728 = vmul.f32 %v1681, %v1696
      %v1729 = vmul.f32 %v1682, %v1696
      %v1730 = vmul.f32 %v1683, %v1696
      %v1731 = vmul.f32 %v1684, %v1696
      %v1732 = vmul.f32 %v1685, %v1696
      %v1733 = vmul.f32 %v1686, %v1696
      %v1734 = vmul.f32 %v1687, %v1696
      %v1735 = vmul.f32 %v1688, %v1696
      %v1736 = vmul.f32 %v1689, %v1696
      %v1737 = vmul.f32 %v1690, %v1696
      %v1738 = vmul.f32 %v1691, %v1696
      %v1740 = vlaneseq
      %v1741 = vshrl.u32 %v1740, 7
      %v1742 = vsub.s32 0, %v1741
      %v1743 = vrot.slane %v1192, %v1742
      %v1745 = vadd.f32 %v1698, %v1743
      %v1746 = vadd.f32 %v1699, %v1743
      %v1747 = vadd.f32 %v1700, %v1743
      %v1748 = vadd.f32 %v1701, %v1743
      %v1749 = vadd.f32 %v1702, %v1743
      %v1750 = vadd.f32 %v1703, %v1743
      %v1751 = vadd.f32 %v1704, %v1743
      %v1752 = vadd.f32 %v1705, %v1743
      %v1753 = vadd.f32 %v1706, %v1743
      %v1754 = vadd.f32 %v1707, %v1743
      %v1755 = vadd.f32 %v1708, %v1743
      %v1756 = vadd.f32 %v1709, %v1743
      %v1757 = vadd.f32 %v1710, %v1743
      %v1758 = vadd.f32 %v1711, %v1743
      %v1759 = vadd.f32 %v1712, %v1743
      %v1760 = vadd.f32 %v1713, %v1743
      %v1761 = vadd.f32 %v1714, %v1743
      %v1762 = vadd.f32 %v1715, %v1743
      %v1763 = vadd.f32 %v1716, %v1743
      %v1764 = vadd.f32 %v1717, %v1743
      %v1765 = vadd.f32 %v1718, %v1743
      %v1766 = vadd.f32 %v1719, %v1743
      %v1767 = vadd.f32 %v1720, %v1743
      %v1768 = vadd.f32 %v1721, %v1743
      %v1769 = vadd.f32 %v1722, %v1743
      %v1770 = vadd.f32 %v1723, %v1743
      %v1771 = vadd.f32 %v1724, %v1743
      %v1772 = vadd.f32 %v1725, %v1743
      %v1773 = vadd.f32 %v1726, %v1743
      %v1774 = vadd.f32 %v1727, %v1743
      %v1775 = vadd.f32 %v1728, %v1743
      %v1776 = vadd.f32 %v1729, %v1743
      %v1777 = vadd.f32 %v1730, %v1743
      %v1778 = vadd.f32 %v1731, %v1743
      %v1779 = vadd.f32 %v1732, %v1743
      %v1780 = vadd.f32 %v1733, %v1743
      %v1781 = vadd.f32 %v1734, %v1743
      %v1782 = vadd.f32 %v1735, %v1743
      %v1783 = vadd.f32 %v1736, %v1743
      %v1784 = vadd.f32 %v1737, %v1743
      %v1785 = vadd.f32 %v1738, %v1743
      %v1786 = vmax.f32 %v1745, 0.0
      %v1787 = vmax.f32 %v1746, 0.0
      %v1788 = vmax.f32 %v1747, 0.0
      %v1789 = vmax.f32 %v1748, 0.0
      %v1790 = vmax.f32 %v1749, 0.0
      %v1791 = vmax.f32 %v1750, 0.0
      %v1792 = vmax.f32 %v1751, 0.0
      %v1793 = vmax.f32 %v1752, 0.0
      %v1794 = vmax.f32 %v1753, 0.0
      %v1795 = vmax.f32 %v1754, 0.0
      %v1796 = vmax.f32 %v1755, 0.0
      %v1797 = vmax.f32 %v1756, 0.0
      %v1798 = vmax.f32 %v1757, 0.0
      %v1799 = vmax.f32 %v1758, 0.0
      %v1800 = vmax.f32 %v1759, 0.0
      %v1801 = vmax.f32 %v1760, 0.0
      %v1802 = vmax.f32 %v1761, 0.0
      %v1803 = vmax.f32 %v1762, 0.0
      %v1804 = vmax.f32 %v1763, 0.0
      %v1805 = vmax.f32 %v1764, 0.0
      %v1806 = vmax.f32 %v1765, 0.0
      %v1807 = vmax.f32 %v1766, 0.0
      %v1808 = vmax.f32 %v1767, 0.0
      %v1809 = vmax.f32 %v1768, 0.0
      %v1810 = vmax.f32 %v1769, 0.0
      %v1811 = vmax.f32 %v1770, 0.0
      %v1812 = vmax.f32 %v1771, 0.0
      %v1813 = vmax.f32 %v1772, 0.0
      %v1814 = vmax.f32 %v1773, 0.0
      %v1815 = vmax.f32 %v1774, 0.0
      %v1816 = vmax.f32 %v1775, 0.0
      %v1817 = vmax.f32 %v1776, 0.0
      %v1818 = vmax.f32 %v1777, 0.0
      %v1819 = vmax.f32 %v1778, 0.0
      %v1820 = vmax.f32 %v1779, 0.0
      %v1821 = vmax.f32 %v1780, 0.0
      %v1822 = vmax.f32 %v1781, 0.0
      %v1823 = vmax.f32 %v1782, 0.0
      %v1824 = vmax.f32 %v1783, 0.0
      %v1825 = vmax.f32 %v1784, 0.0
      %v1826 = vmax.f32 %v1785, 0.0
      %v1827 = vsel %vm691, %v1786, 0.0
      %v1828 = vsel %vm692, %v1787, 0.0
      %v1829 = vsel %vm693, %v1788, 0.0
      %v1830 = vsel %vm694, %v1789, 0.0
      %v1831 = vsel %vm695, %v1790, 0.0
      %v1832 = vsel %vm696, %v1791, 0.0
      %v1833 = vsel %vm697, %v1792, 0.0
      %v1834 = vsel %vm698, %v1793, 0.0
      %v1835 = vsel %vm699, %v1794, 0.0
      %v1836 = vsel %vm700, %v1795, 0.0
      %v1837 = vsel %vm701, %v1796, 0.0
      %v1838 = vsel %vm702, %v1797, 0.0
      %v1839 = vsel %vm703, %v1798, 0.0
      %v1840 = vsel %vm704, %v1799, 0.0
      %v1841 = vsel %vm705, %v1800, 0.0
      %v1842 = vsel %vm706, %v1801, 0.0
      %v1843 = vsel %vm707, %v1802, 0.0
      %v1844 = vsel %vm708, %v1803, 0.0
      %v1845 = vsel %vm709, %v1804, 0.0
      %v1846 = vsel %vm710, %v1805, 0.0
      %v1847 = vsel %vm711, %v1806, 0.0
      %v1848 = vsel %vm712, %v1807, 0.0
      %v1849 = vsel %vm713, %v1808, 0.0
      %v1850 = vsel %vm714, %v1809, 0.0
      %v1851 = vsel %vm715, %v1810, 0.0
      %v1852 = vsel %vm716, %v1811, 0.0
      %v1853 = vsel %vm717, %v1812, 0.0
      %v1854 = vsel %vm718, %v1813, 0.0
      %v1855 = vsel %vm719, %v1814, 0.0
      %v1856 = vsel %vm720, %v1815, 0.0
      %v1857 = vsel %vm721, %v1816, 0.0
      %v1858 = vsel %vm722, %v1817, 0.0
      %v1859 = vsel %vm723, %v1818, 0.0
      %v1860 = vsel %vm724, %v1819, 0.0
      %v1861 = vsel %vm725, %v1820, 0.0
      %v1862 = vsel %vm726, %v1821, 0.0
      %v1863 = vsel %vm727, %v1822, 0.0
      %v1864 = vsel %vm728, %v1823, 0.0
      %v1865 = vsel %vm729, %v1824, 0.0
      %v1866 = vsel %vm730, %v1825, 0.0
      %v1867 = vsel %vm731, %v1826, 0.0
      %1868 = vst.msk [vmem:[#allocation2 + $0x18] sm:$0xff] %vm1234, %v1827
      %1869 = vst.msk [vmem:[#allocation2 + $0x20] sm:$0xff] %vm1234, %v1828
      %1870 = vst.msk [vmem:[#allocation2 + $0x28] sm:$0xff] %vm1234, %v1829
      %1871 = vst.msk [vmem:[#allocation2 + $0x30] sm:$0xff] %vm1234, %v1830
      %1872 = vst.msk [vmem:[#allocation2 + $0x38] sm:$0xff] %vm1234, %v1831
      %1873 = vst.msk [vmem:[#allocation2 + $0x40] sm:$0xff] %vm1234, %v1832
      %1874 = vst.msk [vmem:[#allocation2 + $0x48] sm:$0xff] %vm1234, %v1833
      %1875 = vst.msk [vmem:[#allocation2 + $0x50] sm:$0xff] %vm1234, %v1834
      %1876 = vst.msk [vmem:[#allocation2 + $0x58] sm:$0xff] %vm1234, %v1835
      %1877 = vst.msk [vmem:[#allocation2 + $0x60] sm:$0xff] %vm1234, %v1836
      %1878 = vst.msk [vmem:[#allocation2 + $0x68] sm:$0xff] %vm1234, %v1837
      %1879 = vst.msk [vmem:[#allocation2 + $0x70] sm:$0xff] %vm1234, %v1838
      %1880 = vst.msk [vmem:[#allocation2 + $0x78] sm:$0xff] %vm1234, %v1839
      %1881 = vst.msk [vmem:[#allocation2 + $0x80] sm:$0xff] %vm1234, %v1840
      %1882 = vst.msk [vmem:[#allocation2 + $0x88] sm:$0xff] %vm1234, %v1841
      %1883 = vst.msk [vmem:[#allocation2 + $0x90] sm:$0xff] %vm1234, %v1842
      %1884 = vst.msk [vmem:[#allocation2 + $0x98] sm:$0xff] %vm1234, %v1843
      %1885 = vst.msk [vmem:[#allocation2 + $0xa0] sm:$0xff] %vm1234, %v1844
      %1886 = vst.msk [vmem:[#allocation2 + $0xa8] sm:$0xff] %vm1234, %v1845
      %1887 = vst.msk [vmem:[#allocation2 + $0xb0] sm:$0xff] %vm1234, %v1846
      %1888 = vst.msk [vmem:[#allocation2 + $0xb8] sm:$0xff] %vm1234, %v1847
      %1889 = vst.msk [vmem:[#allocation2 + $0xc0] sm:$0xff] %vm1234, %v1848
      %1890 = vst.msk [vmem:[#allocation2 + $0xc8] sm:$0xff] %vm1234, %v1849
      %1891 = vst.msk [vmem:[#allocation2 + $0xd0] sm:$0xff] %vm1234, %v1850
      %1892 = vst.msk [vmem:[#allocation2 + $0xd8] sm:$0xff] %vm1234, %v1851
      %1893 = vst.msk [vmem:[#allocation2 + $0xe0] sm:$0xff] %vm1234, %v1852
      %1894 = vst.msk [vmem:[#allocation2 + $0xe8] sm:$0xff] %vm1234, %v1853
      %1895 = vst.msk [vmem:[#allocation2 + $0xf0] sm:$0xff] %vm1234, %v1854
      %1896 = vst.msk [vmem:[#allocation2 + $0xf8] sm:$0xff] %vm1234, %v1855
      %1897 = vst.msk [vmem:[#allocation2 + $0x100] sm:$0xff] %vm1234, %v1856
      %1898 = vst.msk [vmem:[#allocation2 + $0x108] sm:$0xff] %vm1234, %v1857
      %1899 = vst.msk [vmem:[#allocation2 + $0x110] sm:$0xff] %vm1234, %v1858
      %1900 = vst.msk [vmem:[#allocation2 + $0x118] sm:$0xff] %vm1234, %v1859
      %1901 = vst.msk [vmem:[#allocation2 + $0x120] sm:$0xff] %vm1234, %v1860
      %1902 = vst.msk [vmem:[#allocation2 + $0x128] sm:$0xff] %vm1234, %v1861
      %1903 = vst.msk [vmem:[#allocation2 + $0x130] sm:$0xff] %vm1234, %v1862
      %1904 = vst.msk [vmem:[#allocation2 + $0x138] sm:$0xff] %vm1234, %v1863
      %1905 = vst.msk [vmem:[#allocation2 + $0x140] sm:$0xff] %vm1234, %v1864
      %1906 = vst.msk [vmem:[#allocation2 + $0x148] sm:$0xff] %vm1234, %v1865
      %1907 = vst.msk [vmem:[#allocation2 + $0x150] sm:$0xff] %vm1234, %v1866
      %1908 = vst.msk [vmem:[#allocation2 + $0x158] sm:$0xff] %vm1234, %v1867
      %v1909 = vld [vmem:[%s8] sm:$0x1]
      %v1910 = vld [vmem:[#allocation2 + $0x5] sm:$0xff]
      %v1911 = vld [vmem:[#allocation2 + $0xd] sm:$0xff]
      %v1912 = vld [vmem:[#allocation2 + $0x15] sm:$0xff]
      %v1913 = vld [vmem:[#allocation2 + $0x1d] sm:$0xff]
      %v1914 = vld [vmem:[#allocation2 + $0x25] sm:$0xff]
      %v1915 = vld [vmem:[#allocation2 + $0x2d] sm:$0xff]
      %v1916 = vld [vmem:[#allocation2 + $0x35] sm:$0xff]
      %v1917 = vld [vmem:[#allocation2 + $0x3d] sm:$0xff]
      %v1918 = vld [vmem:[#allocation2 + $0x45] sm:$0xff]
      %v1919 = vld [vmem:[#allocation2 + $0x4d] sm:$0xff]
      %v1920 = vld [vmem:[#allocation2 + $0x55] sm:$0xff]
      %v1921 = vld [vmem:[#allocation2 + $0x5d] sm:$0xff]
      %v1922 = vld [vmem:[#allocation2 + $0x65] sm:$0xff]
      %v1923 = vld [vmem:[#allocation2 + $0x6d] sm:$0xff]
      %v1924 = vld [vmem:[#allocation2 + $0x75] sm:$0xff]
      %v1925 = vld [vmem:[#allocation2 + $0x7d] sm:$0xff]
      %v1926 = vld [vmem:[#allocation2 + $0x85] sm:$0xff]
      %v1927 = vld [vmem:[#allocation2 + $0x8d] sm:$0xff]
      %v1928 = vld [vmem:[#allocation2 + $0x95] sm:$0xff]
      %v1929 = vld [vmem:[#allocation2 + $0x9d] sm:$0xff]
      %v1930 = vld [vmem:[#allocation2 + $0xa5] sm:$0xff]
      %v1931 = vld [vmem:[#allocation2 + $0xad] sm:$0xff]
      %v1932 = vld [vmem:[#allocation2 + $0xb5] sm:$0xff]
      %v1933 = vld [vmem:[#allocation2 + $0xbd] sm:$0xff]
      %v1934 = vld [vmem:[#allocation2 + $0xc5] sm:$0xff]
      %v1935 = vld [vmem:[#allocation2 + $0xcd] sm:$0xff]
      %v1936 = vld [vmem:[#allocation2 + $0xd5] sm:$0xff]
      %v1937 = vld [vmem:[#allocation2 + $0xdd] sm:$0xff]
      %v1938 = vld [vmem:[#allocation2 + $0xe5] sm:$0xff]
      %v1939 = vld [vmem:[#allocation2 + $0xed] sm:$0xff]
      %v1940 = vld [vmem:[#allocation2 + $0xf5] sm:$0xff]
      %v1941 = vld [vmem:[#allocation2 + $0xfd] sm:$0xff]
      %v1942 = vld [vmem:[#allocation2 + $0x105] sm:$0xff]
      %v1943 = vld [vmem:[#allocation2 + $0x10d] sm:$0xff]
      %v1944 = vld [vmem:[#allocation2 + $0x115] sm:$0xff]
      %v1945 = vld [vmem:[#allocation2 + $0x11d] sm:$0xff]
      %v1946 = vld [vmem:[#allocation2 + $0x125] sm:$0xff]
      %v1947 = vld [vmem:[#allocation2 + $0x12d] sm:$0xff]
      %v1948 = vld [vmem:[#allocation2 + $0x135] sm:$0xff]
      %v1949 = vld [vmem:[#allocation2 + $0x13d] sm:$0xff]
      %v1950 = vld [vmem:[#allocation2 + $0x145] sm:$0xff]
      %v1951 = vpack.c.bf16 %v1911, %v1910
      %v1952 = vpack.c.bf16 %v1913, %v1912
      %v1953 = vpack.c.bf16 %v1915, %v1914
      %v1954 = vpack.c.bf16 %v1917, %v1916
      %v1955 = vpack.c.bf16 %v1919, %v1918
      %v1956 = vpack.c.bf16 %v1921, %v1920
      %v1957 = vpack.c.bf16 %v1923, %v1922
      %v1958 = vpack.c.bf16 %v1925, %v1924
      %v1959 = vpack.c.bf16 %v1927, %v1926
      %v1960 = vpack.c.bf16 %v1929, %v1928
      %v1961 = vpack.c.bf16 %v1931, %v1930
      %v1962 = vpack.c.bf16 %v1933, %v1932
      %v1963 = vpack.c.bf16 %v1935, %v1934
      %v1964 = vpack.c.bf16 %v1937, %v1936
      %v1965 = vpack.c.bf16 %v1939, %v1938
      %v1966 = vpack.c.bf16 %v1941, %v1940
      %v1967 = vpack.c.bf16 %v1943, %v1942
      %v1968 = vpack.c.bf16 %v1945, %v1944
      %v1969 = vpack.c.bf16 %v1947, %v1946
      %v1970 = vpack.c.bf16 %v1949, %v1948
      %v1971 = vpack.c.bf16 %v1950, %v1950
      %v1972 = vld [vmem:[%s7] sm:$0xf]
      %v1973 = vld [vmem:[%s7 + $0x4] sm:$0xf]
      %v1974 = vld [vmem:[%s7 + $0x8] sm:$0xf]
      %v1975 = vld [vmem:[%s7 + $0xc] sm:$0xf]
      %v1976 = vld [vmem:[%s7 + $0x10] sm:$0xf]
      %v1977 = vld [vmem:[%s7 + $0x14] sm:$0xf]
      %v1978 = vld [vmem:[%s7 + $0x18] sm:$0xf]
      %v1979 = vld [vmem:[%s7 + $0x1c] sm:$0xf]
      %v1980 = vld [vmem:[#allocation2 + $0x6] sm:$0xff]
      %v1981 = vld [vmem:[#allocation2 + $0xe] sm:$0xff]
      %v1982 = vld [vmem:[#allocation2 + $0x16] sm:$0xff]
      %v1983 = vld [vmem:[#allocation2 + $0x1e] sm:$0xff]
      %v1984 = vld [vmem:[#allocation2 + $0x26] sm:$0xff]
      %v1985 = vld [vmem:[#allocation2 + $0x2e] sm:$0xff]
      %v1986 = vld [vmem:[#allocation2 + $0x36] sm:$0xff]
      %v1987 = vld [vmem:[#allocation2 + $0x3e] sm:$0xff]
      %v1988 = vld [vmem:[#allocation2 + $0x46] sm:$0xff]
      %v1989 = vld [vmem:[#allocation2 + $0x4e] sm:$0xff]
      %v1990 = vld [vmem:[#allocation2 + $0x56] sm:$0xff]
      %v1991 = vld [vmem:[#allocation2 + $0x5e] sm:$0xff]
      %v1992 = vld [vmem:[#allocation2 + $0x66] sm:$0xff]
      %v1993 = vld [vmem:[#allocation2 + $0x6e] sm:$0xff]
      %v1994 = vld [vmem:[#allocation2 + $0x76] sm:$0xff]
      %v1995 = vld [vmem:[#allocation2 + $0x7e] sm:$0xff]
      %v1996 = vld [vmem:[#allocation2 + $0x86] sm:$0xff]
      %v1997 = vld [vmem:[#allocation2 + $0x8e] sm:$0xff]
      %v1998 = vld [vmem:[#allocation2 + $0x96] sm:$0xff]
      %v1999 = vld [vmem:[#allocation2 + $0x9e] sm:$0xff]
      %v2000 = vld [vmem:[#allocation2 + $0xa6] sm:$0xff]
      %v2001 = vld [vmem:[#allocation2 + $0xae] sm:$0xff]
      %v2002 = vld [vmem:[#allocation2 + $0xb6] sm:$0xff]
      %v2003 = vld [vmem:[#allocation2 + $0xbe] sm:$0xff]
      %v2004 = vld [vmem:[#allocation2 + $0xc6] sm:$0xff]
      %v2005 = vld [vmem:[#allocation2 + $0xce] sm:$0xff]
      %v2006 = vld [vmem:[#allocation2 + $0xd6] sm:$0xff]
      %v2007 = vld [vmem:[#allocation2 + $0xde] sm:$0xff]
      %v2008 = vld [vmem:[#allocation2 + $0xe6] sm:$0xff]
      %v2009 = vld [vmem:[#allocation2 + $0xee] sm:$0xff]
      %v2010 = vld [vmem:[#allocation2 + $0xf6] sm:$0xff]
      %v2011 = vld [vmem:[#allocation2 + $0xfe] sm:$0xff]
      %v2012 = vld [vmem:[#allocation2 + $0x106] sm:$0xff]
      %v2013 = vld [vmem:[#allocation2 + $0x10e] sm:$0xff]
      %v2014 = vld [vmem:[#allocation2 + $0x116] sm:$0xff]
      %v2015 = vld [vmem:[#allocation2 + $0x11e] sm:$0xff]
      %v2016 = vld [vmem:[#allocation2 + $0x126] sm:$0xff]
      %v2017 = vld [vmem:[#allocation2 + $0x12e] sm:$0xff]
      %v2018 = vld [vmem:[#allocation2 + $0x136] sm:$0xff]
      %v2019 = vld [vmem:[#allocation2 + $0x13e] sm:$0xff]
      %v2020 = vld [vmem:[#allocation2 + $0x146] sm:$0xff]
      %v2021 = vpack.c.bf16 %v1981, %v1980
      %v2022 = vpack.c.bf16 %v1983, %v1982
      %v2023 = vpack.c.bf16 %v1985, %v1984
      %v2024 = vpack.c.bf16 %v1987, %v1986
      %v2025 = vpack.c.bf16 %v1989, %v1988
      %v2026 = vpack.c.bf16 %v1991, %v1990
      %v2027 = vpack.c.bf16 %v1993, %v1992
      %v2028 = vpack.c.bf16 %v1995, %v1994
      %v2029 = vpack.c.bf16 %v1997, %v1996
      %v2030 = vpack.c.bf16 %v1999, %v1998
      %v2031 = vpack.c.bf16 %v2001, %v2000
      %v2032 = vpack.c.bf16 %v2003, %v2002
      %v2033 = vpack.c.bf16 %v2005, %v2004
      %v2034 = vpack.c.bf16 %v2007, %v2006
      %v2035 = vpack.c.bf16 %v2009, %v2008
      %v2036 = vpack.c.bf16 %v2011, %v2010
      %v2037 = vpack.c.bf16 %v2013, %v2012
      %v2038 = vpack.c.bf16 %v2015, %v2014
      %v2039 = vpack.c.bf16 %v2017, %v2016
      %v2040 = vpack.c.bf16 %v2019, %v2018
      %v2041 = vpack.c.bf16 %v2020, %v2020
      %s2042 = scalar_lea.vmem %s7, 32
      %v2043 = vld [vmem:[%s2042] sm:$0xf]
      %v2044 = vld [vmem:[%s2042 + $0x4] sm:$0xf]
      %v2045 = vld [vmem:[%s2042 + $0x8] sm:$0xf]
      %v2046 = vld [vmem:[%s2042 + $0xc] sm:$0xf]
      %v2047 = vld [vmem:[%s2042 + $0x10] sm:$0xf]
      %v2048 = vld [vmem:[%s2042 + $0x14] sm:$0xf]
      %v2049 = vld [vmem:[%s2042 + $0x18] sm:$0xf]
      %v2050 = vld [vmem:[%s2042 + $0x1c] sm:$0xf]
      %v2059 = vunpack.c.l.b16 %v2043
      %v2060 = vunpack.c.l.b16 %v2044
      %v2061 = vunpack.c.l.b16 %v2045
      %v2062 = vunpack.c.l.b16 %v2046
      %v2063 = vunpack.c.l.b16 %v2047
      %v2064 = vunpack.c.l.b16 %v2048
      %v2065 = vunpack.c.l.b16 %v2049
      %v2066 = vunpack.c.l.b16 %v2050
      %v2067 = vpack.c.b16 %v2060, %v2059
      %v2068 = vpack.c.b16 %v2062, %v2061
      %v2069 = vpack.c.b16 %v2064, %v2063
      %v2070 = vpack.c.b16 %v2066, %v2065
      %v2076 = vsel %vm1234, %v2021, 0
      %v2079 = vsel %vm1234, %v2022, 0
      %v2082 = vsel %vm1234, %v2023, 0
      %v2085 = vsel %vm1234, %v2024, 0
      %v2088 = vsel %vm1234, %v2025, 0
      %v2091 = vsel %vm1234, %v2026, 0
      %v2094 = vsel %vm1234, %v2027, 0
      %v2097 = vsel %vm1234, %v2028, 0
      %v2100 = vsel %vm1234, %v2029, 0
      %v2103 = vsel %vm1234, %v2030, 0
      %v2106 = vsel %vm1234, %v2031, 0
      %v2109 = vsel %vm1234, %v2032, 0
      %v2112 = vsel %vm1234, %v2033, 0
      %v2115 = vsel %vm1234, %v2034, 0
      %v2118 = vsel %vm1234, %v2035, 0
      %v2121 = vsel %vm1234, %v2036, 0
      %v2124 = vsel %vm1234, %v2037, 0
      %v2127 = vsel %vm1234, %v2038, 0
      %v2130 = vsel %vm1234, %v2039, 0
      %v2133 = vsel %vm1234, %v2040, 0
      %v2136 = vsel %vm1234, %v2041, 0
      %2138 = vmatprep.subr.bf16.mxu0 0
      %2139 = vmatpush1.bf16.msra.mxu0 %v2067
      %2140 = vmatprep.subr.bf16.mxu0 0
      %2141 = vmatpush1.bf16.msra.mxu0 %v2068
      %2142 = vmatprep.subr.bf16.mxu0 0
      %2143 = vmatpush1.bf16.msra.mxu0 %v2069
      %2144 = vmatprep.subr.bf16.mxu0 0
      %2145 = vmatpush1.bf16.msra.mxu0 %v2070
      %2146 = vmatprep.subr.bf16.mxu0 0
      %2147 = vmatpush1.bf16.msra.mxu0 0
      %2148 = vmatprep.subr.bf16.mxu0 0
      %2149 = vmatpush1.bf16.msra.mxu0 0
      %2150 = vmatprep.subr.bf16.mxu0 0
      %2151 = vmatpush1.bf16.msra.mxu0 0
      %2152 = vmatprep.subr.bf16.mxu0 0
      %2153 = vmatpush1.bf16.msra.mxu0 0
      %2154 = vmatprep.subr.bf16.mxu0 0
      %2155 = vmatpush1.bf16.msra.mxu0 0
      %2156 = vmatprep.subr.bf16.mxu0 0
      %2157 = vmatpush1.bf16.msra.mxu0 0
      %2158 = vmatprep.subr.bf16.mxu0 0
      %2159 = vmatpush1.bf16.msra.mxu0 0
      %2160 = vmatprep.subr.bf16.mxu0 0
      %2161 = vmatpush1.bf16.msra.mxu0 0
      %2162 = vmatprep.subr.bf16.mxu0 0
      %2163 = vmatpush1.bf16.msra.mxu0 0
      %2164 = vmatprep.subr.bf16.mxu0 0
      %2165 = vmatpush1.bf16.msra.mxu0 0
      %2166 = vmatprep.subr.bf16.mxu0 0
      %2167 = vmatpush1.bf16.msra.mxu0 0
      %2168 = vmatprep.subr.bf16.mxu0 0
      %2169 = vmatpush1.bf16.msra.mxu0 0
      %2170 = vmatprep.mubr.bf16.mxu0 0
      %2171 = vmatmul.mubr.bf16.gmra.mrb[0].mxu0 %v2076
      %v2172 = vpop.f32.mrb[0].mxu0
      %v2173 = vadd.f32 0.0, %v2172
      %v2174 = vpop.f32.mrb[0].mxu0
      %v2175 = vpop.f32.mrb[0].mxu0
      %v2176 = vadd.f32 0.0, %v2175
      %v2177 = vpop.f32.mrb[0].mxu0
      %2178 = vmatprep.mubr.bf16.mxu0 0
      %2179 = vmatmul.mubr.bf16.gmra.mrb[0].mxu0 %v2079
      %v2180 = vpop.f32.mrb[0].mxu0
      %v2181 = vadd.f32 0.0, %v2180
      %v2182 = vpop.f32.mrb[0].mxu0
      %v2183 = vpop.f32.mrb[0].mxu0
      %v2184 = vadd.f32 0.0, %v2183
      %v2185 = vpop.f32.mrb[0].mxu0
      %2186 = vmatprep.mubr.bf16.mxu0 0
      %2187 = vmatmul.mubr.bf16.gmra.mrb[0].mxu0 %v2082
      %v2188 = vpop.f32.mrb[0].mxu0
      %v2189 = vadd.f32 0.0, %v2188
      %v2190 = vpop.f32.mrb[0].mxu0
      %v2191 = vpop.f32.mrb[0].mxu0
      %v2192 = vadd.f32 0.0, %v2191
      %v2193 = vpop.f32.mrb[0].mxu0
      %2194 = vmatprep.mubr.bf16.mxu0 0
      %2195 = vmatmul.mubr.bf16.gmra.mrb[0].mxu0 %v2085
      %v2196 = vpop.f32.mrb[0].mxu0
      %v2197 = vadd.f32 0.0, %v2196
      %v2198 = vpop.f32.mrb[0].mxu0
      %v2199 = vpop.f32.mrb[0].mxu0
      %v2200 = vadd.f32 0.0, %v2199
      %v2201 = vpop.f32.mrb[0].mxu0
      %2202 = vmatprep.mubr.bf16.mxu0 0
      %2203 = vmatmul.mubr.bf16.gmra.mrb[0].mxu0 %v2088
      %v2204 = vpop.f32.mrb[0].mxu0
      %v2205 = vadd.f32 0.0, %v2204
      %v2206 = vpop.f32.mrb[0].mxu0
      %v2207 = vpop.f32.mrb[0].mxu0
      %v2208 = vadd.f32 0.0, %v2207
      %v2209 = vpop.f32.mrb[0].mxu0
      %2210 = vmatprep.mubr.bf16.mxu0 0
      %2211 = vmatmul.mubr.bf16.gmra.mrb[0].mxu0 %v2091
      %v2212 = vpop.f32.mrb[0].mxu0
      %v2213 = vadd.f32 0.0, %v2212
      %v2214 = vpop.f32.mrb[0].mxu0
      %v2215 = vpop.f32.mrb[0].mxu0
      %v2216 = vadd.f32 0.0, %v2215
      %v2217 = vpop.f32.mrb[0].mxu0
      %2218 = vmatprep.mubr.bf16.mxu0 0
      %2219 = vmatmul.mubr.bf16.gmra.mrb[0].mxu0 %v2094
      %v2220 = vpop.f32.mrb[0].mxu0
      %v2221 = vadd.f32 0.0, %v2220
      %v2222 = vpop.f32.mrb[0].mxu0
      %v2223 = vpop.f32.mrb[0].mxu0
      %v2224 = vadd.f32 0.0, %v2223
      %v2225 = vpop.f32.mrb[0].mxu0
      %2226 = vmatprep.mubr.bf16.mxu0 0
      %2227 = vmatmul.mubr.bf16.gmra.mrb[0].mxu0 %v2097
      %v2228 = vpop.f32.mrb[0].mxu0
      %v2229 = vadd.f32 0.0, %v2228
      %v2230 = vpop.f32.mrb[0].mxu0
      %v2231 = vpop.f32.mrb[0].mxu0
      %v2232 = vadd.f32 0.0, %v2231
      %v2233 = vpop.f32.mrb[0].mxu0
      %2234 = vmatprep.mubr.bf16.mxu0 0
      %2235 = vmatmul.mubr.bf16.gmra.mrb[0].mxu0 %v2100
      %v2236 = vpop.f32.mrb[0].mxu0
      %v2237 = vadd.f32 0.0, %v2236
      %v2238 = vpop.f32.mrb[0].mxu0
      %v2239 = vpop.f32.mrb[0].mxu0
      %v2240 = vadd.f32 0.0, %v2239
      %v2241 = vpop.f32.mrb[0].mxu0
      %2242 = vmatprep.mubr.bf16.mxu0 0
      %2243 = vmatmul.mubr.bf16.gmra.mrb[0].mxu0 %v2103
      %v2244 = vpop.f32.mrb[0].mxu0
      %v2245 = vadd.f32 0.0, %v2244
      %v2246 = vpop.f32.mrb[0].mxu0
      %v2247 = vpop.f32.mrb[0].mxu0
      %v2248 = vadd.f32 0.0, %v2247
      %v2249 = vpop.f32.mrb[0].mxu0
      %2250 = vmatprep.mubr.bf16.mxu0 0
      %2251 = vmatmul.mubr.bf16.gmra.mrb[0].mxu0 %v2106
      %v2252 = vpop.f32.mrb[0].mxu0
      %v2253 = vadd.f32 0.0, %v2252
      %v2254 = vpop.f32.mrb[0].mxu0
      %v2255 = vpop.f32.mrb[0].mxu0
      %v2256 = vadd.f32 0.0, %v2255
      %v2257 = vpop.f32.mrb[0].mxu0
      %2258 = vmatprep.mubr.bf16.mxu0 0
      %2259 = vmatmul.mubr.bf16.gmra.mrb[0].mxu0 %v2109
      %v2260 = vpop.f32.mrb[0].mxu0
      %v2261 = vadd.f32 0.0, %v2260
      %v2262 = vpop.f32.mrb[0].mxu0
      %v2263 = vpop.f32.mrb[0].mxu0
      %v2264 = vadd.f32 0.0, %v2263
      %v2265 = vpop.f32.mrb[0].mxu0
      %2266 = vmatprep.mubr.bf16.mxu0 0
      %2267 = vmatmul.mubr.bf16.gmra.mrb[0].mxu0 %v2112
      %v2268 = vpop.f32.mrb[0].mxu0
      %v2269 = vadd.f32 0.0, %v2268
      %v2270 = vpop.f32.mrb[0].mxu0
      %v2271 = vpop.f32.mrb[0].mxu0
      %v2272 = vadd.f32 0.0, %v2271
      %v2273 = vpop.f32.mrb[0].mxu0
      %2274 = vmatprep.mubr.bf16.mxu0 0
      %2275 = vmatmul.mubr.bf16.gmra.mrb[0].mxu0 %v2115
      %v2276 = vpop.f32.mrb[0].mxu0
      %v2277 = vadd.f32 0.0, %v2276
      %v2278 = vpop.f32.mrb[0].mxu0
      %v2279 = vpop.f32.mrb[0].mxu0
      %v2280 = vadd.f32 0.0, %v2279
      %v2281 = vpop.f32.mrb[0].mxu0
      %2282 = vmatprep.mubr.bf16.mxu0 0
      %2283 = vmatmul.mubr.bf16.gmra.mrb[0].mxu0 %v2118
      %v2284 = vpop.f32.mrb[0].mxu0
      %v2285 = vadd.f32 0.0, %v2284
      %v2286 = vpop.f32.mrb[0].mxu0
      %v2287 = vpop.f32.mrb[0].mxu0
      %v2288 = vadd.f32 0.0, %v2287
      %v2289 = vpop.f32.mrb[0].mxu0
      %2290 = vmatprep.mubr.bf16.mxu0 0
      %2291 = vmatmul.mubr.bf16.gmra.mrb[0].mxu0 %v2121
      %v2292 = vpop.f32.mrb[0].mxu0
      %v2293 = vadd.f32 0.0, %v2292
      %v2294 = vpop.f32.mrb[0].mxu0
      %v2295 = vpop.f32.mrb[0].mxu0
      %v2296 = vadd.f32 0.0, %v2295
      %v2297 = vpop.f32.mrb[0].mxu0
      %2298 = vmatprep.mubr.bf16.mxu0 0
      %2299 = vmatmul.mubr.bf16.gmra.mrb[0].mxu0 %v2124
      %v2300 = vpop.f32.mrb[0].mxu0
      %v2301 = vadd.f32 0.0, %v2300
      %v2302 = vpop.f32.mrb[0].mxu0
      %v2303 = vpop.f32.mrb[0].mxu0
      %v2304 = vadd.f32 0.0, %v2303
      %v2305 = vpop.f32.mrb[0].mxu0
      %2306 = vmatprep.mubr.bf16.mxu0 0
      %2307 = vmatmul.mubr.bf16.gmra.mrb[0].mxu0 %v2127
      %v2308 = vpop.f32.mrb[0].mxu0
      %v2309 = vadd.f32 0.0, %v2308
      %v2310 = vpop.f32.mrb[0].mxu0
      %v2311 = vpop.f32.mrb[0].mxu0
      %v2312 = vadd.f32 0.0, %v2311
      %v2313 = vpop.f32.mrb[0].mxu0
      %2314 = vmatprep.mubr.bf16.mxu0 0
      %2315 = vmatmul.mubr.bf16.gmra.mrb[0].mxu0 %v2130
      %v2316 = vpop.f32.mrb[0].mxu0
      %v2317 = vadd.f32 0.0, %v2316
      %v2318 = vpop.f32.mrb[0].mxu0
      %v2319 = vpop.f32.mrb[0].mxu0
      %v2320 = vadd.f32 0.0, %v2319
      %v2321 = vpop.f32.mrb[0].mxu0
      %2322 = vmatprep.mubr.bf16.mxu0 0
      %2323 = vmatmul.mubr.bf16.gmra.mrb[0].mxu0 %v2133
      %v2324 = vpop.f32.mrb[0].mxu0
      %v2325 = vadd.f32 0.0, %v2324
      %v2326 = vpop.f32.mrb[0].mxu0
      %v2327 = vpop.f32.mrb[0].mxu0
      %v2328 = vadd.f32 0.0, %v2327
      %v2329 = vpop.f32.mrb[0].mxu0
      %2330 = vmatprep.mubr.bf16.mxu0 0
      %2331 = vmatmul.mubr.bf16.gmra.mrb[0].mxu0 %v2136
      %v2332 = vpop.f32.mrb[0].mxu0
      %v2333 = vadd.f32 0.0, %v2332
      %v2334 = vpop.f32.mrb[0].mxu0
      %v2335 = vpop.f32.mrb[0].mxu0
      %v2336 = vpop.f32.mrb[0].mxu0
      %2337 = vdwg.mxu0
      %v2346 = vunpack.c.l.b16 %v1972
      %v2347 = vunpack.c.l.b16 %v1973
      %v2348 = vunpack.c.l.b16 %v1974
      %v2349 = vunpack.c.l.b16 %v1975
      %v2350 = vunpack.c.l.b16 %v1976
      %v2351 = vunpack.c.l.b16 %v1977
      %v2352 = vunpack.c.l.b16 %v1978
      %v2353 = vunpack.c.l.b16 %v1979
      %v2354 = vpack.c.b16 %v2347, %v2346
      %v2355 = vpack.c.b16 %v2349, %v2348
      %v2356 = vpack.c.b16 %v2351, %v2350
      %v2357 = vpack.c.b16 %v2353, %v2352
      %v2363 = vsel %vm1234, %v1951, 0
      %v2366 = vsel %vm1234, %v1952, 0
      %v2369 = vsel %vm1234, %v1953, 0
      %v2372 = vsel %vm1234, %v1954, 0
      %v2375 = vsel %vm1234, %v1955, 0
      %v2378 = vsel %vm1234, %v1956, 0
      %v2381 = vsel %vm1234, %v1957, 0
      %v2384 = vsel %vm1234, %v1958, 0
      %v2387 = vsel %vm1234, %v1959, 0
      %v2390 = vsel %vm1234, %v1960, 0
      %v2393 = vsel %vm1234, %v1961, 0
      %v2396 = vsel %vm1234, %v1962, 0
      %v2399 = vsel %vm1234, %v1963, 0
      %v2402 = vsel %vm1234, %v1964, 0
      %v2405 = vsel %vm1234, %v1965, 0
      %v2408 = vsel %vm1234, %v1966, 0
      %v2411 = vsel %vm1234, %v1967, 0
      %v2414 = vsel %vm1234, %v1968, 0
      %v2417 = vsel %vm1234, %v1969, 0
      %v2420 = vsel %vm1234, %v1970, 0
      %v2423 = vsel %vm1234, %v1971, 0
      %2425 = vmatprep.subr.bf16.mxu0 0
      %2426 = vmatpush1.bf16.msra.mxu0 %v2354
      %2427 = vmatprep.subr.bf16.mxu0 0
      %2428 = vmatpush1.bf16.msra.mxu0 %v2355
      %2429 = vmatprep.subr.bf16.mxu0 0
      %2430 = vmatpush1.bf16.msra.mxu0 %v2356
      %2431 = vmatprep.subr.bf16.mxu0 0
      %2432 = vmatpush1.bf16.msra.mxu0 %v2357
      %2433 = vmatprep.subr.bf16.mxu0 0
      %2434 = vmatpush1.bf16.msra.mxu0 0
      %2435 = vmatprep.subr.bf16.mxu0 0
      %2436 = vmatpush1.bf16.msra.mxu0 0
      %2437 = vmatprep.subr.bf16.mxu0 0
      %2438 = vmatpush1.bf16.msra.mxu0 0
      %2439 = vmatprep.subr.bf16.mxu0 0
      %2440 = vmatpush1.bf16.msra.mxu0 0
      %2441 = vmatprep.subr.bf16.mxu0 0
      %2442 = vmatpush1.bf16.msra.mxu0 0
      %2443 = vmatprep.subr.bf16.mxu0 0
      %2444 = vmatpush1.bf16.msra.mxu0 0
      %2445 = vmatprep.subr.bf16.mxu0 0
      %2446 = vmatpush1.bf16.msra.mxu0 0
      %2447 = vmatprep.subr.bf16.mxu0 0
      %2448 = vmatpush1.bf16.msra.mxu0 0
      %2449 = vmatprep.subr.bf16.mxu0 0
      %2450 = vmatpush1.bf16.msra.mxu0 0
      %2451 = vmatprep.subr.bf16.mxu0 0
      %2452 = vmatpush1.bf16.msra.mxu0 0
      %2453 = vmatprep.subr.bf16.mxu0 0
      %2454 = vmatpush1.bf16.msra.mxu0 0
      %2455 = vmatprep.subr.bf16.mxu0 0
      %2456 = vmatpush1.bf16.msra.mxu0 0
      %2457 = vmatprep.mubr.bf16.mxu0 0
      %2458 = vmatmul.mubr.bf16.gmra.mrb[0].mxu0 %v2363
      %v2459 = vpop.f32.mrb[0].mxu0
      %v2460 = vadd.f32 %v2173, %v2459
      %v2461 = vpop.f32.mrb[0].mxu0
      %v2462 = vpop.f32.mrb[0].mxu0
      %v2463 = vadd.f32 %v2176, %v2462
      %v2464 = vpop.f32.mrb[0].mxu0
      %2465 = vmatprep.mubr.bf16.mxu0 0
      %2466 = vmatmul.mubr.bf16.gmra.mrb[0].mxu0 %v2366
      %v2467 = vpop.f32.mrb[0].mxu0
      %v2468 = vadd.f32 %v2181, %v2467
      %v2469 = vpop.f32.mrb[0].mxu0
      %v2470 = vpop.f32.mrb[0].mxu0
      %v2471 = vadd.f32 %v2184, %v2470
      %v2472 = vpop.f32.mrb[0].mxu0
      %2473 = vmatprep.mubr.bf16.mxu0 0
      %2474 = vmatmul.mubr.bf16.gmra.mrb[0].mxu0 %v2369
      %v2475 = vpop.f32.mrb[0].mxu0
      %v2476 = vadd.f32 %v2189, %v2475
      %v2477 = vpop.f32.mrb[0].mxu0
      %v2478 = vpop.f32.mrb[0].mxu0
      %v2479 = vadd.f32 %v2192, %v2478
      %v2480 = vpop.f32.mrb[0].mxu0
      %2481 = vmatprep.mubr.bf16.mxu0 0
      %2482 = vmatmul.mubr.bf16.gmra.mrb[0].mxu0 %v2372
      %v2483 = vpop.f32.mrb[0].mxu0
      %v2484 = vadd.f32 %v2197, %v2483
      %v2485 = vpop.f32.mrb[0].mxu0
      %v2486 = vpop.f32.mrb[0].mxu0
      %v2487 = vadd.f32 %v2200, %v2486
      %v2488 = vpop.f32.mrb[0].mxu0
      %2489 = vmatprep.mubr.bf16.mxu0 0
      %2490 = vmatmul.mubr.bf16.gmra.mrb[0].mxu0 %v2375
      %v2491 = vpop.f32.mrb[0].mxu0
      %v2492 = vadd.f32 %v2205, %v2491
      %v2493 = vpop.f32.mrb[0].mxu0
      %v2494 = vpop.f32.mrb[0].mxu0
      %v2495 = vadd.f32 %v2208, %v2494
      %v2496 = vpop.f32.mrb[0].mxu0
      %2497 = vmatprep.mubr.bf16.mxu0 0
      %2498 = vmatmul.mubr.bf16.gmra.mrb[0].mxu0 %v2378
      %v2499 = vpop.f32.mrb[0].mxu0
      %v2500 = vadd.f32 %v2213, %v2499
      %v2501 = vpop.f32.mrb[0].mxu0
      %v2502 = vpop.f32.mrb[0].mxu0
      %v2503 = vadd.f32 %v2216, %v2502
      %v2504 = vpop.f32.mrb[0].mxu0
      %2505 = vmatprep.mubr.bf16.mxu0 0
      %2506 = vmatmul.mubr.bf16.gmra.mrb[0].mxu0 %v2381
      %v2507 = vpop.f32.mrb[0].mxu0
      %v2508 = vadd.f32 %v2221, %v2507
      %v2509 = vpop.f32.mrb[0].mxu0
      %v2510 = vpop.f32.mrb[0].mxu0
      %v2511 = vadd.f32 %v2224, %v2510
      %v2512 = vpop.f32.mrb[0].mxu0
      %2513 = vmatprep.mubr.bf16.mxu0 0
      %2514 = vmatmul.mubr.bf16.gmra.mrb[0].mxu0 %v2384
      %v2515 = vpop.f32.mrb[0].mxu0
      %v2516 = vadd.f32 %v2229, %v2515
      %v2517 = vpop.f32.mrb[0].mxu0
      %v2518 = vpop.f32.mrb[0].mxu0
      %v2519 = vadd.f32 %v2232, %v2518
      %v2520 = vpop.f32.mrb[0].mxu0
      %2521 = vmatprep.mubr.bf16.mxu0 0
      %2522 = vmatmul.mubr.bf16.gmra.mrb[0].mxu0 %v2387
      %v2523 = vpop.f32.mrb[0].mxu0
      %v2524 = vadd.f32 %v2237, %v2523
      %v2525 = vpop.f32.mrb[0].mxu0
      %v2526 = vpop.f32.mrb[0].mxu0
      %v2527 = vadd.f32 %v2240, %v2526
      %v2528 = vpop.f32.mrb[0].mxu0
      %2529 = vmatprep.mubr.bf16.mxu0 0
      %2530 = vmatmul.mubr.bf16.gmra.mrb[0].mxu0 %v2390
      %v2531 = vpop.f32.mrb[0].mxu0
      %v2532 = vadd.f32 %v2245, %v2531
      %v2533 = vpop.f32.mrb[0].mxu0
      %v2534 = vpop.f32.mrb[0].mxu0
      %v2535 = vadd.f32 %v2248, %v2534
      %v2536 = vpop.f32.mrb[0].mxu0
      %2537 = vmatprep.mubr.bf16.mxu0 0
      %2538 = vmatmul.mubr.bf16.gmra.mrb[0].mxu0 %v2393
      %v2539 = vpop.f32.mrb[0].mxu0
      %v2540 = vadd.f32 %v2253, %v2539
      %v2541 = vpop.f32.mrb[0].mxu0
      %v2542 = vpop.f32.mrb[0].mxu0
      %v2543 = vadd.f32 %v2256, %v2542
      %v2544 = vpop.f32.mrb[0].mxu0
      %2545 = vmatprep.mubr.bf16.mxu0 0
      %2546 = vmatmul.mubr.bf16.gmra.mrb[0].mxu0 %v2396
      %v2547 = vpop.f32.mrb[0].mxu0
      %v2548 = vadd.f32 %v2261, %v2547
      %v2549 = vpop.f32.mrb[0].mxu0
      %v2550 = vpop.f32.mrb[0].mxu0
      %v2551 = vadd.f32 %v2264, %v2550
      %v2552 = vpop.f32.mrb[0].mxu0
      %2553 = vmatprep.mubr.bf16.mxu0 0
      %2554 = vmatmul.mubr.bf16.gmra.mrb[0].mxu0 %v2399
      %v2555 = vpop.f32.mrb[0].mxu0
      %v2556 = vadd.f32 %v2269, %v2555
      %v2557 = vpop.f32.mrb[0].mxu0
      %v2558 = vpop.f32.mrb[0].mxu0
      %v2559 = vadd.f32 %v2272, %v2558
      %v2560 = vpop.f32.mrb[0].mxu0
      %2561 = vmatprep.mubr.bf16.mxu0 0
      %2562 = vmatmul.mubr.bf16.gmra.mrb[0].mxu0 %v2402
      %v2563 = vpop.f32.mrb[0].mxu0
      %v2564 = vadd.f32 %v2277, %v2563
      %v2565 = vpop.f32.mrb[0].mxu0
      %v2566 = vpop.f32.mrb[0].mxu0
      %v2567 = vadd.f32 %v2280, %v2566
      %v2568 = vpop.f32.mrb[0].mxu0
      %2569 = vmatprep.mubr.bf16.mxu0 0
      %2570 = vmatmul.mubr.bf16.gmra.mrb[0].mxu0 %v2405
      %v2571 = vpop.f32.mrb[0].mxu0
      %v2572 = vadd.f32 %v2285, %v2571
      %v2573 = vpop.f32.mrb[0].mxu0
      %v2574 = vpop.f32.mrb[0].mxu0
      %v2575 = vadd.f32 %v2288, %v2574
      %v2576 = vpop.f32.mrb[0].mxu0
      %2577 = vmatprep.mubr.bf16.mxu0 0
      %2578 = vmatmul.mubr.bf16.gmra.mrb[0].mxu0 %v2408
      %v2579 = vpop.f32.mrb[0].mxu0
      %v2580 = vadd.f32 %v2293, %v2579
      %v2581 = vpop.f32.mrb[0].mxu0
      %v2582 = vpop.f32.mrb[0].mxu0
      %v2583 = vadd.f32 %v2296, %v2582
      %v2584 = vpop.f32.mrb[0].mxu0
      %2585 = vmatprep.mubr.bf16.mxu0 0
      %2586 = vmatmul.mubr.bf16.gmra.mrb[0].mxu0 %v2411
      %v2587 = vpop.f32.mrb[0].mxu0
      %v2588 = vadd.f32 %v2301, %v2587
      %v2589 = vpop.f32.mrb[0].mxu0
      %v2590 = vpop.f32.mrb[0].mxu0
      %v2591 = vadd.f32 %v2304, %v2590
      %v2592 = vpop.f32.mrb[0].mxu0
      %2593 = vmatprep.mubr.bf16.mxu0 0
      %2594 = vmatmul.mubr.bf16.gmra.mrb[0].mxu0 %v2414
      %v2595 = vpop.f32.mrb[0].mxu0
      %v2596 = vadd.f32 %v2309, %v2595
      %v2597 = vpop.f32.mrb[0].mxu0
      %v2598 = vpop.f32.mrb[0].mxu0
      %v2599 = vadd.f32 %v2312, %v2598
      %v2600 = vpop.f32.mrb[0].mxu0
      %2601 = vmatprep.mubr.bf16.mxu0 0
      %2602 = vmatmul.mubr.bf16.gmra.mrb[0].mxu0 %v2417
      %v2603 = vpop.f32.mrb[0].mxu0
      %v2604 = vadd.f32 %v2317, %v2603
      %v2605 = vpop.f32.mrb[0].mxu0
      %v2606 = vpop.f32.mrb[0].mxu0
      %v2607 = vadd.f32 %v2320, %v2606
      %v2608 = vpop.f32.mrb[0].mxu0
      %2609 = vmatprep.mubr.bf16.mxu0 0
      %2610 = vmatmul.mubr.bf16.gmra.mrb[0].mxu0 %v2420
      %v2611 = vpop.f32.mrb[0].mxu0
      %v2612 = vadd.f32 %v2325, %v2611
      %v2613 = vpop.f32.mrb[0].mxu0
      %v2614 = vpop.f32.mrb[0].mxu0
      %v2615 = vadd.f32 %v2328, %v2614
      %v2616 = vpop.f32.mrb[0].mxu0
      %2617 = vmatprep.mubr.bf16.mxu0 0
      %2618 = vmatmul.mubr.bf16.gmra.mrb[0].mxu0 %v2423
      %v2619 = vpop.f32.mrb[0].mxu0
      %v2620 = vadd.f32 %v2333, %v2619
      %v2621 = vpop.f32.mrb[0].mxu0
      %v2622 = vpop.f32.mrb[0].mxu0
      %v2623 = vpop.f32.mrb[0].mxu0
      %2624 = vdwg.mxu0
      %v2625 = vld [vmem:[#allocation2 + $0x7] sm:$0xff]
      %v2626 = vld [vmem:[#allocation2 + $0xf] sm:$0xff]
      %v2627 = vld [vmem:[#allocation2 + $0x17] sm:$0xff]
      %v2628 = vld [vmem:[#allocation2 + $0x1f] sm:$0xff]
      %v2629 = vld [vmem:[#allocation2 + $0x27] sm:$0xff]
      %v2630 = vld [vmem:[#allocation2 + $0x2f] sm:$0xff]
      %v2631 = vld [vmem:[#allocation2 + $0x37] sm:$0xff]
      %v2632 = vld [vmem:[#allocation2 + $0x3f] sm:$0xff]
      %v2633 = vld [vmem:[#allocation2 + $0x47] sm:$0xff]
      %v2634 = vld [vmem:[#allocation2 + $0x4f] sm:$0xff]
      %v2635 = vld [vmem:[#allocation2 + $0x57] sm:$0xff]
      %v2636 = vld [vmem:[#allocation2 + $0x5f] sm:$0xff]
      %v2637 = vld [vmem:[#allocation2 + $0x67] sm:$0xff]
      %v2638 = vld [vmem:[#allocation2 + $0x6f] sm:$0xff]
      %v2639 = vld [vmem:[#allocation2 + $0x77] sm:$0xff]
      %v2640 = vld [vmem:[#allocation2 + $0x7f] sm:$0xff]
      %v2641 = vld [vmem:[#allocation2 + $0x87] sm:$0xff]
      %v2642 = vld [vmem:[#allocation2 + $0x8f] sm:$0xff]
      %v2643 = vld [vmem:[#allocation2 + $0x97] sm:$0xff]
      %v2644 = vld [vmem:[#allocation2 + $0x9f] sm:$0xff]
      %v2645 = vld [vmem:[#allocation2 + $0xa7] sm:$0xff]
      %v2646 = vld [vmem:[#allocation2 + $0xaf] sm:$0xff]
      %v2647 = vld [vmem:[#allocation2 + $0xb7] sm:$0xff]
      %v2648 = vld [vmem:[#allocation2 + $0xbf] sm:$0xff]
      %v2649 = vld [vmem:[#allocation2 + $0xc7] sm:$0xff]
      %v2650 = vld [vmem:[#allocation2 + $0xcf] sm:$0xff]
      %v2651 = vld [vmem:[#allocation2 + $0xd7] sm:$0xff]
      %v2652 = vld [vmem:[#allocation2 + $0xdf] sm:$0xff]
      %v2653 = vld [vmem:[#allocation2 + $0xe7] sm:$0xff]
      %v2654 = vld [vmem:[#allocation2 + $0xef] sm:$0xff]
      %v2655 = vld [vmem:[#allocation2 + $0xf7] sm:$0xff]
      %v2656 = vld [vmem:[#allocation2 + $0xff] sm:$0xff]
      %v2657 = vld [vmem:[#allocation2 + $0x107] sm:$0xff]
      %v2658 = vld [vmem:[#allocation2 + $0x10f] sm:$0xff]
      %v2659 = vld [vmem:[#allocation2 + $0x117] sm:$0xff]
      %v2660 = vld [vmem:[#allocation2 + $0x11f] sm:$0xff]
      %v2661 = vld [vmem:[#allocation2 + $0x127] sm:$0xff]
      %v2662 = vld [vmem:[#allocation2 + $0x12f] sm:$0xff]
      %v2663 = vld [vmem:[#allocation2 + $0x137] sm:$0xff]
      %v2664 = vld [vmem:[#allocation2 + $0x13f] sm:$0xff]
      %v2665 = vld [vmem:[#allocation2 + $0x147] sm:$0xff]
      %v2666 = vpack.c.bf16 %v2626, %v2625
      %v2667 = vpack.c.bf16 %v2628, %v2627
      %v2668 = vpack.c.bf16 %v2630, %v2629
      %v2669 = vpack.c.bf16 %v2632, %v2631
      %v2670 = vpack.c.bf16 %v2634, %v2633
      %v2671 = vpack.c.bf16 %v2636, %v2635
      %v2672 = vpack.c.bf16 %v2638, %v2637
      %v2673 = vpack.c.bf16 %v2640, %v2639
      %v2674 = vpack.c.bf16 %v2642, %v2641
      %v2675 = vpack.c.bf16 %v2644, %v2643
      %v2676 = vpack.c.bf16 %v2646, %v2645
      %v2677 = vpack.c.bf16 %v2648, %v2647
      %v2678 = vpack.c.bf16 %v2650, %v2649
      %v2679 = vpack.c.bf16 %v2652, %v2651
      %v2680 = vpack.c.bf16 %v2654, %v2653
      %v2681 = vpack.c.bf16 %v2656, %v2655
      %v2682 = vpack.c.bf16 %v2658, %v2657
      %v2683 = vpack.c.bf16 %v2660, %v2659
      %v2684 = vpack.c.bf16 %v2662, %v2661
      %v2685 = vpack.c.bf16 %v2664, %v2663
      %v2686 = vpack.c.bf16 %v2665, %v2665
      %s2687 = scalar_lea.vmem %s7, 64
      %v2688 = vld [vmem:[%s2687] sm:$0xf]
      %v2689 = vld [vmem:[%s2687 + $0x4] sm:$0xf]
      %v2690 = vld [vmem:[%s2687 + $0x8] sm:$0xf]
      %v2691 = vld [vmem:[%s2687 + $0xc] sm:$0xf]
      %v2692 = vld [vmem:[%s2687 + $0x10] sm:$0xf]
      %v2693 = vld [vmem:[%s2687 + $0x14] sm:$0xf]
      %v2694 = vld [vmem:[%s2687 + $0x18] sm:$0xf]
      %v2695 = vld [vmem:[%s2687 + $0x1c] sm:$0xf]
      %v2704 = vunpack.c.l.b16 %v2688
      %v2705 = vunpack.c.l.b16 %v2689
      %v2706 = vunpack.c.l.b16 %v2690
      %v2707 = vunpack.c.l.b16 %v2691
      %v2708 = vunpack.c.l.b16 %v2692
      %v2709 = vunpack.c.l.b16 %v2693
      %v2710 = vunpack.c.l.b16 %v2694
      %v2711 = vunpack.c.l.b16 %v2695
      %v2712 = vpack.c.b16 %v2705, %v2704
      %v2713 = vpack.c.b16 %v2707, %v2706
      %v2714 = vpack.c.b16 %v2709, %v2708
      %v2715 = vpack.c.b16 %v2711, %v2710
      %v2721 = vsel %vm1234, %v2666, 0
      %v2724 = vsel %vm1234, %v2667, 0
      %v2727 = vsel %vm1234, %v2668, 0
      %v2730 = vsel %vm1234, %v2669, 0
      %v2733 = vsel %vm1234, %v2670, 0
      %v2736 = vsel %vm1234, %v2671, 0
      %v2739 = vsel %vm1234, %v2672, 0
      %v2742 = vsel %vm1234, %v2673, 0
      %v2745 = vsel %vm1234, %v2674, 0
      %v2748 = vsel %vm1234, %v2675, 0
      %v2751 = vsel %vm1234, %v2676, 0
      %v2754 = vsel %vm1234, %v2677, 0
      %v2757 = vsel %vm1234, %v2678, 0
      %v2760 = vsel %vm1234, %v2679, 0
      %v2763 = vsel %vm1234, %v2680, 0
      %v2766 = vsel %vm1234, %v2681, 0
      %v2769 = vsel %vm1234, %v2682, 0
      %v2772 = vsel %vm1234, %v2683, 0
      %v2775 = vsel %vm1234, %v2684, 0
      %v2778 = vsel %vm1234, %v2685, 0
      %v2781 = vsel %vm1234, %v2686, 0
      %2783 = vmatprep.subr.bf16.mxu0 0
      %2784 = vmatpush1.bf16.msra.mxu0 %v2712
      %2785 = vmatprep.subr.bf16.mxu0 0
      %2786 = vmatpush1.bf16.msra.mxu0 %v2713
      %2787 = vmatprep.subr.bf16.mxu0 0
      %2788 = vmatpush1.bf16.msra.mxu0 %v2714
      %2789 = vmatprep.subr.bf16.mxu0 0
      %2790 = vmatpush1.bf16.msra.mxu0 %v2715
      %2791 = vmatprep.subr.bf16.mxu0 0
      %2792 = vmatpush1.bf16.msra.mxu0 0
      %2793 = vmatprep.subr.bf16.mxu0 0
      %2794 = vmatpush1.bf16.msra.mxu0 0
      %2795 = vmatprep.subr.bf16.mxu0 0
      %2796 = vmatpush1.bf16.msra.mxu0 0
      %2797 = vmatprep.subr.bf16.mxu0 0
      %2798 = vmatpush1.bf16.msra.mxu0 0
      %2799 = vmatprep.subr.bf16.mxu0 0
      %2800 = vmatpush1.bf16.msra.mxu0 0
      %2801 = vmatprep.subr.bf16.mxu0 0
      %2802 = vmatpush1.bf16.msra.mxu0 0
      %2803 = vmatprep.subr.bf16.mxu0 0
      %2804 = vmatpush1.bf16.msra.mxu0 0
      %2805 = vmatprep.subr.bf16.mxu0 0
      %2806 = vmatpush1.bf16.msra.mxu0 0
      %2807 = vmatprep.subr.bf16.mxu0 0
      %2808 = vmatpush1.bf16.msra.mxu0 0
      %2809 = vmatprep.subr.bf16.mxu0 0
      %2810 = vmatpush1.bf16.msra.mxu0 0
      %2811 = vmatprep.subr.bf16.mxu0 0
      %2812 = vmatpush1.bf16.msra.mxu0 0
      %2813 = vmatprep.subr.bf16.mxu0 0
      %2814 = vmatpush1.bf16.msra.mxu0 0
      %2815 = vmatprep.mubr.bf16.mxu0 0
      %2816 = vmatmul.mubr.bf16.gmra.mrb[0].mxu0 %v2721
      %v2817 = vpop.f32.mrb[0].mxu0
      %v2818 = vadd.f32 0.0, %v2817
      %v2819 = vpop.f32.mrb[0].mxu0
      %v2820 = vpop.f32.mrb[0].mxu0
      %v2821 = vadd.f32 0.0, %v2820
      %v2822 = vpop.f32.mrb[0].mxu0
      %2823 = vmatprep.mubr.bf16.mxu0 0
      %2824 = vmatmul.mubr.bf16.gmra.mrb[0].mxu0 %v2724
      %v2825 = vpop.f32.mrb[0].mxu0
      %v2826 = vadd.f32 0.0, %v2825
      %v2827 = vpop.f32.mrb[0].mxu0
      %v2828 = vpop.f32.mrb[0].mxu0
      %v2829 = vadd.f32 0.0, %v2828
      %v2830 = vpop.f32.mrb[0].mxu0
      %2831 = vmatprep.mubr.bf16.mxu0 0
      %2832 = vmatmul.mubr.bf16.gmra.mrb[0].mxu0 %v2727
      %v2833 = vpop.f32.mrb[0].mxu0
      %v2834 = vadd.f32 0.0, %v2833
      %v2835 = vpop.f32.mrb[0].mxu0
      %v2836 = vpop.f32.mrb[0].mxu0
      %v2837 = vadd.f32 0.0, %v2836
      %v2838 = vpop.f32.mrb[0].mxu0
      %2839 = vmatprep.mubr.bf16.mxu0 0
      %2840 = vmatmul.mubr.bf16.gmra.mrb[0].mxu0 %v2730
      %v2841 = vpop.f32.mrb[0].mxu0
      %v2842 = vadd.f32 0.0, %v2841
      %v2843 = vpop.f32.mrb[0].mxu0
      %v2844 = vpop.f32.mrb[0].mxu0
      %v2845 = vadd.f32 0.0, %v2844
      %v2846 = vpop.f32.mrb[0].mxu0
      %2847 = vmatprep.mubr.bf16.mxu0 0
      %2848 = vmatmul.mubr.bf16.gmra.mrb[0].mxu0 %v2733
      %v2849 = vpop.f32.mrb[0].mxu0
      %v2850 = vadd.f32 0.0, %v2849
      %v2851 = vpop.f32.mrb[0].mxu0
      %v2852 = vpop.f32.mrb[0].mxu0
      %v2853 = vadd.f32 0.0, %v2852
      %v2854 = vpop.f32.mrb[0].mxu0
      %2855 = vmatprep.mubr.bf16.mxu0 0
      %2856 = vmatmul.mubr.bf16.gmra.mrb[0].mxu0 %v2736
      %v2857 = vpop.f32.mrb[0].mxu0
      %v2858 = vadd.f32 0.0, %v2857
      %v2859 = vpop.f32.mrb[0].mxu0
      %v2860 = vpop.f32.mrb[0].mxu0
      %v2861 = vadd.f32 0.0, %v2860
      %v2862 = vpop.f32.mrb[0].mxu0
      %2863 = vmatprep.mubr.bf16.mxu0 0
      %2864 = vmatmul.mubr.bf16.gmra.mrb[0].mxu0 %v2739
      %v2865 = vpop.f32.mrb[0].mxu0
      %v2866 = vadd.f32 0.0, %v2865
      %v2867 = vpop.f32.mrb[0].mxu0
      %v2868 = vpop.f32.mrb[0].mxu0
      %v2869 = vadd.f32 0.0, %v2868
      %v2870 = vpop.f32.mrb[0].mxu0
      %2871 = vmatprep.mubr.bf16.mxu0 0
      %2872 = vmatmul.mubr.bf16.gmra.mrb[0].mxu0 %v2742
      %v2873 = vpop.f32.mrb[0].mxu0
      %v2874 = vadd.f32 0.0, %v2873
      %v2875 = vpop.f32.mrb[0].mxu0
      %v2876 = vpop.f32.mrb[0].mxu0
      %v2877 = vadd.f32 0.0, %v2876
      %v2878 = vpop.f32.mrb[0].mxu0
      %2879 = vmatprep.mubr.bf16.mxu0 0
      %2880 = vmatmul.mubr.bf16.gmra.mrb[0].mxu0 %v2745
      %v2881 = vpop.f32.mrb[0].mxu0
      %v2882 = vadd.f32 0.0, %v2881
      %v2883 = vpop.f32.mrb[0].mxu0
      %v2884 = vpop.f32.mrb[0].mxu0
      %v2885 = vadd.f32 0.0, %v2884
      %v2886 = vpop.f32.mrb[0].mxu0
      %2887 = vmatprep.mubr.bf16.mxu0 0
      %2888 = vmatmul.mubr.bf16.gmra.mrb[0].mxu0 %v2748
      %v2889 = vpop.f32.mrb[0].mxu0
      %v2890 = vadd.f32 0.0, %v2889
      %v2891 = vpop.f32.mrb[0].mxu0
      %v2892 = vpop.f32.mrb[0].mxu0
      %v2893 = vadd.f32 0.0, %v2892
      %v2894 = vpop.f32.mrb[0].mxu0
      %2895 = vmatprep.mubr.bf16.mxu0 0
      %2896 = vmatmul.mubr.bf16.gmra.mrb[0].mxu0 %v2751
      %v2897 = vpop.f32.mrb[0].mxu0
      %v2898 = vadd.f32 0.0, %v2897
      %v2899 = vpop.f32.mrb[0].mxu0
      %v2900 = vpop.f32.mrb[0].mxu0
      %v2901 = vadd.f32 0.0, %v2900
      %v2902 = vpop.f32.mrb[0].mxu0
      %2903 = vmatprep.mubr.bf16.mxu0 0
      %2904 = vmatmul.mubr.bf16.gmra.mrb[0].mxu0 %v2754
      %v2905 = vpop.f32.mrb[0].mxu0
      %v2906 = vadd.f32 0.0, %v2905
      %v2907 = vpop.f32.mrb[0].mxu0
      %v2908 = vpop.f32.mrb[0].mxu0
      %v2909 = vadd.f32 0.0, %v2908
      %v2910 = vpop.f32.mrb[0].mxu0
      %2911 = vmatprep.mubr.bf16.mxu0 0
      %2912 = vmatmul.mubr.bf16.gmra.mrb[0].mxu0 %v2757
      %v2913 = vpop.f32.mrb[0].mxu0
      %v2914 = vadd.f32 0.0, %v2913
      %v2915 = vpop.f32.mrb[0].mxu0
      %v2916 = vpop.f32.mrb[0].mxu0
      %v2917 = vadd.f32 0.0, %v2916
      %v2918 = vpop.f32.mrb[0].mxu0
      %2919 = vmatprep.mubr.bf16.mxu0 0
      %2920 = vmatmul.mubr.bf16.gmra.mrb[0].mxu0 %v2760
      %v2921 = vpop.f32.mrb[0].mxu0
      %v2922 = vadd.f32 0.0, %v2921
      %v2923 = vpop.f32.mrb[0].mxu0
      %v2924 = vpop.f32.mrb[0].mxu0
      %v2925 = vadd.f32 0.0, %v2924
      %v2926 = vpop.f32.mrb[0].mxu0
      %2927 = vmatprep.mubr.bf16.mxu0 0
      %2928 = vmatmul.mubr.bf16.gmra.mrb[0].mxu0 %v2763
      %v2929 = vpop.f32.mrb[0].mxu0
      %v2930 = vadd.f32 0.0, %v2929
      %v2931 = vpop.f32.mrb[0].mxu0
      %v2932 = vpop.f32.mrb[0].mxu0
      %v2933 = vadd.f32 0.0, %v2932
      %v2934 = vpop.f32.mrb[0].mxu0
      %2935 = vmatprep.mubr.bf16.mxu0 0
      %2936 = vmatmul.mubr.bf16.gmra.mrb[0].mxu0 %v2766
      %v2937 = vpop.f32.mrb[0].mxu0
      %v2938 = vadd.f32 0.0, %v2937
      %v2939 = vpop.f32.mrb[0].mxu0
      %v2940 = vpop.f32.mrb[0].mxu0
      %v2941 = vadd.f32 0.0, %v2940
      %v2942 = vpop.f32.mrb[0].mxu0
      %2943 = vmatprep.mubr.bf16.mxu0 0
      %2944 = vmatmul.mubr.bf16.gmra.mrb[0].mxu0 %v2769
      %v2945 = vpop.f32.mrb[0].mxu0
      %v2946 = vadd.f32 0.0, %v2945
      %v2947 = vpop.f32.mrb[0].mxu0
      %v2948 = vpop.f32.mrb[0].mxu0
      %v2949 = vadd.f32 0.0, %v2948
      %v2950 = vpop.f32.mrb[0].mxu0
      %2951 = vmatprep.mubr.bf16.mxu0 0
      %2952 = vmatmul.mubr.bf16.gmra.mrb[0].mxu0 %v2772
      %v2953 = vpop.f32.mrb[0].mxu0
      %v2954 = vadd.f32 0.0, %v2953
      %v2955 = vpop.f32.mrb[0].mxu0
      %v2956 = vpop.f32.mrb[0].mxu0
      %v2957 = vadd.f32 0.0, %v2956
      %v2958 = vpop.f32.mrb[0].mxu0
      %2959 = vmatprep.mubr.bf16.mxu0 0
      %2960 = vmatmul.mubr.bf16.gmra.mrb[0].mxu0 %v2775
      %v2961 = vpop.f32.mrb[0].mxu0
      %v2962 = vadd.f32 0.0, %v2961
      %v2963 = vpop.f32.mrb[0].mxu0
      %v2964 = vpop.f32.mrb[0].mxu0
      %v2965 = vadd.f32 0.0, %v2964
      %v2966 = vpop.f32.mrb[0].mxu0
      %2967 = vmatprep.mubr.bf16.mxu0 0
      %2968 = vmatmul.mubr.bf16.gmra.mrb[0].mxu0 %v2778
      %v2969 = vpop.f32.mrb[0].mxu0
      %v2970 = vadd.f32 0.0, %v2969
      %v2971 = vpop.f32.mrb[0].mxu0
      %v2972 = vpop.f32.mrb[0].mxu0
      %v2973 = vadd.f32 0.0, %v2972
      %v2974 = vpop.f32.mrb[0].mxu0
      %2975 = vmatprep.mubr.bf16.mxu0 0
      %2976 = vmatmul.mubr.bf16.gmra.mrb[0].mxu0 %v2781
      %v2977 = vpop.f32.mrb[0].mxu0
      %v2978 = vadd.f32 0.0, %v2977
      %v2979 = vpop.f32.mrb[0].mxu0
      %v2980 = vpop.f32.mrb[0].mxu0
      %v2981 = vpop.f32.mrb[0].mxu0
      %2982 = vdwg.mxu0
      %v2983 = vadd.f32 %v2460, %v2818
      %v2984 = vadd.f32 %v2463, %v2821
      %v2985 = vadd.f32 %v2468, %v2826
      %v2986 = vadd.f32 %v2471, %v2829
      %v2987 = vadd.f32 %v2476, %v2834
      %v2988 = vadd.f32 %v2479, %v2837
      %v2989 = vadd.f32 %v2484, %v2842
      %v2990 = vadd.f32 %v2487, %v2845
      %v2991 = vadd.f32 %v2492, %v2850
      %v2992 = vadd.f32 %v2495, %v2853
      %v2993 = vadd.f32 %v2500, %v2858
      %v2994 = vadd.f32 %v2503, %v2861
      %v2995 = vadd.f32 %v2508, %v2866
      %v2996 = vadd.f32 %v2511, %v2869
      %v2997 = vadd.f32 %v2516, %v2874
      %v2998 = vadd.f32 %v2519, %v2877
      %v2999 = vadd.f32 %v2524, %v2882
      %v3000 = vadd.f32 %v2527, %v2885
      %v3001 = vadd.f32 %v2532, %v2890
      %v3002 = vadd.f32 %v2535, %v2893
      %v3003 = vadd.f32 %v2540, %v2898
      %v3004 = vadd.f32 %v2543, %v2901
      %v3005 = vadd.f32 %v2548, %v2906
      %v3006 = vadd.f32 %v2551, %v2909
      %v3007 = vadd.f32 %v2556, %v2914
      %v3008 = vadd.f32 %v2559, %v2917
      %v3009 = vadd.f32 %v2564, %v2922
      %v3010 = vadd.f32 %v2567, %v2925
      %v3011 = vadd.f32 %v2572, %v2930
      %v3012 = vadd.f32 %v2575, %v2933
      %v3013 = vadd.f32 %v2580, %v2938
      %v3014 = vadd.f32 %v2583, %v2941
      %v3015 = vadd.f32 %v2588, %v2946
      %v3016 = vadd.f32 %v2591, %v2949
      %v3017 = vadd.f32 %v2596, %v2954
      %v3018 = vadd.f32 %v2599, %v2957
      %v3019 = vadd.f32 %v2604, %v2962
      %v3020 = vadd.f32 %v2607, %v2965
      %v3021 = vadd.f32 %v2612, %v2970
      %v3022 = vadd.f32 %v2615, %v2973
      %v3023 = vadd.f32 %v2620, %v2978
      %v3024 = vld [vmem:[#allocation2 + $0x17] sm:$0xff]
      %v3025 = vld [vmem:[#allocation2 + $0x1f] sm:$0xff]
      %v3026 = vld [vmem:[#allocation2 + $0x27] sm:$0xff]
      %v3027 = vld [vmem:[#allocation2 + $0x2f] sm:$0xff]
      %v3028 = vld [vmem:[#allocation2 + $0x37] sm:$0xff]
      %v3029 = vld [vmem:[#allocation2 + $0x3f] sm:$0xff]
      %v3030 = vld [vmem:[#allocation2 + $0x47] sm:$0xff]
      %v3031 = vld [vmem:[#allocation2 + $0x4f] sm:$0xff]
      %v3032 = vld [vmem:[#allocation2 + $0x57] sm:$0xff]
      %v3033 = vld [vmem:[#allocation2 + $0x5f] sm:$0xff]
      %v3034 = vld [vmem:[#allocation2 + $0x67] sm:$0xff]
      %v3035 = vld [vmem:[#allocation2 + $0x6f] sm:$0xff]
      %v3036 = vld [vmem:[#allocation2 + $0x77] sm:$0xff]
      %v3037 = vld [vmem:[#allocation2 + $0x7f] sm:$0xff]
      %v3038 = vld [vmem:[#allocation2 + $0x87] sm:$0xff]
      %v3039 = vld [vmem:[#allocation2 + $0x8f] sm:$0xff]
      %v3040 = vld [vmem:[#allocation2 + $0x97] sm:$0xff]
      %v3041 = vld [vmem:[#allocation2 + $0x9f] sm:$0xff]
      %v3042 = vld [vmem:[#allocation2 + $0xa7] sm:$0xff]
      %v3043 = vld [vmem:[#allocation2 + $0xaf] sm:$0xff]
      %v3044 = vld [vmem:[#allocation2 + $0xb7] sm:$0xff]
      %v3045 = vld [vmem:[#allocation2 + $0xbf] sm:$0xff]
      %v3046 = vld [vmem:[#allocation2 + $0xc7] sm:$0xff]
      %v3047 = vld [vmem:[#allocation2 + $0xcf] sm:$0xff]
      %v3048 = vld [vmem:[#allocation2 + $0xd7] sm:$0xff]
      %v3049 = vld [vmem:[#allocation2 + $0xdf] sm:$0xff]
      %v3050 = vld [vmem:[#allocation2 + $0xe7] sm:$0xff]
      %v3051 = vld [vmem:[#allocation2 + $0xef] sm:$0xff]
      %v3052 = vld [vmem:[#allocation2 + $0xf7] sm:$0xff]
      %v3053 = vld [vmem:[#allocation2 + $0xff] sm:$0xff]
      %v3054 = vld [vmem:[#allocation2 + $0x107] sm:$0xff]
      %v3055 = vld [vmem:[#allocation2 + $0x10f] sm:$0xff]
      %v3056 = vld [vmem:[#allocation2 + $0x117] sm:$0xff]
      %v3057 = vld [vmem:[#allocation2 + $0x11f] sm:$0xff]
      %v3058 = vld [vmem:[#allocation2 + $0x127] sm:$0xff]
      %v3059 = vld [vmem:[#allocation2 + $0x12f] sm:$0xff]
      %v3060 = vld [vmem:[#allocation2 + $0x137] sm:$0xff]
      %v3061 = vld [vmem:[#allocation2 + $0x13f] sm:$0xff]
      %v3062 = vld [vmem:[#allocation2 + $0x147] sm:$0xff]
      %v3063 = vld [vmem:[#allocation2 + $0x14f] sm:$0xff]
      %v3064 = vld [vmem:[#allocation2 + $0x157] sm:$0xff]
      %v3065 = vpack.c.bf16 %v3025, %v3024
      %v3066 = vpack.c.bf16 %v3027, %v3026
      %v3067 = vpack.c.bf16 %v3029, %v3028
      %v3068 = vpack.c.bf16 %v3031, %v3030
      %v3069 = vpack.c.bf16 %v3033, %v3032
      %v3070 = vpack.c.bf16 %v3035, %v3034
      %v3071 = vpack.c.bf16 %v3037, %v3036
      %v3072 = vpack.c.bf16 %v3039, %v3038
      %v3073 = vpack.c.bf16 %v3041, %v3040
      %v3074 = vpack.c.bf16 %v3043, %v3042
      %v3075 = vpack.c.bf16 %v3045, %v3044
      %v3076 = vpack.c.bf16 %v3047, %v3046
      %v3077 = vpack.c.bf16 %v3049, %v3048
      %v3078 = vpack.c.bf16 %v3051, %v3050
      %v3079 = vpack.c.bf16 %v3053, %v3052
      %v3080 = vpack.c.bf16 %v3055, %v3054
      %v3081 = vpack.c.bf16 %v3057, %v3056
      %v3082 = vpack.c.bf16 %v3059, %v3058
      %v3083 = vpack.c.bf16 %v3061, %v3060
      %v3084 = vpack.c.bf16 %v3063, %v3062
      %v3085 = vpack.c.bf16 %v3064, %v3064
      %s3086 = scalar_lea.vmem %s7, 96
      %v3087 = vld [vmem:[%s3086] sm:$0xf]
      %v3088 = vld [vmem:[%s3086 + $0x4] sm:$0xf]
      %v3089 = vld [vmem:[%s3086 + $0x8] sm:$0xf]
      %v3090 = vld [vmem:[%s3086 + $0xc] sm:$0xf]
      %v3091 = vld [vmem:[%s3086 + $0x10] sm:$0xf]
      %v3092 = vld [vmem:[%s3086 + $0x14] sm:$0xf]
      %v3093 = vld [vmem:[%s3086 + $0x18] sm:$0xf]
      %v3094 = vld [vmem:[%s3086 + $0x1c] sm:$0xf]
      %v3103 = vunpack.c.l.b16 %v3087
      %v3104 = vunpack.c.l.b16 %v3088
      %v3105 = vunpack.c.l.b16 %v3089
      %v3106 = vunpack.c.l.b16 %v3090
      %v3107 = vunpack.c.l.b16 %v3091
      %v3108 = vunpack.c.l.b16 %v3092
      %v3109 = vunpack.c.l.b16 %v3093
      %v3110 = vunpack.c.l.b16 %v3094
      %v3111 = vpack.c.b16 %v3104, %v3103
      %v3112 = vpack.c.b16 %v3106, %v3105
      %v3113 = vpack.c.b16 %v3108, %v3107
      %v3114 = vpack.c.b16 %v3110, %v3109
      %v3120 = vsel %vm1234, %v3065, 0
      %v3123 = vsel %vm1234, %v3066, 0
      %v3126 = vsel %vm1234, %v3067, 0
      %v3129 = vsel %vm1234, %v3068, 0
      %v3132 = vsel %vm1234, %v3069, 0
      %v3135 = vsel %vm1234, %v3070, 0
      %v3138 = vsel %vm1234, %v3071, 0
      %v3141 = vsel %vm1234, %v3072, 0
      %v3144 = vsel %vm1234, %v3073, 0
      %v3147 = vsel %vm1234, %v3074, 0
      %v3150 = vsel %vm1234, %v3075, 0
      %v3153 = vsel %vm1234, %v3076, 0
      %v3156 = vsel %vm1234, %v3077, 0
      %v3159 = vsel %vm1234, %v3078, 0
      %v3162 = vsel %vm1234, %v3079, 0
      %v3165 = vsel %vm1234, %v3080, 0
      %v3168 = vsel %vm1234, %v3081, 0
      %v3171 = vsel %vm1234, %v3082, 0
      %v3174 = vsel %vm1234, %v3083, 0
      %v3177 = vsel %vm1234, %v3084, 0
      %v3180 = vsel %vm1234, %v3085, 0
      %3182 = vmatprep.subr.bf16.mxu0 0
      %3183 = vmatpush1.bf16.msra.mxu0 %v3111
      %3184 = vmatprep.subr.bf16.mxu0 0
      %3185 = vmatpush1.bf16.msra.mxu0 %v3112
      %3186 = vmatprep.subr.bf16.mxu0 0
      %3187 = vmatpush1.bf16.msra.mxu0 %v3113
      %3188 = vmatprep.subr.bf16.mxu0 0
      %3189 = vmatpush1.bf16.msra.mxu0 %v3114
      %3190 = vmatprep.subr.bf16.mxu0 0
      %3191 = vmatpush1.bf16.msra.mxu0 0
      %3192 = vmatprep.subr.bf16.mxu0 0
      %3193 = vmatpush1.bf16.msra.mxu0 0
      %3194 = vmatprep.subr.bf16.mxu0 0
      %3195 = vmatpush1.bf16.msra.mxu0 0
      %3196 = vmatprep.subr.bf16.mxu0 0
      %3197 = vmatpush1.bf16.msra.mxu0 0
      %3198 = vmatprep.subr.bf16.mxu0 0
      %3199 = vmatpush1.bf16.msra.mxu0 0
      %3200 = vmatprep.subr.bf16.mxu0 0
      %3201 = vmatpush1.bf16.msra.mxu0 0
      %3202 = vmatprep.subr.bf16.mxu0 0
      %3203 = vmatpush1.bf16.msra.mxu0 0
      %3204 = vmatprep.subr.bf16.mxu0 0
      %3205 = vmatpush1.bf16.msra.mxu0 0
      %3206 = vmatprep.subr.bf16.mxu0 0
      %3207 = vmatpush1.bf16.msra.mxu0 0
      %3208 = vmatprep.subr.bf16.mxu0 0
      %3209 = vmatpush1.bf16.msra.mxu0 0
      %3210 = vmatprep.subr.bf16.mxu0 0
      %3211 = vmatpush1.bf16.msra.mxu0 0
      %3212 = vmatprep.subr.bf16.mxu0 0
      %3213 = vmatpush1.bf16.msra.mxu0 0
      %3214 = vmatprep.mubr.bf16.mxu0 0
      %3215 = vmatmul.mubr.bf16.gmra.mrb[0].mxu0 %v3120
      %v3216 = vpop.f32.mrb[0].mxu0
      %v3217 = vadd.f32 0.0, %v3216
      %v3218 = vpop.f32.mrb[0].mxu0
      %v3219 = vpop.f32.mrb[0].mxu0
      %v3220 = vadd.f32 0.0, %v3219
      %v3221 = vpop.f32.mrb[0].mxu0
      %3222 = vmatprep.mubr.bf16.mxu0 0
      %3223 = vmatmul.mubr.bf16.gmra.mrb[0].mxu0 %v3123
      %v3224 = vpop.f32.mrb[0].mxu0
      %v3225 = vadd.f32 0.0, %v3224
      %v3226 = vpop.f32.mrb[0].mxu0
      %v3227 = vpop.f32.mrb[0].mxu0
      %v3228 = vadd.f32 0.0, %v3227
      %v3229 = vpop.f32.mrb[0].mxu0
      %3230 = vmatprep.mubr.bf16.mxu0 0
      %3231 = vmatmul.mubr.bf16.gmra.mrb[0].mxu0 %v3126
      %v3232 = vpop.f32.mrb[0].mxu0
      %v3233 = vadd.f32 0.0, %v3232
      %v3234 = vpop.f32.mrb[0].mxu0
      %v3235 = vpop.f32.mrb[0].mxu0
      %v3236 = vadd.f32 0.0, %v3235
      %v3237 = vpop.f32.mrb[0].mxu0
      %3238 = vmatprep.mubr.bf16.mxu0 0
      %3239 = vmatmul.mubr.bf16.gmra.mrb[0].mxu0 %v3129
      %v3240 = vpop.f32.mrb[0].mxu0
      %v3241 = vadd.f32 0.0, %v3240
      %v3242 = vpop.f32.mrb[0].mxu0
      %v3243 = vpop.f32.mrb[0].mxu0
      %v3244 = vadd.f32 0.0, %v3243
      %v3245 = vpop.f32.mrb[0].mxu0
      %3246 = vmatprep.mubr.bf16.mxu0 0
      %3247 = vmatmul.mubr.bf16.gmra.mrb[0].mxu0 %v3132
      %v3248 = vpop.f32.mrb[0].mxu0
      %v3249 = vadd.f32 0.0, %v3248
      %v3250 = vpop.f32.mrb[0].mxu0
      %v3251 = vpop.f32.mrb[0].mxu0
      %v3252 = vadd.f32 0.0, %v3251
      %v3253 = vpop.f32.mrb[0].mxu0
      %3254 = vmatprep.mubr.bf16.mxu0 0
      %3255 = vmatmul.mubr.bf16.gmra.mrb[0].mxu0 %v3135
      %v3256 = vpop.f32.mrb[0].mxu0
      %v3257 = vadd.f32 0.0, %v3256
      %v3258 = vpop.f32.mrb[0].mxu0
      %v3259 = vpop.f32.mrb[0].mxu0
      %v3260 = vadd.f32 0.0, %v3259
      %v3261 = vpop.f32.mrb[0].mxu0
      %3262 = vmatprep.mubr.bf16.mxu0 0
      %3263 = vmatmul.mubr.bf16.gmra.mrb[0].mxu0 %v3138
      %v3264 = vpop.f32.mrb[0].mxu0
      %v3265 = vadd.f32 0.0, %v3264
      %v3266 = vpop.f32.mrb[0].mxu0
      %v3267 = vpop.f32.mrb[0].mxu0
      %v3268 = vadd.f32 0.0, %v3267
      %v3269 = vpop.f32.mrb[0].mxu0
      %3270 = vmatprep.mubr.bf16.mxu0 0
      %3271 = vmatmul.mubr.bf16.gmra.mrb[0].mxu0 %v3141
      %v3272 = vpop.f32.mrb[0].mxu0
      %v3273 = vadd.f32 0.0, %v3272
      %v3274 = vpop.f32.mrb[0].mxu0
      %v3275 = vpop.f32.mrb[0].mxu0
      %v3276 = vadd.f32 0.0, %v3275
      %v3277 = vpop.f32.mrb[0].mxu0
      %3278 = vmatprep.mubr.bf16.mxu0 0
      %3279 = vmatmul.mubr.bf16.gmra.mrb[0].mxu0 %v3144
      %v3280 = vpop.f32.mrb[0].mxu0
      %v3281 = vadd.f32 0.0, %v3280
      %v3282 = vpop.f32.mrb[0].mxu0
      %v3283 = vpop.f32.mrb[0].mxu0
      %v3284 = vadd.f32 0.0, %v3283
      %v3285 = vpop.f32.mrb[0].mxu0
      %3286 = vmatprep.mubr.bf16.mxu0 0
      %3287 = vmatmul.mubr.bf16.gmra.mrb[0].mxu0 %v3147
      %v3288 = vpop.f32.mrb[0].mxu0
      %v3289 = vadd.f32 0.0, %v3288
      %v3290 = vpop.f32.mrb[0].mxu0
      %v3291 = vpop.f32.mrb[0].mxu0
      %v3292 = vadd.f32 0.0, %v3291
      %v3293 = vpop.f32.mrb[0].mxu0
      %3294 = vmatprep.mubr.bf16.mxu0 0
      %3295 = vmatmul.mubr.bf16.gmra.mrb[0].mxu0 %v3150
      %v3296 = vpop.f32.mrb[0].mxu0
      %v3297 = vadd.f32 0.0, %v3296
      %v3298 = vpop.f32.mrb[0].mxu0
      %v3299 = vpop.f32.mrb[0].mxu0
      %v3300 = vadd.f32 0.0, %v3299
      %v3301 = vpop.f32.mrb[0].mxu0
      %3302 = vmatprep.mubr.bf16.mxu0 0
      %3303 = vmatmul.mubr.bf16.gmra.mrb[0].mxu0 %v3153
      %v3304 = vpop.f32.mrb[0].mxu0
      %v3305 = vadd.f32 0.0, %v3304
      %v3306 = vpop.f32.mrb[0].mxu0
      %v3307 = vpop.f32.mrb[0].mxu0
      %v3308 = vadd.f32 0.0, %v3307
      %v3309 = vpop.f32.mrb[0].mxu0
      %3310 = vmatprep.mubr.bf16.mxu0 0
      %3311 = vmatmul.mubr.bf16.gmra.mrb[0].mxu0 %v3156
      %v3312 = vpop.f32.mrb[0].mxu0
      %v3313 = vadd.f32 0.0, %v3312
      %v3314 = vpop.f32.mrb[0].mxu0
      %v3315 = vpop.f32.mrb[0].mxu0
      %v3316 = vadd.f32 0.0, %v3315
      %v3317 = vpop.f32.mrb[0].mxu0
      %3318 = vmatprep.mubr.bf16.mxu0 0
      %3319 = vmatmul.mubr.bf16.gmra.mrb[0].mxu0 %v3159
      %v3320 = vpop.f32.mrb[0].mxu0
      %v3321 = vadd.f32 0.0, %v3320
      %v3322 = vpop.f32.mrb[0].mxu0
      %v3323 = vpop.f32.mrb[0].mxu0
      %v3324 = vadd.f32 0.0, %v3323
      %v3325 = vpop.f32.mrb[0].mxu0
      %3326 = vmatprep.mubr.bf16.mxu0 0
      %3327 = vmatmul.mubr.bf16.gmra.mrb[0].mxu0 %v3162
      %v3328 = vpop.f32.mrb[0].mxu0
      %v3329 = vadd.f32 0.0, %v3328
      %v3330 = vpop.f32.mrb[0].mxu0
      %v3331 = vpop.f32.mrb[0].mxu0
      %v3332 = vadd.f32 0.0, %v3331
      %v3333 = vpop.f32.mrb[0].mxu0
      %3334 = vmatprep.mubr.bf16.mxu0 0
      %3335 = vmatmul.mubr.bf16.gmra.mrb[0].mxu0 %v3165
      %v3336 = vpop.f32.mrb[0].mxu0
      %v3337 = vadd.f32 0.0, %v3336
      %v3338 = vpop.f32.mrb[0].mxu0
      %v3339 = vpop.f32.mrb[0].mxu0
      %v3340 = vadd.f32 0.0, %v3339
      %v3341 = vpop.f32.mrb[0].mxu0
      %3342 = vmatprep.mubr.bf16.mxu0 0
      %3343 = vmatmul.mubr.bf16.gmra.mrb[0].mxu0 %v3168
      %v3344 = vpop.f32.mrb[0].mxu0
      %v3345 = vadd.f32 0.0, %v3344
      %v3346 = vpop.f32.mrb[0].mxu0
      %v3347 = vpop.f32.mrb[0].mxu0
      %v3348 = vadd.f32 0.0, %v3347
      %v3349 = vpop.f32.mrb[0].mxu0
      %3350 = vmatprep.mubr.bf16.mxu0 0
      %3351 = vmatmul.mubr.bf16.gmra.mrb[0].mxu0 %v3171
      %v3352 = vpop.f32.mrb[0].mxu0
      %v3353 = vadd.f32 0.0, %v3352
      %v3354 = vpop.f32.mrb[0].mxu0
      %v3355 = vpop.f32.mrb[0].mxu0
      %v3356 = vadd.f32 0.0, %v3355
      %v3357 = vpop.f32.mrb[0].mxu0
      %3358 = vmatprep.mubr.bf16.mxu0 0
      %3359 = vmatmul.mubr.bf16.gmra.mrb[0].mxu0 %v3174
      %v3360 = vpop.f32.mrb[0].mxu0
      %v3361 = vadd.f32 0.0, %v3360
      %v3362 = vpop.f32.mrb[0].mxu0
      %v3363 = vpop.f32.mrb[0].mxu0
      %v3364 = vadd.f32 0.0, %v3363
      %v3365 = vpop.f32.mrb[0].mxu0
      %3366 = vmatprep.mubr.bf16.mxu0 0
      %3367 = vmatmul.mubr.bf16.gmra.mrb[0].mxu0 %v3177
      %v3368 = vpop.f32.mrb[0].mxu0
      %v3369 = vadd.f32 0.0, %v3368
      %v3370 = vpop.f32.mrb[0].mxu0
      %v3371 = vpop.f32.mrb[0].mxu0
      %v3372 = vadd.f32 0.0, %v3371
      %v3373 = vpop.f32.mrb[0].mxu0
      %3374 = vmatprep.mubr.bf16.mxu0 0
      %3375 = vmatmul.mubr.bf16.gmra.mrb[0].mxu0 %v3180
      %v3376 = vpop.f32.mrb[0].mxu0
      %v3377 = vadd.f32 0.0, %v3376
      %v3378 = vpop.f32.mrb[0].mxu0
      %v3379 = vpop.f32.mrb[0].mxu0
      %v3380 = vpop.f32.mrb[0].mxu0
      %3381 = vdwg.mxu0
      %v3382 = vadd.f32 %v2983, %v3217
      %v3383 = vadd.f32 %v2984, %v3220
      %v3384 = vadd.f32 %v2985, %v3225
      %v3385 = vadd.f32 %v2986, %v3228
      %v3386 = vadd.f32 %v2987, %v3233
      %v3387 = vadd.f32 %v2988, %v3236
      %v3388 = vadd.f32 %v2989, %v3241
      %v3389 = vadd.f32 %v2990, %v3244
      %v3390 = vadd.f32 %v2991, %v3249
      %v3391 = vadd.f32 %v2992, %v3252
      %v3392 = vadd.f32 %v2993, %v3257
      %v3393 = vadd.f32 %v2994, %v3260
      %v3394 = vadd.f32 %v2995, %v3265
      %v3395 = vadd.f32 %v2996, %v3268
      %v3396 = vadd.f32 %v2997, %v3273
      %v3397 = vadd.f32 %v2998, %v3276
      %v3398 = vadd.f32 %v2999, %v3281
      %v3399 = vadd.f32 %v3000, %v3284
      %v3400 = vadd.f32 %v3001, %v3289
      %v3401 = vadd.f32 %v3002, %v3292
      %v3402 = vadd.f32 %v3003, %v3297
      %v3403 = vadd.f32 %v3004, %v3300
      %v3404 = vadd.f32 %v3005, %v3305
      %v3405 = vadd.f32 %v3006, %v3308
      %v3406 = vadd.f32 %v3007, %v3313
      %v3407 = vadd.f32 %v3008, %v3316
      %v3408 = vadd.f32 %v3009, %v3321
      %v3409 = vadd.f32 %v3010, %v3324
      %v3410 = vadd.f32 %v3011, %v3329
      %v3411 = vadd.f32 %v3012, %v3332
      %v3412 = vadd.f32 %v3013, %v3337
      %v3413 = vadd.f32 %v3014, %v3340
      %v3414 = vadd.f32 %v3015, %v3345
      %v3415 = vadd.f32 %v3016, %v3348
      %v3416 = vadd.f32 %v3017, %v3353
      %v3417 = vadd.f32 %v3018, %v3356
      %v3418 = vadd.f32 %v3019, %v3361
      %v3419 = vadd.f32 %v3020, %v3364
      %v3420 = vadd.f32 %v3021, %v3369
      %v3421 = vadd.f32 %v3022, %v3372
      %v3422 = vadd.f32 %v3023, %v3377
      %v3423 = vld [vmem:[#allocation2 + $0x18] sm:$0xff]
      %v3424 = vld [vmem:[#allocation2 + $0x20] sm:$0xff]
      %v3425 = vld [vmem:[#allocation2 + $0x28] sm:$0xff]
      %v3426 = vld [vmem:[#allocation2 + $0x30] sm:$0xff]
      %v3427 = vld [vmem:[#allocation2 + $0x38] sm:$0xff]
      %v3428 = vld [vmem:[#allocation2 + $0x40] sm:$0xff]
      %v3429 = vld [vmem:[#allocation2 + $0x48] sm:$0xff]
      %v3430 = vld [vmem:[#allocation2 + $0x50] sm:$0xff]
      %v3431 = vld [vmem:[#allocation2 + $0x58] sm:$0xff]
      %v3432 = vld [vmem:[#allocation2 + $0x60] sm:$0xff]
      %v3433 = vld [vmem:[#allocation2 + $0x68] sm:$0xff]
      %v3434 = vld [vmem:[#allocation2 + $0x70] sm:$0xff]
      %v3435 = vld [vmem:[#allocation2 + $0x78] sm:$0xff]
      %v3436 = vld [vmem:[#allocation2 + $0x80] sm:$0xff]
      %v3437 = vld [vmem:[#allocation2 + $0x88] sm:$0xff]
      %v3438 = vld [vmem:[#allocation2 + $0x90] sm:$0xff]
      %v3439 = vld [vmem:[#allocation2 + $0x98] sm:$0xff]
      %v3440 = vld [vmem:[#allocation2 + $0xa0] sm:$0xff]
      %v3441 = vld [vmem:[#allocation2 + $0xa8] sm:$0xff]
      %v3442 = vld [vmem:[#allocation2 + $0xb0] sm:$0xff]
      %v3443 = vld [vmem:[#allocation2 + $0xb8] sm:$0xff]
      %v3444 = vld [vmem:[#allocation2 + $0xc0] sm:$0xff]
      %v3445 = vld [vmem:[#allocation2 + $0xc8] sm:$0xff]
      %v3446 = vld [vmem:[#allocation2 + $0xd0] sm:$0xff]
      %v3447 = vld [vmem:[#allocation2 + $0xd8] sm:$0xff]
      %v3448 = vld [vmem:[#allocation2 + $0xe0] sm:$0xff]
      %v3449 = vld [vmem:[#allocation2 + $0xe8] sm:$0xff]
      %v3450 = vld [vmem:[#allocation2 + $0xf0] sm:$0xff]
      %v3451 = vld [vmem:[#allocation2 + $0xf8] sm:$0xff]
      %v3452 = vld [vmem:[#allocation2 + $0x100] sm:$0xff]
      %v3453 = vld [vmem:[#allocation2 + $0x108] sm:$0xff]
      %v3454 = vld [vmem:[#allocation2 + $0x110] sm:$0xff]
      %v3455 = vld [vmem:[#allocation2 + $0x118] sm:$0xff]
      %v3456 = vld [vmem:[#allocation2 + $0x120] sm:$0xff]
      %v3457 = vld [vmem:[#allocation2 + $0x128] sm:$0xff]
      %v3458 = vld [vmem:[#allocation2 + $0x130] sm:$0xff]
      %v3459 = vld [vmem:[#allocation2 + $0x138] sm:$0xff]
      %v3460 = vld [vmem:[#allocation2 + $0x140] sm:$0xff]
      %v3461 = vld [vmem:[#allocation2 + $0x148] sm:$0xff]
      %v3462 = vld [vmem:[#allocation2 + $0x150] sm:$0xff]
      %v3463 = vld [vmem:[#allocation2 + $0x158] sm:$0xff]
      %v3464 = vpack.c.bf16 %v3424, %v3423
      %v3465 = vpack.c.bf16 %v3426, %v3425
      %v3466 = vpack.c.bf16 %v3428, %v3427
      %v3467 = vpack.c.bf16 %v3430, %v3429
      %v3468 = vpack.c.bf16 %v3432, %v3431
      %v3469 = vpack.c.bf16 %v3434, %v3433
      %v3470 = vpack.c.bf16 %v3436, %v3435
      %v3471 = vpack.c.bf16 %v3438, %v3437
      %v3472 = vpack.c.bf16 %v3440, %v3439
      %v3473 = vpack.c.bf16 %v3442, %v3441
      %v3474 = vpack.c.bf16 %v3444, %v3443
      %v3475 = vpack.c.bf16 %v3446, %v3445
      %v3476 = vpack.c.bf16 %v3448, %v3447
      %v3477 = vpack.c.bf16 %v3450, %v3449
      %v3478 = vpack.c.bf16 %v3452, %v3451
      %v3479 = vpack.c.bf16 %v3454, %v3453
      %v3480 = vpack.c.bf16 %v3456, %v3455
      %v3481 = vpack.c.bf16 %v3458, %v3457
      %v3482 = vpack.c.bf16 %v3460, %v3459
      %v3483 = vpack.c.bf16 %v3462, %v3461
      %v3484 = vpack.c.bf16 %v3463, %v3463
      %s3485 = scalar_lea.vmem %s7, 128
      %v3486 = vld [vmem:[%s3485] sm:$0xf]
      %v3487 = vld [vmem:[%s3485 + $0x4] sm:$0xf]
      %v3488 = vld [vmem:[%s3485 + $0x8] sm:$0xf]
      %v3489 = vld [vmem:[%s3485 + $0xc] sm:$0xf]
      %v3490 = vld [vmem:[%s3485 + $0x10] sm:$0xf]
      %v3491 = vld [vmem:[%s3485 + $0x14] sm:$0xf]
      %v3492 = vld [vmem:[%s3485 + $0x18] sm:$0xf]
      %v3493 = vld [vmem:[%s3485 + $0x1c] sm:$0xf]
      %v3502 = vunpack.c.l.b16 %v3486
      %v3503 = vunpack.c.l.b16 %v3487
      %v3504 = vunpack.c.l.b16 %v3488
      %v3505 = vunpack.c.l.b16 %v3489
      %v3506 = vunpack.c.l.b16 %v3490
      %v3507 = vunpack.c.l.b16 %v3491
      %v3508 = vunpack.c.l.b16 %v3492
      %v3509 = vunpack.c.l.b16 %v3493
      %v3510 = vpack.c.b16 %v3503, %v3502
      %v3511 = vpack.c.b16 %v3505, %v3504
      %v3512 = vpack.c.b16 %v3507, %v3506
      %v3513 = vpack.c.b16 %v3509, %v3508
      %v3519 = vsel %vm1234, %v3464, 0
      %v3522 = vsel %vm1234, %v3465, 0
      %v3525 = vsel %vm1234, %v3466, 0
      %v3528 = vsel %vm1234, %v3467, 0
      %v3531 = vsel %vm1234, %v3468, 0
      %v3534 = vsel %vm1234, %v3469, 0
      %v3537 = vsel %vm1234, %v3470, 0
      %v3540 = vsel %vm1234, %v3471, 0
      %v3543 = vsel %vm1234, %v3472, 0
      %v3546 = vsel %vm1234, %v3473, 0
      %v3549 = vsel %vm1234, %v3474, 0
      %v3552 = vsel %vm1234, %v3475, 0
      %v3555 = vsel %vm1234, %v3476, 0
      %v3558 = vsel %vm1234, %v3477, 0
      %v3561 = vsel %vm1234, %v3478, 0
      %v3564 = vsel %vm1234, %v3479, 0
      %v3567 = vsel %vm1234, %v3480, 0
      %v3570 = vsel %vm1234, %v3481, 0
      %v3573 = vsel %vm1234, %v3482, 0
      %v3576 = vsel %vm1234, %v3483, 0
      %v3579 = vsel %vm1234, %v3484, 0
      %3581 = vmatprep.subr.bf16.mxu0 0
      %3582 = vmatpush1.bf16.msra.mxu0 %v3510
      %3583 = vmatprep.subr.bf16.mxu0 0
      %3584 = vmatpush1.bf16.msra.mxu0 %v3511
      %3585 = vmatprep.subr.bf16.mxu0 0
      %3586 = vmatpush1.bf16.msra.mxu0 %v3512
      %3587 = vmatprep.subr.bf16.mxu0 0
      %3588 = vmatpush1.bf16.msra.mxu0 %v3513
      %3589 = vmatprep.subr.bf16.mxu0 0
      %3590 = vmatpush1.bf16.msra.mxu0 0
      %3591 = vmatprep.subr.bf16.mxu0 0
      %3592 = vmatpush1.bf16.msra.mxu0 0
      %3593 = vmatprep.subr.bf16.mxu0 0
      %3594 = vmatpush1.bf16.msra.mxu0 0
      %3595 = vmatprep.subr.bf16.mxu0 0
      %3596 = vmatpush1.bf16.msra.mxu0 0
      %3597 = vmatprep.subr.bf16.mxu0 0
      %3598 = vmatpush1.bf16.msra.mxu0 0
      %3599 = vmatprep.subr.bf16.mxu0 0
      %3600 = vmatpush1.bf16.msra.mxu0 0
      %3601 = vmatprep.subr.bf16.mxu0 0
      %3602 = vmatpush1.bf16.msra.mxu0 0
      %3603 = vmatprep.subr.bf16.mxu0 0
      %3604 = vmatpush1.bf16.msra.mxu0 0
      %3605 = vmatprep.subr.bf16.mxu0 0
      %3606 = vmatpush1.bf16.msra.mxu0 0
      %3607 = vmatprep.subr.bf16.mxu0 0
      %3608 = vmatpush1.bf16.msra.mxu0 0
      %3609 = vmatprep.subr.bf16.mxu0 0
      %3610 = vmatpush1.bf16.msra.mxu0 0
      %3611 = vmatprep.subr.bf16.mxu0 0
      %3612 = vmatpush1.bf16.msra.mxu0 0
      %3613 = vmatprep.mubr.bf16.mxu0 0
      %3614 = vmatmul.mubr.bf16.gmra.mrb[0].mxu0 %v3519
      %v3615 = vpop.f32.mrb[0].mxu0
      %v3616 = vadd.f32 0.0, %v3615
      %v3617 = vpop.f32.mrb[0].mxu0
      %v3618 = vpop.f32.mrb[0].mxu0
      %v3619 = vadd.f32 0.0, %v3618
      %v3620 = vpop.f32.mrb[0].mxu0
      %3621 = vmatprep.mubr.bf16.mxu0 0
      %3622 = vmatmul.mubr.bf16.gmra.mrb[0].mxu0 %v3522
      %v3623 = vpop.f32.mrb[0].mxu0
      %v3624 = vadd.f32 0.0, %v3623
      %v3625 = vpop.f32.mrb[0].mxu0
      %v3626 = vpop.f32.mrb[0].mxu0
      %v3627 = vadd.f32 0.0, %v3626
      %v3628 = vpop.f32.mrb[0].mxu0
      %3629 = vmatprep.mubr.bf16.mxu0 0
      %3630 = vmatmul.mubr.bf16.gmra.mrb[0].mxu0 %v3525
      %v3631 = vpop.f32.mrb[0].mxu0
      %v3632 = vadd.f32 0.0, %v3631
      %v3633 = vpop.f32.mrb[0].mxu0
      %v3634 = vpop.f32.mrb[0].mxu0
      %v3635 = vadd.f32 0.0, %v3634
      %v3636 = vpop.f32.mrb[0].mxu0
      %3637 = vmatprep.mubr.bf16.mxu0 0
      %3638 = vmatmul.mubr.bf16.gmra.mrb[0].mxu0 %v3528
      %v3639 = vpop.f32.mrb[0].mxu0
      %v3640 = vadd.f32 0.0, %v3639
      %v3641 = vpop.f32.mrb[0].mxu0
      %v3642 = vpop.f32.mrb[0].mxu0
      %v3643 = vadd.f32 0.0, %v3642
      %v3644 = vpop.f32.mrb[0].mxu0
      %3645 = vmatprep.mubr.bf16.mxu0 0
      %3646 = vmatmul.mubr.bf16.gmra.mrb[0].mxu0 %v3531
      %v3647 = vpop.f32.mrb[0].mxu0
      %v3648 = vadd.f32 0.0, %v3647
      %v3649 = vpop.f32.mrb[0].mxu0
      %v3650 = vpop.f32.mrb[0].mxu0
      %v3651 = vadd.f32 0.0, %v3650
      %v3652 = vpop.f32.mrb[0].mxu0
      %3653 = vmatprep.mubr.bf16.mxu0 0
      %3654 = vmatmul.mubr.bf16.gmra.mrb[0].mxu0 %v3534
      %v3655 = vpop.f32.mrb[0].mxu0
      %v3656 = vadd.f32 0.0, %v3655
      %v3657 = vpop.f32.mrb[0].mxu0
      %v3658 = vpop.f32.mrb[0].mxu0
      %v3659 = vadd.f32 0.0, %v3658
      %v3660 = vpop.f32.mrb[0].mxu0
      %3661 = vmatprep.mubr.bf16.mxu0 0
      %3662 = vmatmul.mubr.bf16.gmra.mrb[0].mxu0 %v3537
      %v3663 = vpop.f32.mrb[0].mxu0
      %v3664 = vadd.f32 0.0, %v3663
      %v3665 = vpop.f32.mrb[0].mxu0
      %v3666 = vpop.f32.mrb[0].mxu0
      %v3667 = vadd.f32 0.0, %v3666
      %v3668 = vpop.f32.mrb[0].mxu0
      %3669 = vmatprep.mubr.bf16.mxu0 0
      %3670 = vmatmul.mubr.bf16.gmra.mrb[0].mxu0 %v3540
      %v3671 = vpop.f32.mrb[0].mxu0
      %v3672 = vadd.f32 0.0, %v3671
      %v3673 = vpop.f32.mrb[0].mxu0
      %v3674 = vpop.f32.mrb[0].mxu0
      %v3675 = vadd.f32 0.0, %v3674
      %v3676 = vpop.f32.mrb[0].mxu0
      %3677 = vmatprep.mubr.bf16.mxu0 0
      %3678 = vmatmul.mubr.bf16.gmra.mrb[0].mxu0 %v3543
      %v3679 = vpop.f32.mrb[0].mxu0
      %v3680 = vadd.f32 0.0, %v3679
      %v3681 = vpop.f32.mrb[0].mxu0
      %v3682 = vpop.f32.mrb[0].mxu0
      %v3683 = vadd.f32 0.0, %v3682
      %v3684 = vpop.f32.mrb[0].mxu0
      %3685 = vmatprep.mubr.bf16.mxu0 0
      %3686 = vmatmul.mubr.bf16.gmra.mrb[0].mxu0 %v3546
      %v3687 = vpop.f32.mrb[0].mxu0
      %v3688 = vadd.f32 0.0, %v3687
      %v3689 = vpop.f32.mrb[0].mxu0
      %v3690 = vpop.f32.mrb[0].mxu0
      %v3691 = vadd.f32 0.0, %v3690
      %v3692 = vpop.f32.mrb[0].mxu0
      %3693 = vmatprep.mubr.bf16.mxu0 0
      %3694 = vmatmul.mubr.bf16.gmra.mrb[0].mxu0 %v3549
      %v3695 = vpop.f32.mrb[0].mxu0
      %v3696 = vadd.f32 0.0, %v3695
      %v3697 = vpop.f32.mrb[0].mxu0
      %v3698 = vpop.f32.mrb[0].mxu0
      %v3699 = vadd.f32 0.0, %v3698
      %v3700 = vpop.f32.mrb[0].mxu0
      %3701 = vmatprep.mubr.bf16.mxu0 0
      %3702 = vmatmul.mubr.bf16.gmra.mrb[0].mxu0 %v3552
      %v3703 = vpop.f32.mrb[0].mxu0
      %v3704 = vadd.f32 0.0, %v3703
      %v3705 = vpop.f32.mrb[0].mxu0
      %v3706 = vpop.f32.mrb[0].mxu0
      %v3707 = vadd.f32 0.0, %v3706
      %v3708 = vpop.f32.mrb[0].mxu0
      %3709 = vmatprep.mubr.bf16.mxu0 0
      %3710 = vmatmul.mubr.bf16.gmra.mrb[0].mxu0 %v3555
      %v3711 = vpop.f32.mrb[0].mxu0
      %v3712 = vadd.f32 0.0, %v3711
      %v3713 = vpop.f32.mrb[0].mxu0
      %v3714 = vpop.f32.mrb[0].mxu0
      %v3715 = vadd.f32 0.0, %v3714
      %v3716 = vpop.f32.mrb[0].mxu0
      %3717 = vmatprep.mubr.bf16.mxu0 0
      %3718 = vmatmul.mubr.bf16.gmra.mrb[0].mxu0 %v3558
      %v3719 = vpop.f32.mrb[0].mxu0
      %v3720 = vadd.f32 0.0, %v3719
      %v3721 = vpop.f32.mrb[0].mxu0
      %v3722 = vpop.f32.mrb[0].mxu0
      %v3723 = vadd.f32 0.0, %v3722
      %v3724 = vpop.f32.mrb[0].mxu0
      %3725 = vmatprep.mubr.bf16.mxu0 0
      %3726 = vmatmul.mubr.bf16.gmra.mrb[0].mxu0 %v3561
      %v3727 = vpop.f32.mrb[0].mxu0
      %v3728 = vadd.f32 0.0, %v3727
      %v3729 = vpop.f32.mrb[0].mxu0
      %v3730 = vpop.f32.mrb[0].mxu0
      %v3731 = vadd.f32 0.0, %v3730
      %v3732 = vpop.f32.mrb[0].mxu0
      %3733 = vmatprep.mubr.bf16.mxu0 0
      %3734 = vmatmul.mubr.bf16.gmra.mrb[0].mxu0 %v3564
      %v3735 = vpop.f32.mrb[0].mxu0
      %v3736 = vadd.f32 0.0, %v3735
      %v3737 = vpop.f32.mrb[0].mxu0
      %v3738 = vpop.f32.mrb[0].mxu0
      %v3739 = vadd.f32 0.0, %v3738
      %v3740 = vpop.f32.mrb[0].mxu0
      %3741 = vmatprep.mubr.bf16.mxu0 0
      %3742 = vmatmul.mubr.bf16.gmra.mrb[0].mxu0 %v3567
      %v3743 = vpop.f32.mrb[0].mxu0
      %v3744 = vadd.f32 0.0, %v3743
      %v3745 = vpop.f32.mrb[0].mxu0
      %v3746 = vpop.f32.mrb[0].mxu0
      %v3747 = vadd.f32 0.0, %v3746
      %v3748 = vpop.f32.mrb[0].mxu0
      %3749 = vmatprep.mubr.bf16.mxu0 0
      %3750 = vmatmul.mubr.bf16.gmra.mrb[0].mxu0 %v3570
      %v3751 = vpop.f32.mrb[0].mxu0
      %v3752 = vadd.f32 0.0, %v3751
      %v3753 = vpop.f32.mrb[0].mxu0
      %v3754 = vpop.f32.mrb[0].mxu0
      %v3755 = vadd.f32 0.0, %v3754
      %v3756 = vpop.f32.mrb[0].mxu0
      %3757 = vmatprep.mubr.bf16.mxu0 0
      %3758 = vmatmul.mubr.bf16.gmra.mrb[0].mxu0 %v3573
      %v3759 = vpop.f32.mrb[0].mxu0
      %v3760 = vadd.f32 0.0, %v3759
      %v3761 = vpop.f32.mrb[0].mxu0
      %v3762 = vpop.f32.mrb[0].mxu0
      %v3763 = vadd.f32 0.0, %v3762
      %v3764 = vpop.f32.mrb[0].mxu0
      %3765 = vmatprep.mubr.bf16.mxu0 0
      %3766 = vmatmul.mubr.bf16.gmra.mrb[0].mxu0 %v3576
      %v3767 = vpop.f32.mrb[0].mxu0
      %v3768 = vadd.f32 0.0, %v3767
      %v3769 = vpop.f32.mrb[0].mxu0
      %v3770 = vpop.f32.mrb[0].mxu0
      %v3771 = vadd.f32 0.0, %v3770
      %v3772 = vpop.f32.mrb[0].mxu0
      %3773 = vmatprep.mubr.bf16.mxu0 0
      %3774 = vmatmul.mubr.bf16.gmra.mrb[0].mxu0 %v3579
      %v3775 = vpop.f32.mrb[0].mxu0
      %v3776 = vadd.f32 0.0, %v3775
      %v3777 = vpop.f32.mrb[0].mxu0
      %v3778 = vpop.f32.mrb[0].mxu0
      %v3779 = vpop.f32.mrb[0].mxu0
      %3780 = vdwg.mxu0
      %v3781 = vadd.f32 %v3382, %v3616
      %v3782 = vadd.f32 %v3383, %v3619
      %v3783 = vadd.f32 %v3384, %v3624
      %v3784 = vadd.f32 %v3385, %v3627
      %v3785 = vadd.f32 %v3386, %v3632
      %v3786 = vadd.f32 %v3387, %v3635
      %v3787 = vadd.f32 %v3388, %v3640
      %v3788 = vadd.f32 %v3389, %v3643
      %v3789 = vadd.f32 %v3390, %v3648
      %v3790 = vadd.f32 %v3391, %v3651
      %v3791 = vadd.f32 %v3392, %v3656
      %v3792 = vadd.f32 %v3393, %v3659
      %v3793 = vadd.f32 %v3394, %v3664
      %v3794 = vadd.f32 %v3395, %v3667
      %v3795 = vadd.f32 %v3396, %v3672
      %v3796 = vadd.f32 %v3397, %v3675
      %v3797 = vadd.f32 %v3398, %v3680
      %v3798 = vadd.f32 %v3399, %v3683
      %v3799 = vadd.f32 %v3400, %v3688
      %v3800 = vadd.f32 %v3401, %v3691
      %v3801 = vadd.f32 %v3402, %v3696
      %v3802 = vadd.f32 %v3403, %v3699
      %v3803 = vadd.f32 %v3404, %v3704
      %v3804 = vadd.f32 %v3405, %v3707
      %v3805 = vadd.f32 %v3406, %v3712
      %v3806 = vadd.f32 %v3407, %v3715
      %v3807 = vadd.f32 %v3408, %v3720
      %v3808 = vadd.f32 %v3409, %v3723
      %v3809 = vadd.f32 %v3410, %v3728
      %v3810 = vadd.f32 %v3411, %v3731
      %v3811 = vadd.f32 %v3412, %v3736
      %v3812 = vadd.f32 %v3413, %v3739
      %v3813 = vadd.f32 %v3414, %v3744
      %v3814 = vadd.f32 %v3415, %v3747
      %v3815 = vadd.f32 %v3416, %v3752
      %v3816 = vadd.f32 %v3417, %v3755
      %v3817 = vadd.f32 %v3418, %v3760
      %v3818 = vadd.f32 %v3419, %v3763
      %v3819 = vadd.f32 %v3420, %v3768
      %v3820 = vadd.f32 %v3421, %v3771
      %v3821 = vadd.f32 %v3422, %v3776
      %v3822 = vld [vmem:[#allocation2 + $0x19] sm:$0xff]
      %v3823 = vld [vmem:[#allocation2 + $0x21] sm:$0xff]
      %v3824 = vld [vmem:[#allocation2 + $0x29] sm:$0xff]
      %v3825 = vld [vmem:[#allocation2 + $0x31] sm:$0xff]
      %v3826 = vld [vmem:[#allocation2 + $0x39] sm:$0xff]
      %v3827 = vld [vmem:[#allocation2 + $0x41] sm:$0xff]
      %v3828 = vld [vmem:[#allocation2 + $0x49] sm:$0xff]
      %v3829 = vld [vmem:[#allocation2 + $0x51] sm:$0xff]
      %v3830 = vld [vmem:[#allocation2 + $0x59] sm:$0xff]
      %v3831 = vld [vmem:[#allocation2 + $0x61] sm:$0xff]
      %v3832 = vld [vmem:[#allocation2 + $0x69] sm:$0xff]
      %v3833 = vld [vmem:[#allocation2 + $0x71] sm:$0xff]
      %v3834 = vld [vmem:[#allocation2 + $0x79] sm:$0xff]
      %v3835 = vld [vmem:[#allocation2 + $0x81] sm:$0xff]
      %v3836 = vld [vmem:[#allocation2 + $0x89] sm:$0xff]
      %v3837 = vld [vmem:[#allocation2 + $0x91] sm:$0xff]
      %v3838 = vld [vmem:[#allocation2 + $0x99] sm:$0xff]
      %v3839 = vld [vmem:[#allocation2 + $0xa1] sm:$0xff]
      %v3840 = vld [vmem:[#allocation2 + $0xa9] sm:$0xff]
      %v3841 = vld [vmem:[#allocation2 + $0xb1] sm:$0xff]
      %v3842 = vld [vmem:[#allocation2 + $0xb9] sm:$0xff]
      %v3843 = vld [vmem:[#allocation2 + $0xc1] sm:$0xff]
      %v3844 = vld [vmem:[#allocation2 + $0xc9] sm:$0xff]
      %v3845 = vld [vmem:[#allocation2 + $0xd1] sm:$0xff]
      %v3846 = vld [vmem:[#allocation2 + $0xd9] sm:$0xff]
      %v3847 = vld [vmem:[#allocation2 + $0xe1] sm:$0xff]
      %v3848 = vld [vmem:[#allocation2 + $0xe9] sm:$0xff]
      %v3849 = vld [vmem:[#allocation2 + $0xf1] sm:$0xff]
      %v3850 = vld [vmem:[#allocation2 + $0xf9] sm:$0xff]
      %v3851 = vld [vmem:[#allocation2 + $0x101] sm:$0xff]
      %v3852 = vld [vmem:[#allocation2 + $0x109] sm:$0xff]
      %v3853 = vld [vmem:[#allocation2 + $0x111] sm:$0xff]
      %v3854 = vld [vmem:[#allocation2 + $0x119] sm:$0xff]
      %v3855 = vld [vmem:[#allocation2 + $0x121] sm:$0xff]
      %v3856 = vld [vmem:[#allocation2 + $0x129] sm:$0xff]
      %v3857 = vld [vmem:[#allocation2 + $0x131] sm:$0xff]
      %v3858 = vld [vmem:[#allocation2 + $0x139] sm:$0xff]
      %v3859 = vld [vmem:[#allocation2 + $0x141] sm:$0xff]
      %v3860 = vld [vmem:[#allocation2 + $0x149] sm:$0xff]
      %v3861 = vld [vmem:[#allocation2 + $0x151] sm:$0xff]
      %v3862 = vld [vmem:[#allocation2 + $0x159] sm:$0xff]
      %v3863 = vpack.c.bf16 %v3823, %v3822
      %v3864 = vpack.c.bf16 %v3825, %v3824
      %v3865 = vpack.c.bf16 %v3827, %v3826
      %v3866 = vpack.c.bf16 %v3829, %v3828
      %v3867 = vpack.c.bf16 %v3831, %v3830
      %v3868 = vpack.c.bf16 %v3833, %v3832
      %v3869 = vpack.c.bf16 %v3835, %v3834
      %v3870 = vpack.c.bf16 %v3837, %v3836
      %v3871 = vpack.c.bf16 %v3839, %v3838
      %v3872 = vpack.c.bf16 %v3841, %v3840
      %v3873 = vpack.c.bf16 %v3843, %v3842
      %v3874 = vpack.c.bf16 %v3845, %v3844
      %v3875 = vpack.c.bf16 %v3847, %v3846
      %v3876 = vpack.c.bf16 %v3849, %v3848
      %v3877 = vpack.c.bf16 %v3851, %v3850
      %v3878 = vpack.c.bf16 %v3853, %v3852
      %v3879 = vpack.c.bf16 %v3855, %v3854
      %v3880 = vpack.c.bf16 %v3857, %v3856
      %v3881 = vpack.c.bf16 %v3859, %v3858
      %v3882 = vpack.c.bf16 %v3861, %v3860
      %v3883 = vpack.c.bf16 %v3862, %v3862
      %s3884 = scalar_lea.vmem %s7, 160
      %v3885 = vld [vmem:[%s3884] sm:$0xf]
      %v3886 = vld [vmem:[%s3884 + $0x4] sm:$0xf]
      %v3887 = vld [vmem:[%s3884 + $0x8] sm:$0xf]
      %v3888 = vld [vmem:[%s3884 + $0xc] sm:$0xf]
      %v3889 = vld [vmem:[%s3884 + $0x10] sm:$0xf]
      %v3890 = vld [vmem:[%s3884 + $0x14] sm:$0xf]
      %v3891 = vld [vmem:[%s3884 + $0x18] sm:$0xf]
      %v3892 = vld [vmem:[%s3884 + $0x1c] sm:$0xf]
      %v3901 = vunpack.c.l.b16 %v3885
      %v3902 = vunpack.c.l.b16 %v3886
      %v3903 = vunpack.c.l.b16 %v3887
      %v3904 = vunpack.c.l.b16 %v3888
      %v3905 = vunpack.c.l.b16 %v3889
      %v3906 = vunpack.c.l.b16 %v3890
      %v3907 = vunpack.c.l.b16 %v3891
      %v3908 = vunpack.c.l.b16 %v3892
      %v3909 = vpack.c.b16 %v3902, %v3901
      %v3910 = vpack.c.b16 %v3904, %v3903
      %v3911 = vpack.c.b16 %v3906, %v3905
      %v3912 = vpack.c.b16 %v3908, %v3907
      %v3918 = vsel %vm1234, %v3863, 0
      %v3921 = vsel %vm1234, %v3864, 0
      %v3924 = vsel %vm1234, %v3865, 0
      %v3927 = vsel %vm1234, %v3866, 0
      %v3930 = vsel %vm1234, %v3867, 0
      %v3933 = vsel %vm1234, %v3868, 0
      %v3936 = vsel %vm1234, %v3869, 0
      %v3939 = vsel %vm1234, %v3870, 0
      %v3942 = vsel %vm1234, %v3871, 0
      %v3945 = vsel %vm1234, %v3872, 0
      %v3948 = vsel %vm1234, %v3873, 0
      %v3951 = vsel %vm1234, %v3874, 0
      %v3954 = vsel %vm1234, %v3875, 0
      %v3957 = vsel %vm1234, %v3876, 0
      %v3960 = vsel %vm1234, %v3877, 0
      %v3963 = vsel %vm1234, %v3878, 0
      %v3966 = vsel %vm1234, %v3879, 0
      %v3969 = vsel %vm1234, %v3880, 0
      %v3972 = vsel %vm1234, %v3881, 0
      %v3975 = vsel %vm1234, %v3882, 0
      %v3978 = vsel %vm1234, %v3883, 0
      %3980 = vmatprep.subr.bf16.mxu0 0
      %3981 = vmatpush1.bf16.msra.mxu0 %v3909
      %3982 = vmatprep.subr.bf16.mxu0 0
      %3983 = vmatpush1.bf16.msra.mxu0 %v3910
      %3984 = vmatprep.subr.bf16.mxu0 0
      %3985 = vmatpush1.bf16.msra.mxu0 %v3911
      %3986 = vmatprep.subr.bf16.mxu0 0
      %3987 = vmatpush1.bf16.msra.mxu0 %v3912
      %3988 = vmatprep.subr.bf16.mxu0 0
      %3989 = vmatpush1.bf16.msra.mxu0 0
      %3990 = vmatprep.subr.bf16.mxu0 0
      %3991 = vmatpush1.bf16.msra.mxu0 0
      %3992 = vmatprep.subr.bf16.mxu0 0
      %3993 = vmatpush1.bf16.msra.mxu0 0
      %3994 = vmatprep.subr.bf16.mxu0 0
      %3995 = vmatpush1.bf16.msra.mxu0 0
      %3996 = vmatprep.subr.bf16.mxu0 0
      %3997 = vmatpush1.bf16.msra.mxu0 0
      %3998 = vmatprep.subr.bf16.mxu0 0
      %3999 = vmatpush1.bf16.msra.mxu0 0
      %4000 = vmatprep.subr.bf16.mxu0 0
      %4001 = vmatpush1.bf16.msra.mxu0 0
      %4002 = vmatprep.subr.bf16.mxu0 0
      %4003 = vmatpush1.bf16.msra.mxu0 0
      %4004 = vmatprep.subr.bf16.mxu0 0
      %4005 = vmatpush1.bf16.msra.mxu0 0
      %4006 = vmatprep.subr.bf16.mxu0 0
      %4007 = vmatpush1.bf16.msra.mxu0 0
      %4008 = vmatprep.subr.bf16.mxu0 0
      %4009 = vmatpush1.bf16.msra.mxu0 0
      %4010 = vmatprep.subr.bf16.mxu0 0
      %4011 = vmatpush1.bf16.msra.mxu0 0
      %4012 = vmatprep.mubr.bf16.mxu0 0
      %4013 = vmatmul.mubr.bf16.gmra.mrb[0].mxu0 %v3918
      %v4014 = vpop.f32.mrb[0].mxu0
      %v4015 = vadd.f32 0.0, %v4014
      %v4016 = vpop.f32.mrb[0].mxu0
      %v4017 = vpop.f32.mrb[0].mxu0
      %v4018 = vadd.f32 0.0, %v4017
      %v4019 = vpop.f32.mrb[0].mxu0
      %4020 = vmatprep.mubr.bf16.mxu0 0
      %4021 = vmatmul.mubr.bf16.gmra.mrb[0].mxu0 %v3921
      %v4022 = vpop.f32.mrb[0].mxu0
      %v4023 = vadd.f32 0.0, %v4022
      %v4024 = vpop.f32.mrb[0].mxu0
      %v4025 = vpop.f32.mrb[0].mxu0
      %v4026 = vadd.f32 0.0, %v4025
      %v4027 = vpop.f32.mrb[0].mxu0
      %4028 = vmatprep.mubr.bf16.mxu0 0
      %4029 = vmatmul.mubr.bf16.gmra.mrb[0].mxu0 %v3924
      %v4030 = vpop.f32.mrb[0].mxu0
      %v4031 = vadd.f32 0.0, %v4030
      %v4032 = vpop.f32.mrb[0].mxu0
      %v4033 = vpop.f32.mrb[0].mxu0
      %v4034 = vadd.f32 0.0, %v4033
      %v4035 = vpop.f32.mrb[0].mxu0
      %4036 = vmatprep.mubr.bf16.mxu0 0
      %4037 = vmatmul.mubr.bf16.gmra.mrb[0].mxu0 %v3927
      %v4038 = vpop.f32.mrb[0].mxu0
      %v4039 = vadd.f32 0.0, %v4038
      %v4040 = vpop.f32.mrb[0].mxu0
      %v4041 = vpop.f32.mrb[0].mxu0
      %v4042 = vadd.f32 0.0, %v4041
      %v4043 = vpop.f32.mrb[0].mxu0
      %4044 = vmatprep.mubr.bf16.mxu0 0
      %4045 = vmatmul.mubr.bf16.gmra.mrb[0].mxu0 %v3930
      %v4046 = vpop.f32.mrb[0].mxu0
      %v4047 = vadd.f32 0.0, %v4046
      %v4048 = vpop.f32.mrb[0].mxu0
      %v4049 = vpop.f32.mrb[0].mxu0
      %v4050 = vadd.f32 0.0, %v4049
      %v4051 = vpop.f32.mrb[0].mxu0
      %4052 = vmatprep.mubr.bf16.mxu0 0
      %4053 = vmatmul.mubr.bf16.gmra.mrb[0].mxu0 %v3933
      %v4054 = vpop.f32.mrb[0].mxu0
      %v4055 = vadd.f32 0.0, %v4054
      %v4056 = vpop.f32.mrb[0].mxu0
      %v4057 = vpop.f32.mrb[0].mxu0
      %v4058 = vadd.f32 0.0, %v4057
      %v4059 = vpop.f32.mrb[0].mxu0
      %4060 = vmatprep.mubr.bf16.mxu0 0
      %4061 = vmatmul.mubr.bf16.gmra.mrb[0].mxu0 %v3936
      %v4062 = vpop.f32.mrb[0].mxu0
      %v4063 = vadd.f32 0.0, %v4062
      %v4064 = vpop.f32.mrb[0].mxu0
      %v4065 = vpop.f32.mrb[0].mxu0
      %v4066 = vadd.f32 0.0, %v4065
      %v4067 = vpop.f32.mrb[0].mxu0
      %4068 = vmatprep.mubr.bf16.mxu0 0
      %4069 = vmatmul.mubr.bf16.gmra.mrb[0].mxu0 %v3939
      %v4070 = vpop.f32.mrb[0].mxu0
      %v4071 = vadd.f32 0.0, %v4070
      %v4072 = vpop.f32.mrb[0].mxu0
      %v4073 = vpop.f32.mrb[0].mxu0
      %v4074 = vadd.f32 0.0, %v4073
      %v4075 = vpop.f32.mrb[0].mxu0
      %4076 = vmatprep.mubr.bf16.mxu0 0
      %4077 = vmatmul.mubr.bf16.gmra.mrb[0].mxu0 %v3942
      %v4078 = vpop.f32.mrb[0].mxu0
      %v4079 = vadd.f32 0.0, %v4078
      %v4080 = vpop.f32.mrb[0].mxu0
      %v4081 = vpop.f32.mrb[0].mxu0
      %v4082 = vadd.f32 0.0, %v4081
      %v4083 = vpop.f32.mrb[0].mxu0
      %4084 = vmatprep.mubr.bf16.mxu0 0
      %4085 = vmatmul.mubr.bf16.gmra.mrb[0].mxu0 %v3945
      %v4086 = vpop.f32.mrb[0].mxu0
      %v4087 = vadd.f32 0.0, %v4086
      %v4088 = vpop.f32.mrb[0].mxu0
      %v4089 = vpop.f32.mrb[0].mxu0
      %v4090 = vadd.f32 0.0, %v4089
      %v4091 = vpop.f32.mrb[0].mxu0
      %4092 = vmatprep.mubr.bf16.mxu0 0
      %4093 = vmatmul.mubr.bf16.gmra.mrb[0].mxu0 %v3948
      %v4094 = vpop.f32.mrb[0].mxu0
      %v4095 = vadd.f32 0.0, %v4094
      %v4096 = vpop.f32.mrb[0].mxu0
      %v4097 = vpop.f32.mrb[0].mxu0
      %v4098 = vadd.f32 0.0, %v4097
      %v4099 = vpop.f32.mrb[0].mxu0
      %4100 = vmatprep.mubr.bf16.mxu0 0
      %4101 = vmatmul.mubr.bf16.gmra.mrb[0].mxu0 %v3951
      %v4102 = vpop.f32.mrb[0].mxu0
      %v4103 = vadd.f32 0.0, %v4102
      %v4104 = vpop.f32.mrb[0].mxu0
      %v4105 = vpop.f32.mrb[0].mxu0
      %v4106 = vadd.f32 0.0, %v4105
      %v4107 = vpop.f32.mrb[0].mxu0
      %4108 = vmatprep.mubr.bf16.mxu0 0
      %4109 = vmatmul.mubr.bf16.gmra.mrb[0].mxu0 %v3954
      %v4110 = vpop.f32.mrb[0].mxu0
      %v4111 = vadd.f32 0.0, %v4110
      %v4112 = vpop.f32.mrb[0].mxu0
      %v4113 = vpop.f32.mrb[0].mxu0
      %v4114 = vadd.f32 0.0, %v4113
      %v4115 = vpop.f32.mrb[0].mxu0
      %4116 = vmatprep.mubr.bf16.mxu0 0
      %4117 = vmatmul.mubr.bf16.gmra.mrb[0].mxu0 %v3957
      %v4118 = vpop.f32.mrb[0].mxu0
      %v4119 = vadd.f32 0.0, %v4118
      %v4120 = vpop.f32.mrb[0].mxu0
      %v4121 = vpop.f32.mrb[0].mxu0
      %v4122 = vadd.f32 0.0, %v4121
      %v4123 = vpop.f32.mrb[0].mxu0
      %4124 = vmatprep.mubr.bf16.mxu0 0
      %4125 = vmatmul.mubr.bf16.gmra.mrb[0].mxu0 %v3960
      %v4126 = vpop.f32.mrb[0].mxu0
      %v4127 = vadd.f32 0.0, %v4126
      %v4128 = vpop.f32.mrb[0].mxu0
      %v4129 = vpop.f32.mrb[0].mxu0
      %v4130 = vadd.f32 0.0, %v4129
      %v4131 = vpop.f32.mrb[0].mxu0
      %4132 = vmatprep.mubr.bf16.mxu0 0
      %4133 = vmatmul.mubr.bf16.gmra.mrb[0].mxu0 %v3963
      %v4134 = vpop.f32.mrb[0].mxu0
      %v4135 = vadd.f32 0.0, %v4134
      %v4136 = vpop.f32.mrb[0].mxu0
      %v4137 = vpop.f32.mrb[0].mxu0
      %v4138 = vadd.f32 0.0, %v4137
      %v4139 = vpop.f32.mrb[0].mxu0
      %4140 = vmatprep.mubr.bf16.mxu0 0
      %4141 = vmatmul.mubr.bf16.gmra.mrb[0].mxu0 %v3966
      %v4142 = vpop.f32.mrb[0].mxu0
      %v4143 = vadd.f32 0.0, %v4142
      %v4144 = vpop.f32.mrb[0].mxu0
      %v4145 = vpop.f32.mrb[0].mxu0
      %v4146 = vadd.f32 0.0, %v4145
      %v4147 = vpop.f32.mrb[0].mxu0
      %4148 = vmatprep.mubr.bf16.mxu0 0
      %4149 = vmatmul.mubr.bf16.gmra.mrb[0].mxu0 %v3969
      %v4150 = vpop.f32.mrb[0].mxu0
      %v4151 = vadd.f32 0.0, %v4150
      %v4152 = vpop.f32.mrb[0].mxu0
      %v4153 = vpop.f32.mrb[0].mxu0
      %v4154 = vadd.f32 0.0, %v4153
      %v4155 = vpop.f32.mrb[0].mxu0
      %4156 = vmatprep.mubr.bf16.mxu0 0
      %4157 = vmatmul.mubr.bf16.gmra.mrb[0].mxu0 %v3972
      %v4158 = vpop.f32.mrb[0].mxu0
      %v4159 = vadd.f32 0.0, %v4158
      %v4160 = vpop.f32.mrb[0].mxu0
      %v4161 = vpop.f32.mrb[0].mxu0
      %v4162 = vadd.f32 0.0, %v4161
      %v4163 = vpop.f32.mrb[0].mxu0
      %4164 = vmatprep.mubr.bf16.mxu0 0
      %4165 = vmatmul.mubr.bf16.gmra.mrb[0].mxu0 %v3975
      %v4166 = vpop.f32.mrb[0].mxu0
      %v4167 = vadd.f32 0.0, %v4166
      %v4168 = vpop.f32.mrb[0].mxu0
      %v4169 = vpop.f32.mrb[0].mxu0
      %v4170 = vadd.f32 0.0, %v4169
      %v4171 = vpop.f32.mrb[0].mxu0
      %4172 = vmatprep.mubr.bf16.mxu0 0
      %4173 = vmatmul.mubr.bf16.gmra.mrb[0].mxu0 %v3978
      %v4174 = vpop.f32.mrb[0].mxu0
      %v4175 = vadd.f32 0.0, %v4174
      %v4176 = vpop.f32.mrb[0].mxu0
      %v4177 = vpop.f32.mrb[0].mxu0
      %v4178 = vpop.f32.mrb[0].mxu0
      %4179 = vdwg.mxu0
      %v4180 = vadd.f32 %v3781, %v4015
      %v4181 = vadd.f32 %v3782, %v4018
      %v4182 = vadd.f32 %v3783, %v4023
      %v4183 = vadd.f32 %v3784, %v4026
      %v4184 = vadd.f32 %v3785, %v4031
      %v4185 = vadd.f32 %v3786, %v4034
      %v4186 = vadd.f32 %v3787, %v4039
      %v4187 = vadd.f32 %v3788, %v4042
      %v4188 = vadd.f32 %v3789, %v4047
      %v4189 = vadd.f32 %v3790, %v4050
      %v4190 = vadd.f32 %v3791, %v4055
      %v4191 = vadd.f32 %v3792, %v4058
      %v4192 = vadd.f32 %v3793, %v4063
      %v4193 = vadd.f32 %v3794, %v4066
      %v4194 = vadd.f32 %v3795, %v4071
      %v4195 = vadd.f32 %v3796, %v4074
      %v4196 = vadd.f32 %v3797, %v4079
      %v4197 = vadd.f32 %v3798, %v4082
      %v4198 = vadd.f32 %v3799, %v4087
      %v4199 = vadd.f32 %v3800, %v4090
      %v4200 = vadd.f32 %v3801, %v4095
      %v4201 = vadd.f32 %v3802, %v4098
      %v4202 = vadd.f32 %v3803, %v4103
      %v4203 = vadd.f32 %v3804, %v4106
      %v4204 = vadd.f32 %v3805, %v4111
      %v4205 = vadd.f32 %v3806, %v4114
      %v4206 = vadd.f32 %v3807, %v4119
      %v4207 = vadd.f32 %v3808, %v4122
      %v4208 = vadd.f32 %v3809, %v4127
      %v4209 = vadd.f32 %v3810, %v4130
      %v4210 = vadd.f32 %v3811, %v4135
      %v4211 = vadd.f32 %v3812, %v4138
      %v4212 = vadd.f32 %v3813, %v4143
      %v4213 = vadd.f32 %v3814, %v4146
      %v4214 = vadd.f32 %v3815, %v4151
      %v4215 = vadd.f32 %v3816, %v4154
      %v4216 = vadd.f32 %v3817, %v4159
      %v4217 = vadd.f32 %v3818, %v4162
      %v4218 = vadd.f32 %v3819, %v4167
      %v4219 = vadd.f32 %v3820, %v4170
      %v4220 = vadd.f32 %v3821, %v4175
      %v4221 = vld [vmem:[#allocation2 + $0x29] sm:$0xff]
      %v4222 = vld [vmem:[#allocation2 + $0x31] sm:$0xff]
      %v4223 = vld [vmem:[#allocation2 + $0x39] sm:$0xff]
      %v4224 = vld [vmem:[#allocation2 + $0x41] sm:$0xff]
      %v4225 = vld [vmem:[#allocation2 + $0x49] sm:$0xff]
      %v4226 = vld [vmem:[#allocation2 + $0x51] sm:$0xff]
      %v4227 = vld [vmem:[#allocation2 + $0x59] sm:$0xff]
      %v4228 = vld [vmem:[#allocation2 + $0x61] sm:$0xff]
      %v4229 = vld [vmem:[#allocation2 + $0x69] sm:$0xff]
      %v4230 = vld [vmem:[#allocation2 + $0x71] sm:$0xff]
      %v4231 = vld [vmem:[#allocation2 + $0x79] sm:$0xff]
      %v4232 = vld [vmem:[#allocation2 + $0x81] sm:$0xff]
      %v4233 = vld [vmem:[#allocation2 + $0x89] sm:$0xff]
      %v4234 = vld [vmem:[#allocation2 + $0x91] sm:$0xff]
      %v4235 = vld [vmem:[#allocation2 + $0x99] sm:$0xff]
      %v4236 = vld [vmem:[#allocation2 + $0xa1] sm:$0xff]
      %v4237 = vld [vmem:[#allocation2 + $0xa9] sm:$0xff]
      %v4238 = vld [vmem:[#allocation2 + $0xb1] sm:$0xff]
      %v4239 = vld [vmem:[#allocation2 + $0xb9] sm:$0xff]
      %v4240 = vld [vmem:[#allocation2 + $0xc1] sm:$0xff]
      %v4241 = vld [vmem:[#allocation2 + $0xc9] sm:$0xff]
      %v4242 = vld [vmem:[#allocation2 + $0xd1] sm:$0xff]
      %v4243 = vld [vmem:[#allocation2 + $0xd9] sm:$0xff]
      %v4244 = vld [vmem:[#allocation2 + $0xe1] sm:$0xff]
      %v4245 = vld [vmem:[#allocation2 + $0xe9] sm:$0xff]
      %v4246 = vld [vmem:[#allocation2 + $0xf1] sm:$0xff]
      %v4247 = vld [vmem:[#allocation2 + $0xf9] sm:$0xff]
      %v4248 = vld [vmem:[#allocation2 + $0x101] sm:$0xff]
      %v4249 = vld [vmem:[#allocation2 + $0x109] sm:$0xff]
      %v4250 = vld [vmem:[#allocation2 + $0x111] sm:$0xff]
      %v4251 = vld [vmem:[#allocation2 + $0x119] sm:$0xff]
      %v4252 = vld [vmem:[#allocation2 + $0x121] sm:$0xff]
      %v4253 = vld [vmem:[#allocation2 + $0x129] sm:$0xff]
      %v4254 = vld [vmem:[#allocation2 + $0x131] sm:$0xff]
      %v4255 = vld [vmem:[#allocation2 + $0x139] sm:$0xff]
      %v4256 = vld [vmem:[#allocation2 + $0x141] sm:$0xff]
      %v4257 = vld [vmem:[#allocation2 + $0x149] sm:$0xff]
      %v4258 = vld [vmem:[#allocation2 + $0x151] sm:$0xff]
      %v4259 = vld [vmem:[#allocation2 + $0x159] sm:$0xff]
      %v4260 = vld [vmem:[#allocation2 + $0x161] sm:$0xff]
      %v4261 = vld [vmem:[#allocation2 + $0x169] sm:$0xff]
      %v4262 = vpack.c.bf16 %v4222, %v4221
      %v4263 = vpack.c.bf16 %v4224, %v4223
      %v4264 = vpack.c.bf16 %v4226, %v4225
      %v4265 = vpack.c.bf16 %v4228, %v4227
      %v4266 = vpack.c.bf16 %v4230, %v4229
      %v4267 = vpack.c.bf16 %v4232, %v4231
      %v4268 = vpack.c.bf16 %v4234, %v4233
      %v4269 = vpack.c.bf16 %v4236, %v4235
      %v4270 = vpack.c.bf16 %v4238, %v4237
      %v4271 = vpack.c.bf16 %v4240, %v4239
      %v4272 = vpack.c.bf16 %v4242, %v4241
      %v4273 = vpack.c.bf16 %v4244, %v4243
      %v4274 = vpack.c.bf16 %v4246, %v4245
      %v4275 = vpack.c.bf16 %v4248, %v4247
      %v4276 = vpack.c.bf16 %v4250, %v4249
      %v4277 = vpack.c.bf16 %v4252, %v4251
      %v4278 = vpack.c.bf16 %v4254, %v4253
      %v4279 = vpack.c.bf16 %v4256, %v4255
      %v4280 = vpack.c.bf16 %v4258, %v4257
      %v4281 = vpack.c.bf16 %v4260, %v4259
      %v4282 = vpack.c.bf16 %v4261, %v4261
      %s4283 = scalar_lea.vmem %s7, 192
      %v4284 = vld [vmem:[%s4283] sm:$0xf]
      %v4285 = vld [vmem:[%s4283 + $0x4] sm:$0xf]
      %v4286 = vld [vmem:[%s4283 + $0x8] sm:$0xf]
      %v4287 = vld [vmem:[%s4283 + $0xc] sm:$0xf]
      %v4288 = vld [vmem:[%s4283 + $0x10] sm:$0xf]
      %v4289 = vld [vmem:[%s4283 + $0x14] sm:$0xf]
      %v4290 = vld [vmem:[%s4283 + $0x18] sm:$0xf]
      %v4291 = vld [vmem:[%s4283 + $0x1c] sm:$0xf]
      %v4300 = vunpack.c.l.b16 %v4284
      %v4301 = vunpack.c.l.b16 %v4285
      %v4302 = vunpack.c.l.b16 %v4286
      %v4303 = vunpack.c.l.b16 %v4287
      %v4304 = vunpack.c.l.b16 %v4288
      %v4305 = vunpack.c.l.b16 %v4289
      %v4306 = vunpack.c.l.b16 %v4290
      %v4307 = vunpack.c.l.b16 %v4291
      %v4308 = vpack.c.b16 %v4301, %v4300
      %v4309 = vpack.c.b16 %v4303, %v4302
      %v4310 = vpack.c.b16 %v4305, %v4304
      %v4311 = vpack.c.b16 %v4307, %v4306
      %v4317 = vsel %vm1234, %v4262, 0
      %v4320 = vsel %vm1234, %v4263, 0
      %v4323 = vsel %vm1234, %v4264, 0
      %v4326 = vsel %vm1234, %v4265, 0
      %v4329 = vsel %vm1234, %v4266, 0
      %v4332 = vsel %vm1234, %v4267, 0
      %v4335 = vsel %vm1234, %v4268, 0
      %v4338 = vsel %vm1234, %v4269, 0
      %v4341 = vsel %vm1234, %v4270, 0
      %v4344 = vsel %vm1234, %v4271, 0
      %v4347 = vsel %vm1234, %v4272, 0
      %v4350 = vsel %vm1234, %v4273, 0
      %v4353 = vsel %vm1234, %v4274, 0
      %v4356 = vsel %vm1234, %v4275, 0
      %v4359 = vsel %vm1234, %v4276, 0
      %v4362 = vsel %vm1234, %v4277, 0
      %v4365 = vsel %vm1234, %v4278, 0
      %v4368 = vsel %vm1234, %v4279, 0
      %v4371 = vsel %vm1234, %v4280, 0
      %v4374 = vsel %vm1234, %v4281, 0
      %v4377 = vsel %vm1234, %v4282, 0
      %4379 = vmatprep.subr.bf16.mxu0 0
      %4380 = vmatpush1.bf16.msra.mxu0 %v4308
      %4381 = vmatprep.subr.bf16.mxu0 0
      %4382 = vmatpush1.bf16.msra.mxu0 %v4309
      %4383 = vmatprep.subr.bf16.mxu0 0
      %4384 = vmatpush1.bf16.msra.mxu0 %v4310
      %4385 = vmatprep.subr.bf16.mxu0 0
      %4386 = vmatpush1.bf16.msra.mxu0 %v4311
      %4387 = vmatprep.subr.bf16.mxu0 0
      %4388 = vmatpush1.bf16.msra.mxu0 0
      %4389 = vmatprep.subr.bf16.mxu0 0
      %4390 = vmatpush1.bf16.msra.mxu0 0
      %4391 = vmatprep.subr.bf16.mxu0 0
      %4392 = vmatpush1.bf16.msra.mxu0 0
      %4393 = vmatprep.subr.bf16.mxu0 0
      %4394 = vmatpush1.bf16.msra.mxu0 0
      %4395 = vmatprep.subr.bf16.mxu0 0
      %4396 = vmatpush1.bf16.msra.mxu0 0
      %4397 = vmatprep.subr.bf16.mxu0 0
      %4398 = vmatpush1.bf16.msra.mxu0 0
      %4399 = vmatprep.subr.bf16.mxu0 0
      %4400 = vmatpush1.bf16.msra.mxu0 0
      %4401 = vmatprep.subr.bf16.mxu0 0
      %4402 = vmatpush1.bf16.msra.mxu0 0
      %4403 = vmatprep.subr.bf16.mxu0 0
      %4404 = vmatpush1.bf16.msra.mxu0 0
      %4405 = vmatprep.subr.bf16.mxu0 0
      %4406 = vmatpush1.bf16.msra.mxu0 0
      %4407 = vmatprep.subr.bf16.mxu0 0
      %4408 = vmatpush1.bf16.msra.mxu0 0
      %4409 = vmatprep.subr.bf16.mxu0 0
      %4410 = vmatpush1.bf16.msra.mxu0 0
      %4411 = vmatprep.mubr.bf16.mxu0 0
      %4412 = vmatmul.mubr.bf16.gmra.mrb[0].mxu0 %v4317
      %v4413 = vpop.f32.mrb[0].mxu0
      %v4414 = vadd.f32 0.0, %v4413
      %v4415 = vpop.f32.mrb[0].mxu0
      %v4416 = vpop.f32.mrb[0].mxu0
      %v4417 = vadd.f32 0.0, %v4416
      %v4418 = vpop.f32.mrb[0].mxu0
      %4419 = vmatprep.mubr.bf16.mxu0 0
      %4420 = vmatmul.mubr.bf16.gmra.mrb[0].mxu0 %v4320
      %v4421 = vpop.f32.mrb[0].mxu0
      %v4422 = vadd.f32 0.0, %v4421
      %v4423 = vpop.f32.mrb[0].mxu0
      %v4424 = vpop.f32.mrb[0].mxu0
      %v4425 = vadd.f32 0.0, %v4424
      %v4426 = vpop.f32.mrb[0].mxu0
      %4427 = vmatprep.mubr.bf16.mxu0 0
      %4428 = vmatmul.mubr.bf16.gmra.mrb[0].mxu0 %v4323
      %v4429 = vpop.f32.mrb[0].mxu0
      %v4430 = vadd.f32 0.0, %v4429
      %v4431 = vpop.f32.mrb[0].mxu0
      %v4432 = vpop.f32.mrb[0].mxu0
      %v4433 = vadd.f32 0.0, %v4432
      %v4434 = vpop.f32.mrb[0].mxu0
      %4435 = vmatprep.mubr.bf16.mxu0 0
      %4436 = vmatmul.mubr.bf16.gmra.mrb[0].mxu0 %v4326
      %v4437 = vpop.f32.mrb[0].mxu0
      %v4438 = vadd.f32 0.0, %v4437
      %v4439 = vpop.f32.mrb[0].mxu0
      %v4440 = vpop.f32.mrb[0].mxu0
      %v4441 = vadd.f32 0.0, %v4440
      %v4442 = vpop.f32.mrb[0].mxu0
      %4443 = vmatprep.mubr.bf16.mxu0 0
      %4444 = vmatmul.mubr.bf16.gmra.mrb[0].mxu0 %v4329
      %v4445 = vpop.f32.mrb[0].mxu0
      %v4446 = vadd.f32 0.0, %v4445
      %v4447 = vpop.f32.mrb[0].mxu0
      %v4448 = vpop.f32.mrb[0].mxu0
      %v4449 = vadd.f32 0.0, %v4448
      %v4450 = vpop.f32.mrb[0].mxu0
      %4451 = vmatprep.mubr.bf16.mxu0 0
      %4452 = vmatmul.mubr.bf16.gmra.mrb[0].mxu0 %v4332
      %v4453 = vpop.f32.mrb[0].mxu0
      %v4454 = vadd.f32 0.0, %v4453
      %v4455 = vpop.f32.mrb[0].mxu0
      %v4456 = vpop.f32.mrb[0].mxu0
      %v4457 = vadd.f32 0.0, %v4456
      %v4458 = vpop.f32.mrb[0].mxu0
      %4459 = vmatprep.mubr.bf16.mxu0 0
      %4460 = vmatmul.mubr.bf16.gmra.mrb[0].mxu0 %v4335
      %v4461 = vpop.f32.mrb[0].mxu0
      %v4462 = vadd.f32 0.0, %v4461
      %v4463 = vpop.f32.mrb[0].mxu0
      %v4464 = vpop.f32.mrb[0].mxu0
      %v4465 = vadd.f32 0.0, %v4464
      %v4466 = vpop.f32.mrb[0].mxu0
      %4467 = vmatprep.mubr.bf16.mxu0 0
      %4468 = vmatmul.mubr.bf16.gmra.mrb[0].mxu0 %v4338
      %v4469 = vpop.f32.mrb[0].mxu0
      %v4470 = vadd.f32 0.0, %v4469
      %v4471 = vpop.f32.mrb[0].mxu0
      %v4472 = vpop.f32.mrb[0].mxu0
      %v4473 = vadd.f32 0.0, %v4472
      %v4474 = vpop.f32.mrb[0].mxu0
      %4475 = vmatprep.mubr.bf16.mxu0 0
      %4476 = vmatmul.mubr.bf16.gmra.mrb[0].mxu0 %v4341
      %v4477 = vpop.f32.mrb[0].mxu0
      %v4478 = vadd.f32 0.0, %v4477
      %v4479 = vpop.f32.mrb[0].mxu0
      %v4480 = vpop.f32.mrb[0].mxu0
      %v4481 = vadd.f32 0.0, %v4480
      %v4482 = vpop.f32.mrb[0].mxu0
      %4483 = vmatprep.mubr.bf16.mxu0 0
      %4484 = vmatmul.mubr.bf16.gmra.mrb[0].mxu0 %v4344
      %v4485 = vpop.f32.mrb[0].mxu0
      %v4486 = vadd.f32 0.0, %v4485
      %v4487 = vpop.f32.mrb[0].mxu0
      %v4488 = vpop.f32.mrb[0].mxu0
      %v4489 = vadd.f32 0.0, %v4488
      %v4490 = vpop.f32.mrb[0].mxu0
      %4491 = vmatprep.mubr.bf16.mxu0 0
      %4492 = vmatmul.mubr.bf16.gmra.mrb[0].mxu0 %v4347
      %v4493 = vpop.f32.mrb[0].mxu0
      %v4494 = vadd.f32 0.0, %v4493
      %v4495 = vpop.f32.mrb[0].mxu0
      %v4496 = vpop.f32.mrb[0].mxu0
      %v4497 = vadd.f32 0.0, %v4496
      %v4498 = vpop.f32.mrb[0].mxu0
      %4499 = vmatprep.mubr.bf16.mxu0 0
      %4500 = vmatmul.mubr.bf16.gmra.mrb[0].mxu0 %v4350
      %v4501 = vpop.f32.mrb[0].mxu0
      %v4502 = vadd.f32 0.0, %v4501
      %v4503 = vpop.f32.mrb[0].mxu0
      %v4504 = vpop.f32.mrb[0].mxu0
      %v4505 = vadd.f32 0.0, %v4504
      %v4506 = vpop.f32.mrb[0].mxu0
      %4507 = vmatprep.mubr.bf16.mxu0 0
      %4508 = vmatmul.mubr.bf16.gmra.mrb[0].mxu0 %v4353
      %v4509 = vpop.f32.mrb[0].mxu0
      %v4510 = vadd.f32 0.0, %v4509
      %v4511 = vpop.f32.mrb[0].mxu0
      %v4512 = vpop.f32.mrb[0].mxu0
      %v4513 = vadd.f32 0.0, %v4512
      %v4514 = vpop.f32.mrb[0].mxu0
      %4515 = vmatprep.mubr.bf16.mxu0 0
      %4516 = vmatmul.mubr.bf16.gmra.mrb[0].mxu0 %v4356
      %v4517 = vpop.f32.mrb[0].mxu0
      %v4518 = vadd.f32 0.0, %v4517
      %v4519 = vpop.f32.mrb[0].mxu0
      %v4520 = vpop.f32.mrb[0].mxu0
      %v4521 = vadd.f32 0.0, %v4520
      %v4522 = vpop.f32.mrb[0].mxu0
      %4523 = vmatprep.mubr.bf16.mxu0 0
      %4524 = vmatmul.mubr.bf16.gmra.mrb[0].mxu0 %v4359
      %v4525 = vpop.f32.mrb[0].mxu0
      %v4526 = vadd.f32 0.0, %v4525
      %v4527 = vpop.f32.mrb[0].mxu0
      %v4528 = vpop.f32.mrb[0].mxu0
      %v4529 = vadd.f32 0.0, %v4528
      %v4530 = vpop.f32.mrb[0].mxu0
      %4531 = vmatprep.mubr.bf16.mxu0 0
      %4532 = vmatmul.mubr.bf16.gmra.mrb[0].mxu0 %v4362
      %v4533 = vpop.f32.mrb[0].mxu0
      %v4534 = vadd.f32 0.0, %v4533
      %v4535 = vpop.f32.mrb[0].mxu0
      %v4536 = vpop.f32.mrb[0].mxu0
      %v4537 = vadd.f32 0.0, %v4536
      %v4538 = vpop.f32.mrb[0].mxu0
      %4539 = vmatprep.mubr.bf16.mxu0 0
      %4540 = vmatmul.mubr.bf16.gmra.mrb[0].mxu0 %v4365
      %v4541 = vpop.f32.mrb[0].mxu0
      %v4542 = vadd.f32 0.0, %v4541
      %v4543 = vpop.f32.mrb[0].mxu0
      %v4544 = vpop.f32.mrb[0].mxu0
      %v4545 = vadd.f32 0.0, %v4544
      %v4546 = vpop.f32.mrb[0].mxu0
      %4547 = vmatprep.mubr.bf16.mxu0 0
      %4548 = vmatmul.mubr.bf16.gmra.mrb[0].mxu0 %v4368
      %v4549 = vpop.f32.mrb[0].mxu0
      %v4550 = vadd.f32 0.0, %v4549
      %v4551 = vpop.f32.mrb[0].mxu0
      %v4552 = vpop.f32.mrb[0].mxu0
      %v4553 = vadd.f32 0.0, %v4552
      %v4554 = vpop.f32.mrb[0].mxu0
      %4555 = vmatprep.mubr.bf16.mxu0 0
      %4556 = vmatmul.mubr.bf16.gmra.mrb[0].mxu0 %v4371
      %v4557 = vpop.f32.mrb[0].mxu0
      %v4558 = vadd.f32 0.0, %v4557
      %v4559 = vpop.f32.mrb[0].mxu0
      %v4560 = vpop.f32.mrb[0].mxu0
      %v4561 = vadd.f32 0.0, %v4560
      %v4562 = vpop.f32.mrb[0].mxu0
      %4563 = vmatprep.mubr.bf16.mxu0 0
      %4564 = vmatmul.mubr.bf16.gmra.mrb[0].mxu0 %v4374
      %v4565 = vpop.f32.mrb[0].mxu0
      %v4566 = vadd.f32 0.0, %v4565
      %v4567 = vpop.f32.mrb[0].mxu0
      %v4568 = vpop.f32.mrb[0].mxu0
      %v4569 = vadd.f32 0.0, %v4568
      %v4570 = vpop.f32.mrb[0].mxu0
      %4571 = vmatprep.mubr.bf16.mxu0 0
      %4572 = vmatmul.mubr.bf16.gmra.mrb[0].mxu0 %v4377
      %v4573 = vpop.f32.mrb[0].mxu0
      %v4574 = vadd.f32 0.0, %v4573
      %v4575 = vpop.f32.mrb[0].mxu0
      %v4576 = vpop.f32.mrb[0].mxu0
      %v4577 = vpop.f32.mrb[0].mxu0
      %4578 = vdwg.mxu0
      %v4579 = vadd.f32 %v4180, %v4414
      %v4580 = vadd.f32 %v4181, %v4417
      %v4581 = vadd.f32 %v4182, %v4422
      %v4582 = vadd.f32 %v4183, %v4425
      %v4583 = vadd.f32 %v4184, %v4430
      %v4584 = vadd.f32 %v4185, %v4433
      %v4585 = vadd.f32 %v4186, %v4438
      %v4586 = vadd.f32 %v4187, %v4441
      %v4587 = vadd.f32 %v4188, %v4446
      %v4588 = vadd.f32 %v4189, %v4449
      %v4589 = vadd.f32 %v4190, %v4454
      %v4590 = vadd.f32 %v4191, %v4457
      %v4591 = vadd.f32 %v4192, %v4462
      %v4592 = vadd.f32 %v4193, %v4465
      %v4593 = vadd.f32 %v4194, %v4470
      %v4594 = vadd.f32 %v4195, %v4473
      %v4595 = vadd.f32 %v4196, %v4478
      %v4596 = vadd.f32 %v4197, %v4481
      %v4597 = vadd.f32 %v4198, %v4486
      %v4598 = vadd.f32 %v4199, %v4489
      %v4599 = vadd.f32 %v4200, %v4494
      %v4600 = vadd.f32 %v4201, %v4497
      %v4601 = vadd.f32 %v4202, %v4502
      %v4602 = vadd.f32 %v4203, %v4505
      %v4603 = vadd.f32 %v4204, %v4510
      %v4604 = vadd.f32 %v4205, %v4513
      %v4605 = vadd.f32 %v4206, %v4518
      %v4606 = vadd.f32 %v4207, %v4521
      %v4607 = vadd.f32 %v4208, %v4526
      %v4608 = vadd.f32 %v4209, %v4529
      %v4609 = vadd.f32 %v4210, %v4534
      %v4610 = vadd.f32 %v4211, %v4537
      %v4611 = vadd.f32 %v4212, %v4542
      %v4612 = vadd.f32 %v4213, %v4545
      %v4613 = vadd.f32 %v4214, %v4550
      %v4614 = vadd.f32 %v4215, %v4553
      %v4615 = vadd.f32 %v4216, %v4558
      %v4616 = vadd.f32 %v4217, %v4561
      %v4617 = vadd.f32 %v4218, %v4566
      %v4618 = vadd.f32 %v4219, %v4569
      %v4619 = vadd.f32 %v4220, %v4574
      %v4620 = vld [vmem:[#allocation2 + $0x2a] sm:$0xff]
      %v4621 = vld [vmem:[#allocation2 + $0x32] sm:$0xff]
      %v4622 = vld [vmem:[#allocation2 + $0x3a] sm:$0xff]
      %v4623 = vld [vmem:[#allocation2 + $0x42] sm:$0xff]
      %v4624 = vld [vmem:[#allocation2 + $0x4a] sm:$0xff]
      %v4625 = vld [vmem:[#allocation2 + $0x52] sm:$0xff]
      %v4626 = vld [vmem:[#allocation2 + $0x5a] sm:$0xff]
      %v4627 = vld [vmem:[#allocation2 + $0x62] sm:$0xff]
      %v4628 = vld [vmem:[#allocation2 + $0x6a] sm:$0xff]
      %v4629 = vld [vmem:[#allocation2 + $0x72] sm:$0xff]
      %v4630 = vld [vmem:[#allocation2 + $0x7a] sm:$0xff]
      %v4631 = vld [vmem:[#allocation2 + $0x82] sm:$0xff]
      %v4632 = vld [vmem:[#allocation2 + $0x8a] sm:$0xff]
      %v4633 = vld [vmem:[#allocation2 + $0x92] sm:$0xff]
      %v4634 = vld [vmem:[#allocation2 + $0x9a] sm:$0xff]
      %v4635 = vld [vmem:[#allocation2 + $0xa2] sm:$0xff]
      %v4636 = vld [vmem:[#allocation2 + $0xaa] sm:$0xff]
      %v4637 = vld [vmem:[#allocation2 + $0xb2] sm:$0xff]
      %v4638 = vld [vmem:[#allocation2 + $0xba] sm:$0xff]
      %v4639 = vld [vmem:[#allocation2 + $0xc2] sm:$0xff]
      %v4640 = vld [vmem:[#allocation2 + $0xca] sm:$0xff]
      %v4641 = vld [vmem:[#allocation2 + $0xd2] sm:$0xff]
      %v4642 = vld [vmem:[#allocation2 + $0xda] sm:$0xff]
      %v4643 = vld [vmem:[#allocation2 + $0xe2] sm:$0xff]
      %v4644 = vld [vmem:[#allocation2 + $0xea] sm:$0xff]
      %v4645 = vld [vmem:[#allocation2 + $0xf2] sm:$0xff]
      %v4646 = vld [vmem:[#allocation2 + $0xfa] sm:$0xff]
      %v4647 = vld [vmem:[#allocation2 + $0x102] sm:$0xff]
      %v4648 = vld [vmem:[#allocation2 + $0x10a] sm:$0xff]
      %v4649 = vld [vmem:[#allocation2 + $0x112] sm:$0xff]
      %v4650 = vld [vmem:[#allocation2 + $0x11a] sm:$0xff]
      %v4651 = vld [vmem:[#allocation2 + $0x122] sm:$0xff]
      %v4652 = vld [vmem:[#allocation2 + $0x12a] sm:$0xff]
      %v4653 = vld [vmem:[#allocation2 + $0x132] sm:$0xff]
      %v4654 = vld [vmem:[#allocation2 + $0x13a] sm:$0xff]
      %v4655 = vld [vmem:[#allocation2 + $0x142] sm:$0xff]
      %v4656 = vld [vmem:[#allocation2 + $0x14a] sm:$0xff]
      %v4657 = vld [vmem:[#allocation2 + $0x152] sm:$0xff]
      %v4658 = vld [vmem:[#allocation2 + $0x15a] sm:$0xff]
      %v4659 = vld [vmem:[#allocation2 + $0x162] sm:$0xff]
      %v4660 = vld [vmem:[#allocation2 + $0x16a] sm:$0xff]
      %v4661 = vpack.c.bf16 %v4621, %v4620
      %v4662 = vpack.c.bf16 %v4623, %v4622
      %v4663 = vpack.c.bf16 %v4625, %v4624
      %v4664 = vpack.c.bf16 %v4627, %v4626
      %v4665 = vpack.c.bf16 %v4629, %v4628
      %v4666 = vpack.c.bf16 %v4631, %v4630
      %v4667 = vpack.c.bf16 %v4633, %v4632
      %v4668 = vpack.c.bf16 %v4635, %v4634
      %v4669 = vpack.c.bf16 %v4637, %v4636
      %v4670 = vpack.c.bf16 %v4639, %v4638
      %v4671 = vpack.c.bf16 %v4641, %v4640
      %v4672 = vpack.c.bf16 %v4643, %v4642
      %v4673 = vpack.c.bf16 %v4645, %v4644
      %v4674 = vpack.c.bf16 %v4647, %v4646
      %v4675 = vpack.c.bf16 %v4649, %v4648
      %v4676 = vpack.c.bf16 %v4651, %v4650
      %v4677 = vpack.c.bf16 %v4653, %v4652
      %v4678 = vpack.c.bf16 %v4655, %v4654
      %v4679 = vpack.c.bf16 %v4657, %v4656
      %v4680 = vpack.c.bf16 %v4659, %v4658
      %v4681 = vpack.c.bf16 %v4660, %v4660
      %s4682 = scalar_lea.vmem %s7, 224
      %v4683 = vld [vmem:[%s4682] sm:$0xf]
      %v4684 = vld [vmem:[%s4682 + $0x4] sm:$0xf]
      %v4685 = vld [vmem:[%s4682 + $0x8] sm:$0xf]
      %v4686 = vld [vmem:[%s4682 + $0xc] sm:$0xf]
      %v4687 = vld [vmem:[%s4682 + $0x10] sm:$0xf]
      %v4688 = vld [vmem:[%s4682 + $0x14] sm:$0xf]
      %v4689 = vld [vmem:[%s4682 + $0x18] sm:$0xf]
      %v4690 = vld [vmem:[%s4682 + $0x1c] sm:$0xf]
      %v4699 = vunpack.c.l.b16 %v4683
      %v4700 = vunpack.c.l.b16 %v4684
      %v4701 = vunpack.c.l.b16 %v4685
      %v4702 = vunpack.c.l.b16 %v4686
      %v4703 = vunpack.c.l.b16 %v4687
      %v4704 = vunpack.c.l.b16 %v4688
      %v4705 = vunpack.c.l.b16 %v4689
      %v4706 = vunpack.c.l.b16 %v4690
      %v4707 = vpack.c.b16 %v4700, %v4699
      %v4708 = vpack.c.b16 %v4702, %v4701
      %v4709 = vpack.c.b16 %v4704, %v4703
      %v4710 = vpack.c.b16 %v4706, %v4705
      %v4716 = vsel %vm1234, %v4661, 0
      %v4719 = vsel %vm1234, %v4662, 0
      %v4722 = vsel %vm1234, %v4663, 0
      %v4725 = vsel %vm1234, %v4664, 0
      %v4728 = vsel %vm1234, %v4665, 0
      %v4731 = vsel %vm1234, %v4666, 0
      %v4734 = vsel %vm1234, %v4667, 0
      %v4737 = vsel %vm1234, %v4668, 0
      %v4740 = vsel %vm1234, %v4669, 0
      %v4743 = vsel %vm1234, %v4670, 0
      %v4746 = vsel %vm1234, %v4671, 0
      %v4749 = vsel %vm1234, %v4672, 0
      %v4752 = vsel %vm1234, %v4673, 0
      %v4755 = vsel %vm1234, %v4674, 0
      %v4758 = vsel %vm1234, %v4675, 0
      %v4761 = vsel %vm1234, %v4676, 0
      %v4764 = vsel %vm1234, %v4677, 0
      %v4767 = vsel %vm1234, %v4678, 0
      %v4770 = vsel %vm1234, %v4679, 0
      %v4773 = vsel %vm1234, %v4680, 0
      %v4776 = vsel %vm1234, %v4681, 0
      %4778 = vmatprep.subr.bf16.mxu0 0
      %4779 = vmatpush1.bf16.msra.mxu0 %v4707
      %4780 = vmatprep.subr.bf16.mxu0 0
      %4781 = vmatpush1.bf16.msra.mxu0 %v4708
      %4782 = vmatprep.subr.bf16.mxu0 0
      %4783 = vmatpush1.bf16.msra.mxu0 %v4709
      %4784 = vmatprep.subr.bf16.mxu0 0
      %4785 = vmatpush1.bf16.msra.mxu0 %v4710
      %4786 = vmatprep.subr.bf16.mxu0 0
      %4787 = vmatpush1.bf16.msra.mxu0 0
      %4788 = vmatprep.subr.bf16.mxu0 0
      %4789 = vmatpush1.bf16.msra.mxu0 0
      %4790 = vmatprep.subr.bf16.mxu0 0
      %4791 = vmatpush1.bf16.msra.mxu0 0
      %4792 = vmatprep.subr.bf16.mxu0 0
      %4793 = vmatpush1.bf16.msra.mxu0 0
      %4794 = vmatprep.subr.bf16.mxu0 0
      %4795 = vmatpush1.bf16.msra.mxu0 0
      %4796 = vmatprep.subr.bf16.mxu0 0
      %4797 = vmatpush1.bf16.msra.mxu0 0
      %4798 = vmatprep.subr.bf16.mxu0 0
      %4799 = vmatpush1.bf16.msra.mxu0 0
      %4800 = vmatprep.subr.bf16.mxu0 0
      %4801 = vmatpush1.bf16.msra.mxu0 0
      %4802 = vmatprep.subr.bf16.mxu0 0
      %4803 = vmatpush1.bf16.msra.mxu0 0
      %4804 = vmatprep.subr.bf16.mxu0 0
      %4805 = vmatpush1.bf16.msra.mxu0 0
      %4806 = vmatprep.subr.bf16.mxu0 0
      %4807 = vmatpush1.bf16.msra.mxu0 0
      %4808 = vmatprep.subr.bf16.mxu0 0
      %4809 = vmatpush1.bf16.msra.mxu0 0
      %4810 = vmatprep.mubr.bf16.mxu0 0
      %4811 = vmatmul.mubr.bf16.gmra.mrb[0].mxu0 %v4716
      %v4812 = vpop.f32.mrb[0].mxu0
      %v4813 = vadd.f32 0.0, %v4812
      %v4814 = vpop.f32.mrb[0].mxu0
      %v4815 = vpop.f32.mrb[0].mxu0
      %v4816 = vadd.f32 0.0, %v4815
      %v4817 = vpop.f32.mrb[0].mxu0
      %4818 = vmatprep.mubr.bf16.mxu0 0
      %4819 = vmatmul.mubr.bf16.gmra.mrb[0].mxu0 %v4719
      %v4820 = vpop.f32.mrb[0].mxu0
      %v4821 = vadd.f32 0.0, %v4820
      %v4822 = vpop.f32.mrb[0].mxu0
      %v4823 = vpop.f32.mrb[0].mxu0
      %v4824 = vadd.f32 0.0, %v4823
      %v4825 = vpop.f32.mrb[0].mxu0
      %4826 = vmatprep.mubr.bf16.mxu0 0
      %4827 = vmatmul.mubr.bf16.gmra.mrb[0].mxu0 %v4722
      %v4828 = vpop.f32.mrb[0].mxu0
      %v4829 = vadd.f32 0.0, %v4828
      %v4830 = vpop.f32.mrb[0].mxu0
      %v4831 = vpop.f32.mrb[0].mxu0
      %v4832 = vadd.f32 0.0, %v4831
      %v4833 = vpop.f32.mrb[0].mxu0
      %4834 = vmatprep.mubr.bf16.mxu0 0
      %4835 = vmatmul.mubr.bf16.gmra.mrb[0].mxu0 %v4725
      %v4836 = vpop.f32.mrb[0].mxu0
      %v4837 = vadd.f32 0.0, %v4836
      %v4838 = vpop.f32.mrb[0].mxu0
      %v4839 = vpop.f32.mrb[0].mxu0
      %v4840 = vadd.f32 0.0, %v4839
      %v4841 = vpop.f32.mrb[0].mxu0
      %4842 = vmatprep.mubr.bf16.mxu0 0
      %4843 = vmatmul.mubr.bf16.gmra.mrb[0].mxu0 %v4728
      %v4844 = vpop.f32.mrb[0].mxu0
      %v4845 = vadd.f32 0.0, %v4844
      %v4846 = vpop.f32.mrb[0].mxu0
      %v4847 = vpop.f32.mrb[0].mxu0
      %v4848 = vadd.f32 0.0, %v4847
      %v4849 = vpop.f32.mrb[0].mxu0
      %4850 = vmatprep.mubr.bf16.mxu0 0
      %4851 = vmatmul.mubr.bf16.gmra.mrb[0].mxu0 %v4731
      %v4852 = vpop.f32.mrb[0].mxu0
      %v4853 = vadd.f32 0.0, %v4852
      %v4854 = vpop.f32.mrb[0].mxu0
      %v4855 = vpop.f32.mrb[0].mxu0
      %v4856 = vadd.f32 0.0, %v4855
      %v4857 = vpop.f32.mrb[0].mxu0
      %4858 = vmatprep.mubr.bf16.mxu0 0
      %4859 = vmatmul.mubr.bf16.gmra.mrb[0].mxu0 %v4734
      %v4860 = vpop.f32.mrb[0].mxu0
      %v4861 = vadd.f32 0.0, %v4860
      %v4862 = vpop.f32.mrb[0].mxu0
      %v4863 = vpop.f32.mrb[0].mxu0
      %v4864 = vadd.f32 0.0, %v4863
      %v4865 = vpop.f32.mrb[0].mxu0
      %4866 = vmatprep.mubr.bf16.mxu0 0
      %4867 = vmatmul.mubr.bf16.gmra.mrb[0].mxu0 %v4737
      %v4868 = vpop.f32.mrb[0].mxu0
      %v4869 = vadd.f32 0.0, %v4868
      %v4870 = vpop.f32.mrb[0].mxu0
      %v4871 = vpop.f32.mrb[0].mxu0
      %v4872 = vadd.f32 0.0, %v4871
      %v4873 = vpop.f32.mrb[0].mxu0
      %4874 = vmatprep.mubr.bf16.mxu0 0
      %4875 = vmatmul.mubr.bf16.gmra.mrb[0].mxu0 %v4740
      %v4876 = vpop.f32.mrb[0].mxu0
      %v4877 = vadd.f32 0.0, %v4876
      %v4878 = vpop.f32.mrb[0].mxu0
      %v4879 = vpop.f32.mrb[0].mxu0
      %v4880 = vadd.f32 0.0, %v4879
      %v4881 = vpop.f32.mrb[0].mxu0
      %4882 = vmatprep.mubr.bf16.mxu0 0
      %4883 = vmatmul.mubr.bf16.gmra.mrb[0].mxu0 %v4743
      %v4884 = vpop.f32.mrb[0].mxu0
      %v4885 = vadd.f32 0.0, %v4884
      %v4886 = vpop.f32.mrb[0].mxu0
      %v4887 = vpop.f32.mrb[0].mxu0
      %v4888 = vadd.f32 0.0, %v4887
      %v4889 = vpop.f32.mrb[0].mxu0
      %4890 = vmatprep.mubr.bf16.mxu0 0
      %4891 = vmatmul.mubr.bf16.gmra.mrb[0].mxu0 %v4746
      %v4892 = vpop.f32.mrb[0].mxu0
      %v4893 = vadd.f32 0.0, %v4892
      %v4894 = vpop.f32.mrb[0].mxu0
      %v4895 = vpop.f32.mrb[0].mxu0
      %v4896 = vadd.f32 0.0, %v4895
      %v4897 = vpop.f32.mrb[0].mxu0
      %4898 = vmatprep.mubr.bf16.mxu0 0
      %4899 = vmatmul.mubr.bf16.gmra.mrb[0].mxu0 %v4749
      %v4900 = vpop.f32.mrb[0].mxu0
      %v4901 = vadd.f32 0.0, %v4900
      %v4902 = vpop.f32.mrb[0].mxu0
      %v4903 = vpop.f32.mrb[0].mxu0
      %v4904 = vadd.f32 0.0, %v4903
      %v4905 = vpop.f32.mrb[0].mxu0
      %4906 = vmatprep.mubr.bf16.mxu0 0
      %4907 = vmatmul.mubr.bf16.gmra.mrb[0].mxu0 %v4752
      %v4908 = vpop.f32.mrb[0].mxu0
      %v4909 = vadd.f32 0.0, %v4908
      %v4910 = vpop.f32.mrb[0].mxu0
      %v4911 = vpop.f32.mrb[0].mxu0
      %v4912 = vadd.f32 0.0, %v4911
      %v4913 = vpop.f32.mrb[0].mxu0
      %4914 = vmatprep.mubr.bf16.mxu0 0
      %4915 = vmatmul.mubr.bf16.gmra.mrb[0].mxu0 %v4755
      %v4916 = vpop.f32.mrb[0].mxu0
      %v4917 = vadd.f32 0.0, %v4916
      %v4918 = vpop.f32.mrb[0].mxu0
      %v4919 = vpop.f32.mrb[0].mxu0
      %v4920 = vadd.f32 0.0, %v4919
      %v4921 = vpop.f32.mrb[0].mxu0
      %4922 = vmatprep.mubr.bf16.mxu0 0
      %4923 = vmatmul.mubr.bf16.gmra.mrb[0].mxu0 %v4758
      %v4924 = vpop.f32.mrb[0].mxu0
      %v4925 = vadd.f32 0.0, %v4924
      %v4926 = vpop.f32.mrb[0].mxu0
      %v4927 = vpop.f32.mrb[0].mxu0
      %v4928 = vadd.f32 0.0, %v4927
      %v4929 = vpop.f32.mrb[0].mxu0
      %4930 = vmatprep.mubr.bf16.mxu0 0
      %4931 = vmatmul.mubr.bf16.gmra.mrb[0].mxu0 %v4761
      %v4932 = vpop.f32.mrb[0].mxu0
      %v4933 = vadd.f32 0.0, %v4932
      %v4934 = vpop.f32.mrb[0].mxu0
      %v4935 = vpop.f32.mrb[0].mxu0
      %v4936 = vadd.f32 0.0, %v4935
      %v4937 = vpop.f32.mrb[0].mxu0
      %4938 = vmatprep.mubr.bf16.mxu0 0
      %4939 = vmatmul.mubr.bf16.gmra.mrb[0].mxu0 %v4764
      %v4940 = vpop.f32.mrb[0].mxu0
      %v4941 = vadd.f32 0.0, %v4940
      %v4942 = vpop.f32.mrb[0].mxu0
      %v4943 = vpop.f32.mrb[0].mxu0
      %v4944 = vadd.f32 0.0, %v4943
      %v4945 = vpop.f32.mrb[0].mxu0
      %4946 = vmatprep.mubr.bf16.mxu0 0
      %4947 = vmatmul.mubr.bf16.gmra.mrb[0].mxu0 %v4767
      %v4948 = vpop.f32.mrb[0].mxu0
      %v4949 = vadd.f32 0.0, %v4948
      %v4950 = vpop.f32.mrb[0].mxu0
      %v4951 = vpop.f32.mrb[0].mxu0
      %v4952 = vadd.f32 0.0, %v4951
      %v4953 = vpop.f32.mrb[0].mxu0
      %4954 = vmatprep.mubr.bf16.mxu0 0
      %4955 = vmatmul.mubr.bf16.gmra.mrb[0].mxu0 %v4770
      %v4956 = vpop.f32.mrb[0].mxu0
      %v4957 = vadd.f32 0.0, %v4956
      %v4958 = vpop.f32.mrb[0].mxu0
      %v4959 = vpop.f32.mrb[0].mxu0
      %v4960 = vadd.f32 0.0, %v4959
      %v4961 = vpop.f32.mrb[0].mxu0
      %4962 = vmatprep.mubr.bf16.mxu0 0
      %4963 = vmatmul.mubr.bf16.gmra.mrb[0].mxu0 %v4773
      %v4964 = vpop.f32.mrb[0].mxu0
      %v4965 = vadd.f32 0.0, %v4964
      %v4966 = vpop.f32.mrb[0].mxu0
      %v4967 = vpop.f32.mrb[0].mxu0
      %v4968 = vadd.f32 0.0, %v4967
      %v4969 = vpop.f32.mrb[0].mxu0
      %4970 = vmatprep.mubr.bf16.mxu0 0
      %4971 = vmatmul.mubr.bf16.gmra.mrb[0].mxu0 %v4776
      %v4972 = vpop.f32.mrb[0].mxu0
      %v4973 = vadd.f32 0.0, %v4972
      %v4974 = vpop.f32.mrb[0].mxu0
      %v4975 = vpop.f32.mrb[0].mxu0
      %v4976 = vpop.f32.mrb[0].mxu0
      %4977 = vdwg.mxu0
      %v4978 = vadd.f32 %v4579, %v4813
      %v4979 = vadd.f32 %v4580, %v4816
      %v4980 = vadd.f32 %v4581, %v4821
      %v4981 = vadd.f32 %v4582, %v4824
      %v4982 = vadd.f32 %v4583, %v4829
      %v4983 = vadd.f32 %v4584, %v4832
      %v4984 = vadd.f32 %v4585, %v4837
      %v4985 = vadd.f32 %v4586, %v4840
      %v4986 = vadd.f32 %v4587, %v4845
      %v4987 = vadd.f32 %v4588, %v4848
      %v4988 = vadd.f32 %v4589, %v4853
      %v4989 = vadd.f32 %v4590, %v4856
      %v4990 = vadd.f32 %v4591, %v4861
      %v4991 = vadd.f32 %v4592, %v4864
      %v4992 = vadd.f32 %v4593, %v4869
      %v4993 = vadd.f32 %v4594, %v4872
      %v4994 = vadd.f32 %v4595, %v4877
      %v4995 = vadd.f32 %v4596, %v4880
      %v4996 = vadd.f32 %v4597, %v4885
      %v4997 = vadd.f32 %v4598, %v4888
      %v4998 = vadd.f32 %v4599, %v4893
      %v4999 = vadd.f32 %v4600, %v4896
      %v5000 = vadd.f32 %v4601, %v4901
      %v5001 = vadd.f32 %v4602, %v4904
      %v5002 = vadd.f32 %v4603, %v4909
      %v5003 = vadd.f32 %v4604, %v4912
      %v5004 = vadd.f32 %v4605, %v4917
      %v5005 = vadd.f32 %v4606, %v4920
      %v5006 = vadd.f32 %v4607, %v4925
      %v5007 = vadd.f32 %v4608, %v4928
      %v5008 = vadd.f32 %v4609, %v4933
      %v5009 = vadd.f32 %v4610, %v4936
      %v5010 = vadd.f32 %v4611, %v4941
      %v5011 = vadd.f32 %v4612, %v4944
      %v5012 = vadd.f32 %v4613, %v4949
      %v5013 = vadd.f32 %v4614, %v4952
      %v5014 = vadd.f32 %v4615, %v4957
      %v5015 = vadd.f32 %v4616, %v4960
      %v5016 = vadd.f32 %v4617, %v4965
      %v5017 = vadd.f32 %v4618, %v4968
      %v5018 = vadd.f32 %v4619, %v4973
      %v5019 = vld [vmem:[#allocation2 + $0x2b] sm:$0xff]
      %v5020 = vld [vmem:[#allocation2 + $0x33] sm:$0xff]
      %v5021 = vld [vmem:[#allocation2 + $0x3b] sm:$0xff]
      %v5022 = vld [vmem:[#allocation2 + $0x43] sm:$0xff]
      %v5023 = vld [vmem:[#allocation2 + $0x4b] sm:$0xff]
      %v5024 = vld [vmem:[#allocation2 + $0x53] sm:$0xff]
      %v5025 = vld [vmem:[#allocation2 + $0x5b] sm:$0xff]
      %v5026 = vld [vmem:[#allocation2 + $0x63] sm:$0xff]
      %v5027 = vld [vmem:[#allocation2 + $0x6b] sm:$0xff]
      %v5028 = vld [vmem:[#allocation2 + $0x73] sm:$0xff]
      %v5029 = vld [vmem:[#allocation2 + $0x7b] sm:$0xff]
      %v5030 = vld [vmem:[#allocation2 + $0x83] sm:$0xff]
      %v5031 = vld [vmem:[#allocation2 + $0x8b] sm:$0xff]
      %v5032 = vld [vmem:[#allocation2 + $0x93] sm:$0xff]
      %v5033 = vld [vmem:[#allocation2 + $0x9b] sm:$0xff]
      %v5034 = vld [vmem:[#allocation2 + $0xa3] sm:$0xff]
      %v5035 = vld [vmem:[#allocation2 + $0xab] sm:$0xff]
      %v5036 = vld [vmem:[#allocation2 + $0xb3] sm:$0xff]
      %v5037 = vld [vmem:[#allocation2 + $0xbb] sm:$0xff]
      %v5038 = vld [vmem:[#allocation2 + $0xc3] sm:$0xff]
      %v5039 = vld [vmem:[#allocation2 + $0xcb] sm:$0xff]
      %v5040 = vld [vmem:[#allocation2 + $0xd3] sm:$0xff]
      %v5041 = vld [vmem:[#allocation2 + $0xdb] sm:$0xff]
      %v5042 = vld [vmem:[#allocation2 + $0xe3] sm:$0xff]
      %v5043 = vld [vmem:[#allocation2 + $0xeb] sm:$0xff]
      %v5044 = vld [vmem:[#allocation2 + $0xf3] sm:$0xff]
      %v5045 = vld [vmem:[#allocation2 + $0xfb] sm:$0xff]
      %v5046 = vld [vmem:[#allocation2 + $0x103] sm:$0xff]
      %v5047 = vld [vmem:[#allocation2 + $0x10b] sm:$0xff]
      %v5048 = vld [vmem:[#allocation2 + $0x113] sm:$0xff]
      %v5049 = vld [vmem:[#allocation2 + $0x11b] sm:$0xff]
      %v5050 = vld [vmem:[#allocation2 + $0x123] sm:$0xff]
      %v5051 = vld [vmem:[#allocation2 + $0x12b] sm:$0xff]
      %v5052 = vld [vmem:[#allocation2 + $0x133] sm:$0xff]
      %v5053 = vld [vmem:[#allocation2 + $0x13b] sm:$0xff]
      %v5054 = vld [vmem:[#allocation2 + $0x143] sm:$0xff]
      %v5055 = vld [vmem:[#allocation2 + $0x14b] sm:$0xff]
      %v5056 = vld [vmem:[#allocation2 + $0x153] sm:$0xff]
      %v5057 = vld [vmem:[#allocation2 + $0x15b] sm:$0xff]
      %v5058 = vld [vmem:[#allocation2 + $0x163] sm:$0xff]
      %v5059 = vld [vmem:[#allocation2 + $0x16b] sm:$0xff]
      %v5060 = vpack.c.bf16 %v5020, %v5019
      %v5061 = vpack.c.bf16 %v5022, %v5021
      %v5062 = vpack.c.bf16 %v5024, %v5023
      %v5063 = vpack.c.bf16 %v5026, %v5025
      %v5064 = vpack.c.bf16 %v5028, %v5027
      %v5065 = vpack.c.bf16 %v5030, %v5029
      %v5066 = vpack.c.bf16 %v5032, %v5031
      %v5067 = vpack.c.bf16 %v5034, %v5033
      %v5068 = vpack.c.bf16 %v5036, %v5035
      %v5069 = vpack.c.bf16 %v5038, %v5037
      %v5070 = vpack.c.bf16 %v5040, %v5039
      %v5071 = vpack.c.bf16 %v5042, %v5041
      %v5072 = vpack.c.bf16 %v5044, %v5043
      %v5073 = vpack.c.bf16 %v5046, %v5045
      %v5074 = vpack.c.bf16 %v5048, %v5047
      %v5075 = vpack.c.bf16 %v5050, %v5049
      %v5076 = vpack.c.bf16 %v5052, %v5051
      %v5077 = vpack.c.bf16 %v5054, %v5053
      %v5078 = vpack.c.bf16 %v5056, %v5055
      %v5079 = vpack.c.bf16 %v5058, %v5057
      %v5080 = vpack.c.bf16 %v5059, %v5059
      %s5081 = scalar_lea.vmem %s7, 256
      %v5082 = vld [vmem:[%s5081] sm:$0xf]
      %v5083 = vld [vmem:[%s5081 + $0x4] sm:$0xf]
      %v5084 = vld [vmem:[%s5081 + $0x8] sm:$0xf]
      %v5085 = vld [vmem:[%s5081 + $0xc] sm:$0xf]
      %v5086 = vld [vmem:[%s5081 + $0x10] sm:$0xf]
      %v5087 = vld [vmem:[%s5081 + $0x14] sm:$0xf]
      %v5088 = vld [vmem:[%s5081 + $0x18] sm:$0xf]
      %v5089 = vld [vmem:[%s5081 + $0x1c] sm:$0xf]
      %v5098 = vunpack.c.l.b16 %v5082
      %v5099 = vunpack.c.l.b16 %v5083
      %v5100 = vunpack.c.l.b16 %v5084
      %v5101 = vunpack.c.l.b16 %v5085
      %v5102 = vunpack.c.l.b16 %v5086
      %v5103 = vunpack.c.l.b16 %v5087
      %v5104 = vunpack.c.l.b16 %v5088
      %v5105 = vunpack.c.l.b16 %v5089
      %v5106 = vpack.c.b16 %v5099, %v5098
      %v5107 = vpack.c.b16 %v5101, %v5100
      %v5108 = vpack.c.b16 %v5103, %v5102
      %v5109 = vpack.c.b16 %v5105, %v5104
      %v5115 = vsel %vm1234, %v5060, 0
      %v5118 = vsel %vm1234, %v5061, 0
      %v5121 = vsel %vm1234, %v5062, 0
      %v5124 = vsel %vm1234, %v5063, 0
      %v5127 = vsel %vm1234, %v5064, 0
      %v5130 = vsel %vm1234, %v5065, 0
      %v5133 = vsel %vm1234, %v5066, 0
      %v5136 = vsel %vm1234, %v5067, 0
      %v5139 = vsel %vm1234, %v5068, 0
      %v5142 = vsel %vm1234, %v5069, 0
      %v5145 = vsel %vm1234, %v5070, 0
      %v5148 = vsel %vm1234, %v5071, 0
      %v5151 = vsel %vm1234, %v5072, 0
      %v5154 = vsel %vm1234, %v5073, 0
      %v5157 = vsel %vm1234, %v5074, 0
      %v5160 = vsel %vm1234, %v5075, 0
      %v5163 = vsel %vm1234, %v5076, 0
      %v5166 = vsel %vm1234, %v5077, 0
      %v5169 = vsel %vm1234, %v5078, 0
      %v5172 = vsel %vm1234, %v5079, 0
      %v5175 = vsel %vm1234, %v5080, 0
      %5177 = vmatprep.subr.bf16.mxu0 0
      %5178 = vmatpush1.bf16.msra.mxu0 %v5106
      %5179 = vmatprep.subr.bf16.mxu0 0
      %5180 = vmatpush1.bf16.msra.mxu0 %v5107
      %5181 = vmatprep.subr.bf16.mxu0 0
      %5182 = vmatpush1.bf16.msra.mxu0 %v5108
      %5183 = vmatprep.subr.bf16.mxu0 0
      %5184 = vmatpush1.bf16.msra.mxu0 %v5109
      %5185 = vmatprep.subr.bf16.mxu0 0
      %5186 = vmatpush1.bf16.msra.mxu0 0
      %5187 = vmatprep.subr.bf16.mxu0 0
      %5188 = vmatpush1.bf16.msra.mxu0 0
      %5189 = vmatprep.subr.bf16.mxu0 0
      %5190 = vmatpush1.bf16.msra.mxu0 0
      %5191 = vmatprep.subr.bf16.mxu0 0
      %5192 = vmatpush1.bf16.msra.mxu0 0
      %5193 = vmatprep.subr.bf16.mxu0 0
      %5194 = vmatpush1.bf16.msra.mxu0 0
      %5195 = vmatprep.subr.bf16.mxu0 0
      %5196 = vmatpush1.bf16.msra.mxu0 0
      %5197 = vmatprep.subr.bf16.mxu0 0
      %5198 = vmatpush1.bf16.msra.mxu0 0
      %5199 = vmatprep.subr.bf16.mxu0 0
      %5200 = vmatpush1.bf16.msra.mxu0 0
      %5201 = vmatprep.subr.bf16.mxu0 0
      %5202 = vmatpush1.bf16.msra.mxu0 0
      %5203 = vmatprep.subr.bf16.mxu0 0
      %5204 = vmatpush1.bf16.msra.mxu0 0
      %5205 = vmatprep.subr.bf16.mxu0 0
      %5206 = vmatpush1.bf16.msra.mxu0 0
      %5207 = vmatprep.subr.bf16.mxu0 0
      %5208 = vmatpush1.bf16.msra.mxu0 0
      %5209 = vmatprep.mubr.bf16.mxu0 0
      %5210 = vmatmul.mubr.bf16.gmra.mrb[0].mxu0 %v5115
      %v5211 = vpop.f32.mrb[0].mxu0
      %v5212 = vadd.f32 0.0, %v5211
      %v5213 = vpop.f32.mrb[0].mxu0
      %v5214 = vpop.f32.mrb[0].mxu0
      %v5215 = vadd.f32 0.0, %v5214
      %v5216 = vpop.f32.mrb[0].mxu0
      %5217 = vmatprep.mubr.bf16.mxu0 0
      %5218 = vmatmul.mubr.bf16.gmra.mrb[0].mxu0 %v5118
      %v5219 = vpop.f32.mrb[0].mxu0
      %v5220 = vadd.f32 0.0, %v5219
      %v5221 = vpop.f32.mrb[0].mxu0
      %v5222 = vpop.f32.mrb[0].mxu0
      %v5223 = vadd.f32 0.0, %v5222
      %v5224 = vpop.f32.mrb[0].mxu0
      %5225 = vmatprep.mubr.bf16.mxu0 0
      %5226 = vmatmul.mubr.bf16.gmra.mrb[0].mxu0 %v5121
      %v5227 = vpop.f32.mrb[0].mxu0
      %v5228 = vadd.f32 0.0, %v5227
      %v5229 = vpop.f32.mrb[0].mxu0
      %v5230 = vpop.f32.mrb[0].mxu0
      %v5231 = vadd.f32 0.0, %v5230
      %v5232 = vpop.f32.mrb[0].mxu0
      %5233 = vmatprep.mubr.bf16.mxu0 0
      %5234 = vmatmul.mubr.bf16.gmra.mrb[0].mxu0 %v5124
      %v5235 = vpop.f32.mrb[0].mxu0
      %v5236 = vadd.f32 0.0, %v5235
      %v5237 = vpop.f32.mrb[0].mxu0
      %v5238 = vpop.f32.mrb[0].mxu0
      %v5239 = vadd.f32 0.0, %v5238
      %v5240 = vpop.f32.mrb[0].mxu0
      %5241 = vmatprep.mubr.bf16.mxu0 0
      %5242 = vmatmul.mubr.bf16.gmra.mrb[0].mxu0 %v5127
      %v5243 = vpop.f32.mrb[0].mxu0
      %v5244 = vadd.f32 0.0, %v5243
      %v5245 = vpop.f32.mrb[0].mxu0
      %v5246 = vpop.f32.mrb[0].mxu0
      %v5247 = vadd.f32 0.0, %v5246
      %v5248 = vpop.f32.mrb[0].mxu0
      %5249 = vmatprep.mubr.bf16.mxu0 0
      %5250 = vmatmul.mubr.bf16.gmra.mrb[0].mxu0 %v5130
      %v5251 = vpop.f32.mrb[0].mxu0
      %v5252 = vadd.f32 0.0, %v5251
      %v5253 = vpop.f32.mrb[0].mxu0
      %v5254 = vpop.f32.mrb[0].mxu0
      %v5255 = vadd.f32 0.0, %v5254
      %v5256 = vpop.f32.mrb[0].mxu0
      %5257 = vmatprep.mubr.bf16.mxu0 0
      %5258 = vmatmul.mubr.bf16.gmra.mrb[0].mxu0 %v5133
      %v5259 = vpop.f32.mrb[0].mxu0
      %v5260 = vadd.f32 0.0, %v5259
      %v5261 = vpop.f32.mrb[0].mxu0
      %v5262 = vpop.f32.mrb[0].mxu0
      %v5263 = vadd.f32 0.0, %v5262
      %v5264 = vpop.f32.mrb[0].mxu0
      %5265 = vmatprep.mubr.bf16.mxu0 0
      %5266 = vmatmul.mubr.bf16.gmra.mrb[0].mxu0 %v5136
      %v5267 = vpop.f32.mrb[0].mxu0
      %v5268 = vadd.f32 0.0, %v5267
      %v5269 = vpop.f32.mrb[0].mxu0
      %v5270 = vpop.f32.mrb[0].mxu0
      %v5271 = vadd.f32 0.0, %v5270
      %v5272 = vpop.f32.mrb[0].mxu0
      %5273 = vmatprep.mubr.bf16.mxu0 0
      %5274 = vmatmul.mubr.bf16.gmra.mrb[0].mxu0 %v5139
      %v5275 = vpop.f32.mrb[0].mxu0
      %v5276 = vadd.f32 0.0, %v5275
      %v5277 = vpop.f32.mrb[0].mxu0
      %v5278 = vpop.f32.mrb[0].mxu0
      %v5279 = vadd.f32 0.0, %v5278
      %v5280 = vpop.f32.mrb[0].mxu0
      %5281 = vmatprep.mubr.bf16.mxu0 0
      %5282 = vmatmul.mubr.bf16.gmra.mrb[0].mxu0 %v5142
      %v5283 = vpop.f32.mrb[0].mxu0
      %v5284 = vadd.f32 0.0, %v5283
      %v5285 = vpop.f32.mrb[0].mxu0
      %v5286 = vpop.f32.mrb[0].mxu0
      %v5287 = vadd.f32 0.0, %v5286
      %v5288 = vpop.f32.mrb[0].mxu0
      %5289 = vmatprep.mubr.bf16.mxu0 0
      %5290 = vmatmul.mubr.bf16.gmra.mrb[0].mxu0 %v5145
      %v5291 = vpop.f32.mrb[0].mxu0
      %v5292 = vadd.f32 0.0, %v5291
      %v5293 = vpop.f32.mrb[0].mxu0
      %v5294 = vpop.f32.mrb[0].mxu0
      %v5295 = vadd.f32 0.0, %v5294
      %v5296 = vpop.f32.mrb[0].mxu0
      %5297 = vmatprep.mubr.bf16.mxu0 0
      %5298 = vmatmul.mubr.bf16.gmra.mrb[0].mxu0 %v5148
      %v5299 = vpop.f32.mrb[0].mxu0
      %v5300 = vadd.f32 0.0, %v5299
      %v5301 = vpop.f32.mrb[0].mxu0
      %v5302 = vpop.f32.mrb[0].mxu0
      %v5303 = vadd.f32 0.0, %v5302
      %v5304 = vpop.f32.mrb[0].mxu0
      %5305 = vmatprep.mubr.bf16.mxu0 0
      %5306 = vmatmul.mubr.bf16.gmra.mrb[0].mxu0 %v5151
      %v5307 = vpop.f32.mrb[0].mxu0
      %v5308 = vadd.f32 0.0, %v5307
      %v5309 = vpop.f32.mrb[0].mxu0
      %v5310 = vpop.f32.mrb[0].mxu0
      %v5311 = vadd.f32 0.0, %v5310
      %v5312 = vpop.f32.mrb[0].mxu0
      %5313 = vmatprep.mubr.bf16.mxu0 0
      %5314 = vmatmul.mubr.bf16.gmra.mrb[0].mxu0 %v5154
      %v5315 = vpop.f32.mrb[0].mxu0
      %v5316 = vadd.f32 0.0, %v5315
      %v5317 = vpop.f32.mrb[0].mxu0
      %v5318 = vpop.f32.mrb[0].mxu0
      %v5319 = vadd.f32 0.0, %v5318
      %v5320 = vpop.f32.mrb[0].mxu0
      %5321 = vmatprep.mubr.bf16.mxu0 0
      %5322 = vmatmul.mubr.bf16.gmra.mrb[0].mxu0 %v5157
      %v5323 = vpop.f32.mrb[0].mxu0
      %v5324 = vadd.f32 0.0, %v5323
      %v5325 = vpop.f32.mrb[0].mxu0
      %v5326 = vpop.f32.mrb[0].mxu0
      %v5327 = vadd.f32 0.0, %v5326
      %v5328 = vpop.f32.mrb[0].mxu0
      %5329 = vmatprep.mubr.bf16.mxu0 0
      %5330 = vmatmul.mubr.bf16.gmra.mrb[0].mxu0 %v5160
      %v5331 = vpop.f32.mrb[0].mxu0
      %v5332 = vadd.f32 0.0, %v5331
      %v5333 = vpop.f32.mrb[0].mxu0
      %v5334 = vpop.f32.mrb[0].mxu0
      %v5335 = vadd.f32 0.0, %v5334
      %v5336 = vpop.f32.mrb[0].mxu0
      %5337 = vmatprep.mubr.bf16.mxu0 0
      %5338 = vmatmul.mubr.bf16.gmra.mrb[0].mxu0 %v5163
      %v5339 = vpop.f32.mrb[0].mxu0
      %v5340 = vadd.f32 0.0, %v5339
      %v5341 = vpop.f32.mrb[0].mxu0
      %v5342 = vpop.f32.mrb[0].mxu0
      %v5343 = vadd.f32 0.0, %v5342
      %v5344 = vpop.f32.mrb[0].mxu0
      %5345 = vmatprep.mubr.bf16.mxu0 0
      %5346 = vmatmul.mubr.bf16.gmra.mrb[0].mxu0 %v5166
      %v5347 = vpop.f32.mrb[0].mxu0
      %v5348 = vadd.f32 0.0, %v5347
      %v5349 = vpop.f32.mrb[0].mxu0
      %v5350 = vpop.f32.mrb[0].mxu0
      %v5351 = vadd.f32 0.0, %v5350
      %v5352 = vpop.f32.mrb[0].mxu0
      %5353 = vmatprep.mubr.bf16.mxu0 0
      %5354 = vmatmul.mubr.bf16.gmra.mrb[0].mxu0 %v5169
      %v5355 = vpop.f32.mrb[0].mxu0
      %v5356 = vadd.f32 0.0, %v5355
      %v5357 = vpop.f32.mrb[0].mxu0
      %v5358 = vpop.f32.mrb[0].mxu0
      %v5359 = vadd.f32 0.0, %v5358
      %v5360 = vpop.f32.mrb[0].mxu0
      %5361 = vmatprep.mubr.bf16.mxu0 0
      %5362 = vmatmul.mubr.bf16.gmra.mrb[0].mxu0 %v5172
      %v5363 = vpop.f32.mrb[0].mxu0
      %v5364 = vadd.f32 0.0, %v5363
      %v5365 = vpop.f32.mrb[0].mxu0
      %v5366 = vpop.f32.mrb[0].mxu0
      %v5367 = vadd.f32 0.0, %v5366
      %v5368 = vpop.f32.mrb[0].mxu0
      %5369 = vmatprep.mubr.bf16.mxu0 0
      %5370 = vmatmul.mubr.bf16.gmra.mrb[0].mxu0 %v5175
      %v5371 = vpop.f32.mrb[0].mxu0
      %v5372 = vadd.f32 0.0, %v5371
      %v5373 = vpop.f32.mrb[0].mxu0
      %v5374 = vpop.f32.mrb[0].mxu0
      %v5375 = vpop.f32.mrb[0].mxu0
      %5376 = vdwg.mxu0
      %v5377 = vadd.f32 %v4978, %v5212
      %v5378 = vadd.f32 %v4979, %v5215
      %v5379 = vadd.f32 %v4980, %v5220
      %v5380 = vadd.f32 %v4981, %v5223
      %v5381 = vadd.f32 %v4982, %v5228
      %v5382 = vadd.f32 %v4983, %v5231
      %v5383 = vadd.f32 %v4984, %v5236
      %v5384 = vadd.f32 %v4985, %v5239
      %v5385 = vadd.f32 %v4986, %v5244
      %v5386 = vadd.f32 %v4987, %v5247
      %v5387 = vadd.f32 %v4988, %v5252
      %v5388 = vadd.f32 %v4989, %v5255
      %v5389 = vadd.f32 %v4990, %v5260
      %v5390 = vadd.f32 %v4991, %v5263
      %v5391 = vadd.f32 %v4992, %v5268
      %v5392 = vadd.f32 %v4993, %v5271
      %v5393 = vadd.f32 %v4994, %v5276
      %v5394 = vadd.f32 %v4995, %v5279
      %v5395 = vadd.f32 %v4996, %v5284
      %v5396 = vadd.f32 %v4997, %v5287
      %v5397 = vadd.f32 %v4998, %v5292
      %v5398 = vadd.f32 %v4999, %v5295
      %v5399 = vadd.f32 %v5000, %v5300
      %v5400 = vadd.f32 %v5001, %v5303
      %v5401 = vadd.f32 %v5002, %v5308
      %v5402 = vadd.f32 %v5003, %v5311
      %v5403 = vadd.f32 %v5004, %v5316
      %v5404 = vadd.f32 %v5005, %v5319
      %v5405 = vadd.f32 %v5006, %v5324
      %v5406 = vadd.f32 %v5007, %v5327
      %v5407 = vadd.f32 %v5008, %v5332
      %v5408 = vadd.f32 %v5009, %v5335
      %v5409 = vadd.f32 %v5010, %v5340
      %v5410 = vadd.f32 %v5011, %v5343
      %v5411 = vadd.f32 %v5012, %v5348
      %v5412 = vadd.f32 %v5013, %v5351
      %v5413 = vadd.f32 %v5014, %v5356
      %v5414 = vadd.f32 %v5015, %v5359
      %v5415 = vadd.f32 %v5016, %v5364
      %v5416 = vadd.f32 %v5017, %v5367
      %v5417 = vadd.f32 %v5018, %v5372
      %v5419 = vlaneseq
      %v5420 = vshrl.u32 %v5419, 7
      %v5421 = vsub.s32 0, %v5420
      %v5422 = vrot.slane %v1909, %v5421
      %v5424 = vadd.f32 %v5377, %v5422
      %v5425 = vadd.f32 %v5378, %v5422
      %v5426 = vadd.f32 %v5379, %v5422
      %v5427 = vadd.f32 %v5380, %v5422
      %v5428 = vadd.f32 %v5381, %v5422
      %v5429 = vadd.f32 %v5382, %v5422
      %v5430 = vadd.f32 %v5383, %v5422
      %v5431 = vadd.f32 %v5384, %v5422
      %v5432 = vadd.f32 %v5385, %v5422
      %v5433 = vadd.f32 %v5386, %v5422
      %v5434 = vadd.f32 %v5387, %v5422
      %v5435 = vadd.f32 %v5388, %v5422
      %v5436 = vadd.f32 %v5389, %v5422
      %v5437 = vadd.f32 %v5390, %v5422
      %v5438 = vadd.f32 %v5391, %v5422
      %v5439 = vadd.f32 %v5392, %v5422
      %v5440 = vadd.f32 %v5393, %v5422
      %v5441 = vadd.f32 %v5394, %v5422
      %v5442 = vadd.f32 %v5395, %v5422
      %v5443 = vadd.f32 %v5396, %v5422
      %v5444 = vadd.f32 %v5397, %v5422
      %v5445 = vadd.f32 %v5398, %v5422
      %v5446 = vadd.f32 %v5399, %v5422
      %v5447 = vadd.f32 %v5400, %v5422
      %v5448 = vadd.f32 %v5401, %v5422
      %v5449 = vadd.f32 %v5402, %v5422
      %v5450 = vadd.f32 %v5403, %v5422
      %v5451 = vadd.f32 %v5404, %v5422
      %v5452 = vadd.f32 %v5405, %v5422
      %v5453 = vadd.f32 %v5406, %v5422
      %v5454 = vadd.f32 %v5407, %v5422
      %v5455 = vadd.f32 %v5408, %v5422
      %v5456 = vadd.f32 %v5409, %v5422
      %v5457 = vadd.f32 %v5410, %v5422
      %v5458 = vadd.f32 %v5411, %v5422
      %v5459 = vadd.f32 %v5412, %v5422
      %v5460 = vadd.f32 %v5413, %v5422
      %v5461 = vadd.f32 %v5414, %v5422
      %v5462 = vadd.f32 %v5415, %v5422
      %v5463 = vadd.f32 %v5416, %v5422
      %v5464 = vadd.f32 %v5417, %v5422
      %v5465 = vld [vmem:[%s9] sm:$0x1]
      %v5466 = vld [vmem:[%s10] sm:$0x1]
      %v5467 = vsel %vm691, %v5424, 0.0
      %v5468 = vsel %vm692, %v5425, 0.0
      %v5469 = vsel %vm693, %v5426, 0.0
      %v5470 = vsel %vm694, %v5427, 0.0
      %v5471 = vsel %vm695, %v5428, 0.0
      %v5472 = vsel %vm696, %v5429, 0.0
      %v5473 = vsel %vm697, %v5430, 0.0
      %v5474 = vsel %vm698, %v5431, 0.0
      %v5475 = vsel %vm699, %v5432, 0.0
      %v5476 = vsel %vm700, %v5433, 0.0
      %v5477 = vsel %vm701, %v5434, 0.0
      %v5478 = vsel %vm702, %v5435, 0.0
      %v5479 = vsel %vm703, %v5436, 0.0
      %v5480 = vsel %vm704, %v5437, 0.0
      %v5481 = vsel %vm705, %v5438, 0.0
      %v5482 = vsel %vm706, %v5439, 0.0
      %v5483 = vsel %vm707, %v5440, 0.0
      %v5484 = vsel %vm708, %v5441, 0.0
      %v5485 = vsel %vm709, %v5442, 0.0
      %v5486 = vsel %vm710, %v5443, 0.0
      %v5487 = vsel %vm711, %v5444, 0.0
      %v5488 = vsel %vm712, %v5445, 0.0
      %v5489 = vsel %vm713, %v5446, 0.0
      %v5490 = vsel %vm714, %v5447, 0.0
      %v5491 = vsel %vm715, %v5448, 0.0
      %v5492 = vsel %vm716, %v5449, 0.0
      %v5493 = vsel %vm717, %v5450, 0.0
      %v5494 = vsel %vm718, %v5451, 0.0
      %v5495 = vsel %vm719, %v5452, 0.0
      %v5496 = vsel %vm720, %v5453, 0.0
      %v5497 = vsel %vm721, %v5454, 0.0
      %v5498 = vsel %vm722, %v5455, 0.0
      %v5499 = vsel %vm723, %v5456, 0.0
      %v5500 = vsel %vm724, %v5457, 0.0
      %v5501 = vsel %vm725, %v5458, 0.0
      %v5502 = vsel %vm726, %v5459, 0.0
      %v5503 = vsel %vm727, %v5460, 0.0
      %v5504 = vsel %vm728, %v5461, 0.0
      %v5505 = vsel %vm729, %v5462, 0.0
      %v5506 = vsel %vm730, %v5463, 0.0
      %v5507 = vsel %vm731, %v5464, 0.0
      %v5508 = vsel %vm1234, %v5467, 0.0
      %v5509 = vsel %vm1234, %v5468, 0.0
      %v5510 = vadd.f32 %v5508, %v5509
      %v5511 = vsel %vm1234, %v5469, 0.0
      %v5512 = vadd.f32 %v5510, %v5511
      %v5513 = vsel %vm1234, %v5470, 0.0
      %v5514 = vadd.f32 %v5512, %v5513
      %v5515 = vsel %vm1234, %v5471, 0.0
      %v5516 = vadd.f32 %v5514, %v5515
      %v5517 = vsel %vm1234, %v5472, 0.0
      %v5518 = vadd.f32 %v5516, %v5517
      %v5519 = vsel %vm1234, %v5473, 0.0
      %v5520 = vadd.f32 %v5518, %v5519
      %v5521 = vsel %vm1234, %v5474, 0.0
      %v5522 = vadd.f32 %v5520, %v5521
      %v5523 = vsel %vm1234, %v5475, 0.0
      %v5524 = vadd.f32 %v5522, %v5523
      %v5525 = vsel %vm1234, %v5476, 0.0
      %v5526 = vadd.f32 %v5524, %v5525
      %v5527 = vsel %vm1234, %v5477, 0.0
      %v5528 = vadd.f32 %v5526, %v5527
      %v5529 = vsel %vm1234, %v5478, 0.0
      %v5530 = vadd.f32 %v5528, %v5529
      %v5531 = vsel %vm1234, %v5479, 0.0
      %v5532 = vadd.f32 %v5530, %v5531
      %v5533 = vsel %vm1234, %v5480, 0.0
      %v5534 = vadd.f32 %v5532, %v5533
      %v5535 = vsel %vm1234, %v5481, 0.0
      %v5536 = vadd.f32 %v5534, %v5535
      %v5537 = vsel %vm1234, %v5482, 0.0
      %v5538 = vadd.f32 %v5536, %v5537
      %v5539 = vsel %vm1234, %v5483, 0.0
      %v5540 = vadd.f32 %v5538, %v5539
      %v5541 = vsel %vm1234, %v5484, 0.0
      %v5542 = vadd.f32 %v5540, %v5541
      %v5543 = vsel %vm1234, %v5485, 0.0
      %v5544 = vadd.f32 %v5542, %v5543
      %v5545 = vsel %vm1234, %v5486, 0.0
      %v5546 = vadd.f32 %v5544, %v5545
      %v5547 = vsel %vm1234, %v5487, 0.0
      %v5548 = vadd.f32 %v5546, %v5547
      %v5549 = vsel %vm1234, %v5488, 0.0
      %v5550 = vadd.f32 %v5548, %v5549
      %v5551 = vsel %vm1234, %v5489, 0.0
      %v5552 = vadd.f32 %v5550, %v5551
      %v5553 = vsel %vm1234, %v5490, 0.0
      %v5554 = vadd.f32 %v5552, %v5553
      %v5555 = vsel %vm1234, %v5491, 0.0
      %v5556 = vadd.f32 %v5554, %v5555
      %v5557 = vsel %vm1234, %v5492, 0.0
      %v5558 = vadd.f32 %v5556, %v5557
      %v5559 = vsel %vm1234, %v5493, 0.0
      %v5560 = vadd.f32 %v5558, %v5559
      %v5561 = vsel %vm1234, %v5494, 0.0
      %v5562 = vadd.f32 %v5560, %v5561
      %v5563 = vsel %vm1234, %v5495, 0.0
      %v5564 = vadd.f32 %v5562, %v5563
      %v5565 = vsel %vm1234, %v5496, 0.0
      %v5566 = vadd.f32 %v5564, %v5565
      %v5567 = vsel %vm1234, %v5497, 0.0
      %v5568 = vadd.f32 %v5566, %v5567
      %v5569 = vsel %vm1234, %v5498, 0.0
      %v5570 = vadd.f32 %v5568, %v5569
      %v5571 = vsel %vm1234, %v5499, 0.0
      %v5572 = vadd.f32 %v5570, %v5571
      %v5573 = vsel %vm1234, %v5500, 0.0
      %v5574 = vadd.f32 %v5572, %v5573
      %v5575 = vsel %vm1234, %v5501, 0.0
      %v5576 = vadd.f32 %v5574, %v5575
      %v5577 = vsel %vm1234, %v5502, 0.0
      %v5578 = vadd.f32 %v5576, %v5577
      %v5579 = vsel %vm1234, %v5503, 0.0
      %v5580 = vadd.f32 %v5578, %v5579
      %v5581 = vsel %vm1234, %v5504, 0.0
      %v5582 = vadd.f32 %v5580, %v5581
      %v5583 = vsel %vm1234, %v5505, 0.0
      %v5584 = vadd.f32 %v5582, %v5583
      %v5585 = vsel %vm1234, %v5506, 0.0
      %v5586 = vadd.f32 %v5584, %v5585
      %v5587 = vsel %vm1234, %v5507, 0.0
      %v5588 = vadd.f32 %v5586, %v5587
      %v5589 = vrot.slane %v5588, 4
      %v5590 = vadd.f32 %v5588, %v5589
      %v5591 = vrot.slane %v5590, 2
      %v5592 = vadd.f32 %v5590, %v5591
      %v5593 = vrot.slane %v5592, 1
      %v5594 = vadd.f32 %v5592, %v5593
      %v5595 = vmul.f32 %v5467, %v5467
      %v5596 = vmul.f32 %v5468, %v5468
      %v5597 = vmul.f32 %v5469, %v5469
      %v5598 = vmul.f32 %v5470, %v5470
      %v5599 = vmul.f32 %v5471, %v5471
      %v5600 = vmul.f32 %v5472, %v5472
      %v5601 = vmul.f32 %v5473, %v5473
      %v5602 = vmul.f32 %v5474, %v5474
      %v5603 = vmul.f32 %v5475, %v5475
      %v5604 = vmul.f32 %v5476, %v5476
      %v5605 = vmul.f32 %v5477, %v5477
      %v5606 = vmul.f32 %v5478, %v5478
      %v5607 = vmul.f32 %v5479, %v5479
      %v5608 = vmul.f32 %v5480, %v5480
      %v5609 = vmul.f32 %v5481, %v5481
      %v5610 = vmul.f32 %v5482, %v5482
      %v5611 = vmul.f32 %v5483, %v5483
      %v5612 = vmul.f32 %v5484, %v5484
      %v5613 = vmul.f32 %v5485, %v5485
      %v5614 = vmul.f32 %v5486, %v5486
      %v5615 = vmul.f32 %v5487, %v5487
      %v5616 = vmul.f32 %v5488, %v5488
      %v5617 = vmul.f32 %v5489, %v5489
      %v5618 = vmul.f32 %v5490, %v5490
      %v5619 = vmul.f32 %v5491, %v5491
      %v5620 = vmul.f32 %v5492, %v5492
      %v5621 = vmul.f32 %v5493, %v5493
      %v5622 = vmul.f32 %v5494, %v5494
      %v5623 = vmul.f32 %v5495, %v5495
      %v5624 = vmul.f32 %v5496, %v5496
      %v5625 = vmul.f32 %v5497, %v5497
      %v5626 = vmul.f32 %v5498, %v5498
      %v5627 = vmul.f32 %v5499, %v5499
      %v5628 = vmul.f32 %v5500, %v5500
      %v5629 = vmul.f32 %v5501, %v5501
      %v5630 = vmul.f32 %v5502, %v5502
      %v5631 = vmul.f32 %v5503, %v5503
      %v5632 = vmul.f32 %v5504, %v5504
      %v5633 = vmul.f32 %v5505, %v5505
      %v5634 = vmul.f32 %v5506, %v5506
      %v5635 = vmul.f32 %v5507, %v5507
      %v5636 = vsel %vm1234, %v5595, 0.0
      %v5637 = vsel %vm1234, %v5596, 0.0
      %v5638 = vadd.f32 %v5636, %v5637
      %v5639 = vsel %vm1234, %v5597, 0.0
      %v5640 = vadd.f32 %v5638, %v5639
      %v5641 = vsel %vm1234, %v5598, 0.0
      %v5642 = vadd.f32 %v5640, %v5641
      %v5643 = vsel %vm1234, %v5599, 0.0
      %v5644 = vadd.f32 %v5642, %v5643
      %v5645 = vsel %vm1234, %v5600, 0.0
      %v5646 = vadd.f32 %v5644, %v5645
      %v5647 = vsel %vm1234, %v5601, 0.0
      %v5648 = vadd.f32 %v5646, %v5647
      %v5649 = vsel %vm1234, %v5602, 0.0
      %v5650 = vadd.f32 %v5648, %v5649
      %v5651 = vsel %vm1234, %v5603, 0.0
      %v5652 = vadd.f32 %v5650, %v5651
      %v5653 = vsel %vm1234, %v5604, 0.0
      %v5654 = vadd.f32 %v5652, %v5653
      %v5655 = vsel %vm1234, %v5605, 0.0
      %v5656 = vadd.f32 %v5654, %v5655
      %v5657 = vsel %vm1234, %v5606, 0.0
      %v5658 = vadd.f32 %v5656, %v5657
      %v5659 = vsel %vm1234, %v5607, 0.0
      %v5660 = vadd.f32 %v5658, %v5659
      %v5661 = vsel %vm1234, %v5608, 0.0
      %v5662 = vadd.f32 %v5660, %v5661
      %v5663 = vsel %vm1234, %v5609, 0.0
      %v5664 = vadd.f32 %v5662, %v5663
      %v5665 = vsel %vm1234, %v5610, 0.0
      %v5666 = vadd.f32 %v5664, %v5665
      %v5667 = vsel %vm1234, %v5611, 0.0
      %v5668 = vadd.f32 %v5666, %v5667
      %v5669 = vsel %vm1234, %v5612, 0.0
      %v5670 = vadd.f32 %v5668, %v5669
      %v5671 = vsel %vm1234, %v5613, 0.0
      %v5672 = vadd.f32 %v5670, %v5671
      %v5673 = vsel %vm1234, %v5614, 0.0
      %v5674 = vadd.f32 %v5672, %v5673
      %v5675 = vsel %vm1234, %v5615, 0.0
      %v5676 = vadd.f32 %v5674, %v5675
      %v5677 = vsel %vm1234, %v5616, 0.0
      %v5678 = vadd.f32 %v5676, %v5677
      %v5679 = vsel %vm1234, %v5617, 0.0
      %v5680 = vadd.f32 %v5678, %v5679
      %v5681 = vsel %vm1234, %v5618, 0.0
      %v5682 = vadd.f32 %v5680, %v5681
      %v5683 = vsel %vm1234, %v5619, 0.0
      %v5684 = vadd.f32 %v5682, %v5683
      %v5685 = vsel %vm1234, %v5620, 0.0
      %v5686 = vadd.f32 %v5684, %v5685
      %v5687 = vsel %vm1234, %v5621, 0.0
      %v5688 = vadd.f32 %v5686, %v5687
      %v5689 = vsel %vm1234, %v5622, 0.0
      %v5690 = vadd.f32 %v5688, %v5689
      %v5691 = vsel %vm1234, %v5623, 0.0
      %v5692 = vadd.f32 %v5690, %v5691
      %v5693 = vsel %vm1234, %v5624, 0.0
      %v5694 = vadd.f32 %v5692, %v5693
      %v5695 = vsel %vm1234, %v5625, 0.0
      %v5696 = vadd.f32 %v5694, %v5695
      %v5697 = vsel %vm1234, %v5626, 0.0
      %v5698 = vadd.f32 %v5696, %v5697
      %v5699 = vsel %vm1234, %v5627, 0.0
      %v5700 = vadd.f32 %v5698, %v5699
      %v5701 = vsel %vm1234, %v5628, 0.0
      %v5702 = vadd.f32 %v5700, %v5701
      %v5703 = vsel %vm1234, %v5629, 0.0
      %v5704 = vadd.f32 %v5702, %v5703
      %v5705 = vsel %vm1234, %v5630, 0.0
      %v5706 = vadd.f32 %v5704, %v5705
      %v5707 = vsel %vm1234, %v5631, 0.0
      %v5708 = vadd.f32 %v5706, %v5707
      %v5709 = vsel %vm1234, %v5632, 0.0
      %v5710 = vadd.f32 %v5708, %v5709
      %v5711 = vsel %vm1234, %v5633, 0.0
      %v5712 = vadd.f32 %v5710, %v5711
      %v5713 = vsel %vm1234, %v5634, 0.0
      %v5714 = vadd.f32 %v5712, %v5713
      %v5715 = vsel %vm1234, %v5635, 0.0
      %v5716 = vadd.f32 %v5714, %v5715
      %v5717 = vrot.slane %v5716, 4
      %v5718 = vadd.f32 %v5716, %v5717
      %v5719 = vrot.slane %v5718, 2
      %v5720 = vadd.f32 %v5718, %v5719
      %v5721 = vrot.slane %v5720, 1
      %v5722 = vadd.f32 %v5720, %v5721
      %v5724 = vsel %vm1234, %v5594, 0
      %5726 = vmatprep.subr.mxu0 0.0
      %5727 = vmatpush1.msra.mxu0 %v732
      %5728 = vmatprep.subr.mxu0 0.0
      %5729 = vmatpush1.msra.mxu0 %v733
      %5730 = vmatprep.subr.mxu0 0.0
      %5731 = vmatpush1.msra.mxu0 %v734
      %5732 = vmatprep.subr.mxu0 0.0
      %5733 = vmatpush1.msra.mxu0 %v735
      %5734 = vmatprep.subr.mxu0 0.0
      %5735 = vmatpush1.msra.mxu0 %v736
      %5736 = vmatprep.subr.mxu0 0.0
      %5737 = vmatpush1.msra.mxu0 %v737
      %5738 = vmatprep.subr.mxu0 0.0
      %5739 = vmatpush1.msra.mxu0 %v738
      %5740 = vmatprep.subr.mxu0 0.0
      %5741 = vmatpush1.msra.mxu0 %v739
      %5742 = vmatprep.subr.mxu0 0.0
      %5743 = vmatpush1.msra.mxu0 0.0
      %5744 = vmatprep.subr.mxu0 0.0
      %5745 = vmatpush1.msra.mxu0 0.0
      %5746 = vmatprep.subr.mxu0 0.0
      %5747 = vmatpush1.msra.mxu0 0.0
      %5748 = vmatprep.subr.mxu0 0.0
      %5749 = vmatpush1.msra.mxu0 0.0
      %5750 = vmatprep.subr.mxu0 0.0
      %5751 = vmatpush1.msra.mxu0 0.0
      %5752 = vmatprep.subr.mxu0 0.0
      %5753 = vmatpush1.msra.mxu0 0.0
      %5754 = vmatprep.subr.mxu0 0.0
      %5755 = vmatpush1.msra.mxu0 0.0
      %5756 = vmatprep.subr.mxu0 0.0
      %5757 = vmatpush1.msra.mxu0 0.0
      %5758 = vmatprep.subr.mxu0 0.0
      %5759 = vmatpush1.msra.mxu0 0.0
      %5760 = vmatprep.subr.mxu0 0.0
      %5761 = vmatpush1.msra.mxu0 0.0
      %5762 = vmatprep.subr.mxu0 0.0
      %5763 = vmatpush1.msra.mxu0 0.0
      %5764 = vmatprep.subr.mxu0 0.0
      %5765 = vmatpush1.msra.mxu0 0.0
      %5766 = vmatprep.subr.mxu0 0.0
      %5767 = vmatpush1.msra.mxu0 0.0
      %5768 = vmatprep.subr.mxu0 0.0
      %5769 = vmatpush1.msra.mxu0 0.0
      %5770 = vmatprep.subr.mxu0 0.0
      %5771 = vmatpush1.msra.mxu0 0.0
      %5772 = vmatprep.subr.mxu0 0.0
      %5773 = vmatpush1.msra.mxu0 0.0
      %5774 = vmatprep.subr.mxu0 0.0
      %5775 = vmatpush1.msra.mxu0 0.0
      %5776 = vmatprep.subr.mxu0 0.0
      %5777 = vmatpush1.msra.mxu0 0.0
      %5778 = vmatprep.subr.mxu0 0.0
      %5779 = vmatpush1.msra.mxu0 0.0
      %5780 = vmatprep.subr.mxu0 0.0
      %5781 = vmatpush1.msra.mxu0 0.0
      %5782 = vmatprep.subr.mxu0 0.0
      %5783 = vmatpush1.msra.mxu0 0.0
      %5784 = vmatprep.subr.mxu0 0.0
      %5785 = vmatpush1.msra.mxu0 0.0
      %5786 = vmatprep.subr.mxu0 0.0
      %5787 = vmatpush1.msra.mxu0 0.0
      %5788 = vmatprep.subr.mxu0 0.0
      %5789 = vmatpush1.msra.mxu0 0.0
      %5790 = vmatprep.mubr.f32.mxu0 0.0
      %5791 = vmatmul.mubr.f32.gmra.mrb[0].mxu0 %v5724
      %v5792 = vpop.f32.mrb[0].mxu0
      %v5793 = vadd.f32 0.0, %v5792
      %v5794 = vpop.f32.mrb[0].mxu0
      %5795 = vdwg.mxu0
      %v5796 = vmul.f32 %v5793, 0.00024414063
      %v5798 = vsel %vm1234, %v5722, 0
      %5800 = vmatprep.subr.mxu0 0.0
      %5801 = vmatpush1.msra.mxu0 %v732
      %5802 = vmatprep.subr.mxu0 0.0
      %5803 = vmatpush1.msra.mxu0 %v733
      %5804 = vmatprep.subr.mxu0 0.0
      %5805 = vmatpush1.msra.mxu0 %v734
      %5806 = vmatprep.subr.mxu0 0.0
      %5807 = vmatpush1.msra.mxu0 %v735
      %5808 = vmatprep.subr.mxu0 0.0
      %5809 = vmatpush1.msra.mxu0 %v736
      %5810 = vmatprep.subr.mxu0 0.0
      %5811 = vmatpush1.msra.mxu0 %v737
      %5812 = vmatprep.subr.mxu0 0.0
      %5813 = vmatpush1.msra.mxu0 %v738
      %5814 = vmatprep.subr.mxu0 0.0
      %5815 = vmatpush1.msra.mxu0 %v739
      %5816 = vmatprep.subr.mxu0 0.0
      %5817 = vmatpush1.msra.mxu0 0.0
      %5818 = vmatprep.subr.mxu0 0.0
      %5819 = vmatpush1.msra.mxu0 0.0
      %5820 = vmatprep.subr.mxu0 0.0
      %5821 = vmatpush1.msra.mxu0 0.0
      %5822 = vmatprep.subr.mxu0 0.0
      %5823 = vmatpush1.msra.mxu0 0.0
      %5824 = vmatprep.subr.mxu0 0.0
      %5825 = vmatpush1.msra.mxu0 0.0
      %5826 = vmatprep.subr.mxu0 0.0
      %5827 = vmatpush1.msra.mxu0 0.0
      %5828 = vmatprep.subr.mxu0 0.0
      %5829 = vmatpush1.msra.mxu0 0.0
      %5830 = vmatprep.subr.mxu0 0.0
      %5831 = vmatpush1.msra.mxu0 0.0
      %5832 = vmatprep.subr.mxu0 0.0
      %5833 = vmatpush1.msra.mxu0 0.0
      %5834 = vmatprep.subr.mxu0 0.0
      %5835 = vmatpush1.msra.mxu0 0.0
      %5836 = vmatprep.subr.mxu0 0.0
      %5837 = vmatpush1.msra.mxu0 0.0
      %5838 = vmatprep.subr.mxu0 0.0
      %5839 = vmatpush1.msra.mxu0 0.0
      %5840 = vmatprep.subr.mxu0 0.0
      %5841 = vmatpush1.msra.mxu0 0.0
      %5842 = vmatprep.subr.mxu0 0.0
      %5843 = vmatpush1.msra.mxu0 0.0
      %5844 = vmatprep.subr.mxu0 0.0
      %5845 = vmatpush1.msra.mxu0 0.0
      %5846 = vmatprep.subr.mxu0 0.0
      %5847 = vmatpush1.msra.mxu0 0.0
      %5848 = vmatprep.subr.mxu0 0.0
      %5849 = vmatpush1.msra.mxu0 0.0
      %5850 = vmatprep.subr.mxu0 0.0
      %5851 = vmatpush1.msra.mxu0 0.0
      %5852 = vmatprep.subr.mxu0 0.0
      %5853 = vmatpush1.msra.mxu0 0.0
      %5854 = vmatprep.subr.mxu0 0.0
      %5855 = vmatpush1.msra.mxu0 0.0
      %5856 = vmatprep.subr.mxu0 0.0
      %5857 = vmatpush1.msra.mxu0 0.0
      %5858 = vmatprep.subr.mxu0 0.0
      %5859 = vmatpush1.msra.mxu0 0.0
      %5860 = vmatprep.subr.mxu0 0.0
      %5861 = vmatpush1.msra.mxu0 0.0
      %5862 = vmatprep.subr.mxu0 0.0
      %5863 = vmatpush1.msra.mxu0 0.0
      %5864 = vmatprep.mubr.f32.mxu0 0.0
      %5865 = vmatmul.mubr.f32.gmra.mrb[0].mxu0 %v5798
      %v5866 = vpop.f32.mrb[0].mxu0
      %v5867 = vadd.f32 0.0, %v5866
      %v5868 = vpop.f32.mrb[0].mxu0
      %5869 = vdwg.mxu0
      %v5870 = vmul.f32 %v5867, 0.00024414063
      %v5871 = vmul.f32 %v5796, %v5796
      %v5872 = vsub.f32 %v5870, %v5871
      %v5873 = vadd.f32 %v5872, 1e-05
      %v5874 = vrsqrt.pop %v5873
      %v5875 = vlaneseq
      %v5876 = vshrl.u32 %v5875, 7
      %v5877 = vsub.s32 0, %v5876
      %v5878 = vrot.slane %v5796, %v5877
      %v5879 = vsub.f32 %v5467, %v5878
      %v5880 = vsub.f32 %v5468, %v5878
      %v5881 = vsub.f32 %v5469, %v5878
      %v5882 = vsub.f32 %v5470, %v5878
      %v5883 = vsub.f32 %v5471, %v5878
      %v5884 = vsub.f32 %v5472, %v5878
      %v5885 = vsub.f32 %v5473, %v5878
      %v5886 = vsub.f32 %v5474, %v5878
      %v5887 = vsub.f32 %v5475, %v5878
      %v5888 = vsub.f32 %v5476, %v5878
      %v5889 = vsub.f32 %v5477, %v5878
      %v5890 = vsub.f32 %v5478, %v5878
      %v5891 = vsub.f32 %v5479, %v5878
      %v5892 = vsub.f32 %v5480, %v5878
      %v5893 = vsub.f32 %v5481, %v5878
      %v5894 = vsub.f32 %v5482, %v5878
      %v5895 = vsub.f32 %v5483, %v5878
      %v5896 = vsub.f32 %v5484, %v5878
      %v5897 = vsub.f32 %v5485, %v5878
      %v5898 = vsub.f32 %v5486, %v5878
      %v5899 = vsub.f32 %v5487, %v5878
      %v5900 = vsub.f32 %v5488, %v5878
      %v5901 = vsub.f32 %v5489, %v5878
      %v5902 = vsub.f32 %v5490, %v5878
      %v5903 = vsub.f32 %v5491, %v5878
      %v5904 = vsub.f32 %v5492, %v5878
      %v5905 = vsub.f32 %v5493, %v5878
      %v5906 = vsub.f32 %v5494, %v5878
      %v5907 = vsub.f32 %v5495, %v5878
      %v5908 = vsub.f32 %v5496, %v5878
      %v5909 = vsub.f32 %v5497, %v5878
      %v5910 = vsub.f32 %v5498, %v5878
      %v5911 = vsub.f32 %v5499, %v5878
      %v5912 = vsub.f32 %v5500, %v5878
      %v5913 = vsub.f32 %v5501, %v5878
      %v5914 = vsub.f32 %v5502, %v5878
      %v5915 = vsub.f32 %v5503, %v5878
      %v5916 = vsub.f32 %v5504, %v5878
      %v5917 = vsub.f32 %v5505, %v5878
      %v5918 = vsub.f32 %v5506, %v5878
      %v5919 = vsub.f32 %v5507, %v5878
      %v5920 = vlaneseq
      %v5921 = vshrl.u32 %v5920, 7
      %v5922 = vsub.s32 0, %v5921
      %v5923 = vrot.slane %v5874, %v5922
      %v5924 = vmul.f32 %v5879, %v5923
      %v5925 = vmul.f32 %v5880, %v5923
      %v5926 = vmul.f32 %v5881, %v5923
      %v5927 = vmul.f32 %v5882, %v5923
      %v5928 = vmul.f32 %v5883, %v5923
      %v5929 = vmul.f32 %v5884, %v5923
      %v5930 = vmul.f32 %v5885, %v5923
      %v5931 = vmul.f32 %v5886, %v5923
      %v5932 = vmul.f32 %v5887, %v5923
      %v5933 = vmul.f32 %v5888, %v5923
      %v5934 = vmul.f32 %v5889, %v5923
      %v5935 = vmul.f32 %v5890, %v5923
      %v5936 = vmul.f32 %v5891, %v5923
      %v5937 = vmul.f32 %v5892, %v5923
      %v5938 = vmul.f32 %v5893, %v5923
      %v5939 = vmul.f32 %v5894, %v5923
      %v5940 = vmul.f32 %v5895, %v5923
      %v5941 = vmul.f32 %v5896, %v5923
      %v5942 = vmul.f32 %v5897, %v5923
      %v5943 = vmul.f32 %v5898, %v5923
      %v5944 = vmul.f32 %v5899, %v5923
      %v5945 = vmul.f32 %v5900, %v5923
      %v5946 = vmul.f32 %v5901, %v5923
      %v5947 = vmul.f32 %v5902, %v5923
      %v5948 = vmul.f32 %v5903, %v5923
      %v5949 = vmul.f32 %v5904, %v5923
      %v5950 = vmul.f32 %v5905, %v5923
      %v5951 = vmul.f32 %v5906, %v5923
      %v5952 = vmul.f32 %v5907, %v5923
      %v5953 = vmul.f32 %v5908, %v5923
      %v5954 = vmul.f32 %v5909, %v5923
      %v5955 = vmul.f32 %v5910, %v5923
      %v5956 = vmul.f32 %v5911, %v5923
      %v5957 = vmul.f32 %v5912, %v5923
      %v5958 = vmul.f32 %v5913, %v5923
      %v5959 = vmul.f32 %v5914, %v5923
      %v5960 = vmul.f32 %v5915, %v5923
      %v5961 = vmul.f32 %v5916, %v5923
      %v5962 = vmul.f32 %v5917, %v5923
      %v5963 = vmul.f32 %v5918, %v5923
      %v5964 = vmul.f32 %v5919, %v5923
      %v5966 = vlaneseq
      %v5967 = vshrl.u32 %v5966, 7
      %v5968 = vsub.s32 0, %v5967
      %v5969 = vrot.slane %v5465, %v5968
      %v5971 = vmul.f32 %v5924, %v5969
      %v5972 = vmul.f32 %v5925, %v5969
      %v5973 = vmul.f32 %v5926, %v5969
      %v5974 = vmul.f32 %v5927, %v5969
      %v5975 = vmul.f32 %v5928, %v5969
      %v5976 = vmul.f32 %v5929, %v5969
      %v5977 = vmul.f32 %v5930, %v5969
      %v5978 = vmul.f32 %v5931, %v5969
      %v5979 = vmul.f32 %v5932, %v5969
      %v5980 = vmul.f32 %v5933, %v5969
      %v5981 = vmul.f32 %v5934, %v5969
      %v5982 = vmul.f32 %v5935, %v5969
      %v5983 = vmul.f32 %v5936, %v5969
      %v5984 = vmul.f32 %v5937, %v5969
      %v5985 = vmul.f32 %v5938, %v5969
      %v5986 = vmul.f32 %v5939, %v5969
      %v5987 = vmul.f32 %v5940, %v5969
      %v5988 = vmul.f32 %v5941, %v5969
      %v5989 = vmul.f32 %v5942, %v5969
      %v5990 = vmul.f32 %v5943, %v5969
      %v5991 = vmul.f32 %v5944, %v5969
      %v5992 = vmul.f32 %v5945, %v5969
      %v5993 = vmul.f32 %v5946, %v5969
      %v5994 = vmul.f32 %v5947, %v5969
      %v5995 = vmul.f32 %v5948, %v5969
      %v5996 = vmul.f32 %v5949, %v5969
      %v5997 = vmul.f32 %v5950, %v5969
      %v5998 = vmul.f32 %v5951, %v5969
      %v5999 = vmul.f32 %v5952, %v5969
      %v6000 = vmul.f32 %v5953, %v5969
      %v6001 = vmul.f32 %v5954, %v5969
      %v6002 = vmul.f32 %v5955, %v5969
      %v6003 = vmul.f32 %v5956, %v5969
      %v6004 = vmul.f32 %v5957, %v5969
      %v6005 = vmul.f32 %v5958, %v5969
      %v6006 = vmul.f32 %v5959, %v5969
      %v6007 = vmul.f32 %v5960, %v5969
      %v6008 = vmul.f32 %v5961, %v5969
      %v6009 = vmul.f32 %v5962, %v5969
      %v6010 = vmul.f32 %v5963, %v5969
      %v6011 = vmul.f32 %v5964, %v5969
      %v6013 = vlaneseq
      %v6014 = vshrl.u32 %v6013, 7
      %v6015 = vsub.s32 0, %v6014
      %v6016 = vrot.slane %v5466, %v6015
      %v6018 = vadd.f32 %v5971, %v6016
      %v6019 = vadd.f32 %v5972, %v6016
      %v6020 = vadd.f32 %v5973, %v6016
      %v6021 = vadd.f32 %v5974, %v6016
      %v6022 = vadd.f32 %v5975, %v6016
      %v6023 = vadd.f32 %v5976, %v6016
      %v6024 = vadd.f32 %v5977, %v6016
      %v6025 = vadd.f32 %v5978, %v6016
      %v6026 = vadd.f32 %v5979, %v6016
      %v6027 = vadd.f32 %v5980, %v6016
      %v6028 = vadd.f32 %v5981, %v6016
      %v6029 = vadd.f32 %v5982, %v6016
      %v6030 = vadd.f32 %v5983, %v6016
      %v6031 = vadd.f32 %v5984, %v6016
      %v6032 = vadd.f32 %v5985, %v6016
      %v6033 = vadd.f32 %v5986, %v6016
      %v6034 = vadd.f32 %v5987, %v6016
      %v6035 = vadd.f32 %v5988, %v6016
      %v6036 = vadd.f32 %v5989, %v6016
      %v6037 = vadd.f32 %v5990, %v6016
      %v6038 = vadd.f32 %v5991, %v6016
      %v6039 = vadd.f32 %v5992, %v6016
      %v6040 = vadd.f32 %v5993, %v6016
      %v6041 = vadd.f32 %v5994, %v6016
      %v6042 = vadd.f32 %v5995, %v6016
      %v6043 = vadd.f32 %v5996, %v6016
      %v6044 = vadd.f32 %v5997, %v6016
      %v6045 = vadd.f32 %v5998, %v6016
      %v6046 = vadd.f32 %v5999, %v6016
      %v6047 = vadd.f32 %v6000, %v6016
      %v6048 = vadd.f32 %v6001, %v6016
      %v6049 = vadd.f32 %v6002, %v6016
      %v6050 = vadd.f32 %v6003, %v6016
      %v6051 = vadd.f32 %v6004, %v6016
      %v6052 = vadd.f32 %v6005, %v6016
      %v6053 = vadd.f32 %v6006, %v6016
      %v6054 = vadd.f32 %v6007, %v6016
      %v6055 = vadd.f32 %v6008, %v6016
      %v6056 = vadd.f32 %v6009, %v6016
      %v6057 = vadd.f32 %v6010, %v6016
      %v6058 = vadd.f32 %v6011, %v6016
      %v6059 = vmax.f32 %v6018, 0.0
      %v6060 = vmax.f32 %v6019, 0.0
      %v6061 = vmax.f32 %v6020, 0.0
      %v6062 = vmax.f32 %v6021, 0.0
      %v6063 = vmax.f32 %v6022, 0.0
      %v6064 = vmax.f32 %v6023, 0.0
      %v6065 = vmax.f32 %v6024, 0.0
      %v6066 = vmax.f32 %v6025, 0.0
      %v6067 = vmax.f32 %v6026, 0.0
      %v6068 = vmax.f32 %v6027, 0.0
      %v6069 = vmax.f32 %v6028, 0.0
      %v6070 = vmax.f32 %v6029, 0.0
      %v6071 = vmax.f32 %v6030, 0.0
      %v6072 = vmax.f32 %v6031, 0.0
      %v6073 = vmax.f32 %v6032, 0.0
      %v6074 = vmax.f32 %v6033, 0.0
      %v6075 = vmax.f32 %v6034, 0.0
      %v6076 = vmax.f32 %v6035, 0.0
      %v6077 = vmax.f32 %v6036, 0.0
      %v6078 = vmax.f32 %v6037, 0.0
      %v6079 = vmax.f32 %v6038, 0.0
      %v6080 = vmax.f32 %v6039, 0.0
      %v6081 = vmax.f32 %v6040, 0.0
      %v6082 = vmax.f32 %v6041, 0.0
      %v6083 = vmax.f32 %v6042, 0.0
      %v6084 = vmax.f32 %v6043, 0.0
      %v6085 = vmax.f32 %v6044, 0.0
      %v6086 = vmax.f32 %v6045, 0.0
      %v6087 = vmax.f32 %v6046, 0.0
      %v6088 = vmax.f32 %v6047, 0.0
      %v6089 = vmax.f32 %v6048, 0.0
      %v6090 = vmax.f32 %v6049, 0.0
      %v6091 = vmax.f32 %v6050, 0.0
      %v6092 = vmax.f32 %v6051, 0.0
      %v6093 = vmax.f32 %v6052, 0.0
      %v6094 = vmax.f32 %v6053, 0.0
      %v6095 = vmax.f32 %v6054, 0.0
      %v6096 = vmax.f32 %v6055, 0.0
      %v6097 = vmax.f32 %v6056, 0.0
      %v6098 = vmax.f32 %v6057, 0.0
      %v6099 = vmax.f32 %v6058, 0.0
      %v6100 = vsel %vm691, %v6059, 0.0
      %v6101 = vsel %vm692, %v6060, 0.0
      %v6102 = vsel %vm693, %v6061, 0.0
      %v6103 = vsel %vm694, %v6062, 0.0
      %v6104 = vsel %vm695, %v6063, 0.0
      %v6105 = vsel %vm696, %v6064, 0.0
      %v6106 = vsel %vm697, %v6065, 0.0
      %v6107 = vsel %vm698, %v6066, 0.0
      %v6108 = vsel %vm699, %v6067, 0.0
      %v6109 = vsel %vm700, %v6068, 0.0
      %v6110 = vsel %vm701, %v6069, 0.0
      %v6111 = vsel %vm702, %v6070, 0.0
      %v6112 = vsel %vm703, %v6071, 0.0
      %v6113 = vsel %vm704, %v6072, 0.0
      %v6114 = vsel %vm705, %v6073, 0.0
      %v6115 = vsel %vm706, %v6074, 0.0
      %v6116 = vsel %vm707, %v6075, 0.0
      %v6117 = vsel %vm708, %v6076, 0.0
      %v6118 = vsel %vm709, %v6077, 0.0
      %v6119 = vsel %vm710, %v6078, 0.0
      %v6120 = vsel %vm711, %v6079, 0.0
      %v6121 = vsel %vm712, %v6080, 0.0
      %v6122 = vsel %vm713, %v6081, 0.0
      %v6123 = vsel %vm714, %v6082, 0.0
      %v6124 = vsel %vm715, %v6083, 0.0
      %v6125 = vsel %vm716, %v6084, 0.0
      %v6126 = vsel %vm717, %v6085, 0.0
      %v6127 = vsel %vm718, %v6086, 0.0
      %v6128 = vsel %vm719, %v6087, 0.0
      %v6129 = vsel %vm720, %v6088, 0.0
      %v6130 = vsel %vm721, %v6089, 0.0
      %v6131 = vsel %vm722, %v6090, 0.0
      %v6132 = vsel %vm723, %v6091, 0.0
      %v6133 = vsel %vm724, %v6092, 0.0
      %v6134 = vsel %vm725, %v6093, 0.0
      %v6135 = vsel %vm726, %v6094, 0.0
      %v6136 = vsel %vm727, %v6095, 0.0
      %v6137 = vsel %vm728, %v6096, 0.0
      %v6138 = vsel %vm729, %v6097, 0.0
      %v6139 = vsel %vm730, %v6098, 0.0
      %v6140 = vsel %vm731, %v6099, 0.0
      %6141 = vst.msk [vmem:[#allocation3 + $0x18] sm:$0xff] %vm1234, %v6100
      %6142 = vst.msk [vmem:[#allocation3 + $0x20] sm:$0xff] %vm1234, %v6101
      %6143 = vst.msk [vmem:[#allocation3 + $0x28] sm:$0xff] %vm1234, %v6102
      %6144 = vst.msk [vmem:[#allocation3 + $0x30] sm:$0xff] %vm1234, %v6103
      %6145 = vst.msk [vmem:[#allocation3 + $0x38] sm:$0xff] %vm1234, %v6104
      %6146 = vst.msk [vmem:[#allocation3 + $0x40] sm:$0xff] %vm1234, %v6105
      %6147 = vst.msk [vmem:[#allocation3 + $0x48] sm:$0xff] %vm1234, %v6106
      %6148 = vst.msk [vmem:[#allocation3 + $0x50] sm:$0xff] %vm1234, %v6107
      %6149 = vst.msk [vmem:[#allocation3 + $0x58] sm:$0xff] %vm1234, %v6108
      %6150 = vst.msk [vmem:[#allocation3 + $0x60] sm:$0xff] %vm1234, %v6109
      %6151 = vst.msk [vmem:[#allocation3 + $0x68] sm:$0xff] %vm1234, %v6110
      %6152 = vst.msk [vmem:[#allocation3 + $0x70] sm:$0xff] %vm1234, %v6111
      %6153 = vst.msk [vmem:[#allocation3 + $0x78] sm:$0xff] %vm1234, %v6112
      %6154 = vst.msk [vmem:[#allocation3 + $0x80] sm:$0xff] %vm1234, %v6113
      %6155 = vst.msk [vmem:[#allocation3 + $0x88] sm:$0xff] %vm1234, %v6114
      %6156 = vst.msk [vmem:[#allocation3 + $0x90] sm:$0xff] %vm1234, %v6115
      %6157 = vst.msk [vmem:[#allocation3 + $0x98] sm:$0xff] %vm1234, %v6116
      %6158 = vst.msk [vmem:[#allocation3 + $0xa0] sm:$0xff] %vm1234, %v6117
      %6159 = vst.msk [vmem:[#allocation3 + $0xa8] sm:$0xff] %vm1234, %v6118
      %6160 = vst.msk [vmem:[#allocation3 + $0xb0] sm:$0xff] %vm1234, %v6119
      %6161 = vst.msk [vmem:[#allocation3 + $0xb8] sm:$0xff] %vm1234, %v6120
      %6162 = vst.msk [vmem:[#allocation3 + $0xc0] sm:$0xff] %vm1234, %v6121
      %6163 = vst.msk [vmem:[#allocation3 + $0xc8] sm:$0xff] %vm1234, %v6122
      %6164 = vst.msk [vmem:[#allocation3 + $0xd0] sm:$0xff] %vm1234, %v6123
      %6165 = vst.msk [vmem:[#allocation3 + $0xd8] sm:$0xff] %vm1234, %v6124
      %6166 = vst.msk [vmem:[#allocation3 + $0xe0] sm:$0xff] %vm1234, %v6125
      %6167 = vst.msk [vmem:[#allocation3 + $0xe8] sm:$0xff] %vm1234, %v6126
      %6168 = vst.msk [vmem:[#allocation3 + $0xf0] sm:$0xff] %vm1234, %v6127
      %6169 = vst.msk [vmem:[#allocation3 + $0xf8] sm:$0xff] %vm1234, %v6128
      %6170 = vst.msk [vmem:[#allocation3 + $0x100] sm:$0xff] %vm1234, %v6129
      %6171 = vst.msk [vmem:[#allocation3 + $0x108] sm:$0xff] %vm1234, %v6130
      %6172 = vst.msk [vmem:[#allocation3 + $0x110] sm:$0xff] %vm1234, %v6131
      %6173 = vst.msk [vmem:[#allocation3 + $0x118] sm:$0xff] %vm1234, %v6132
      %6174 = vst.msk [vmem:[#allocation3 + $0x120] sm:$0xff] %vm1234, %v6133
      %6175 = vst.msk [vmem:[#allocation3 + $0x128] sm:$0xff] %vm1234, %v6134
      %6176 = vst.msk [vmem:[#allocation3 + $0x130] sm:$0xff] %vm1234, %v6135
      %6177 = vst.msk [vmem:[#allocation3 + $0x138] sm:$0xff] %vm1234, %v6136
      %6178 = vst.msk [vmem:[#allocation3 + $0x140] sm:$0xff] %vm1234, %v6137
      %6179 = vst.msk [vmem:[#allocation3 + $0x148] sm:$0xff] %vm1234, %v6138
      %6180 = vst.msk [vmem:[#allocation3 + $0x150] sm:$0xff] %vm1234, %v6139
      %6181 = vst.msk [vmem:[#allocation3 + $0x158] sm:$0xff] %vm1234, %v6140
      %v6182 = vld [vmem:[%s12] sm:$0x1]
      %v6183 = vld [vmem:[#allocation3 + $0x5] sm:$0xff]
      %v6184 = vld [vmem:[#allocation3 + $0xd] sm:$0xff]
      %v6185 = vld [vmem:[#allocation3 + $0x15] sm:$0xff]
      %v6186 = vld [vmem:[#allocation3 + $0x1d] sm:$0xff]
      %v6187 = vld [vmem:[#allocation3 + $0x25] sm:$0xff]
      %v6188 = vld [vmem:[#allocation3 + $0x2d] sm:$0xff]
      %v6189 = vld [vmem:[#allocation3 + $0x35] sm:$0xff]
      %v6190 = vld [vmem:[#allocation3 + $0x3d] sm:$0xff]
      %v6191 = vld [vmem:[#allocation3 + $0x45] sm:$0xff]
      %v6192 = vld [vmem:[#allocation3 + $0x4d] sm:$0xff]
      %v6193 = vld [vmem:[#allocation3 + $0x55] sm:$0xff]
      %v6194 = vld [vmem:[#allocation3 + $0x5d] sm:$0xff]
      %v6195 = vld [vmem:[#allocation3 + $0x65] sm:$0xff]
      %v6196 = vld [vmem:[#allocation3 + $0x6d] sm:$0xff]
      %v6197 = vld [vmem:[#allocation3 + $0x75] sm:$0xff]
      %v6198 = vld [vmem:[#allocation3 + $0x7d] sm:$0xff]
      %v6199 = vld [vmem:[#allocation3 + $0x85] sm:$0xff]
      %v6200 = vld [vmem:[#allocation3 + $0x8d] sm:$0xff]
      %v6201 = vld [vmem:[#allocation3 + $0x95] sm:$0xff]
      %v6202 = vld [vmem:[#allocation3 + $0x9d] sm:$0xff]
      %v6203 = vld [vmem:[#allocation3 + $0xa5] sm:$0xff]
      %v6204 = vld [vmem:[#allocation3 + $0xad] sm:$0xff]
      %v6205 = vld [vmem:[#allocation3 + $0xb5] sm:$0xff]
      %v6206 = vld [vmem:[#allocation3 + $0xbd] sm:$0xff]
      %v6207 = vld [vmem:[#allocation3 + $0xc5] sm:$0xff]
      %v6208 = vld [vmem:[#allocation3 + $0xcd] sm:$0xff]
      %v6209 = vld [vmem:[#allocation3 + $0xd5] sm:$0xff]
      %v6210 = vld [vmem:[#allocation3 + $0xdd] sm:$0xff]
      %v6211 = vld [vmem:[#allocation3 + $0xe5] sm:$0xff]
      %v6212 = vld [vmem:[#allocation3 + $0xed] sm:$0xff]
      %v6213 = vld [vmem:[#allocation3 + $0xf5] sm:$0xff]
      %v6214 = vld [vmem:[#allocation3 + $0xfd] sm:$0xff]
      %v6215 = vld [vmem:[#allocation3 + $0x105] sm:$0xff]
      %v6216 = vld [vmem:[#allocation3 + $0x10d] sm:$0xff]
      %v6217 = vld [vmem:[#allocation3 + $0x115] sm:$0xff]
      %v6218 = vld [vmem:[#allocation3 + $0x11d] sm:$0xff]
      %v6219 = vld [vmem:[#allocation3 + $0x125] sm:$0xff]
      %v6220 = vld [vmem:[#allocation3 + $0x12d] sm:$0xff]
      %v6221 = vld [vmem:[#allocation3 + $0x135] sm:$0xff]
      %v6222 = vld [vmem:[#allocation3 + $0x13d] sm:$0xff]
      %v6223 = vld [vmem:[#allocation3 + $0x145] sm:$0xff]
      %v6224 = vpack.c.bf16 %v6184, %v6183
      %v6225 = vpack.c.bf16 %v6186, %v6185
      %v6226 = vpack.c.bf16 %v6188, %v6187
      %v6227 = vpack.c.bf16 %v6190, %v6189
      %v6228 = vpack.c.bf16 %v6192, %v6191
      %v6229 = vpack.c.bf16 %v6194, %v6193
      %v6230 = vpack.c.bf16 %v6196, %v6195
      %v6231 = vpack.c.bf16 %v6198, %v6197
      %v6232 = vpack.c.bf16 %v6200, %v6199
      %v6233 = vpack.c.bf16 %v6202, %v6201
      %v6234 = vpack.c.bf16 %v6204, %v6203
      %v6235 = vpack.c.bf16 %v6206, %v6205
      %v6236 = vpack.c.bf16 %v6208, %v6207
      %v6237 = vpack.c.bf16 %v6210, %v6209
      %v6238 = vpack.c.bf16 %v6212, %v6211
      %v6239 = vpack.c.bf16 %v6214, %v6213
      %v6240 = vpack.c.bf16 %v6216, %v6215
      %v6241 = vpack.c.bf16 %v6218, %v6217
      %v6242 = vpack.c.bf16 %v6220, %v6219
      %v6243 = vpack.c.bf16 %v6222, %v6221
      %v6244 = vpack.c.bf16 %v6223, %v6223
      %v6245 = vld [vmem:[%s11] sm:$0xf]
      %v6246 = vld [vmem:[%s11 + $0x4] sm:$0xf]
      %v6247 = vld [vmem:[%s11 + $0x8] sm:$0xf]
      %v6248 = vld [vmem:[%s11 + $0xc] sm:$0xf]
      %v6249 = vld [vmem:[%s11 + $0x10] sm:$0xf]
      %v6250 = vld [vmem:[%s11 + $0x14] sm:$0xf]
      %v6251 = vld [vmem:[%s11 + $0x18] sm:$0xf]
      %v6252 = vld [vmem:[%s11 + $0x1c] sm:$0xf]
      %v6253 = vld [vmem:[#allocation3 + $0x6] sm:$0xff]
      %v6254 = vld [vmem:[#allocation3 + $0xe] sm:$0xff]
      %v6255 = vld [vmem:[#allocation3 + $0x16] sm:$0xff]
      %v6256 = vld [vmem:[#allocation3 + $0x1e] sm:$0xff]
      %v6257 = vld [vmem:[#allocation3 + $0x26] sm:$0xff]
      %v6258 = vld [vmem:[#allocation3 + $0x2e] sm:$0xff]
      %v6259 = vld [vmem:[#allocation3 + $0x36] sm:$0xff]
      %v6260 = vld [vmem:[#allocation3 + $0x3e] sm:$0xff]
      %v6261 = vld [vmem:[#allocation3 + $0x46] sm:$0xff]
      %v6262 = vld [vmem:[#allocation3 + $0x4e] sm:$0xff]
      %v6263 = vld [vmem:[#allocation3 + $0x56] sm:$0xff]
      %v6264 = vld [vmem:[#allocation3 + $0x5e] sm:$0xff]
      %v6265 = vld [vmem:[#allocation3 + $0x66] sm:$0xff]
      %v6266 = vld [vmem:[#allocation3 + $0x6e] sm:$0xff]
      %v6267 = vld [vmem:[#allocation3 + $0x76] sm:$0xff]
      %v6268 = vld [vmem:[#allocation3 + $0x7e] sm:$0xff]
      %v6269 = vld [vmem:[#allocation3 + $0x86] sm:$0xff]
      %v6270 = vld [vmem:[#allocation3 + $0x8e] sm:$0xff]
      %v6271 = vld [vmem:[#allocation3 + $0x96] sm:$0xff]
      %v6272 = vld [vmem:[#allocation3 + $0x9e] sm:$0xff]
      %v6273 = vld [vmem:[#allocation3 + $0xa6] sm:$0xff]
      %v6274 = vld [vmem:[#allocation3 + $0xae] sm:$0xff]
      %v6275 = vld [vmem:[#allocation3 + $0xb6] sm:$0xff]
      %v6276 = vld [vmem:[#allocation3 + $0xbe] sm:$0xff]
      %v6277 = vld [vmem:[#allocation3 + $0xc6] sm:$0xff]
      %v6278 = vld [vmem:[#allocation3 + $0xce] sm:$0xff]
      %v6279 = vld [vmem:[#allocation3 + $0xd6] sm:$0xff]
      %v6280 = vld [vmem:[#allocation3 + $0xde] sm:$0xff]
      %v6281 = vld [vmem:[#allocation3 + $0xe6] sm:$0xff]
      %v6282 = vld [vmem:[#allocation3 + $0xee] sm:$0xff]
      %v6283 = vld [vmem:[#allocation3 + $0xf6] sm:$0xff]
      %v6284 = vld [vmem:[#allocation3 + $0xfe] sm:$0xff]
      %v6285 = vld [vmem:[#allocation3 + $0x106] sm:$0xff]
      %v6286 = vld [vmem:[#allocation3 + $0x10e] sm:$0xff]
      %v6287 = vld [vmem:[#allocation3 + $0x116] sm:$0xff]
      %v6288 = vld [vmem:[#allocation3 + $0x11e] sm:$0xff]
      %v6289 = vld [vmem:[#allocation3 + $0x126] sm:$0xff]
      %v6290 = vld [vmem:[#allocation3 + $0x12e] sm:$0xff]
      %v6291 = vld [vmem:[#allocation3 + $0x136] sm:$0xff]
      %v6292 = vld [vmem:[#allocation3 + $0x13e] sm:$0xff]
      %v6293 = vld [vmem:[#allocation3 + $0x146] sm:$0xff]
      %v6294 = vpack.c.bf16 %v6254, %v6253
      %v6295 = vpack.c.bf16 %v6256, %v6255
      %v6296 = vpack.c.bf16 %v6258, %v6257
      %v6297 = vpack.c.bf16 %v6260, %v6259
      %v6298 = vpack.c.bf16 %v6262, %v6261
      %v6299 = vpack.c.bf16 %v6264, %v6263
      %v6300 = vpack.c.bf16 %v6266, %v6265
      %v6301 = vpack.c.bf16 %v6268, %v6267
      %v6302 = vpack.c.bf16 %v6270, %v6269
      %v6303 = vpack.c.bf16 %v6272, %v6271
      %v6304 = vpack.c.bf16 %v6274, %v6273
      %v6305 = vpack.c.bf16 %v6276, %v6275
      %v6306 = vpack.c.bf16 %v6278, %v6277
      %v6307 = vpack.c.bf16 %v6280, %v6279
      %v6308 = vpack.c.bf16 %v6282, %v6281
      %v6309 = vpack.c.bf16 %v6284, %v6283
      %v6310 = vpack.c.bf16 %v6286, %v6285
      %v6311 = vpack.c.bf16 %v6288, %v6287
      %v6312 = vpack.c.bf16 %v6290, %v6289
      %v6313 = vpack.c.bf16 %v6292, %v6291
      %v6314 = vpack.c.bf16 %v6293, %v6293
      %s6315 = scalar_lea.vmem %s11, 32
      %v6316 = vld [vmem:[%s6315] sm:$0xf]
      %v6317 = vld [vmem:[%s6315 + $0x4] sm:$0xf]
      %v6318 = vld [vmem:[%s6315 + $0x8] sm:$0xf]
      %v6319 = vld [vmem:[%s6315 + $0xc] sm:$0xf]
      %v6320 = vld [vmem:[%s6315 + $0x10] sm:$0xf]
      %v6321 = vld [vmem:[%s6315 + $0x14] sm:$0xf]
      %v6322 = vld [vmem:[%s6315 + $0x18] sm:$0xf]
      %v6323 = vld [vmem:[%s6315 + $0x1c] sm:$0xf]
      %v6332 = vunpack.c.l.b16 %v6316
      %v6333 = vunpack.c.l.b16 %v6317
      %v6334 = vunpack.c.l.b16 %v6318
      %v6335 = vunpack.c.l.b16 %v6319
      %v6336 = vunpack.c.l.b16 %v6320
      %v6337 = vunpack.c.l.b16 %v6321
      %v6338 = vunpack.c.l.b16 %v6322
      %v6339 = vunpack.c.l.b16 %v6323
      %v6340 = vpack.c.b16 %v6333, %v6332
      %v6341 = vpack.c.b16 %v6335, %v6334
      %v6342 = vpack.c.b16 %v6337, %v6336
      %v6343 = vpack.c.b16 %v6339, %v6338
      %v6349 = vsel %vm1234, %v6294, 0
      %v6352 = vsel %vm1234, %v6295, 0
      %v6355 = vsel %vm1234, %v6296, 0
      %v6358 = vsel %vm1234, %v6297, 0
      %v6361 = vsel %vm1234, %v6298, 0
      %v6364 = vsel %vm1234, %v6299, 0
      %v6367 = vsel %vm1234, %v6300, 0
      %v6370 = vsel %vm1234, %v6301, 0
      %v6373 = vsel %vm1234, %v6302, 0
      %v6376 = vsel %vm1234, %v6303, 0
      %v6379 = vsel %vm1234, %v6304, 0
      %v6382 = vsel %vm1234, %v6305, 0
      %v6385 = vsel %vm1234, %v6306, 0
      %v6388 = vsel %vm1234, %v6307, 0
      %v6391 = vsel %vm1234, %v6308, 0
      %v6394 = vsel %vm1234, %v6309, 0
      %v6397 = vsel %vm1234, %v6310, 0
      %v6400 = vsel %vm1234, %v6311, 0
      %v6403 = vsel %vm1234, %v6312, 0
      %v6406 = vsel %vm1234, %v6313, 0
      %v6409 = vsel %vm1234, %v6314, 0
      %6411 = vmatprep.subr.bf16.mxu0 0
      %6412 = vmatpush1.bf16.msra.mxu0 %v6340
      %6413 = vmatprep.subr.bf16.mxu0 0
      %6414 = vmatpush1.bf16.msra.mxu0 %v6341
      %6415 = vmatprep.subr.bf16.mxu0 0
      %6416 = vmatpush1.bf16.msra.mxu0 %v6342
      %6417 = vmatprep.subr.bf16.mxu0 0
      %6418 = vmatpush1.bf16.msra.mxu0 %v6343
      %6419 = vmatprep.subr.bf16.mxu0 0
      %6420 = vmatpush1.bf16.msra.mxu0 0
      %6421 = vmatprep.subr.bf16.mxu0 0
      %6422 = vmatpush1.bf16.msra.mxu0 0
      %6423 = vmatprep.subr.bf16.mxu0 0
      %6424 = vmatpush1.bf16.msra.mxu0 0
      %6425 = vmatprep.subr.bf16.mxu0 0
      %6426 = vmatpush1.bf16.msra.mxu0 0
      %6427 = vmatprep.subr.bf16.mxu0 0
      %6428 = vmatpush1.bf16.msra.mxu0 0
      %6429 = vmatprep.subr.bf16.mxu0 0
      %6430 = vmatpush1.bf16.msra.mxu0 0
      %6431 = vmatprep.subr.bf16.mxu0 0
      %6432 = vmatpush1.bf16.msra.mxu0 0
      %6433 = vmatprep.subr.bf16.mxu0 0
      %6434 = vmatpush1.bf16.msra.mxu0 0
      %6435 = vmatprep.subr.bf16.mxu0 0
      %6436 = vmatpush1.bf16.msra.mxu0 0
      %6437 = vmatprep.subr.bf16.mxu0 0
      %6438 = vmatpush1.bf16.msra.mxu0 0
      %6439 = vmatprep.subr.bf16.mxu0 0
      %6440 = vmatpush1.bf16.msra.mxu0 0
      %6441 = vmatprep.subr.bf16.mxu0 0
      %6442 = vmatpush1.bf16.msra.mxu0 0
      %6443 = vmatprep.mubr.bf16.mxu0 0
      %6444 = vmatmul.mubr.bf16.gmra.mrb[0].mxu0 %v6349
      %v6445 = vpop.f32.mrb[0].mxu0
      %v6446 = vadd.f32 0.0, %v6445
      %v6447 = vpop.f32.mrb[0].mxu0
      %v6448 = vpop.f32.mrb[0].mxu0
      %v6449 = vadd.f32 0.0, %v6448
      %v6450 = vpop.f32.mrb[0].mxu0
      %6451 = vmatprep.mubr.bf16.mxu0 0
      %6452 = vmatmul.mubr.bf16.gmra.mrb[0].mxu0 %v6352
      %v6453 = vpop.f32.mrb[0].mxu0
      %v6454 = vadd.f32 0.0, %v6453
      %v6455 = vpop.f32.mrb[0].mxu0
      %v6456 = vpop.f32.mrb[0].mxu0
      %v6457 = vadd.f32 0.0, %v6456
      %v6458 = vpop.f32.mrb[0].mxu0
      %6459 = vmatprep.mubr.bf16.mxu0 0
      %6460 = vmatmul.mubr.bf16.gmra.mrb[0].mxu0 %v6355
      %v6461 = vpop.f32.mrb[0].mxu0
      %v6462 = vadd.f32 0.0, %v6461
      %v6463 = vpop.f32.mrb[0].mxu0
      %v6464 = vpop.f32.mrb[0].mxu0
      %v6465 = vadd.f32 0.0, %v6464
      %v6466 = vpop.f32.mrb[0].mxu0
      %6467 = vmatprep.mubr.bf16.mxu0 0
      %6468 = vmatmul.mubr.bf16.gmra.mrb[0].mxu0 %v6358
      %v6469 = vpop.f32.mrb[0].mxu0
      %v6470 = vadd.f32 0.0, %v6469
      %v6471 = vpop.f32.mrb[0].mxu0
      %v6472 = vpop.f32.mrb[0].mxu0
      %v6473 = vadd.f32 0.0, %v6472
      %v6474 = vpop.f32.mrb[0].mxu0
      %6475 = vmatprep.mubr.bf16.mxu0 0
      %6476 = vmatmul.mubr.bf16.gmra.mrb[0].mxu0 %v6361
      %v6477 = vpop.f32.mrb[0].mxu0
      %v6478 = vadd.f32 0.0, %v6477
      %v6479 = vpop.f32.mrb[0].mxu0
      %v6480 = vpop.f32.mrb[0].mxu0
      %v6481 = vadd.f32 0.0, %v6480
      %v6482 = vpop.f32.mrb[0].mxu0
      %6483 = vmatprep.mubr.bf16.mxu0 0
      %6484 = vmatmul.mubr.bf16.gmra.mrb[0].mxu0 %v6364
      %v6485 = vpop.f32.mrb[0].mxu0
      %v6486 = vadd.f32 0.0, %v6485
      %v6487 = vpop.f32.mrb[0].mxu0
      %v6488 = vpop.f32.mrb[0].mxu0
      %v6489 = vadd.f32 0.0, %v6488
      %v6490 = vpop.f32.mrb[0].mxu0
      %6491 = vmatprep.mubr.bf16.mxu0 0
      %6492 = vmatmul.mubr.bf16.gmra.mrb[0].mxu0 %v6367
      %v6493 = vpop.f32.mrb[0].mxu0
      %v6494 = vadd.f32 0.0, %v6493
      %v6495 = vpop.f32.mrb[0].mxu0
      %v6496 = vpop.f32.mrb[0].mxu0
      %v6497 = vadd.f32 0.0, %v6496
      %v6498 = vpop.f32.mrb[0].mxu0
      %6499 = vmatprep.mubr.bf16.mxu0 0
      %6500 = vmatmul.mubr.bf16.gmra.mrb[0].mxu0 %v6370
      %v6501 = vpop.f32.mrb[0].mxu0
      %v6502 = vadd.f32 0.0, %v6501
      %v6503 = vpop.f32.mrb[0].mxu0
      %v6504 = vpop.f32.mrb[0].mxu0
      %v6505 = vadd.f32 0.0, %v6504
      %v6506 = vpop.f32.mrb[0].mxu0
      %6507 = vmatprep.mubr.bf16.mxu0 0
      %6508 = vmatmul.mubr.bf16.gmra.mrb[0].mxu0 %v6373
      %v6509 = vpop.f32.mrb[0].mxu0
      %v6510 = vadd.f32 0.0, %v6509
      %v6511 = vpop.f32.mrb[0].mxu0
      %v6512 = vpop.f32.mrb[0].mxu0
      %v6513 = vadd.f32 0.0, %v6512
      %v6514 = vpop.f32.mrb[0].mxu0
      %6515 = vmatprep.mubr.bf16.mxu0 0
      %6516 = vmatmul.mubr.bf16.gmra.mrb[0].mxu0 %v6376
      %v6517 = vpop.f32.mrb[0].mxu0
      %v6518 = vadd.f32 0.0, %v6517
      %v6519 = vpop.f32.mrb[0].mxu0
      %v6520 = vpop.f32.mrb[0].mxu0
      %v6521 = vadd.f32 0.0, %v6520
      %v6522 = vpop.f32.mrb[0].mxu0
      %6523 = vmatprep.mubr.bf16.mxu0 0
      %6524 = vmatmul.mubr.bf16.gmra.mrb[0].mxu0 %v6379
      %v6525 = vpop.f32.mrb[0].mxu0
      %v6526 = vadd.f32 0.0, %v6525
      %v6527 = vpop.f32.mrb[0].mxu0
      %v6528 = vpop.f32.mrb[0].mxu0
      %v6529 = vadd.f32 0.0, %v6528
      %v6530 = vpop.f32.mrb[0].mxu0
      %6531 = vmatprep.mubr.bf16.mxu0 0
      %6532 = vmatmul.mubr.bf16.gmra.mrb[0].mxu0 %v6382
      %v6533 = vpop.f32.mrb[0].mxu0
      %v6534 = vadd.f32 0.0, %v6533
      %v6535 = vpop.f32.mrb[0].mxu0
      %v6536 = vpop.f32.mrb[0].mxu0
      %v6537 = vadd.f32 0.0, %v6536
      %v6538 = vpop.f32.mrb[0].mxu0
      %6539 = vmatprep.mubr.bf16.mxu0 0
      %6540 = vmatmul.mubr.bf16.gmra.mrb[0].mxu0 %v6385
      %v6541 = vpop.f32.mrb[0].mxu0
      %v6542 = vadd.f32 0.0, %v6541
      %v6543 = vpop.f32.mrb[0].mxu0
      %v6544 = vpop.f32.mrb[0].mxu0
      %v6545 = vadd.f32 0.0, %v6544
      %v6546 = vpop.f32.mrb[0].mxu0
      %6547 = vmatprep.mubr.bf16.mxu0 0
      %6548 = vmatmul.mubr.bf16.gmra.mrb[0].mxu0 %v6388
      %v6549 = vpop.f32.mrb[0].mxu0
      %v6550 = vadd.f32 0.0, %v6549
      %v6551 = vpop.f32.mrb[0].mxu0
      %v6552 = vpop.f32.mrb[0].mxu0
      %v6553 = vadd.f32 0.0, %v6552
      %v6554 = vpop.f32.mrb[0].mxu0
      %6555 = vmatprep.mubr.bf16.mxu0 0
      %6556 = vmatmul.mubr.bf16.gmra.mrb[0].mxu0 %v6391
      %v6557 = vpop.f32.mrb[0].mxu0
      %v6558 = vadd.f32 0.0, %v6557
      %v6559 = vpop.f32.mrb[0].mxu0
      %v6560 = vpop.f32.mrb[0].mxu0
      %v6561 = vadd.f32 0.0, %v6560
      %v6562 = vpop.f32.mrb[0].mxu0
      %6563 = vmatprep.mubr.bf16.mxu0 0
      %6564 = vmatmul.mubr.bf16.gmra.mrb[0].mxu0 %v6394
      %v6565 = vpop.f32.mrb[0].mxu0
      %v6566 = vadd.f32 0.0, %v6565
      %v6567 = vpop.f32.mrb[0].mxu0
      %v6568 = vpop.f32.mrb[0].mxu0
      %v6569 = vadd.f32 0.0, %v6568
      %v6570 = vpop.f32.mrb[0].mxu0
      %6571 = vmatprep.mubr.bf16.mxu0 0
      %6572 = vmatmul.mubr.bf16.gmra.mrb[0].mxu0 %v6397
      %v6573 = vpop.f32.mrb[0].mxu0
      %v6574 = vadd.f32 0.0, %v6573
      %v6575 = vpop.f32.mrb[0].mxu0
      %v6576 = vpop.f32.mrb[0].mxu0
      %v6577 = vadd.f32 0.0, %v6576
      %v6578 = vpop.f32.mrb[0].mxu0
      %6579 = vmatprep.mubr.bf16.mxu0 0
      %6580 = vmatmul.mubr.bf16.gmra.mrb[0].mxu0 %v6400
      %v6581 = vpop.f32.mrb[0].mxu0
      %v6582 = vadd.f32 0.0, %v6581
      %v6583 = vpop.f32.mrb[0].mxu0
      %v6584 = vpop.f32.mrb[0].mxu0
      %v6585 = vadd.f32 0.0, %v6584
      %v6586 = vpop.f32.mrb[0].mxu0
      %6587 = vmatprep.mubr.bf16.mxu0 0
      %6588 = vmatmul.mubr.bf16.gmra.mrb[0].mxu0 %v6403
      %v6589 = vpop.f32.mrb[0].mxu0
      %v6590 = vadd.f32 0.0, %v6589
      %v6591 = vpop.f32.mrb[0].mxu0
      %v6592 = vpop.f32.mrb[0].mxu0
      %v6593 = vadd.f32 0.0, %v6592
      %v6594 = vpop.f32.mrb[0].mxu0
      %6595 = vmatprep.mubr.bf16.mxu0 0
      %6596 = vmatmul.mubr.bf16.gmra.mrb[0].mxu0 %v6406
      %v6597 = vpop.f32.mrb[0].mxu0
      %v6598 = vadd.f32 0.0, %v6597
      %v6599 = vpop.f32.mrb[0].mxu0
      %v6600 = vpop.f32.mrb[0].mxu0
      %v6601 = vadd.f32 0.0, %v6600
      %v6602 = vpop.f32.mrb[0].mxu0
      %6603 = vmatprep.mubr.bf16.mxu0 0
      %6604 = vmatmul.mubr.bf16.gmra.mrb[0].mxu0 %v6409
      %v6605 = vpop.f32.mrb[0].mxu0
      %v6606 = vadd.f32 0.0, %v6605
      %v6607 = vpop.f32.mrb[0].mxu0
      %v6608 = vpop.f32.mrb[0].mxu0
      %v6609 = vpop.f32.mrb[0].mxu0
      %6610 = vdwg.mxu0
      %v6619 = vunpack.c.l.b16 %v6245
      %v6620 = vunpack.c.l.b16 %v6246
      %v6621 = vunpack.c.l.b16 %v6247
      %v6622 = vunpack.c.l.b16 %v6248
      %v6623 = vunpack.c.l.b16 %v6249
      %v6624 = vunpack.c.l.b16 %v6250
      %v6625 = vunpack.c.l.b16 %v6251
      %v6626 = vunpack.c.l.b16 %v6252
      %v6627 = vpack.c.b16 %v6620, %v6619
      %v6628 = vpack.c.b16 %v6622, %v6621
      %v6629 = vpack.c.b16 %v6624, %v6623
      %v6630 = vpack.c.b16 %v6626, %v6625
      %v6636 = vsel %vm1234, %v6224, 0
      %v6639 = vsel %vm1234, %v6225, 0
      %v6642 = vsel %vm1234, %v6226, 0
      %v6645 = vsel %vm1234, %v6227, 0
      %v6648 = vsel %vm1234, %v6228, 0
      %v6651 = vsel %vm1234, %v6229, 0
      %v6654 = vsel %vm1234, %v6230, 0
      %v6657 = vsel %vm1234, %v6231, 0
      %v6660 = vsel %vm1234, %v6232, 0
      %v6663 = vsel %vm1234, %v6233, 0
      %v6666 = vsel %vm1234, %v6234, 0
      %v6669 = vsel %vm1234, %v6235, 0
      %v6672 = vsel %vm1234, %v6236, 0
      %v6675 = vsel %vm1234, %v6237, 0
      %v6678 = vsel %vm1234, %v6238, 0
      %v6681 = vsel %vm1234, %v6239, 0
      %v6684 = vsel %vm1234, %v6240, 0
      %v6687 = vsel %vm1234, %v6241, 0
      %v6690 = vsel %vm1234, %v6242, 0
      %v6693 = vsel %vm1234, %v6243, 0
      %v6696 = vsel %vm1234, %v6244, 0
      %6698 = vmatprep.subr.bf16.mxu0 0
      %6699 = vmatpush1.bf16.msra.mxu0 %v6627
      %6700 = vmatprep.subr.bf16.mxu0 0
      %6701 = vmatpush1.bf16.msra.mxu0 %v6628
      %6702 = vmatprep.subr.bf16.mxu0 0
      %6703 = vmatpush1.bf16.msra.mxu0 %v6629
      %6704 = vmatprep.subr.bf16.mxu0 0
      %6705 = vmatpush1.bf16.msra.mxu0 %v6630
      %6706 = vmatprep.subr.bf16.mxu0 0
      %6707 = vmatpush1.bf16.msra.mxu0 0
      %6708 = vmatprep.subr.bf16.mxu0 0
      %6709 = vmatpush1.bf16.msra.mxu0 0
      %6710 = vmatprep.subr.bf16.mxu0 0
      %6711 = vmatpush1.bf16.msra.mxu0 0
      %6712 = vmatprep.subr.bf16.mxu0 0
      %6713 = vmatpush1.bf16.msra.mxu0 0
      %6714 = vmatprep.subr.bf16.mxu0 0
      %6715 = vmatpush1.bf16.msra.mxu0 0
      %6716 = vmatprep.subr.bf16.mxu0 0
      %6717 = vmatpush1.bf16.msra.mxu0 0
      %6718 = vmatprep.subr.bf16.mxu0 0
      %6719 = vmatpush1.bf16.msra.mxu0 0
      %6720 = vmatprep.subr.bf16.mxu0 0
      %6721 = vmatpush1.bf16.msra.mxu0 0
      %6722 = vmatprep.subr.bf16.mxu0 0
      %6723 = vmatpush1.bf16.msra.mxu0 0
      %6724 = vmatprep.subr.bf16.mxu0 0
      %6725 = vmatpush1.bf16.msra.mxu0 0
      %6726 = vmatprep.subr.bf16.mxu0 0
      %6727 = vmatpush1.bf16.msra.mxu0 0
      %6728 = vmatprep.subr.bf16.mxu0 0
      %6729 = vmatpush1.bf16.msra.mxu0 0
      %6730 = vmatprep.mubr.bf16.mxu0 0
      %6731 = vmatmul.mubr.bf16.gmra.mrb[0].mxu0 %v6636
      %v6732 = vpop.f32.mrb[0].mxu0
      %v6733 = vadd.f32 %v6446, %v6732
      %v6734 = vpop.f32.mrb[0].mxu0
      %v6735 = vpop.f32.mrb[0].mxu0
      %v6736 = vadd.f32 %v6449, %v6735
      %v6737 = vpop.f32.mrb[0].mxu0
      %6738 = vmatprep.mubr.bf16.mxu0 0
      %6739 = vmatmul.mubr.bf16.gmra.mrb[0].mxu0 %v6639
      %v6740 = vpop.f32.mrb[0].mxu0
      %v6741 = vadd.f32 %v6454, %v6740
      %v6742 = vpop.f32.mrb[0].mxu0
      %v6743 = vpop.f32.mrb[0].mxu0
      %v6744 = vadd.f32 %v6457, %v6743
      %v6745 = vpop.f32.mrb[0].mxu0
      %6746 = vmatprep.mubr.bf16.mxu0 0
      %6747 = vmatmul.mubr.bf16.gmra.mrb[0].mxu0 %v6642
      %v6748 = vpop.f32.mrb[0].mxu0
      %v6749 = vadd.f32 %v6462, %v6748
      %v6750 = vpop.f32.mrb[0].mxu0
      %v6751 = vpop.f32.mrb[0].mxu0
      %v6752 = vadd.f32 %v6465, %v6751
      %v6753 = vpop.f32.mrb[0].mxu0
      %6754 = vmatprep.mubr.bf16.mxu0 0
      %6755 = vmatmul.mubr.bf16.gmra.mrb[0].mxu0 %v6645
      %v6756 = vpop.f32.mrb[0].mxu0
      %v6757 = vadd.f32 %v6470, %v6756
      %v6758 = vpop.f32.mrb[0].mxu0
      %v6759 = vpop.f32.mrb[0].mxu0
      %v6760 = vadd.f32 %v6473, %v6759
      %v6761 = vpop.f32.mrb[0].mxu0
      %6762 = vmatprep.mubr.bf16.mxu0 0
      %6763 = vmatmul.mubr.bf16.gmra.mrb[0].mxu0 %v6648
      %v6764 = vpop.f32.mrb[0].mxu0
      %v6765 = vadd.f32 %v6478, %v6764
      %v6766 = vpop.f32.mrb[0].mxu0
      %v6767 = vpop.f32.mrb[0].mxu0
      %v6768 = vadd.f32 %v6481, %v6767
      %v6769 = vpop.f32.mrb[0].mxu0
      %6770 = vmatprep.mubr.bf16.mxu0 0
      %6771 = vmatmul.mubr.bf16.gmra.mrb[0].mxu0 %v6651
      %v6772 = vpop.f32.mrb[0].mxu0
      %v6773 = vadd.f32 %v6486, %v6772
      %v6774 = vpop.f32.mrb[0].mxu0
      %v6775 = vpop.f32.mrb[0].mxu0
      %v6776 = vadd.f32 %v6489, %v6775
      %v6777 = vpop.f32.mrb[0].mxu0
      %6778 = vmatprep.mubr.bf16.mxu0 0
      %6779 = vmatmul.mubr.bf16.gmra.mrb[0].mxu0 %v6654
      %v6780 = vpop.f32.mrb[0].mxu0
      %v6781 = vadd.f32 %v6494, %v6780
      %v6782 = vpop.f32.mrb[0].mxu0
      %v6783 = vpop.f32.mrb[0].mxu0
      %v6784 = vadd.f32 %v6497, %v6783
      %v6785 = vpop.f32.mrb[0].mxu0
      %6786 = vmatprep.mubr.bf16.mxu0 0
      %6787 = vmatmul.mubr.bf16.gmra.mrb[0].mxu0 %v6657
      %v6788 = vpop.f32.mrb[0].mxu0
      %v6789 = vadd.f32 %v6502, %v6788
      %v6790 = vpop.f32.mrb[0].mxu0
      %v6791 = vpop.f32.mrb[0].mxu0
      %v6792 = vadd.f32 %v6505, %v6791
      %v6793 = vpop.f32.mrb[0].mxu0
      %6794 = vmatprep.mubr.bf16.mxu0 0
      %6795 = vmatmul.mubr.bf16.gmra.mrb[0].mxu0 %v6660
      %v6796 = vpop.f32.mrb[0].mxu0
      %v6797 = vadd.f32 %v6510, %v6796
      %v6798 = vpop.f32.mrb[0].mxu0
      %v6799 = vpop.f32.mrb[0].mxu0
      %v6800 = vadd.f32 %v6513, %v6799
      %v6801 = vpop.f32.mrb[0].mxu0
      %6802 = vmatprep.mubr.bf16.mxu0 0
      %6803 = vmatmul.mubr.bf16.gmra.mrb[0].mxu0 %v6663
      %v6804 = vpop.f32.mrb[0].mxu0
      %v6805 = vadd.f32 %v6518, %v6804
      %v6806 = vpop.f32.mrb[0].mxu0
      %v6807 = vpop.f32.mrb[0].mxu0
      %v6808 = vadd.f32 %v6521, %v6807
      %v6809 = vpop.f32.mrb[0].mxu0
      %6810 = vmatprep.mubr.bf16.mxu0 0
      %6811 = vmatmul.mubr.bf16.gmra.mrb[0].mxu0 %v6666
      %v6812 = vpop.f32.mrb[0].mxu0
      %v6813 = vadd.f32 %v6526, %v6812
      %v6814 = vpop.f32.mrb[0].mxu0
      %v6815 = vpop.f32.mrb[0].mxu0
      %v6816 = vadd.f32 %v6529, %v6815
      %v6817 = vpop.f32.mrb[0].mxu0
      %6818 = vmatprep.mubr.bf16.mxu0 0
      %6819 = vmatmul.mubr.bf16.gmra.mrb[0].mxu0 %v6669
      %v6820 = vpop.f32.mrb[0].mxu0
      %v6821 = vadd.f32 %v6534, %v6820
      %v6822 = vpop.f32.mrb[0].mxu0
      %v6823 = vpop.f32.mrb[0].mxu0
      %v6824 = vadd.f32 %v6537, %v6823
      %v6825 = vpop.f32.mrb[0].mxu0
      %6826 = vmatprep.mubr.bf16.mxu0 0
      %6827 = vmatmul.mubr.bf16.gmra.mrb[0].mxu0 %v6672
      %v6828 = vpop.f32.mrb[0].mxu0
      %v6829 = vadd.f32 %v6542, %v6828
      %v6830 = vpop.f32.mrb[0].mxu0
      %v6831 = vpop.f32.mrb[0].mxu0
      %v6832 = vadd.f32 %v6545, %v6831
      %v6833 = vpop.f32.mrb[0].mxu0
      %6834 = vmatprep.mubr.bf16.mxu0 0
      %6835 = vmatmul.mubr.bf16.gmra.mrb[0].mxu0 %v6675
      %v6836 = vpop.f32.mrb[0].mxu0
      %v6837 = vadd.f32 %v6550, %v6836
      %v6838 = vpop.f32.mrb[0].mxu0
      %v6839 = vpop.f32.mrb[0].mxu0
      %v6840 = vadd.f32 %v6553, %v6839
      %v6841 = vpop.f32.mrb[0].mxu0
      %6842 = vmatprep.mubr.bf16.mxu0 0
      %6843 = vmatmul.mubr.bf16.gmra.mrb[0].mxu0 %v6678
      %v6844 = vpop.f32.mrb[0].mxu0
      %v6845 = vadd.f32 %v6558, %v6844
      %v6846 = vpop.f32.mrb[0].mxu0
      %v6847 = vpop.f32.mrb[0].mxu0
      %v6848 = vadd.f32 %v6561, %v6847
      %v6849 = vpop.f32.mrb[0].mxu0
      %6850 = vmatprep.mubr.bf16.mxu0 0
      %6851 = vmatmul.mubr.bf16.gmra.mrb[0].mxu0 %v6681
      %v6852 = vpop.f32.mrb[0].mxu0
      %v6853 = vadd.f32 %v6566, %v6852
      %v6854 = vpop.f32.mrb[0].mxu0
      %v6855 = vpop.f32.mrb[0].mxu0
      %v6856 = vadd.f32 %v6569, %v6855
      %v6857 = vpop.f32.mrb[0].mxu0
      %6858 = vmatprep.mubr.bf16.mxu0 0
      %6859 = vmatmul.mubr.bf16.gmra.mrb[0].mxu0 %v6684
      %v6860 = vpop.f32.mrb[0].mxu0
      %v6861 = vadd.f32 %v6574, %v6860
      %v6862 = vpop.f32.mrb[0].mxu0
      %v6863 = vpop.f32.mrb[0].mxu0
      %v6864 = vadd.f32 %v6577, %v6863
      %v6865 = vpop.f32.mrb[0].mxu0
      %6866 = vmatprep.mubr.bf16.mxu0 0
      %6867 = vmatmul.mubr.bf16.gmra.mrb[0].mxu0 %v6687
      %v6868 = vpop.f32.mrb[0].mxu0
      %v6869 = vadd.f32 %v6582, %v6868
      %v6870 = vpop.f32.mrb[0].mxu0
      %v6871 = vpop.f32.mrb[0].mxu0
      %v6872 = vadd.f32 %v6585, %v6871
      %v6873 = vpop.f32.mrb[0].mxu0
      %6874 = vmatprep.mubr.bf16.mxu0 0
      %6875 = vmatmul.mubr.bf16.gmra.mrb[0].mxu0 %v6690
      %v6876 = vpop.f32.mrb[0].mxu0
      %v6877 = vadd.f32 %v6590, %v6876
      %v6878 = vpop.f32.mrb[0].mxu0
      %v6879 = vpop.f32.mrb[0].mxu0
      %v6880 = vadd.f32 %v6593, %v6879
      %v6881 = vpop.f32.mrb[0].mxu0
      %6882 = vmatprep.mubr.bf16.mxu0 0
      %6883 = vmatmul.mubr.bf16.gmra.mrb[0].mxu0 %v6693
      %v6884 = vpop.f32.mrb[0].mxu0
      %v6885 = vadd.f32 %v6598, %v6884
      %v6886 = vpop.f32.mrb[0].mxu0
      %v6887 = vpop.f32.mrb[0].mxu0
      %v6888 = vadd.f32 %v6601, %v6887
      %v6889 = vpop.f32.mrb[0].mxu0
      %6890 = vmatprep.mubr.bf16.mxu0 0
      %6891 = vmatmul.mubr.bf16.gmra.mrb[0].mxu0 %v6696
      %v6892 = vpop.f32.mrb[0].mxu0
      %v6893 = vadd.f32 %v6606, %v6892
      %v6894 = vpop.f32.mrb[0].mxu0
      %v6895 = vpop.f32.mrb[0].mxu0
      %v6896 = vpop.f32.mrb[0].mxu0
      %6897 = vdwg.mxu0
      %v6898 = vld [vmem:[#allocation3 + $0x7] sm:$0xff]
      %v6899 = vld [vmem:[#allocation3 + $0xf] sm:$0xff]
      %v6900 = vld [vmem:[#allocation3 + $0x17] sm:$0xff]
      %v6901 = vld [vmem:[#allocation3 + $0x1f] sm:$0xff]
      %v6902 = vld [vmem:[#allocation3 + $0x27] sm:$0xff]
      %v6903 = vld [vmem:[#allocation3 + $0x2f] sm:$0xff]
      %v6904 = vld [vmem:[#allocation3 + $0x37] sm:$0xff]
      %v6905 = vld [vmem:[#allocation3 + $0x3f] sm:$0xff]
      %v6906 = vld [vmem:[#allocation3 + $0x47] sm:$0xff]
      %v6907 = vld [vmem:[#allocation3 + $0x4f] sm:$0xff]
      %v6908 = vld [vmem:[#allocation3 + $0x57] sm:$0xff]
      %v6909 = vld [vmem:[#allocation3 + $0x5f] sm:$0xff]
      %v6910 = vld [vmem:[#allocation3 + $0x67] sm:$0xff]
      %v6911 = vld [vmem:[#allocation3 + $0x6f] sm:$0xff]
      %v6912 = vld [vmem:[#allocation3 + $0x77] sm:$0xff]
      %v6913 = vld [vmem:[#allocation3 + $0x7f] sm:$0xff]
      %v6914 = vld [vmem:[#allocation3 + $0x87] sm:$0xff]
      %v6915 = vld [vmem:[#allocation3 + $0x8f] sm:$0xff]
      %v6916 = vld [vmem:[#allocation3 + $0x97] sm:$0xff]
      %v6917 = vld [vmem:[#allocation3 + $0x9f] sm:$0xff]
      %v6918 = vld [vmem:[#allocation3 + $0xa7] sm:$0xff]
      %v6919 = vld [vmem:[#allocation3 + $0xaf] sm:$0xff]
      %v6920 = vld [vmem:[#allocation3 + $0xb7] sm:$0xff]
      %v6921 = vld [vmem:[#allocation3 + $0xbf] sm:$0xff]
      %v6922 = vld [vmem:[#allocation3 + $0xc7] sm:$0xff]
      %v6923 = vld [vmem:[#allocation3 + $0xcf] sm:$0xff]
      %v6924 = vld [vmem:[#allocation3 + $0xd7] sm:$0xff]
      %v6925 = vld [vmem:[#allocation3 + $0xdf] sm:$0xff]
      %v6926 = vld [vmem:[#allocation3 + $0xe7] sm:$0xff]
      %v6927 = vld [vmem:[#allocation3 + $0xef] sm:$0xff]
      %v6928 = vld [vmem:[#allocation3 + $0xf7] sm:$0xff]
      %v6929 = vld [vmem:[#allocation3 + $0xff] sm:$0xff]
      %v6930 = vld [vmem:[#allocation3 + $0x107] sm:$0xff]
      %v6931 = vld [vmem:[#allocation3 + $0x10f] sm:$0xff]
      %v6932 = vld [vmem:[#allocation3 + $0x117] sm:$0xff]
      %v6933 = vld [vmem:[#allocation3 + $0x11f] sm:$0xff]
      %v6934 = vld [vmem:[#allocation3 + $0x127] sm:$0xff]
      %v6935 = vld [vmem:[#allocation3 + $0x12f] sm:$0xff]
      %v6936 = vld [vmem:[#allocation3 + $0x137] sm:$0xff]
      %v6937 = vld [vmem:[#allocation3 + $0x13f] sm:$0xff]
      %v6938 = vld [vmem:[#allocation3 + $0x147] sm:$0xff]
      %v6939 = vpack.c.bf16 %v6899, %v6898
      %v6940 = vpack.c.bf16 %v6901, %v6900
      %v6941 = vpack.c.bf16 %v6903, %v6902
      %v6942 = vpack.c.bf16 %v6905, %v6904
      %v6943 = vpack.c.bf16 %v6907, %v6906
      %v6944 = vpack.c.bf16 %v6909, %v6908
      %v6945 = vpack.c.bf16 %v6911, %v6910
      %v6946 = vpack.c.bf16 %v6913, %v6912
      %v6947 = vpack.c.bf16 %v6915, %v6914
      %v6948 = vpack.c.bf16 %v6917, %v6916
      %v6949 = vpack.c.bf16 %v6919, %v6918
      %v6950 = vpack.c.bf16 %v6921, %v6920
      %v6951 = vpack.c.bf16 %v6923, %v6922
      %v6952 = vpack.c.bf16 %v6925, %v6924
      %v6953 = vpack.c.bf16 %v6927, %v6926
      %v6954 = vpack.c.bf16 %v6929, %v6928
      %v6955 = vpack.c.bf16 %v6931, %v6930
      %v6956 = vpack.c.bf16 %v6933, %v6932
      %v6957 = vpack.c.bf16 %v6935, %v6934
      %v6958 = vpack.c.bf16 %v6937, %v6936
      %v6959 = vpack.c.bf16 %v6938, %v6938
      %s6960 = scalar_lea.vmem %s11, 64
      %v6961 = vld [vmem:[%s6960] sm:$0xf]
      %v6962 = vld [vmem:[%s6960 + $0x4] sm:$0xf]
      %v6963 = vld [vmem:[%s6960 + $0x8] sm:$0xf]
      %v6964 = vld [vmem:[%s6960 + $0xc] sm:$0xf]
      %v6965 = vld [vmem:[%s6960 + $0x10] sm:$0xf]
      %v6966 = vld [vmem:[%s6960 + $0x14] sm:$0xf]
      %v6967 = vld [vmem:[%s6960 + $0x18] sm:$0xf]
      %v6968 = vld [vmem:[%s6960 + $0x1c] sm:$0xf]
      %v6977 = vunpack.c.l.b16 %v6961
      %v6978 = vunpack.c.l.b16 %v6962
      %v6979 = vunpack.c.l.b16 %v6963
      %v6980 = vunpack.c.l.b16 %v6964
      %v6981 = vunpack.c.l.b16 %v6965
      %v6982 = vunpack.c.l.b16 %v6966
      %v6983 = vunpack.c.l.b16 %v6967
      %v6984 = vunpack.c.l.b16 %v6968
      %v6985 = vpack.c.b16 %v6978, %v6977
      %v6986 = vpack.c.b16 %v6980, %v6979
      %v6987 = vpack.c.b16 %v6982, %v6981
      %v6988 = vpack.c.b16 %v6984, %v6983
      %v6994 = vsel %vm1234, %v6939, 0
      %v6997 = vsel %vm1234, %v6940, 0
      %v7000 = vsel %vm1234, %v6941, 0
      %v7003 = vsel %vm1234, %v6942, 0
      %v7006 = vsel %vm1234, %v6943, 0
      %v7009 = vsel %vm1234, %v6944, 0
      %v7012 = vsel %vm1234, %v6945, 0
      %v7015 = vsel %vm1234, %v6946, 0
      %v7018 = vsel %vm1234, %v6947, 0
      %v7021 = vsel %vm1234, %v6948, 0
      %v7024 = vsel %vm1234, %v6949, 0
      %v7027 = vsel %vm1234, %v6950, 0
      %v7030 = vsel %vm1234, %v6951, 0
      %v7033 = vsel %vm1234, %v6952, 0
      %v7036 = vsel %vm1234, %v6953, 0
      %v7039 = vsel %vm1234, %v6954, 0
      %v7042 = vsel %vm1234, %v6955, 0
      %v7045 = vsel %vm1234, %v6956, 0
      %v7048 = vsel %vm1234, %v6957, 0
      %v7051 = vsel %vm1234, %v6958, 0
      %v7054 = vsel %vm1234, %v6959, 0
      %7056 = vmatprep.subr.bf16.mxu0 0
      %7057 = vmatpush1.bf16.msra.mxu0 %v6985
      %7058 = vmatprep.subr.bf16.mxu0 0
      %7059 = vmatpush1.bf16.msra.mxu0 %v6986
      %7060 = vmatprep.subr.bf16.mxu0 0
      %7061 = vmatpush1.bf16.msra.mxu0 %v6987
      %7062 = vmatprep.subr.bf16.mxu0 0
      %7063 = vmatpush1.bf16.msra.mxu0 %v6988
      %7064 = vmatprep.subr.bf16.mxu0 0
      %7065 = vmatpush1.bf16.msra.mxu0 0
      %7066 = vmatprep.subr.bf16.mxu0 0
      %7067 = vmatpush1.bf16.msra.mxu0 0
      %7068 = vmatprep.subr.bf16.mxu0 0
      %7069 = vmatpush1.bf16.msra.mxu0 0
      %7070 = vmatprep.subr.bf16.mxu0 0
      %7071 = vmatpush1.bf16.msra.mxu0 0
      %7072 = vmatprep.subr.bf16.mxu0 0
      %7073 = vmatpush1.bf16.msra.mxu0 0
      %7074 = vmatprep.subr.bf16.mxu0 0
      %7075 = vmatpush1.bf16.msra.mxu0 0
      %7076 = vmatprep.subr.bf16.mxu0 0
      %7077 = vmatpush1.bf16.msra.mxu0 0
      %7078 = vmatprep.subr.bf16.mxu0 0
      %7079 = vmatpush1.bf16.msra.mxu0 0
      %7080 = vmatprep.subr.bf16.mxu0 0
      %7081 = vmatpush1.bf16.msra.mxu0 0
      %7082 = vmatprep.subr.bf16.mxu0 0
      %7083 = vmatpush1.bf16.msra.mxu0 0
      %7084 = vmatprep.subr.bf16.mxu0 0
      %7085 = vmatpush1.bf16.msra.mxu0 0
      %7086 = vmatprep.subr.bf16.mxu0 0
      %7087 = vmatpush1.bf16.msra.mxu0 0
      %7088 = vmatprep.mubr.bf16.mxu0 0
      %7089 = vmatmul.mubr.bf16.gmra.mrb[0].mxu0 %v6994
      %v7090 = vpop.f32.mrb[0].mxu0
      %v7091 = vadd.f32 0.0, %v7090
      %v7092 = vpop.f32.mrb[0].mxu0
      %v7093 = vpop.f32.mrb[0].mxu0
      %v7094 = vadd.f32 0.0, %v7093
      %v7095 = vpop.f32.mrb[0].mxu0
      %7096 = vmatprep.mubr.bf16.mxu0 0
      %7097 = vmatmul.mubr.bf16.gmra.mrb[0].mxu0 %v6997
      %v7098 = vpop.f32.mrb[0].mxu0
      %v7099 = vadd.f32 0.0, %v7098
      %v7100 = vpop.f32.mrb[0].mxu0
      %v7101 = vpop.f32.mrb[0].mxu0
      %v7102 = vadd.f32 0.0, %v7101
      %v7103 = vpop.f32.mrb[0].mxu0
      %7104 = vmatprep.mubr.bf16.mxu0 0
      %7105 = vmatmul.mubr.bf16.gmra.mrb[0].mxu0 %v7000
      %v7106 = vpop.f32.mrb[0].mxu0
      %v7107 = vadd.f32 0.0, %v7106
      %v7108 = vpop.f32.mrb[0].mxu0
      %v7109 = vpop.f32.mrb[0].mxu0
      %v7110 = vadd.f32 0.0, %v7109
      %v7111 = vpop.f32.mrb[0].mxu0
      %7112 = vmatprep.mubr.bf16.mxu0 0
      %7113 = vmatmul.mubr.bf16.gmra.mrb[0].mxu0 %v7003
      %v7114 = vpop.f32.mrb[0].mxu0
      %v7115 = vadd.f32 0.0, %v7114
      %v7116 = vpop.f32.mrb[0].mxu0
      %v7117 = vpop.f32.mrb[0].mxu0
      %v7118 = vadd.f32 0.0, %v7117
      %v7119 = vpop.f32.mrb[0].mxu0
      %7120 = vmatprep.mubr.bf16.mxu0 0
      %7121 = vmatmul.mubr.bf16.gmra.mrb[0].mxu0 %v7006
      %v7122 = vpop.f32.mrb[0].mxu0
      %v7123 = vadd.f32 0.0, %v7122
      %v7124 = vpop.f32.mrb[0].mxu0
      %v7125 = vpop.f32.mrb[0].mxu0
      %v7126 = vadd.f32 0.0, %v7125
      %v7127 = vpop.f32.mrb[0].mxu0
      %7128 = vmatprep.mubr.bf16.mxu0 0
      %7129 = vmatmul.mubr.bf16.gmra.mrb[0].mxu0 %v7009
      %v7130 = vpop.f32.mrb[0].mxu0
      %v7131 = vadd.f32 0.0, %v7130
      %v7132 = vpop.f32.mrb[0].mxu0
      %v7133 = vpop.f32.mrb[0].mxu0
      %v7134 = vadd.f32 0.0, %v7133
      %v7135 = vpop.f32.mrb[0].mxu0
      %7136 = vmatprep.mubr.bf16.mxu0 0
      %7137 = vmatmul.mubr.bf16.gmra.mrb[0].mxu0 %v7012
      %v7138 = vpop.f32.mrb[0].mxu0
      %v7139 = vadd.f32 0.0, %v7138
      %v7140 = vpop.f32.mrb[0].mxu0
      %v7141 = vpop.f32.mrb[0].mxu0
      %v7142 = vadd.f32 0.0, %v7141
      %v7143 = vpop.f32.mrb[0].mxu0
      %7144 = vmatprep.mubr.bf16.mxu0 0
      %7145 = vmatmul.mubr.bf16.gmra.mrb[0].mxu0 %v7015
      %v7146 = vpop.f32.mrb[0].mxu0
      %v7147 = vadd.f32 0.0, %v7146
      %v7148 = vpop.f32.mrb[0].mxu0
      %v7149 = vpop.f32.mrb[0].mxu0
      %v7150 = vadd.f32 0.0, %v7149
      %v7151 = vpop.f32.mrb[0].mxu0
      %7152 = vmatprep.mubr.bf16.mxu0 0
      %7153 = vmatmul.mubr.bf16.gmra.mrb[0].mxu0 %v7018
      %v7154 = vpop.f32.mrb[0].mxu0
      %v7155 = vadd.f32 0.0, %v7154
      %v7156 = vpop.f32.mrb[0].mxu0
      %v7157 = vpop.f32.mrb[0].mxu0
      %v7158 = vadd.f32 0.0, %v7157
      %v7159 = vpop.f32.mrb[0].mxu0
      %7160 = vmatprep.mubr.bf16.mxu0 0
      %7161 = vmatmul.mubr.bf16.gmra.mrb[0].mxu0 %v7021
      %v7162 = vpop.f32.mrb[0].mxu0
      %v7163 = vadd.f32 0.0, %v7162
      %v7164 = vpop.f32.mrb[0].mxu0
      %v7165 = vpop.f32.mrb[0].mxu0
      %v7166 = vadd.f32 0.0, %v7165
      %v7167 = vpop.f32.mrb[0].mxu0
      %7168 = vmatprep.mubr.bf16.mxu0 0
      %7169 = vmatmul.mubr.bf16.gmra.mrb[0].mxu0 %v7024
      %v7170 = vpop.f32.mrb[0].mxu0
      %v7171 = vadd.f32 0.0, %v7170
      %v7172 = vpop.f32.mrb[0].mxu0
      %v7173 = vpop.f32.mrb[0].mxu0
      %v7174 = vadd.f32 0.0, %v7173
      %v7175 = vpop.f32.mrb[0].mxu0
      %7176 = vmatprep.mubr.bf16.mxu0 0
      %7177 = vmatmul.mubr.bf16.gmra.mrb[0].mxu0 %v7027
      %v7178 = vpop.f32.mrb[0].mxu0
      %v7179 = vadd.f32 0.0, %v7178
      %v7180 = vpop.f32.mrb[0].mxu0
      %v7181 = vpop.f32.mrb[0].mxu0
      %v7182 = vadd.f32 0.0, %v7181
      %v7183 = vpop.f32.mrb[0].mxu0
      %7184 = vmatprep.mubr.bf16.mxu0 0
      %7185 = vmatmul.mubr.bf16.gmra.mrb[0].mxu0 %v7030
      %v7186 = vpop.f32.mrb[0].mxu0
      %v7187 = vadd.f32 0.0, %v7186
      %v7188 = vpop.f32.mrb[0].mxu0
      %v7189 = vpop.f32.mrb[0].mxu0
      %v7190 = vadd.f32 0.0, %v7189
      %v7191 = vpop.f32.mrb[0].mxu0
      %7192 = vmatprep.mubr.bf16.mxu0 0
      %7193 = vmatmul.mubr.bf16.gmra.mrb[0].mxu0 %v7033
      %v7194 = vpop.f32.mrb[0].mxu0
      %v7195 = vadd.f32 0.0, %v7194
      %v7196 = vpop.f32.mrb[0].mxu0
      %v7197 = vpop.f32.mrb[0].mxu0
      %v7198 = vadd.f32 0.0, %v7197
      %v7199 = vpop.f32.mrb[0].mxu0
      %7200 = vmatprep.mubr.bf16.mxu0 0
      %7201 = vmatmul.mubr.bf16.gmra.mrb[0].mxu0 %v7036
      %v7202 = vpop.f32.mrb[0].mxu0
      %v7203 = vadd.f32 0.0, %v7202
      %v7204 = vpop.f32.mrb[0].mxu0
      %v7205 = vpop.f32.mrb[0].mxu0
      %v7206 = vadd.f32 0.0, %v7205
      %v7207 = vpop.f32.mrb[0].mxu0
      %7208 = vmatprep.mubr.bf16.mxu0 0
      %7209 = vmatmul.mubr.bf16.gmra.mrb[0].mxu0 %v7039
      %v7210 = vpop.f32.mrb[0].mxu0
      %v7211 = vadd.f32 0.0, %v7210
      %v7212 = vpop.f32.mrb[0].mxu0
      %v7213 = vpop.f32.mrb[0].mxu0
      %v7214 = vadd.f32 0.0, %v7213
      %v7215 = vpop.f32.mrb[0].mxu0
      %7216 = vmatprep.mubr.bf16.mxu0 0
      %7217 = vmatmul.mubr.bf16.gmra.mrb[0].mxu0 %v7042
      %v7218 = vpop.f32.mrb[0].mxu0
      %v7219 = vadd.f32 0.0, %v7218
      %v7220 = vpop.f32.mrb[0].mxu0
      %v7221 = vpop.f32.mrb[0].mxu0
      %v7222 = vadd.f32 0.0, %v7221
      %v7223 = vpop.f32.mrb[0].mxu0
      %7224 = vmatprep.mubr.bf16.mxu0 0
      %7225 = vmatmul.mubr.bf16.gmra.mrb[0].mxu0 %v7045
      %v7226 = vpop.f32.mrb[0].mxu0
      %v7227 = vadd.f32 0.0, %v7226
      %v7228 = vpop.f32.mrb[0].mxu0
      %v7229 = vpop.f32.mrb[0].mxu0
      %v7230 = vadd.f32 0.0, %v7229
      %v7231 = vpop.f32.mrb[0].mxu0
      %7232 = vmatprep.mubr.bf16.mxu0 0
      %7233 = vmatmul.mubr.bf16.gmra.mrb[0].mxu0 %v7048
      %v7234 = vpop.f32.mrb[0].mxu0
      %v7235 = vadd.f32 0.0, %v7234
      %v7236 = vpop.f32.mrb[0].mxu0
      %v7237 = vpop.f32.mrb[0].mxu0
      %v7238 = vadd.f32 0.0, %v7237
      %v7239 = vpop.f32.mrb[0].mxu0
      %7240 = vmatprep.mubr.bf16.mxu0 0
      %7241 = vmatmul.mubr.bf16.gmra.mrb[0].mxu0 %v7051
      %v7242 = vpop.f32.mrb[0].mxu0
      %v7243 = vadd.f32 0.0, %v7242
      %v7244 = vpop.f32.mrb[0].mxu0
      %v7245 = vpop.f32.mrb[0].mxu0
      %v7246 = vadd.f32 0.0, %v7245
      %v7247 = vpop.f32.mrb[0].mxu0
      %7248 = vmatprep.mubr.bf16.mxu0 0
      %7249 = vmatmul.mubr.bf16.gmra.mrb[0].mxu0 %v7054
      %v7250 = vpop.f32.mrb[0].mxu0
      %v7251 = vadd.f32 0.0, %v7250
      %v7252 = vpop.f32.mrb[0].mxu0
      %v7253 = vpop.f32.mrb[0].mxu0
      %v7254 = vpop.f32.mrb[0].mxu0
      %7255 = vdwg.mxu0
      %v7256 = vadd.f32 %v6733, %v7091
      %v7257 = vadd.f32 %v6736, %v7094
      %v7258 = vadd.f32 %v6741, %v7099
      %v7259 = vadd.f32 %v6744, %v7102
      %v7260 = vadd.f32 %v6749, %v7107
      %v7261 = vadd.f32 %v6752, %v7110
      %v7262 = vadd.f32 %v6757, %v7115
      %v7263 = vadd.f32 %v6760, %v7118
      %v7264 = vadd.f32 %v6765, %v7123
      %v7265 = vadd.f32 %v6768, %v7126
      %v7266 = vadd.f32 %v6773, %v7131
      %v7267 = vadd.f32 %v6776, %v7134
      %v7268 = vadd.f32 %v6781, %v7139
      %v7269 = vadd.f32 %v6784, %v7142
      %v7270 = vadd.f32 %v6789, %v7147
      %v7271 = vadd.f32 %v6792, %v7150
      %v7272 = vadd.f32 %v6797, %v7155
      %v7273 = vadd.f32 %v6800, %v7158
      %v7274 = vadd.f32 %v6805, %v7163
      %v7275 = vadd.f32 %v6808, %v7166
      %v7276 = vadd.f32 %v6813, %v7171
      %v7277 = vadd.f32 %v6816, %v7174
      %v7278 = vadd.f32 %v6821, %v7179
      %v7279 = vadd.f32 %v6824, %v7182
      %v7280 = vadd.f32 %v6829, %v7187
      %v7281 = vadd.f32 %v6832, %v7190
      %v7282 = vadd.f32 %v6837, %v7195
      %v7283 = vadd.f32 %v6840, %v7198
      %v7284 = vadd.f32 %v6845, %v7203
      %v7285 = vadd.f32 %v6848, %v7206
      %v7286 = vadd.f32 %v6853, %v7211
      %v7287 = vadd.f32 %v6856, %v7214
      %v7288 = vadd.f32 %v6861, %v7219
      %v7289 = vadd.f32 %v6864, %v7222
      %v7290 = vadd.f32 %v6869, %v7227
      %v7291 = vadd.f32 %v6872, %v7230
      %v7292 = vadd.f32 %v6877, %v7235
      %v7293 = vadd.f32 %v6880, %v7238
      %v7294 = vadd.f32 %v6885, %v7243
      %v7295 = vadd.f32 %v6888, %v7246
      %v7296 = vadd.f32 %v6893, %v7251
      %v7297 = vld [vmem:[#allocation3 + $0x17] sm:$0xff]
      %v7298 = vld [vmem:[#allocation3 + $0x1f] sm:$0xff]
      %v7299 = vld [vmem:[#allocation3 + $0x27] sm:$0xff]
      %v7300 = vld [vmem:[#allocation3 + $0x2f] sm:$0xff]
      %v7301 = vld [vmem:[#allocation3 + $0x37] sm:$0xff]
      %v7302 = vld [vmem:[#allocation3 + $0x3f] sm:$0xff]
      %v7303 = vld [vmem:[#allocation3 + $0x47] sm:$0xff]
      %v7304 = vld [vmem:[#allocation3 + $0x4f] sm:$0xff]
      %v7305 = vld [vmem:[#allocation3 + $0x57] sm:$0xff]
      %v7306 = vld [vmem:[#allocation3 + $0x5f] sm:$0xff]
      %v7307 = vld [vmem:[#allocation3 + $0x67] sm:$0xff]
      %v7308 = vld [vmem:[#allocation3 + $0x6f] sm:$0xff]
      %v7309 = vld [vmem:[#allocation3 + $0x77] sm:$0xff]
      %v7310 = vld [vmem:[#allocation3 + $0x7f] sm:$0xff]
      %v7311 = vld [vmem:[#allocation3 + $0x87] sm:$0xff]
      %v7312 = vld [vmem:[#allocation3 + $0x8f] sm:$0xff]
      %v7313 = vld [vmem:[#allocation3 + $0x97] sm:$0xff]
      %v7314 = vld [vmem:[#allocation3 + $0x9f] sm:$0xff]
      %v7315 = vld [vmem:[#allocation3 + $0xa7] sm:$0xff]
      %v7316 = vld [vmem:[#allocation3 + $0xaf] sm:$0xff]
      %v7317 = vld [vmem:[#allocation3 + $0xb7] sm:$0xff]
      %v7318 = vld [vmem:[#allocation3 + $0xbf] sm:$0xff]
      %v7319 = vld [vmem:[#allocation3 + $0xc7] sm:$0xff]
      %v7320 = vld [vmem:[#allocation3 + $0xcf] sm:$0xff]
      %v7321 = vld [vmem:[#allocation3 + $0xd7] sm:$0xff]
      %v7322 = vld [vmem:[#allocation3 + $0xdf] sm:$0xff]
      %v7323 = vld [vmem:[#allocation3 + $0xe7] sm:$0xff]
      %v7324 = vld [vmem:[#allocation3 + $0xef] sm:$0xff]
      %v7325 = vld [vmem:[#allocation3 + $0xf7] sm:$0xff]
      %v7326 = vld [vmem:[#allocation3 + $0xff] sm:$0xff]
      %v7327 = vld [vmem:[#allocation3 + $0x107] sm:$0xff]
      %v7328 = vld [vmem:[#allocation3 + $0x10f] sm:$0xff]
      %v7329 = vld [vmem:[#allocation3 + $0x117] sm:$0xff]
      %v7330 = vld [vmem:[#allocation3 + $0x11f] sm:$0xff]
      %v7331 = vld [vmem:[#allocation3 + $0x127] sm:$0xff]
      %v7332 = vld [vmem:[#allocation3 + $0x12f] sm:$0xff]
      %v7333 = vld [vmem:[#allocation3 + $0x137] sm:$0xff]
      %v7334 = vld [vmem:[#allocation3 + $0x13f] sm:$0xff]
      %v7335 = vld [vmem:[#allocation3 + $0x147] sm:$0xff]
      %v7336 = vld [vmem:[#allocation3 + $0x14f] sm:$0xff]
      %v7337 = vld [vmem:[#allocation3 + $0x157] sm:$0xff]
      %v7338 = vpack.c.bf16 %v7298, %v7297
      %v7339 = vpack.c.bf16 %v7300, %v7299
      %v7340 = vpack.c.bf16 %v7302, %v7301
      %v7341 = vpack.c.bf16 %v7304, %v7303
      %v7342 = vpack.c.bf16 %v7306, %v7305
      %v7343 = vpack.c.bf16 %v7308, %v7307
      %v7344 = vpack.c.bf16 %v7310, %v7309
      %v7345 = vpack.c.bf16 %v7312, %v7311
      %v7346 = vpack.c.bf16 %v7314, %v7313
      %v7347 = vpack.c.bf16 %v7316, %v7315
      %v7348 = vpack.c.bf16 %v7318, %v7317
      %v7349 = vpack.c.bf16 %v7320, %v7319
      %v7350 = vpack.c.bf16 %v7322, %v7321
      %v7351 = vpack.c.bf16 %v7324, %v7323
      %v7352 = vpack.c.bf16 %v7326, %v7325
      %v7353 = vpack.c.bf16 %v7328, %v7327
      %v7354 = vpack.c.bf16 %v7330, %v7329
      %v7355 = vpack.c.bf16 %v7332, %v7331
      %v7356 = vpack.c.bf16 %v7334, %v7333
      %v7357 = vpack.c.bf16 %v7336, %v7335
      %v7358 = vpack.c.bf16 %v7337, %v7337
      %s7359 = scalar_lea.vmem %s11, 96
      %v7360 = vld [vmem:[%s7359] sm:$0xf]
      %v7361 = vld [vmem:[%s7359 + $0x4] sm:$0xf]
      %v7362 = vld [vmem:[%s7359 + $0x8] sm:$0xf]
      %v7363 = vld [vmem:[%s7359 + $0xc] sm:$0xf]
      %v7364 = vld [vmem:[%s7359 + $0x10] sm:$0xf]
      %v7365 = vld [vmem:[%s7359 + $0x14] sm:$0xf]
      %v7366 = vld [vmem:[%s7359 + $0x18] sm:$0xf]
      %v7367 = vld [vmem:[%s7359 + $0x1c] sm:$0xf]
      %v7376 = vunpack.c.l.b16 %v7360
      %v7377 = vunpack.c.l.b16 %v7361
      %v7378 = vunpack.c.l.b16 %v7362
      %v7379 = vunpack.c.l.b16 %v7363
      %v7380 = vunpack.c.l.b16 %v7364
      %v7381 = vunpack.c.l.b16 %v7365
      %v7382 = vunpack.c.l.b16 %v7366
      %v7383 = vunpack.c.l.b16 %v7367
      %v7384 = vpack.c.b16 %v7377, %v7376
      %v7385 = vpack.c.b16 %v7379, %v7378
      %v7386 = vpack.c.b16 %v7381, %v7380
      %v7387 = vpack.c.b16 %v7383, %v7382
      %v7393 = vsel %vm1234, %v7338, 0
      %v7396 = vsel %vm1234, %v7339, 0
      %v7399 = vsel %vm1234, %v7340, 0
      %v7402 = vsel %vm1234, %v7341, 0
      %v7405 = vsel %vm1234, %v7342, 0
      %v7408 = vsel %vm1234, %v7343, 0
      %v7411 = vsel %vm1234, %v7344, 0
      %v7414 = vsel %vm1234, %v7345, 0
      %v7417 = vsel %vm1234, %v7346, 0
      %v7420 = vsel %vm1234, %v7347, 0
      %v7423 = vsel %vm1234, %v7348, 0
      %v7426 = vsel %vm1234, %v7349, 0
      %v7429 = vsel %vm1234, %v7350, 0
      %v7432 = vsel %vm1234, %v7351, 0
      %v7435 = vsel %vm1234, %v7352, 0
      %v7438 = vsel %vm1234, %v7353, 0
      %v7441 = vsel %vm1234, %v7354, 0
      %v7444 = vsel %vm1234, %v7355, 0
      %v7447 = vsel %vm1234, %v7356, 0
      %v7450 = vsel %vm1234, %v7357, 0
      %v7453 = vsel %vm1234, %v7358, 0
      %7455 = vmatprep.subr.bf16.mxu0 0
      %7456 = vmatpush1.bf16.msra.mxu0 %v7384
      %7457 = vmatprep.subr.bf16.mxu0 0
      %7458 = vmatpush1.bf16.msra.mxu0 %v7385
      %7459 = vmatprep.subr.bf16.mxu0 0
      %7460 = vmatpush1.bf16.msra.mxu0 %v7386
      %7461 = vmatprep.subr.bf16.mxu0 0
      %7462 = vmatpush1.bf16.msra.mxu0 %v7387
      %7463 = vmatprep.subr.bf16.mxu0 0
      %7464 = vmatpush1.bf16.msra.mxu0 0
      %7465 = vmatprep.subr.bf16.mxu0 0
      %7466 = vmatpush1.bf16.msra.mxu0 0
      %7467 = vmatprep.subr.bf16.mxu0 0
      %7468 = vmatpush1.bf16.msra.mxu0 0
      %7469 = vmatprep.subr.bf16.mxu0 0
      %7470 = vmatpush1.bf16.msra.mxu0 0
      %7471 = vmatprep.subr.bf16.mxu0 0
      %7472 = vmatpush1.bf16.msra.mxu0 0
      %7473 = vmatprep.subr.bf16.mxu0 0
      %7474 = vmatpush1.bf16.msra.mxu0 0
      %7475 = vmatprep.subr.bf16.mxu0 0
      %7476 = vmatpush1.bf16.msra.mxu0 0
      %7477 = vmatprep.subr.bf16.mxu0 0
      %7478 = vmatpush1.bf16.msra.mxu0 0
      %7479 = vmatprep.subr.bf16.mxu0 0
      %7480 = vmatpush1.bf16.msra.mxu0 0
      %7481 = vmatprep.subr.bf16.mxu0 0
      %7482 = vmatpush1.bf16.msra.mxu0 0
      %7483 = vmatprep.subr.bf16.mxu0 0
      %7484 = vmatpush1.bf16.msra.mxu0 0
      %7485 = vmatprep.subr.bf16.mxu0 0
      %7486 = vmatpush1.bf16.msra.mxu0 0
      %7487 = vmatprep.mubr.bf16.mxu0 0
      %7488 = vmatmul.mubr.bf16.gmra.mrb[0].mxu0 %v7393
      %v7489 = vpop.f32.mrb[0].mxu0
      %v7490 = vadd.f32 0.0, %v7489
      %v7491 = vpop.f32.mrb[0].mxu0
      %v7492 = vpop.f32.mrb[0].mxu0
      %v7493 = vadd.f32 0.0, %v7492
      %v7494 = vpop.f32.mrb[0].mxu0
      %7495 = vmatprep.mubr.bf16.mxu0 0
      %7496 = vmatmul.mubr.bf16.gmra.mrb[0].mxu0 %v7396
      %v7497 = vpop.f32.mrb[0].mxu0
      %v7498 = vadd.f32 0.0, %v7497
      %v7499 = vpop.f32.mrb[0].mxu0
      %v7500 = vpop.f32.mrb[0].mxu0
      %v7501 = vadd.f32 0.0, %v7500
      %v7502 = vpop.f32.mrb[0].mxu0
      %7503 = vmatprep.mubr.bf16.mxu0 0
      %7504 = vmatmul.mubr.bf16.gmra.mrb[0].mxu0 %v7399
      %v7505 = vpop.f32.mrb[0].mxu0
      %v7506 = vadd.f32 0.0, %v7505
      %v7507 = vpop.f32.mrb[0].mxu0
      %v7508 = vpop.f32.mrb[0].mxu0
      %v7509 = vadd.f32 0.0, %v7508
      %v7510 = vpop.f32.mrb[0].mxu0
      %7511 = vmatprep.mubr.bf16.mxu0 0
      %7512 = vmatmul.mubr.bf16.gmra.mrb[0].mxu0 %v7402
      %v7513 = vpop.f32.mrb[0].mxu0
      %v7514 = vadd.f32 0.0, %v7513
      %v7515 = vpop.f32.mrb[0].mxu0
      %v7516 = vpop.f32.mrb[0].mxu0
      %v7517 = vadd.f32 0.0, %v7516
      %v7518 = vpop.f32.mrb[0].mxu0
      %7519 = vmatprep.mubr.bf16.mxu0 0
      %7520 = vmatmul.mubr.bf16.gmra.mrb[0].mxu0 %v7405
      %v7521 = vpop.f32.mrb[0].mxu0
      %v7522 = vadd.f32 0.0, %v7521
      %v7523 = vpop.f32.mrb[0].mxu0
      %v7524 = vpop.f32.mrb[0].mxu0
      %v7525 = vadd.f32 0.0, %v7524
      %v7526 = vpop.f32.mrb[0].mxu0
      %7527 = vmatprep.mubr.bf16.mxu0 0
      %7528 = vmatmul.mubr.bf16.gmra.mrb[0].mxu0 %v7408
      %v7529 = vpop.f32.mrb[0].mxu0
      %v7530 = vadd.f32 0.0, %v7529
      %v7531 = vpop.f32.mrb[0].mxu0
      %v7532 = vpop.f32.mrb[0].mxu0
      %v7533 = vadd.f32 0.0, %v7532
      %v7534 = vpop.f32.mrb[0].mxu0
      %7535 = vmatprep.mubr.bf16.mxu0 0
      %7536 = vmatmul.mubr.bf16.gmra.mrb[0].mxu0 %v7411
      %v7537 = vpop.f32.mrb[0].mxu0
      %v7538 = vadd.f32 0.0, %v7537
      %v7539 = vpop.f32.mrb[0].mxu0
      %v7540 = vpop.f32.mrb[0].mxu0
      %v7541 = vadd.f32 0.0, %v7540
      %v7542 = vpop.f32.mrb[0].mxu0
      %7543 = vmatprep.mubr.bf16.mxu0 0
      %7544 = vmatmul.mubr.bf16.gmra.mrb[0].mxu0 %v7414
      %v7545 = vpop.f32.mrb[0].mxu0
      %v7546 = vadd.f32 0.0, %v7545
      %v7547 = vpop.f32.mrb[0].mxu0
      %v7548 = vpop.f32.mrb[0].mxu0
      %v7549 = vadd.f32 0.0, %v7548
      %v7550 = vpop.f32.mrb[0].mxu0
      %7551 = vmatprep.mubr.bf16.mxu0 0
      %7552 = vmatmul.mubr.bf16.gmra.mrb[0].mxu0 %v7417
      %v7553 = vpop.f32.mrb[0].mxu0
      %v7554 = vadd.f32 0.0, %v7553
      %v7555 = vpop.f32.mrb[0].mxu0
      %v7556 = vpop.f32.mrb[0].mxu0
      %v7557 = vadd.f32 0.0, %v7556
      %v7558 = vpop.f32.mrb[0].mxu0
      %7559 = vmatprep.mubr.bf16.mxu0 0
      %7560 = vmatmul.mubr.bf16.gmra.mrb[0].mxu0 %v7420
      %v7561 = vpop.f32.mrb[0].mxu0
      %v7562 = vadd.f32 0.0, %v7561
      %v7563 = vpop.f32.mrb[0].mxu0
      %v7564 = vpop.f32.mrb[0].mxu0
      %v7565 = vadd.f32 0.0, %v7564
      %v7566 = vpop.f32.mrb[0].mxu0
      %7567 = vmatprep.mubr.bf16.mxu0 0
      %7568 = vmatmul.mubr.bf16.gmra.mrb[0].mxu0 %v7423
      %v7569 = vpop.f32.mrb[0].mxu0
      %v7570 = vadd.f32 0.0, %v7569
      %v7571 = vpop.f32.mrb[0].mxu0
      %v7572 = vpop.f32.mrb[0].mxu0
      %v7573 = vadd.f32 0.0, %v7572
      %v7574 = vpop.f32.mrb[0].mxu0
      %7575 = vmatprep.mubr.bf16.mxu0 0
      %7576 = vmatmul.mubr.bf16.gmra.mrb[0].mxu0 %v7426
      %v7577 = vpop.f32.mrb[0].mxu0
      %v7578 = vadd.f32 0.0, %v7577
      %v7579 = vpop.f32.mrb[0].mxu0
      %v7580 = vpop.f32.mrb[0].mxu0
      %v7581 = vadd.f32 0.0, %v7580
      %v7582 = vpop.f32.mrb[0].mxu0
      %7583 = vmatprep.mubr.bf16.mxu0 0
      %7584 = vmatmul.mubr.bf16.gmra.mrb[0].mxu0 %v7429
      %v7585 = vpop.f32.mrb[0].mxu0
      %v7586 = vadd.f32 0.0, %v7585
      %v7587 = vpop.f32.mrb[0].mxu0
      %v7588 = vpop.f32.mrb[0].mxu0
      %v7589 = vadd.f32 0.0, %v7588
      %v7590 = vpop.f32.mrb[0].mxu0
      %7591 = vmatprep.mubr.bf16.mxu0 0
      %7592 = vmatmul.mubr.bf16.gmra.mrb[0].mxu0 %v7432
      %v7593 = vpop.f32.mrb[0].mxu0
      %v7594 = vadd.f32 0.0, %v7593
      %v7595 = vpop.f32.mrb[0].mxu0
      %v7596 = vpop.f32.mrb[0].mxu0
      %v7597 = vadd.f32 0.0, %v7596
      %v7598 = vpop.f32.mrb[0].mxu0
      %7599 = vmatprep.mubr.bf16.mxu0 0
      %7600 = vmatmul.mubr.bf16.gmra.mrb[0].mxu0 %v7435
      %v7601 = vpop.f32.mrb[0].mxu0
      %v7602 = vadd.f32 0.0, %v7601
      %v7603 = vpop.f32.mrb[0].mxu0
      %v7604 = vpop.f32.mrb[0].mxu0
      %v7605 = vadd.f32 0.0, %v7604
      %v7606 = vpop.f32.mrb[0].mxu0
      %7607 = vmatprep.mubr.bf16.mxu0 0
      %7608 = vmatmul.mubr.bf16.gmra.mrb[0].mxu0 %v7438
      %v7609 = vpop.f32.mrb[0].mxu0
      %v7610 = vadd.f32 0.0, %v7609
      %v7611 = vpop.f32.mrb[0].mxu0
      %v7612 = vpop.f32.mrb[0].mxu0
      %v7613 = vadd.f32 0.0, %v7612
      %v7614 = vpop.f32.mrb[0].mxu0
      %7615 = vmatprep.mubr.bf16.mxu0 0
      %7616 = vmatmul.mubr.bf16.gmra.mrb[0].mxu0 %v7441
      %v7617 = vpop.f32.mrb[0].mxu0
      %v7618 = vadd.f32 0.0, %v7617
      %v7619 = vpop.f32.mrb[0].mxu0
      %v7620 = vpop.f32.mrb[0].mxu0
      %v7621 = vadd.f32 0.0, %v7620
      %v7622 = vpop.f32.mrb[0].mxu0
      %7623 = vmatprep.mubr.bf16.mxu0 0
      %7624 = vmatmul.mubr.bf16.gmra.mrb[0].mxu0 %v7444
      %v7625 = vpop.f32.mrb[0].mxu0
      %v7626 = vadd.f32 0.0, %v7625
      %v7627 = vpop.f32.mrb[0].mxu0
      %v7628 = vpop.f32.mrb[0].mxu0
      %v7629 = vadd.f32 0.0, %v7628
      %v7630 = vpop.f32.mrb[0].mxu0
      %7631 = vmatprep.mubr.bf16.mxu0 0
      %7632 = vmatmul.mubr.bf16.gmra.mrb[0].mxu0 %v7447
      %v7633 = vpop.f32.mrb[0].mxu0
      %v7634 = vadd.f32 0.0, %v7633
      %v7635 = vpop.f32.mrb[0].mxu0
      %v7636 = vpop.f32.mrb[0].mxu0
      %v7637 = vadd.f32 0.0, %v7636
      %v7638 = vpop.f32.mrb[0].mxu0
      %7639 = vmatprep.mubr.bf16.mxu0 0
      %7640 = vmatmul.mubr.bf16.gmra.mrb[0].mxu0 %v7450
      %v7641 = vpop.f32.mrb[0].mxu0
      %v7642 = vadd.f32 0.0, %v7641
      %v7643 = vpop.f32.mrb[0].mxu0
      %v7644 = vpop.f32.mrb[0].mxu0
      %v7645 = vadd.f32 0.0, %v7644
      %v7646 = vpop.f32.mrb[0].mxu0
      %7647 = vmatprep.mubr.bf16.mxu0 0
      %7648 = vmatmul.mubr.bf16.gmra.mrb[0].mxu0 %v7453
      %v7649 = vpop.f32.mrb[0].mxu0
      %v7650 = vadd.f32 0.0, %v7649
      %v7651 = vpop.f32.mrb[0].mxu0
      %v7652 = vpop.f32.mrb[0].mxu0
      %v7653 = vpop.f32.mrb[0].mxu0
      %7654 = vdwg.mxu0
      %v7655 = vadd.f32 %v7256, %v7490
      %v7656 = vadd.f32 %v7257, %v7493
      %v7657 = vadd.f32 %v7258, %v7498
      %v7658 = vadd.f32 %v7259, %v7501
      %v7659 = vadd.f32 %v7260, %v7506
      %v7660 = vadd.f32 %v7261, %v7509
      %v7661 = vadd.f32 %v7262, %v7514
      %v7662 = vadd.f32 %v7263, %v7517
      %v7663 = vadd.f32 %v7264, %v7522
      %v7664 = vadd.f32 %v7265, %v7525
      %v7665 = vadd.f32 %v7266, %v7530
      %v7666 = vadd.f32 %v7267, %v7533
      %v7667 = vadd.f32 %v7268, %v7538
      %v7668 = vadd.f32 %v7269, %v7541
      %v7669 = vadd.f32 %v7270, %v7546
      %v7670 = vadd.f32 %v7271, %v7549
      %v7671 = vadd.f32 %v7272, %v7554
      %v7672 = vadd.f32 %v7273, %v7557
      %v7673 = vadd.f32 %v7274, %v7562
      %v7674 = vadd.f32 %v7275, %v7565
      %v7675 = vadd.f32 %v7276, %v7570
      %v7676 = vadd.f32 %v7277, %v7573
      %v7677 = vadd.f32 %v7278, %v7578
      %v7678 = vadd.f32 %v7279, %v7581
      %v7679 = vadd.f32 %v7280, %v7586
      %v7680 = vadd.f32 %v7281, %v7589
      %v7681 = vadd.f32 %v7282, %v7594
      %v7682 = vadd.f32 %v7283, %v7597
      %v7683 = vadd.f32 %v7284, %v7602
      %v7684 = vadd.f32 %v7285, %v7605
      %v7685 = vadd.f32 %v7286, %v7610
      %v7686 = vadd.f32 %v7287, %v7613
      %v7687 = vadd.f32 %v7288, %v7618
      %v7688 = vadd.f32 %v7289, %v7621
      %v7689 = vadd.f32 %v7290, %v7626
      %v7690 = vadd.f32 %v7291, %v7629
      %v7691 = vadd.f32 %v7292, %v7634
      %v7692 = vadd.f32 %v7293, %v7637
      %v7693 = vadd.f32 %v7294, %v7642
      %v7694 = vadd.f32 %v7295, %v7645
      %v7695 = vadd.f32 %v7296, %v7650
      %v7696 = vld [vmem:[#allocation3 + $0x18] sm:$0xff]
      %v7697 = vld [vmem:[#allocation3 + $0x20] sm:$0xff]
      %v7698 = vld [vmem:[#allocation3 + $0x28] sm:$0xff]
      %v7699 = vld [vmem:[#allocation3 + $0x30] sm:$0xff]
      %v7700 = vld [vmem:[#allocation3 + $0x38] sm:$0xff]
      %v7701 = vld [vmem:[#allocation3 + $0x40] sm:$0xff]
      %v7702 = vld [vmem:[#allocation3 + $0x48] sm:$0xff]
      %v7703 = vld [vmem:[#allocation3 + $0x50] sm:$0xff]
      %v7704 = vld [vmem:[#allocation3 + $0x58] sm:$0xff]
      %v7705 = vld [vmem:[#allocation3 + $0x60] sm:$0xff]
      %v7706 = vld [vmem:[#allocation3 + $0x68] sm:$0xff]
      %v7707 = vld [vmem:[#allocation3 + $0x70] sm:$0xff]
      %v7708 = vld [vmem:[#allocation3 + $0x78] sm:$0xff]
      %v7709 = vld [vmem:[#allocation3 + $0x80] sm:$0xff]
      %v7710 = vld [vmem:[#allocation3 + $0x88] sm:$0xff]
      %v7711 = vld [vmem:[#allocation3 + $0x90] sm:$0xff]
      %v7712 = vld [vmem:[#allocation3 + $0x98] sm:$0xff]
      %v7713 = vld [vmem:[#allocation3 + $0xa0] sm:$0xff]
      %v7714 = vld [vmem:[#allocation3 + $0xa8] sm:$0xff]
      %v7715 = vld [vmem:[#allocation3 + $0xb0] sm:$0xff]
      %v7716 = vld [vmem:[#allocation3 + $0xb8] sm:$0xff]
      %v7717 = vld [vmem:[#allocation3 + $0xc0] sm:$0xff]
      %v7718 = vld [vmem:[#allocation3 + $0xc8] sm:$0xff]
      %v7719 = vld [vmem:[#allocation3 + $0xd0] sm:$0xff]
      %v7720 = vld [vmem:[#allocation3 + $0xd8] sm:$0xff]
      %v7721 = vld [vmem:[#allocation3 + $0xe0] sm:$0xff]
      %v7722 = vld [vmem:[#allocation3 + $0xe8] sm:$0xff]
      %v7723 = vld [vmem:[#allocation3 + $0xf0] sm:$0xff]
      %v7724 = vld [vmem:[#allocation3 + $0xf8] sm:$0xff]
      %v7725 = vld [vmem:[#allocation3 + $0x100] sm:$0xff]
      %v7726 = vld [vmem:[#allocation3 + $0x108] sm:$0xff]
      %v7727 = vld [vmem:[#allocation3 + $0x110] sm:$0xff]
      %v7728 = vld [vmem:[#allocation3 + $0x118] sm:$0xff]
      %v7729 = vld [vmem:[#allocation3 + $0x120] sm:$0xff]
      %v7730 = vld [vmem:[#allocation3 + $0x128] sm:$0xff]
      %v7731 = vld [vmem:[#allocation3 + $0x130] sm:$0xff]
      %v7732 = vld [vmem:[#allocation3 + $0x138] sm:$0xff]
      %v7733 = vld [vmem:[#allocation3 + $0x140] sm:$0xff]
      %v7734 = vld [vmem:[#allocation3 + $0x148] sm:$0xff]
      %v7735 = vld [vmem:[#allocation3 + $0x150] sm:$0xff]
      %v7736 = vld [vmem:[#allocation3 + $0x158] sm:$0xff]
      %v7737 = vpack.c.bf16 %v7697, %v7696
      %v7738 = vpack.c.bf16 %v7699, %v7698
      %v7739 = vpack.c.bf16 %v7701, %v7700
      %v7740 = vpack.c.bf16 %v7703, %v7702
      %v7741 = vpack.c.bf16 %v7705, %v7704
      %v7742 = vpack.c.bf16 %v7707, %v7706
      %v7743 = vpack.c.bf16 %v7709, %v7708
      %v7744 = vpack.c.bf16 %v7711, %v7710
      %v7745 = vpack.c.bf16 %v7713, %v7712
      %v7746 = vpack.c.bf16 %v7715, %v7714
      %v7747 = vpack.c.bf16 %v7717, %v7716
      %v7748 = vpack.c.bf16 %v7719, %v7718
      %v7749 = vpack.c.bf16 %v7721, %v7720
      %v7750 = vpack.c.bf16 %v7723, %v7722
      %v7751 = vpack.c.bf16 %v7725, %v7724
      %v7752 = vpack.c.bf16 %v7727, %v7726
      %v7753 = vpack.c.bf16 %v7729, %v7728
      %v7754 = vpack.c.bf16 %v7731, %v7730
      %v7755 = vpack.c.bf16 %v7733, %v7732
      %v7756 = vpack.c.bf16 %v7735, %v7734
      %v7757 = vpack.c.bf16 %v7736, %v7736
      %s7758 = scalar_lea.vmem %s11, 128
      %v7759 = vld [vmem:[%s7758] sm:$0xf]
      %v7760 = vld [vmem:[%s7758 + $0x4] sm:$0xf]
      %v7761 = vld [vmem:[%s7758 + $0x8] sm:$0xf]
      %v7762 = vld [vmem:[%s7758 + $0xc] sm:$0xf]
      %v7763 = vld [vmem:[%s7758 + $0x10] sm:$0xf]
      %v7764 = vld [vmem:[%s7758 + $0x14] sm:$0xf]
      %v7765 = vld [vmem:[%s7758 + $0x18] sm:$0xf]
      %v7766 = vld [vmem:[%s7758 + $0x1c] sm:$0xf]
      %v7775 = vunpack.c.l.b16 %v7759
      %v7776 = vunpack.c.l.b16 %v7760
      %v7777 = vunpack.c.l.b16 %v7761
      %v7778 = vunpack.c.l.b16 %v7762
      %v7779 = vunpack.c.l.b16 %v7763
      %v7780 = vunpack.c.l.b16 %v7764
      %v7781 = vunpack.c.l.b16 %v7765
      %v7782 = vunpack.c.l.b16 %v7766
      %v7783 = vpack.c.b16 %v7776, %v7775
      %v7784 = vpack.c.b16 %v7778, %v7777
      %v7785 = vpack.c.b16 %v7780, %v7779
      %v7786 = vpack.c.b16 %v7782, %v7781
      %v7792 = vsel %vm1234, %v7737, 0
      %v7795 = vsel %vm1234, %v7738, 0
      %v7798 = vsel %vm1234, %v7739, 0
      %v7801 = vsel %vm1234, %v7740, 0
      %v7804 = vsel %vm1234, %v7741, 0
      %v7807 = vsel %vm1234, %v7742, 0
      %v7810 = vsel %vm1234, %v7743, 0
      %v7813 = vsel %vm1234, %v7744, 0
      %v7816 = vsel %vm1234, %v7745, 0
      %v7819 = vsel %vm1234, %v7746, 0
      %v7822 = vsel %vm1234, %v7747, 0
      %v7825 = vsel %vm1234, %v7748, 0
      %v7828 = vsel %vm1234, %v7749, 0
      %v7831 = vsel %vm1234, %v7750, 0
      %v7834 = vsel %vm1234, %v7751, 0
      %v7837 = vsel %vm1234, %v7752, 0
      %v7840 = vsel %vm1234, %v7753, 0
      %v7843 = vsel %vm1234, %v7754, 0
      %v7846 = vsel %vm1234, %v7755, 0
      %v7849 = vsel %vm1234, %v7756, 0
      %v7852 = vsel %vm1234, %v7757, 0
      %7854 = vmatprep.subr.bf16.mxu0 0
      %7855 = vmatpush1.bf16.msra.mxu0 %v7783
      %7856 = vmatprep.subr.bf16.mxu0 0
      %7857 = vmatpush1.bf16.msra.mxu0 %v7784
      %7858 = vmatprep.subr.bf16.mxu0 0
      %7859 = vmatpush1.bf16.msra.mxu0 %v7785
      %7860 = vmatprep.subr.bf16.mxu0 0
      %7861 = vmatpush1.bf16.msra.mxu0 %v7786
      %7862 = vmatprep.subr.bf16.mxu0 0
      %7863 = vmatpush1.bf16.msra.mxu0 0
      %7864 = vmatprep.subr.bf16.mxu0 0
      %7865 = vmatpush1.bf16.msra.mxu0 0
      %7866 = vmatprep.subr.bf16.mxu0 0
      %7867 = vmatpush1.bf16.msra.mxu0 0
      %7868 = vmatprep.subr.bf16.mxu0 0
      %7869 = vmatpush1.bf16.msra.mxu0 0
      %7870 = vmatprep.subr.bf16.mxu0 0
      %7871 = vmatpush1.bf16.msra.mxu0 0
      %7872 = vmatprep.subr.bf16.mxu0 0
      %7873 = vmatpush1.bf16.msra.mxu0 0
      %7874 = vmatprep.subr.bf16.mxu0 0
      %7875 = vmatpush1.bf16.msra.mxu0 0
      %7876 = vmatprep.subr.bf16.mxu0 0
      %7877 = vmatpush1.bf16.msra.mxu0 0
      %7878 = vmatprep.subr.bf16.mxu0 0
      %7879 = vmatpush1.bf16.msra.mxu0 0
      %7880 = vmatprep.subr.bf16.mxu0 0
      %7881 = vmatpush1.bf16.msra.mxu0 0
      %7882 = vmatprep.subr.bf16.mxu0 0
      %7883 = vmatpush1.bf16.msra.mxu0 0
      %7884 = vmatprep.subr.bf16.mxu0 0
      %7885 = vmatpush1.bf16.msra.mxu0 0
      %7886 = vmatprep.mubr.bf16.mxu0 0
      %7887 = vmatmul.mubr.bf16.gmra.mrb[0].mxu0 %v7792
      %v7888 = vpop.f32.mrb[0].mxu0
      %v7889 = vadd.f32 0.0, %v7888
      %v7890 = vpop.f32.mrb[0].mxu0
      %v7891 = vpop.f32.mrb[0].mxu0
      %v7892 = vadd.f32 0.0, %v7891
      %v7893 = vpop.f32.mrb[0].mxu0
      %7894 = vmatprep.mubr.bf16.mxu0 0
      %7895 = vmatmul.mubr.bf16.gmra.mrb[0].mxu0 %v7795
      %v7896 = vpop.f32.mrb[0].mxu0
      %v7897 = vadd.f32 0.0, %v7896
      %v7898 = vpop.f32.mrb[0].mxu0
      %v7899 = vpop.f32.mrb[0].mxu0
      %v7900 = vadd.f32 0.0, %v7899
      %v7901 = vpop.f32.mrb[0].mxu0
      %7902 = vmatprep.mubr.bf16.mxu0 0
      %7903 = vmatmul.mubr.bf16.gmra.mrb[0].mxu0 %v7798
      %v7904 = vpop.f32.mrb[0].mxu0
      %v7905 = vadd.f32 0.0, %v7904
      %v7906 = vpop.f32.mrb[0].mxu0
      %v7907 = vpop.f32.mrb[0].mxu0
      %v7908 = vadd.f32 0.0, %v7907
      %v7909 = vpop.f32.mrb[0].mxu0
      %7910 = vmatprep.mubr.bf16.mxu0 0
      %7911 = vmatmul.mubr.bf16.gmra.mrb[0].mxu0 %v7801
      %v7912 = vpop.f32.mrb[0].mxu0
      %v7913 = vadd.f32 0.0, %v7912
      %v7914 = vpop.f32.mrb[0].mxu0
      %v7915 = vpop.f32.mrb[0].mxu0
      %v7916 = vadd.f32 0.0, %v7915
      %v7917 = vpop.f32.mrb[0].mxu0
      %7918 = vmatprep.mubr.bf16.mxu0 0
      %7919 = vmatmul.mubr.bf16.gmra.mrb[0].mxu0 %v7804
      %v7920 = vpop.f32.mrb[0].mxu0
      %v7921 = vadd.f32 0.0, %v7920
      %v7922 = vpop.f32.mrb[0].mxu0
      %v7923 = vpop.f32.mrb[0].mxu0
      %v7924 = vadd.f32 0.0, %v7923
      %v7925 = vpop.f32.mrb[0].mxu0
      %7926 = vmatprep.mubr.bf16.mxu0 0
      %7927 = vmatmul.mubr.bf16.gmra.mrb[0].mxu0 %v7807
      %v7928 = vpop.f32.mrb[0].mxu0
      %v7929 = vadd.f32 0.0, %v7928
      %v7930 = vpop.f32.mrb[0].mxu0
      %v7931 = vpop.f32.mrb[0].mxu0
      %v7932 = vadd.f32 0.0, %v7931
      %v7933 = vpop.f32.mrb[0].mxu0
      %7934 = vmatprep.mubr.bf16.mxu0 0
      %7935 = vmatmul.mubr.bf16.gmra.mrb[0].mxu0 %v7810
      %v7936 = vpop.f32.mrb[0].mxu0
      %v7937 = vadd.f32 0.0, %v7936
      %v7938 = vpop.f32.mrb[0].mxu0
      %v7939 = vpop.f32.mrb[0].mxu0
      %v7940 = vadd.f32 0.0, %v7939
      %v7941 = vpop.f32.mrb[0].mxu0
      %7942 = vmatprep.mubr.bf16.mxu0 0
      %7943 = vmatmul.mubr.bf16.gmra.mrb[0].mxu0 %v7813
      %v7944 = vpop.f32.mrb[0].mxu0
      %v7945 = vadd.f32 0.0, %v7944
      %v7946 = vpop.f32.mrb[0].mxu0
      %v7947 = vpop.f32.mrb[0].mxu0
      %v7948 = vadd.f32 0.0, %v7947
      %v7949 = vpop.f32.mrb[0].mxu0
      %7950 = vmatprep.mubr.bf16.mxu0 0
      %7951 = vmatmul.mubr.bf16.gmra.mrb[0].mxu0 %v7816
      %v7952 = vpop.f32.mrb[0].mxu0
      %v7953 = vadd.f32 0.0, %v7952
      %v7954 = vpop.f32.mrb[0].mxu0
      %v7955 = vpop.f32.mrb[0].mxu0
      %v7956 = vadd.f32 0.0, %v7955
      %v7957 = vpop.f32.mrb[0].mxu0
      %7958 = vmatprep.mubr.bf16.mxu0 0
      %7959 = vmatmul.mubr.bf16.gmra.mrb[0].mxu0 %v7819
      %v7960 = vpop.f32.mrb[0].mxu0
      %v7961 = vadd.f32 0.0, %v7960
      %v7962 = vpop.f32.mrb[0].mxu0
      %v7963 = vpop.f32.mrb[0].mxu0
      %v7964 = vadd.f32 0.0, %v7963
      %v7965 = vpop.f32.mrb[0].mxu0
      %7966 = vmatprep.mubr.bf16.mxu0 0
      %7967 = vmatmul.mubr.bf16.gmra.mrb[0].mxu0 %v7822
      %v7968 = vpop.f32.mrb[0].mxu0
      %v7969 = vadd.f32 0.0, %v7968
      %v7970 = vpop.f32.mrb[0].mxu0
      %v7971 = vpop.f32.mrb[0].mxu0
      %v7972 = vadd.f32 0.0, %v7971
      %v7973 = vpop.f32.mrb[0].mxu0
      %7974 = vmatprep.mubr.bf16.mxu0 0
      %7975 = vmatmul.mubr.bf16.gmra.mrb[0].mxu0 %v7825
      %v7976 = vpop.f32.mrb[0].mxu0
      %v7977 = vadd.f32 0.0, %v7976
      %v7978 = vpop.f32.mrb[0].mxu0
      %v7979 = vpop.f32.mrb[0].mxu0
      %v7980 = vadd.f32 0.0, %v7979
      %v7981 = vpop.f32.mrb[0].mxu0
      %7982 = vmatprep.mubr.bf16.mxu0 0
      %7983 = vmatmul.mubr.bf16.gmra.mrb[0].mxu0 %v7828
      %v7984 = vpop.f32.mrb[0].mxu0
      %v7985 = vadd.f32 0.0, %v7984
      %v7986 = vpop.f32.mrb[0].mxu0
      %v7987 = vpop.f32.mrb[0].mxu0
      %v7988 = vadd.f32 0.0, %v7987
      %v7989 = vpop.f32.mrb[0].mxu0
      %7990 = vmatprep.mubr.bf16.mxu0 0
      %7991 = vmatmul.mubr.bf16.gmra.mrb[0].mxu0 %v7831
      %v7992 = vpop.f32.mrb[0].mxu0
      %v7993 = vadd.f32 0.0, %v7992
      %v7994 = vpop.f32.mrb[0].mxu0
      %v7995 = vpop.f32.mrb[0].mxu0
      %v7996 = vadd.f32 0.0, %v7995
      %v7997 = vpop.f32.mrb[0].mxu0
      %7998 = vmatprep.mubr.bf16.mxu0 0
      %7999 = vmatmul.mubr.bf16.gmra.mrb[0].mxu0 %v7834
      %v8000 = vpop.f32.mrb[0].mxu0
      %v8001 = vadd.f32 0.0, %v8000
      %v8002 = vpop.f32.mrb[0].mxu0
      %v8003 = vpop.f32.mrb[0].mxu0
      %v8004 = vadd.f32 0.0, %v8003
      %v8005 = vpop.f32.mrb[0].mxu0
      %8006 = vmatprep.mubr.bf16.mxu0 0
      %8007 = vmatmul.mubr.bf16.gmra.mrb[0].mxu0 %v7837
      %v8008 = vpop.f32.mrb[0].mxu0
      %v8009 = vadd.f32 0.0, %v8008
      %v8010 = vpop.f32.mrb[0].mxu0
      %v8011 = vpop.f32.mrb[0].mxu0
      %v8012 = vadd.f32 0.0, %v8011
      %v8013 = vpop.f32.mrb[0].mxu0
      %8014 = vmatprep.mubr.bf16.mxu0 0
      %8015 = vmatmul.mubr.bf16.gmra.mrb[0].mxu0 %v7840
      %v8016 = vpop.f32.mrb[0].mxu0
      %v8017 = vadd.f32 0.0, %v8016
      %v8018 = vpop.f32.mrb[0].mxu0
      %v8019 = vpop.f32.mrb[0].mxu0
      %v8020 = vadd.f32 0.0, %v8019
      %v8021 = vpop.f32.mrb[0].mxu0
      %8022 = vmatprep.mubr.bf16.mxu0 0
      %8023 = vmatmul.mubr.bf16.gmra.mrb[0].mxu0 %v7843
      %v8024 = vpop.f32.mrb[0].mxu0
      %v8025 = vadd.f32 0.0, %v8024
      %v8026 = vpop.f32.mrb[0].mxu0
      %v8027 = vpop.f32.mrb[0].mxu0
      %v8028 = vadd.f32 0.0, %v8027
      %v8029 = vpop.f32.mrb[0].mxu0
      %8030 = vmatprep.mubr.bf16.mxu0 0
      %8031 = vmatmul.mubr.bf16.gmra.mrb[0].mxu0 %v7846
      %v8032 = vpop.f32.mrb[0].mxu0
      %v8033 = vadd.f32 0.0, %v8032
      %v8034 = vpop.f32.mrb[0].mxu0
      %v8035 = vpop.f32.mrb[0].mxu0
      %v8036 = vadd.f32 0.0, %v8035
      %v8037 = vpop.f32.mrb[0].mxu0
      %8038 = vmatprep.mubr.bf16.mxu0 0
      %8039 = vmatmul.mubr.bf16.gmra.mrb[0].mxu0 %v7849
      %v8040 = vpop.f32.mrb[0].mxu0
      %v8041 = vadd.f32 0.0, %v8040
      %v8042 = vpop.f32.mrb[0].mxu0
      %v8043 = vpop.f32.mrb[0].mxu0
      %v8044 = vadd.f32 0.0, %v8043
      %v8045 = vpop.f32.mrb[0].mxu0
      %8046 = vmatprep.mubr.bf16.mxu0 0
      %8047 = vmatmul.mubr.bf16.gmra.mrb[0].mxu0 %v7852
      %v8048 = vpop.f32.mrb[0].mxu0
      %v8049 = vadd.f32 0.0, %v8048
      %v8050 = vpop.f32.mrb[0].mxu0
      %v8051 = vpop.f32.mrb[0].mxu0
      %v8052 = vpop.f32.mrb[0].mxu0
      %8053 = vdwg.mxu0
      %v8054 = vadd.f32 %v7655, %v7889
      %v8055 = vadd.f32 %v7656, %v7892
      %v8056 = vadd.f32 %v7657, %v7897
      %v8057 = vadd.f32 %v7658, %v7900
      %v8058 = vadd.f32 %v7659, %v7905
      %v8059 = vadd.f32 %v7660, %v7908
      %v8060 = vadd.f32 %v7661, %v7913
      %v8061 = vadd.f32 %v7662, %v7916
      %v8062 = vadd.f32 %v7663, %v7921
      %v8063 = vadd.f32 %v7664, %v7924
      %v8064 = vadd.f32 %v7665, %v7929
      %v8065 = vadd.f32 %v7666, %v7932
      %v8066 = vadd.f32 %v7667, %v7937
      %v8067 = vadd.f32 %v7668, %v7940
      %v8068 = vadd.f32 %v7669, %v7945
      %v8069 = vadd.f32 %v7670, %v7948
      %v8070 = vadd.f32 %v7671, %v7953
      %v8071 = vadd.f32 %v7672, %v7956
      %v8072 = vadd.f32 %v7673, %v7961
      %v8073 = vadd.f32 %v7674, %v7964
      %v8074 = vadd.f32 %v7675, %v7969
      %v8075 = vadd.f32 %v7676, %v7972
      %v8076 = vadd.f32 %v7677, %v7977
      %v8077 = vadd.f32 %v7678, %v7980
      %v8078 = vadd.f32 %v7679, %v7985
      %v8079 = vadd.f32 %v7680, %v7988
      %v8080 = vadd.f32 %v7681, %v7993
      %v8081 = vadd.f32 %v7682, %v7996
      %v8082 = vadd.f32 %v7683, %v8001
      %v8083 = vadd.f32 %v7684, %v8004
      %v8084 = vadd.f32 %v7685, %v8009
      %v8085 = vadd.f32 %v7686, %v8012
      %v8086 = vadd.f32 %v7687, %v8017
      %v8087 = vadd.f32 %v7688, %v8020
      %v8088 = vadd.f32 %v7689, %v8025
      %v8089 = vadd.f32 %v7690, %v8028
      %v8090 = vadd.f32 %v7691, %v8033
      %v8091 = vadd.f32 %v7692, %v8036
      %v8092 = vadd.f32 %v7693, %v8041
      %v8093 = vadd.f32 %v7694, %v8044
      %v8094 = vadd.f32 %v7695, %v8049
      %v8095 = vld [vmem:[#allocation3 + $0x19] sm:$0xff]
      %v8096 = vld [vmem:[#allocation3 + $0x21] sm:$0xff]
      %v8097 = vld [vmem:[#allocation3 + $0x29] sm:$0xff]
      %v8098 = vld [vmem:[#allocation3 + $0x31] sm:$0xff]
      %v8099 = vld [vmem:[#allocation3 + $0x39] sm:$0xff]
      %v8100 = vld [vmem:[#allocation3 + $0x41] sm:$0xff]
      %v8101 = vld [vmem:[#allocation3 + $0x49] sm:$0xff]
      %v8102 = vld [vmem:[#allocation3 + $0x51] sm:$0xff]
      %v8103 = vld [vmem:[#allocation3 + $0x59] sm:$0xff]
      %v8104 = vld [vmem:[#allocation3 + $0x61] sm:$0xff]
      %v8105 = vld [vmem:[#allocation3 + $0x69] sm:$0xff]
      %v8106 = vld [vmem:[#allocation3 + $0x71] sm:$0xff]
      %v8107 = vld [vmem:[#allocation3 + $0x79] sm:$0xff]
      %v8108 = vld [vmem:[#allocation3 + $0x81] sm:$0xff]
      %v8109 = vld [vmem:[#allocation3 + $0x89] sm:$0xff]
      %v8110 = vld [vmem:[#allocation3 + $0x91] sm:$0xff]
      %v8111 = vld [vmem:[#allocation3 + $0x99] sm:$0xff]
      %v8112 = vld [vmem:[#allocation3 + $0xa1] sm:$0xff]
      %v8113 = vld [vmem:[#allocation3 + $0xa9] sm:$0xff]
      %v8114 = vld [vmem:[#allocation3 + $0xb1] sm:$0xff]
      %v8115 = vld [vmem:[#allocation3 + $0xb9] sm:$0xff]
      %v8116 = vld [vmem:[#allocation3 + $0xc1] sm:$0xff]
      %v8117 = vld [vmem:[#allocation3 + $0xc9] sm:$0xff]
      %v8118 = vld [vmem:[#allocation3 + $0xd1] sm:$0xff]
      %v8119 = vld [vmem:[#allocation3 + $0xd9] sm:$0xff]
      %v8120 = vld [vmem:[#allocation3 + $0xe1] sm:$0xff]
      %v8121 = vld [vmem:[#allocation3 + $0xe9] sm:$0xff]
      %v8122 = vld [vmem:[#allocation3 + $0xf1] sm:$0xff]
      %v8123 = vld [vmem:[#allocation3 + $0xf9] sm:$0xff]
      %v8124 = vld [vmem:[#allocation3 + $0x101] sm:$0xff]
      %v8125 = vld [vmem:[#allocation3 + $0x109] sm:$0xff]
      %v8126 = vld [vmem:[#allocation3 + $0x111] sm:$0xff]
      %v8127 = vld [vmem:[#allocation3 + $0x119] sm:$0xff]
      %v8128 = vld [vmem:[#allocation3 + $0x121] sm:$0xff]
      %v8129 = vld [vmem:[#allocation3 + $0x129] sm:$0xff]
      %v8130 = vld [vmem:[#allocation3 + $0x131] sm:$0xff]
      %v8131 = vld [vmem:[#allocation3 + $0x139] sm:$0xff]
      %v8132 = vld [vmem:[#allocation3 + $0x141] sm:$0xff]
      %v8133 = vld [vmem:[#allocation3 + $0x149] sm:$0xff]
      %v8134 = vld [vmem:[#allocation3 + $0x151] sm:$0xff]
      %v8135 = vld [vmem:[#allocation3 + $0x159] sm:$0xff]
      %v8136 = vpack.c.bf16 %v8096, %v8095
      %v8137 = vpack.c.bf16 %v8098, %v8097
      %v8138 = vpack.c.bf16 %v8100, %v8099
      %v8139 = vpack.c.bf16 %v8102, %v8101
      %v8140 = vpack.c.bf16 %v8104, %v8103
      %v8141 = vpack.c.bf16 %v8106, %v8105
      %v8142 = vpack.c.bf16 %v8108, %v8107
      %v8143 = vpack.c.bf16 %v8110, %v8109
      %v8144 = vpack.c.bf16 %v8112, %v8111
      %v8145 = vpack.c.bf16 %v8114, %v8113
      %v8146 = vpack.c.bf16 %v8116, %v8115
      %v8147 = vpack.c.bf16 %v8118, %v8117
      %v8148 = vpack.c.bf16 %v8120, %v8119
      %v8149 = vpack.c.bf16 %v8122, %v8121
      %v8150 = vpack.c.bf16 %v8124, %v8123
      %v8151 = vpack.c.bf16 %v8126, %v8125
      %v8152 = vpack.c.bf16 %v8128, %v8127
      %v8153 = vpack.c.bf16 %v8130, %v8129
      %v8154 = vpack.c.bf16 %v8132, %v8131
      %v8155 = vpack.c.bf16 %v8134, %v8133
      %v8156 = vpack.c.bf16 %v8135, %v8135
      %s8157 = scalar_lea.vmem %s11, 160
      %v8158 = vld [vmem:[%s8157] sm:$0xf]
      %v8159 = vld [vmem:[%s8157 + $0x4] sm:$0xf]
      %v8160 = vld [vmem:[%s8157 + $0x8] sm:$0xf]
      %v8161 = vld [vmem:[%s8157 + $0xc] sm:$0xf]
      %v8162 = vld [vmem:[%s8157 + $0x10] sm:$0xf]
      %v8163 = vld [vmem:[%s8157 + $0x14] sm:$0xf]
      %v8164 = vld [vmem:[%s8157 + $0x18] sm:$0xf]
      %v8165 = vld [vmem:[%s8157 + $0x1c] sm:$0xf]
      %v8174 = vunpack.c.l.b16 %v8158
      %v8175 = vunpack.c.l.b16 %v8159
      %v8176 = vunpack.c.l.b16 %v8160
      %v8177 = vunpack.c.l.b16 %v8161
      %v8178 = vunpack.c.l.b16 %v8162
      %v8179 = vunpack.c.l.b16 %v8163
      %v8180 = vunpack.c.l.b16 %v8164
      %v8181 = vunpack.c.l.b16 %v8165
      %v8182 = vpack.c.b16 %v8175, %v8174
      %v8183 = vpack.c.b16 %v8177, %v8176
      %v8184 = vpack.c.b16 %v8179, %v8178
      %v8185 = vpack.c.b16 %v8181, %v8180
      %v8191 = vsel %vm1234, %v8136, 0
      %v8194 = vsel %vm1234, %v8137, 0
      %v8197 = vsel %vm1234, %v8138, 0
      %v8200 = vsel %vm1234, %v8139, 0
      %v8203 = vsel %vm1234, %v8140, 0
      %v8206 = vsel %vm1234, %v8141, 0
      %v8209 = vsel %vm1234, %v8142, 0
      %v8212 = vsel %vm1234, %v8143, 0
      %v8215 = vsel %vm1234, %v8144, 0
      %v8218 = vsel %vm1234, %v8145, 0
      %v8221 = vsel %vm1234, %v8146, 0
      %v8224 = vsel %vm1234, %v8147, 0
      %v8227 = vsel %vm1234, %v8148, 0
      %v8230 = vsel %vm1234, %v8149, 0
      %v8233 = vsel %vm1234, %v8150, 0
      %v8236 = vsel %vm1234, %v8151, 0
      %v8239 = vsel %vm1234, %v8152, 0
      %v8242 = vsel %vm1234, %v8153, 0
      %v8245 = vsel %vm1234, %v8154, 0
      %v8248 = vsel %vm1234, %v8155, 0
      %v8251 = vsel %vm1234, %v8156, 0
      %8253 = vmatprep.subr.bf16.mxu0 0
      %8254 = vmatpush1.bf16.msra.mxu0 %v8182
      %8255 = vmatprep.subr.bf16.mxu0 0
      %8256 = vmatpush1.bf16.msra.mxu0 %v8183
      %8257 = vmatprep.subr.bf16.mxu0 0
      %8258 = vmatpush1.bf16.msra.mxu0 %v8184
      %8259 = vmatprep.subr.bf16.mxu0 0
      %8260 = vmatpush1.bf16.msra.mxu0 %v8185
      %8261 = vmatprep.subr.bf16.mxu0 0
      %8262 = vmatpush1.bf16.msra.mxu0 0
      %8263 = vmatprep.subr.bf16.mxu0 0
      %8264 = vmatpush1.bf16.msra.mxu0 0
      %8265 = vmatprep.subr.bf16.mxu0 0
      %8266 = vmatpush1.bf16.msra.mxu0 0
      %8267 = vmatprep.subr.bf16.mxu0 0
      %8268 = vmatpush1.bf16.msra.mxu0 0
      %8269 = vmatprep.subr.bf16.mxu0 0
      %8270 = vmatpush1.bf16.msra.mxu0 0
      %8271 = vmatprep.subr.bf16.mxu0 0
      %8272 = vmatpush1.bf16.msra.mxu0 0
      %8273 = vmatprep.subr.bf16.mxu0 0
      %8274 = vmatpush1.bf16.msra.mxu0 0
      %8275 = vmatprep.subr.bf16.mxu0 0
      %8276 = vmatpush1.bf16.msra.mxu0 0
      %8277 = vmatprep.subr.bf16.mxu0 0
      %8278 = vmatpush1.bf16.msra.mxu0 0
      %8279 = vmatprep.subr.bf16.mxu0 0
      %8280 = vmatpush1.bf16.msra.mxu0 0
      %8281 = vmatprep.subr.bf16.mxu0 0
      %8282 = vmatpush1.bf16.msra.mxu0 0
      %8283 = vmatprep.subr.bf16.mxu0 0
      %8284 = vmatpush1.bf16.msra.mxu0 0
      %8285 = vmatprep.mubr.bf16.mxu0 0
      %8286 = vmatmul.mubr.bf16.gmra.mrb[0].mxu0 %v8191
      %v8287 = vpop.f32.mrb[0].mxu0
      %v8288 = vadd.f32 0.0, %v8287
      %v8289 = vpop.f32.mrb[0].mxu0
      %v8290 = vpop.f32.mrb[0].mxu0
      %v8291 = vadd.f32 0.0, %v8290
      %v8292 = vpop.f32.mrb[0].mxu0
      %8293 = vmatprep.mubr.bf16.mxu0 0
      %8294 = vmatmul.mubr.bf16.gmra.mrb[0].mxu0 %v8194
      %v8295 = vpop.f32.mrb[0].mxu0
      %v8296 = vadd.f32 0.0, %v8295
      %v8297 = vpop.f32.mrb[0].mxu0
      %v8298 = vpop.f32.mrb[0].mxu0
      %v8299 = vadd.f32 0.0, %v8298
      %v8300 = vpop.f32.mrb[0].mxu0
      %8301 = vmatprep.mubr.bf16.mxu0 0
      %8302 = vmatmul.mubr.bf16.gmra.mrb[0].mxu0 %v8197
      %v8303 = vpop.f32.mrb[0].mxu0
      %v8304 = vadd.f32 0.0, %v8303
      %v8305 = vpop.f32.mrb[0].mxu0
      %v8306 = vpop.f32.mrb[0].mxu0
      %v8307 = vadd.f32 0.0, %v8306
      %v8308 = vpop.f32.mrb[0].mxu0
      %8309 = vmatprep.mubr.bf16.mxu0 0
      %8310 = vmatmul.mubr.bf16.gmra.mrb[0].mxu0 %v8200
      %v8311 = vpop.f32.mrb[0].mxu0
      %v8312 = vadd.f32 0.0, %v8311
      %v8313 = vpop.f32.mrb[0].mxu0
      %v8314 = vpop.f32.mrb[0].mxu0
      %v8315 = vadd.f32 0.0, %v8314
      %v8316 = vpop.f32.mrb[0].mxu0
      %8317 = vmatprep.mubr.bf16.mxu0 0
      %8318 = vmatmul.mubr.bf16.gmra.mrb[0].mxu0 %v8203
      %v8319 = vpop.f32.mrb[0].mxu0
      %v8320 = vadd.f32 0.0, %v8319
      %v8321 = vpop.f32.mrb[0].mxu0
      %v8322 = vpop.f32.mrb[0].mxu0
      %v8323 = vadd.f32 0.0, %v8322
      %v8324 = vpop.f32.mrb[0].mxu0
      %8325 = vmatprep.mubr.bf16.mxu0 0
      %8326 = vmatmul.mubr.bf16.gmra.mrb[0].mxu0 %v8206
      %v8327 = vpop.f32.mrb[0].mxu0
      %v8328 = vadd.f32 0.0, %v8327
      %v8329 = vpop.f32.mrb[0].mxu0
      %v8330 = vpop.f32.mrb[0].mxu0
      %v8331 = vadd.f32 0.0, %v8330
      %v8332 = vpop.f32.mrb[0].mxu0
      %8333 = vmatprep.mubr.bf16.mxu0 0
      %8334 = vmatmul.mubr.bf16.gmra.mrb[0].mxu0 %v8209
      %v8335 = vpop.f32.mrb[0].mxu0
      %v8336 = vadd.f32 0.0, %v8335
      %v8337 = vpop.f32.mrb[0].mxu0
      %v8338 = vpop.f32.mrb[0].mxu0
      %v8339 = vadd.f32 0.0, %v8338
      %v8340 = vpop.f32.mrb[0].mxu0
      %8341 = vmatprep.mubr.bf16.mxu0 0
      %8342 = vmatmul.mubr.bf16.gmra.mrb[0].mxu0 %v8212
      %v8343 = vpop.f32.mrb[0].mxu0
      %v8344 = vadd.f32 0.0, %v8343
      %v8345 = vpop.f32.mrb[0].mxu0
      %v8346 = vpop.f32.mrb[0].mxu0
      %v8347 = vadd.f32 0.0, %v8346
      %v8348 = vpop.f32.mrb[0].mxu0
      %8349 = vmatprep.mubr.bf16.mxu0 0
      %8350 = vmatmul.mubr.bf16.gmra.mrb[0].mxu0 %v8215
      %v8351 = vpop.f32.mrb[0].mxu0
      %v8352 = vadd.f32 0.0, %v8351
      %v8353 = vpop.f32.mrb[0].mxu0
      %v8354 = vpop.f32.mrb[0].mxu0
      %v8355 = vadd.f32 0.0, %v8354
      %v8356 = vpop.f32.mrb[0].mxu0
      %8357 = vmatprep.mubr.bf16.mxu0 0
      %8358 = vmatmul.mubr.bf16.gmra.mrb[0].mxu0 %v8218
      %v8359 = vpop.f32.mrb[0].mxu0
      %v8360 = vadd.f32 0.0, %v8359
      %v8361 = vpop.f32.mrb[0].mxu0
      %v8362 = vpop.f32.mrb[0].mxu0
      %v8363 = vadd.f32 0.0, %v8362
      %v8364 = vpop.f32.mrb[0].mxu0
      %8365 = vmatprep.mubr.bf16.mxu0 0
      %8366 = vmatmul.mubr.bf16.gmra.mrb[0].mxu0 %v8221
      %v8367 = vpop.f32.mrb[0].mxu0
      %v8368 = vadd.f32 0.0, %v8367
      %v8369 = vpop.f32.mrb[0].mxu0
      %v8370 = vpop.f32.mrb[0].mxu0
      %v8371 = vadd.f32 0.0, %v8370
      %v8372 = vpop.f32.mrb[0].mxu0
      %8373 = vmatprep.mubr.bf16.mxu0 0
      %8374 = vmatmul.mubr.bf16.gmra.mrb[0].mxu0 %v8224
      %v8375 = vpop.f32.mrb[0].mxu0
      %v8376 = vadd.f32 0.0, %v8375
      %v8377 = vpop.f32.mrb[0].mxu0
      %v8378 = vpop.f32.mrb[0].mxu0
      %v8379 = vadd.f32 0.0, %v8378
      %v8380 = vpop.f32.mrb[0].mxu0
      %8381 = vmatprep.mubr.bf16.mxu0 0
      %8382 = vmatmul.mubr.bf16.gmra.mrb[0].mxu0 %v8227
      %v8383 = vpop.f32.mrb[0].mxu0
      %v8384 = vadd.f32 0.0, %v8383
      %v8385 = vpop.f32.mrb[0].mxu0
      %v8386 = vpop.f32.mrb[0].mxu0
      %v8387 = vadd.f32 0.0, %v8386
      %v8388 = vpop.f32.mrb[0].mxu0
      %8389 = vmatprep.mubr.bf16.mxu0 0
      %8390 = vmatmul.mubr.bf16.gmra.mrb[0].mxu0 %v8230
      %v8391 = vpop.f32.mrb[0].mxu0
      %v8392 = vadd.f32 0.0, %v8391
      %v8393 = vpop.f32.mrb[0].mxu0
      %v8394 = vpop.f32.mrb[0].mxu0
      %v8395 = vadd.f32 0.0, %v8394
      %v8396 = vpop.f32.mrb[0].mxu0
      %8397 = vmatprep.mubr.bf16.mxu0 0
      %8398 = vmatmul.mubr.bf16.gmra.mrb[0].mxu0 %v8233
      %v8399 = vpop.f32.mrb[0].mxu0
      %v8400 = vadd.f32 0.0, %v8399
      %v8401 = vpop.f32.mrb[0].mxu0
      %v8402 = vpop.f32.mrb[0].mxu0
      %v8403 = vadd.f32 0.0, %v8402
      %v8404 = vpop.f32.mrb[0].mxu0
      %8405 = vmatprep.mubr.bf16.mxu0 0
      %8406 = vmatmul.mubr.bf16.gmra.mrb[0].mxu0 %v8236
      %v8407 = vpop.f32.mrb[0].mxu0
      %v8408 = vadd.f32 0.0, %v8407
      %v8409 = vpop.f32.mrb[0].mxu0
      %v8410 = vpop.f32.mrb[0].mxu0
      %v8411 = vadd.f32 0.0, %v8410
      %v8412 = vpop.f32.mrb[0].mxu0
      %8413 = vmatprep.mubr.bf16.mxu0 0
      %8414 = vmatmul.mubr.bf16.gmra.mrb[0].mxu0 %v8239
      %v8415 = vpop.f32.mrb[0].mxu0
      %v8416 = vadd.f32 0.0, %v8415
      %v8417 = vpop.f32.mrb[0].mxu0
      %v8418 = vpop.f32.mrb[0].mxu0
      %v8419 = vadd.f32 0.0, %v8418
      %v8420 = vpop.f32.mrb[0].mxu0
      %8421 = vmatprep.mubr.bf16.mxu0 0
      %8422 = vmatmul.mubr.bf16.gmra.mrb[0].mxu0 %v8242
      %v8423 = vpop.f32.mrb[0].mxu0
      %v8424 = vadd.f32 0.0, %v8423
      %v8425 = vpop.f32.mrb[0].mxu0
      %v8426 = vpop.f32.mrb[0].mxu0
      %v8427 = vadd.f32 0.0, %v8426
      %v8428 = vpop.f32.mrb[0].mxu0
      %8429 = vmatprep.mubr.bf16.mxu0 0
      %8430 = vmatmul.mubr.bf16.gmra.mrb[0].mxu0 %v8245
      %v8431 = vpop.f32.mrb[0].mxu0
      %v8432 = vadd.f32 0.0, %v8431
      %v8433 = vpop.f32.mrb[0].mxu0
      %v8434 = vpop.f32.mrb[0].mxu0
      %v8435 = vadd.f32 0.0, %v8434
      %v8436 = vpop.f32.mrb[0].mxu0
      %8437 = vmatprep.mubr.bf16.mxu0 0
      %8438 = vmatmul.mubr.bf16.gmra.mrb[0].mxu0 %v8248
      %v8439 = vpop.f32.mrb[0].mxu0
      %v8440 = vadd.f32 0.0, %v8439
      %v8441 = vpop.f32.mrb[0].mxu0
      %v8442 = vpop.f32.mrb[0].mxu0
      %v8443 = vadd.f32 0.0, %v8442
      %v8444 = vpop.f32.mrb[0].mxu0
      %8445 = vmatprep.mubr.bf16.mxu0 0
      %8446 = vmatmul.mubr.bf16.gmra.mrb[0].mxu0 %v8251
      %v8447 = vpop.f32.mrb[0].mxu0
      %v8448 = vadd.f32 0.0, %v8447
      %v8449 = vpop.f32.mrb[0].mxu0
      %v8450 = vpop.f32.mrb[0].mxu0
      %v8451 = vpop.f32.mrb[0].mxu0
      %8452 = vdwg.mxu0
      %v8453 = vadd.f32 %v8054, %v8288
      %v8454 = vadd.f32 %v8055, %v8291
      %v8455 = vadd.f32 %v8056, %v8296
      %v8456 = vadd.f32 %v8057, %v8299
      %v8457 = vadd.f32 %v8058, %v8304
      %v8458 = vadd.f32 %v8059, %v8307
      %v8459 = vadd.f32 %v8060, %v8312
      %v8460 = vadd.f32 %v8061, %v8315
      %v8461 = vadd.f32 %v8062, %v8320
      %v8462 = vadd.f32 %v8063, %v8323
      %v8463 = vadd.f32 %v8064, %v8328
      %v8464 = vadd.f32 %v8065, %v8331
      %v8465 = vadd.f32 %v8066, %v8336
      %v8466 = vadd.f32 %v8067, %v8339
      %v8467 = vadd.f32 %v8068, %v8344
      %v8468 = vadd.f32 %v8069, %v8347
      %v8469 = vadd.f32 %v8070, %v8352
      %v8470 = vadd.f32 %v8071, %v8355
      %v8471 = vadd.f32 %v8072, %v8360
      %v8472 = vadd.f32 %v8073, %v8363
      %v8473 = vadd.f32 %v8074, %v8368
      %v8474 = vadd.f32 %v8075, %v8371
      %v8475 = vadd.f32 %v8076, %v8376
      %v8476 = vadd.f32 %v8077, %v8379
      %v8477 = vadd.f32 %v8078, %v8384
      %v8478 = vadd.f32 %v8079, %v8387
      %v8479 = vadd.f32 %v8080, %v8392
      %v8480 = vadd.f32 %v8081, %v8395
      %v8481 = vadd.f32 %v8082, %v8400
      %v8482 = vadd.f32 %v8083, %v8403
      %v8483 = vadd.f32 %v8084, %v8408
      %v8484 = vadd.f32 %v8085, %v8411
      %v8485 = vadd.f32 %v8086, %v8416
      %v8486 = vadd.f32 %v8087, %v8419
      %v8487 = vadd.f32 %v8088, %v8424
      %v8488 = vadd.f32 %v8089, %v8427
      %v8489 = vadd.f32 %v8090, %v8432
      %v8490 = vadd.f32 %v8091, %v8435
      %v8491 = vadd.f32 %v8092, %v8440
      %v8492 = vadd.f32 %v8093, %v8443
      %v8493 = vadd.f32 %v8094, %v8448
      %v8494 = vld [vmem:[#allocation3 + $0x29] sm:$0xff]
      %v8495 = vld [vmem:[#allocation3 + $0x31] sm:$0xff]
      %v8496 = vld [vmem:[#allocation3 + $0x39] sm:$0xff]
      %v8497 = vld [vmem:[#allocation3 + $0x41] sm:$0xff]
      %v8498 = vld [vmem:[#allocation3 + $0x49] sm:$0xff]
      %v8499 = vld [vmem:[#allocation3 + $0x51] sm:$0xff]
      %v8500 = vld [vmem:[#allocation3 + $0x59] sm:$0xff]
      %v8501 = vld [vmem:[#allocation3 + $0x61] sm:$0xff]
      %v8502 = vld [vmem:[#allocation3 + $0x69] sm:$0xff]
      %v8503 = vld [vmem:[#allocation3 + $0x71] sm:$0xff]
      %v8504 = vld [vmem:[#allocation3 + $0x79] sm:$0xff]
      %v8505 = vld [vmem:[#allocation3 + $0x81] sm:$0xff]
      %v8506 = vld [vmem:[#allocation3 + $0x89] sm:$0xff]
      %v8507 = vld [vmem:[#allocation3 + $0x91] sm:$0xff]
      %v8508 = vld [vmem:[#allocation3 + $0x99] sm:$0xff]
      %v8509 = vld [vmem:[#allocation3 + $0xa1] sm:$0xff]
      %v8510 = vld [vmem:[#allocation3 + $0xa9] sm:$0xff]
      %v8511 = vld [vmem:[#allocation3 + $0xb1] sm:$0xff]
      %v8512 = vld [vmem:[#allocation3 + $0xb9] sm:$0xff]
      %v8513 = vld [vmem:[#allocation3 + $0xc1] sm:$0xff]
      %v8514 = vld [vmem:[#allocation3 + $0xc9] sm:$0xff]
      %v8515 = vld [vmem:[#allocation3 + $0xd1] sm:$0xff]
      %v8516 = vld [vmem:[#allocation3 + $0xd9] sm:$0xff]
      %v8517 = vld [vmem:[#allocation3 + $0xe1] sm:$0xff]
      %v8518 = vld [vmem:[#allocation3 + $0xe9] sm:$0xff]
      %v8519 = vld [vmem:[#allocation3 + $0xf1] sm:$0xff]
      %v8520 = vld [vmem:[#allocation3 + $0xf9] sm:$0xff]
      %v8521 = vld [vmem:[#allocation3 + $0x101] sm:$0xff]
      %v8522 = vld [vmem:[#allocation3 + $0x109] sm:$0xff]
      %v8523 = vld [vmem:[#allocation3 + $0x111] sm:$0xff]
      %v8524 = vld [vmem:[#allocation3 + $0x119] sm:$0xff]
      %v8525 = vld [vmem:[#allocation3 + $0x121] sm:$0xff]
      %v8526 = vld [vmem:[#allocation3 + $0x129] sm:$0xff]
      %v8527 = vld [vmem:[#allocation3 + $0x131] sm:$0xff]
      %v8528 = vld [vmem:[#allocation3 + $0x139] sm:$0xff]
      %v8529 = vld [vmem:[#allocation3 + $0x141] sm:$0xff]
      %v8530 = vld [vmem:[#allocation3 + $0x149] sm:$0xff]
      %v8531 = vld [vmem:[#allocation3 + $0x151] sm:$0xff]
      %v8532 = vld [vmem:[#allocation3 + $0x159] sm:$0xff]
      %v8533 = vld [vmem:[#allocation3 + $0x161] sm:$0xff]
      %v8534 = vld [vmem:[#allocation3 + $0x169] sm:$0xff]
      %v8535 = vpack.c.bf16 %v8495, %v8494
      %v8536 = vpack.c.bf16 %v8497, %v8496
      %v8537 = vpack.c.bf16 %v8499, %v8498
      %v8538 = vpack.c.bf16 %v8501, %v8500
      %v8539 = vpack.c.bf16 %v8503, %v8502
      %v8540 = vpack.c.bf16 %v8505, %v8504
      %v8541 = vpack.c.bf16 %v8507, %v8506
      %v8542 = vpack.c.bf16 %v8509, %v8508
      %v8543 = vpack.c.bf16 %v8511, %v8510
      %v8544 = vpack.c.bf16 %v8513, %v8512
      %v8545 = vpack.c.bf16 %v8515, %v8514
      %v8546 = vpack.c.bf16 %v8517, %v8516
      %v8547 = vpack.c.bf16 %v8519, %v8518
      %v8548 = vpack.c.bf16 %v8521, %v8520
      %v8549 = vpack.c.bf16 %v8523, %v8522
      %v8550 = vpack.c.bf16 %v8525, %v8524
      %v8551 = vpack.c.bf16 %v8527, %v8526
      %v8552 = vpack.c.bf16 %v8529, %v8528
      %v8553 = vpack.c.bf16 %v8531, %v8530
      %v8554 = vpack.c.bf16 %v8533, %v8532
      %v8555 = vpack.c.bf16 %v8534, %v8534
      %s8556 = scalar_lea.vmem %s11, 192
      %v8557 = vld [vmem:[%s8556] sm:$0xf]
      %v8558 = vld [vmem:[%s8556 + $0x4] sm:$0xf]
      %v8559 = vld [vmem:[%s8556 + $0x8] sm:$0xf]
      %v8560 = vld [vmem:[%s8556 + $0xc] sm:$0xf]
      %v8561 = vld [vmem:[%s8556 + $0x10] sm:$0xf]
      %v8562 = vld [vmem:[%s8556 + $0x14] sm:$0xf]
      %v8563 = vld [vmem:[%s8556 + $0x18] sm:$0xf]
      %v8564 = vld [vmem:[%s8556 + $0x1c] sm:$0xf]
      %v8573 = vunpack.c.l.b16 %v8557
      %v8574 = vunpack.c.l.b16 %v8558
      %v8575 = vunpack.c.l.b16 %v8559
      %v8576 = vunpack.c.l.b16 %v8560
      %v8577 = vunpack.c.l.b16 %v8561
      %v8578 = vunpack.c.l.b16 %v8562
      %v8579 = vunpack.c.l.b16 %v8563
      %v8580 = vunpack.c.l.b16 %v8564
      %v8581 = vpack.c.b16 %v8574, %v8573
      %v8582 = vpack.c.b16 %v8576, %v8575
      %v8583 = vpack.c.b16 %v8578, %v8577
      %v8584 = vpack.c.b16 %v8580, %v8579
      %v8590 = vsel %vm1234, %v8535, 0
      %v8593 = vsel %vm1234, %v8536, 0
      %v8596 = vsel %vm1234, %v8537, 0
      %v8599 = vsel %vm1234, %v8538, 0
      %v8602 = vsel %vm1234, %v8539, 0
      %v8605 = vsel %vm1234, %v8540, 0
      %v8608 = vsel %vm1234, %v8541, 0
      %v8611 = vsel %vm1234, %v8542, 0
      %v8614 = vsel %vm1234, %v8543, 0
      %v8617 = vsel %vm1234, %v8544, 0
      %v8620 = vsel %vm1234, %v8545, 0
      %v8623 = vsel %vm1234, %v8546, 0
      %v8626 = vsel %vm1234, %v8547, 0
      %v8629 = vsel %vm1234, %v8548, 0
      %v8632 = vsel %vm1234, %v8549, 0
      %v8635 = vsel %vm1234, %v8550, 0
      %v8638 = vsel %vm1234, %v8551, 0
      %v8641 = vsel %vm1234, %v8552, 0
      %v8644 = vsel %vm1234, %v8553, 0
      %v8647 = vsel %vm1234, %v8554, 0
      %v8650 = vsel %vm1234, %v8555, 0
      %8652 = vmatprep.subr.bf16.mxu0 0
      %8653 = vmatpush1.bf16.msra.mxu0 %v8581
      %8654 = vmatprep.subr.bf16.mxu0 0
      %8655 = vmatpush1.bf16.msra.mxu0 %v8582
      %8656 = vmatprep.subr.bf16.mxu0 0
      %8657 = vmatpush1.bf16.msra.mxu0 %v8583
      %8658 = vmatprep.subr.bf16.mxu0 0
      %8659 = vmatpush1.bf16.msra.mxu0 %v8584
      %8660 = vmatprep.subr.bf16.mxu0 0
      %8661 = vmatpush1.bf16.msra.mxu0 0
      %8662 = vmatprep.subr.bf16.mxu0 0
      %8663 = vmatpush1.bf16.msra.mxu0 0
      %8664 = vmatprep.subr.bf16.mxu0 0
      %8665 = vmatpush1.bf16.msra.mxu0 0
      %8666 = vmatprep.subr.bf16.mxu0 0
      %8667 = vmatpush1.bf16.msra.mxu0 0
      %8668 = vmatprep.subr.bf16.mxu0 0
      %8669 = vmatpush1.bf16.msra.mxu0 0
      %8670 = vmatprep.subr.bf16.mxu0 0
      %8671 = vmatpush1.bf16.msra.mxu0 0
      %8672 = vmatprep.subr.bf16.mxu0 0
      %8673 = vmatpush1.bf16.msra.mxu0 0
      %8674 = vmatprep.subr.bf16.mxu0 0
      %8675 = vmatpush1.bf16.msra.mxu0 0
      %8676 = vmatprep.subr.bf16.mxu0 0
      %8677 = vmatpush1.bf16.msra.mxu0 0
      %8678 = vmatprep.subr.bf16.mxu0 0
      %8679 = vmatpush1.bf16.msra.mxu0 0
      %8680 = vmatprep.subr.bf16.mxu0 0
      %8681 = vmatpush1.bf16.msra.mxu0 0
      %8682 = vmatprep.subr.bf16.mxu0 0
      %8683 = vmatpush1.bf16.msra.mxu0 0
      %8684 = vmatprep.mubr.bf16.mxu0 0
      %8685 = vmatmul.mubr.bf16.gmra.mrb[0].mxu0 %v8590
      %v8686 = vpop.f32.mrb[0].mxu0
      %v8687 = vadd.f32 0.0, %v8686
      %v8688 = vpop.f32.mrb[0].mxu0
      %v8689 = vpop.f32.mrb[0].mxu0
      %v8690 = vadd.f32 0.0, %v8689
      %v8691 = vpop.f32.mrb[0].mxu0
      %8692 = vmatprep.mubr.bf16.mxu0 0
      %8693 = vmatmul.mubr.bf16.gmra.mrb[0].mxu0 %v8593
      %v8694 = vpop.f32.mrb[0].mxu0
      %v8695 = vadd.f32 0.0, %v8694
      %v8696 = vpop.f32.mrb[0].mxu0
      %v8697 = vpop.f32.mrb[0].mxu0
      %v8698 = vadd.f32 0.0, %v8697
      %v8699 = vpop.f32.mrb[0].mxu0
      %8700 = vmatprep.mubr.bf16.mxu0 0
      %8701 = vmatmul.mubr.bf16.gmra.mrb[0].mxu0 %v8596
      %v8702 = vpop.f32.mrb[0].mxu0
      %v8703 = vadd.f32 0.0, %v8702
      %v8704 = vpop.f32.mrb[0].mxu0
      %v8705 = vpop.f32.mrb[0].mxu0
      %v8706 = vadd.f32 0.0, %v8705
      %v8707 = vpop.f32.mrb[0].mxu0
      %8708 = vmatprep.mubr.bf16.mxu0 0
      %8709 = vmatmul.mubr.bf16.gmra.mrb[0].mxu0 %v8599
      %v8710 = vpop.f32.mrb[0].mxu0
      %v8711 = vadd.f32 0.0, %v8710
      %v8712 = vpop.f32.mrb[0].mxu0
      %v8713 = vpop.f32.mrb[0].mxu0
      %v8714 = vadd.f32 0.0, %v8713
      %v8715 = vpop.f32.mrb[0].mxu0
      %8716 = vmatprep.mubr.bf16.mxu0 0
      %8717 = vmatmul.mubr.bf16.gmra.mrb[0].mxu0 %v8602
      %v8718 = vpop.f32.mrb[0].mxu0
      %v8719 = vadd.f32 0.0, %v8718
      %v8720 = vpop.f32.mrb[0].mxu0
      %v8721 = vpop.f32.mrb[0].mxu0
      %v8722 = vadd.f32 0.0, %v8721
      %v8723 = vpop.f32.mrb[0].mxu0
      %8724 = vmatprep.mubr.bf16.mxu0 0
      %8725 = vmatmul.mubr.bf16.gmra.mrb[0].mxu0 %v8605
      %v8726 = vpop.f32.mrb[0].mxu0
      %v8727 = vadd.f32 0.0, %v8726
      %v8728 = vpop.f32.mrb[0].mxu0
      %v8729 = vpop.f32.mrb[0].mxu0
      %v8730 = vadd.f32 0.0, %v8729
      %v8731 = vpop.f32.mrb[0].mxu0
      %8732 = vmatprep.mubr.bf16.mxu0 0
      %8733 = vmatmul.mubr.bf16.gmra.mrb[0].mxu0 %v8608
      %v8734 = vpop.f32.mrb[0].mxu0
      %v8735 = vadd.f32 0.0, %v8734
      %v8736 = vpop.f32.mrb[0].mxu0
      %v8737 = vpop.f32.mrb[0].mxu0
      %v8738 = vadd.f32 0.0, %v8737
      %v8739 = vpop.f32.mrb[0].mxu0
      %8740 = vmatprep.mubr.bf16.mxu0 0
      %8741 = vmatmul.mubr.bf16.gmra.mrb[0].mxu0 %v8611
      %v8742 = vpop.f32.mrb[0].mxu0
      %v8743 = vadd.f32 0.0, %v8742
      %v8744 = vpop.f32.mrb[0].mxu0
      %v8745 = vpop.f32.mrb[0].mxu0
      %v8746 = vadd.f32 0.0, %v8745
      %v8747 = vpop.f32.mrb[0].mxu0
      %8748 = vmatprep.mubr.bf16.mxu0 0
      %8749 = vmatmul.mubr.bf16.gmra.mrb[0].mxu0 %v8614
      %v8750 = vpop.f32.mrb[0].mxu0
      %v8751 = vadd.f32 0.0, %v8750
      %v8752 = vpop.f32.mrb[0].mxu0
      %v8753 = vpop.f32.mrb[0].mxu0
      %v8754 = vadd.f32 0.0, %v8753
      %v8755 = vpop.f32.mrb[0].mxu0
      %8756 = vmatprep.mubr.bf16.mxu0 0
      %8757 = vmatmul.mubr.bf16.gmra.mrb[0].mxu0 %v8617
      %v8758 = vpop.f32.mrb[0].mxu0
      %v8759 = vadd.f32 0.0, %v8758
      %v8760 = vpop.f32.mrb[0].mxu0
      %v8761 = vpop.f32.mrb[0].mxu0
      %v8762 = vadd.f32 0.0, %v8761
      %v8763 = vpop.f32.mrb[0].mxu0
      %8764 = vmatprep.mubr.bf16.mxu0 0
      %8765 = vmatmul.mubr.bf16.gmra.mrb[0].mxu0 %v8620
      %v8766 = vpop.f32.mrb[0].mxu0
      %v8767 = vadd.f32 0.0, %v8766
      %v8768 = vpop.f32.mrb[0].mxu0
      %v8769 = vpop.f32.mrb[0].mxu0
      %v8770 = vadd.f32 0.0, %v8769
      %v8771 = vpop.f32.mrb[0].mxu0
      %8772 = vmatprep.mubr.bf16.mxu0 0
      %8773 = vmatmul.mubr.bf16.gmra.mrb[0].mxu0 %v8623
      %v8774 = vpop.f32.mrb[0].mxu0
      %v8775 = vadd.f32 0.0, %v8774
      %v8776 = vpop.f32.mrb[0].mxu0
      %v8777 = vpop.f32.mrb[0].mxu0
      %v8778 = vadd.f32 0.0, %v8777
      %v8779 = vpop.f32.mrb[0].mxu0
      %8780 = vmatprep.mubr.bf16.mxu0 0
      %8781 = vmatmul.mubr.bf16.gmra.mrb[0].mxu0 %v8626
      %v8782 = vpop.f32.mrb[0].mxu0
      %v8783 = vadd.f32 0.0, %v8782
      %v8784 = vpop.f32.mrb[0].mxu0
      %v8785 = vpop.f32.mrb[0].mxu0
      %v8786 = vadd.f32 0.0, %v8785
      %v8787 = vpop.f32.mrb[0].mxu0
      %8788 = vmatprep.mubr.bf16.mxu0 0
      %8789 = vmatmul.mubr.bf16.gmra.mrb[0].mxu0 %v8629
      %v8790 = vpop.f32.mrb[0].mxu0
      %v8791 = vadd.f32 0.0, %v8790
      %v8792 = vpop.f32.mrb[0].mxu0
      %v8793 = vpop.f32.mrb[0].mxu0
      %v8794 = vadd.f32 0.0, %v8793
      %v8795 = vpop.f32.mrb[0].mxu0
      %8796 = vmatprep.mubr.bf16.mxu0 0
      %8797 = vmatmul.mubr.bf16.gmra.mrb[0].mxu0 %v8632
      %v8798 = vpop.f32.mrb[0].mxu0
      %v8799 = vadd.f32 0.0, %v8798
      %v8800 = vpop.f32.mrb[0].mxu0
      %v8801 = vpop.f32.mrb[0].mxu0
      %v8802 = vadd.f32 0.0, %v8801
      %v8803 = vpop.f32.mrb[0].mxu0
      %8804 = vmatprep.mubr.bf16.mxu0 0
      %8805 = vmatmul.mubr.bf16.gmra.mrb[0].mxu0 %v8635
      %v8806 = vpop.f32.mrb[0].mxu0
      %v8807 = vadd.f32 0.0, %v8806
      %v8808 = vpop.f32.mrb[0].mxu0
      %v8809 = vpop.f32.mrb[0].mxu0
      %v8810 = vadd.f32 0.0, %v8809
      %v8811 = vpop.f32.mrb[0].mxu0
      %8812 = vmatprep.mubr.bf16.mxu0 0
      %8813 = vmatmul.mubr.bf16.gmra.mrb[0].mxu0 %v8638
      %v8814 = vpop.f32.mrb[0].mxu0
      %v8815 = vadd.f32 0.0, %v8814
      %v8816 = vpop.f32.mrb[0].mxu0
      %v8817 = vpop.f32.mrb[0].mxu0
      %v8818 = vadd.f32 0.0, %v8817
      %v8819 = vpop.f32.mrb[0].mxu0
      %8820 = vmatprep.mubr.bf16.mxu0 0
      %8821 = vmatmul.mubr.bf16.gmra.mrb[0].mxu0 %v8641
      %v8822 = vpop.f32.mrb[0].mxu0
      %v8823 = vadd.f32 0.0, %v8822
      %v8824 = vpop.f32.mrb[0].mxu0
      %v8825 = vpop.f32.mrb[0].mxu0
      %v8826 = vadd.f32 0.0, %v8825
      %v8827 = vpop.f32.mrb[0].mxu0
      %8828 = vmatprep.mubr.bf16.mxu0 0
      %8829 = vmatmul.mubr.bf16.gmra.mrb[0].mxu0 %v8644
      %v8830 = vpop.f32.mrb[0].mxu0
      %v8831 = vadd.f32 0.0, %v8830
      %v8832 = vpop.f32.mrb[0].mxu0
      %v8833 = vpop.f32.mrb[0].mxu0
      %v8834 = vadd.f32 0.0, %v8833
      %v8835 = vpop.f32.mrb[0].mxu0
      %8836 = vmatprep.mubr.bf16.mxu0 0
      %8837 = vmatmul.mubr.bf16.gmra.mrb[0].mxu0 %v8647
      %v8838 = vpop.f32.mrb[0].mxu0
      %v8839 = vadd.f32 0.0, %v8838
      %v8840 = vpop.f32.mrb[0].mxu0
      %v8841 = vpop.f32.mrb[0].mxu0
      %v8842 = vadd.f32 0.0, %v8841
      %v8843 = vpop.f32.mrb[0].mxu0
      %8844 = vmatprep.mubr.bf16.mxu0 0
      %8845 = vmatmul.mubr.bf16.gmra.mrb[0].mxu0 %v8650
      %v8846 = vpop.f32.mrb[0].mxu0
      %v8847 = vadd.f32 0.0, %v8846
      %v8848 = vpop.f32.mrb[0].mxu0
      %v8849 = vpop.f32.mrb[0].mxu0
      %v8850 = vpop.f32.mrb[0].mxu0
      %8851 = vdwg.mxu0
      %v8852 = vadd.f32 %v8453, %v8687
      %v8853 = vadd.f32 %v8454, %v8690
      %v8854 = vadd.f32 %v8455, %v8695
      %v8855 = vadd.f32 %v8456, %v8698
      %v8856 = vadd.f32 %v8457, %v8703
      %v8857 = vadd.f32 %v8458, %v8706
      %v8858 = vadd.f32 %v8459, %v8711
      %v8859 = vadd.f32 %v8460, %v8714
      %v8860 = vadd.f32 %v8461, %v8719
      %v8861 = vadd.f32 %v8462, %v8722
      %v8862 = vadd.f32 %v8463, %v8727
      %v8863 = vadd.f32 %v8464, %v8730
      %v8864 = vadd.f32 %v8465, %v8735
      %v8865 = vadd.f32 %v8466, %v8738
      %v8866 = vadd.f32 %v8467, %v8743
      %v8867 = vadd.f32 %v8468, %v8746
      %v8868 = vadd.f32 %v8469, %v8751
      %v8869 = vadd.f32 %v8470, %v8754
      %v8870 = vadd.f32 %v8471, %v8759
      %v8871 = vadd.f32 %v8472, %v8762
      %v8872 = vadd.f32 %v8473, %v8767
      %v8873 = vadd.f32 %v8474, %v8770
      %v8874 = vadd.f32 %v8475, %v8775
      %v8875 = vadd.f32 %v8476, %v8778
      %v8876 = vadd.f32 %v8477, %v8783
      %v8877 = vadd.f32 %v8478, %v8786
      %v8878 = vadd.f32 %v8479, %v8791
      %v8879 = vadd.f32 %v8480, %v8794
      %v8880 = vadd.f32 %v8481, %v8799
      %v8881 = vadd.f32 %v8482, %v8802
      %v8882 = vadd.f32 %v8483, %v8807
      %v8883 = vadd.f32 %v8484, %v8810
      %v8884 = vadd.f32 %v8485, %v8815
      %v8885 = vadd.f32 %v8486, %v8818
      %v8886 = vadd.f32 %v8487, %v8823
      %v8887 = vadd.f32 %v8488, %v8826
      %v8888 = vadd.f32 %v8489, %v8831
      %v8889 = vadd.f32 %v8490, %v8834
      %v8890 = vadd.f32 %v8491, %v8839
      %v8891 = vadd.f32 %v8492, %v8842
      %v8892 = vadd.f32 %v8493, %v8847
      %v8893 = vld [vmem:[#allocation3 + $0x2a] sm:$0xff]
      %v8894 = vld [vmem:[#allocation3 + $0x32] sm:$0xff]
      %v8895 = vld [vmem:[#allocation3 + $0x3a] sm:$0xff]
      %v8896 = vld [vmem:[#allocation3 + $0x42] sm:$0xff]
      %v8897 = vld [vmem:[#allocation3 + $0x4a] sm:$0xff]
      %v8898 = vld [vmem:[#allocation3 + $0x52] sm:$0xff]
      %v8899 = vld [vmem:[#allocation3 + $0x5a] sm:$0xff]
      %v8900 = vld [vmem:[#allocation3 + $0x62] sm:$0xff]
      %v8901 = vld [vmem:[#allocation3 + $0x6a] sm:$0xff]
      %v8902 = vld [vmem:[#allocation3 + $0x72] sm:$0xff]
      %v8903 = vld [vmem:[#allocation3 + $0x7a] sm:$0xff]
      %v8904 = vld [vmem:[#allocation3 + $0x82] sm:$0xff]
      %v8905 = vld [vmem:[#allocation3 + $0x8a] sm:$0xff]
      %v8906 = vld [vmem:[#allocation3 + $0x92] sm:$0xff]
      %v8907 = vld [vmem:[#allocation3 + $0x9a] sm:$0xff]
      %v8908 = vld [vmem:[#allocation3 + $0xa2] sm:$0xff]
      %v8909 = vld [vmem:[#allocation3 + $0xaa] sm:$0xff]
      %v8910 = vld [vmem:[#allocation3 + $0xb2] sm:$0xff]
      %v8911 = vld [vmem:[#allocation3 + $0xba] sm:$0xff]
      %v8912 = vld [vmem:[#allocation3 + $0xc2] sm:$0xff]
      %v8913 = vld [vmem:[#allocation3 + $0xca] sm:$0xff]
      %v8914 = vld [vmem:[#allocation3 + $0xd2] sm:$0xff]
      %v8915 = vld [vmem:[#allocation3 + $0xda] sm:$0xff]
      %v8916 = vld [vmem:[#allocation3 + $0xe2] sm:$0xff]
      %v8917 = vld [vmem:[#allocation3 + $0xea] sm:$0xff]
      %v8918 = vld [vmem:[#allocation3 + $0xf2] sm:$0xff]
      %v8919 = vld [vmem:[#allocation3 + $0xfa] sm:$0xff]
      %v8920 = vld [vmem:[#allocation3 + $0x102] sm:$0xff]
      %v8921 = vld [vmem:[#allocation3 + $0x10a] sm:$0xff]
      %v8922 = vld [vmem:[#allocation3 + $0x112] sm:$0xff]
      %v8923 = vld [vmem:[#allocation3 + $0x11a] sm:$0xff]
      %v8924 = vld [vmem:[#allocation3 + $0x122] sm:$0xff]
      %v8925 = vld [vmem:[#allocation3 + $0x12a] sm:$0xff]
      %v8926 = vld [vmem:[#allocation3 + $0x132] sm:$0xff]
      %v8927 = vld [vmem:[#allocation3 + $0x13a] sm:$0xff]
      %v8928 = vld [vmem:[#allocation3 + $0x142] sm:$0xff]
      %v8929 = vld [vmem:[#allocation3 + $0x14a] sm:$0xff]
      %v8930 = vld [vmem:[#allocation3 + $0x152] sm:$0xff]
      %v8931 = vld [vmem:[#allocation3 + $0x15a] sm:$0xff]
      %v8932 = vld [vmem:[#allocation3 + $0x162] sm:$0xff]
      %v8933 = vld [vmem:[#allocation3 + $0x16a] sm:$0xff]
      %v8934 = vpack.c.bf16 %v8894, %v8893
      %v8935 = vpack.c.bf16 %v8896, %v8895
      %v8936 = vpack.c.bf16 %v8898, %v8897
      %v8937 = vpack.c.bf16 %v8900, %v8899
      %v8938 = vpack.c.bf16 %v8902, %v8901
      %v8939 = vpack.c.bf16 %v8904, %v8903
      %v8940 = vpack.c.bf16 %v8906, %v8905
      %v8941 = vpack.c.bf16 %v8908, %v8907
      %v8942 = vpack.c.bf16 %v8910, %v8909
      %v8943 = vpack.c.bf16 %v8912, %v8911
      %v8944 = vpack.c.bf16 %v8914, %v8913
      %v8945 = vpack.c.bf16 %v8916, %v8915
      %v8946 = vpack.c.bf16 %v8918, %v8917
      %v8947 = vpack.c.bf16 %v8920, %v8919
      %v8948 = vpack.c.bf16 %v8922, %v8921
      %v8949 = vpack.c.bf16 %v8924, %v8923
      %v8950 = vpack.c.bf16 %v8926, %v8925
      %v8951 = vpack.c.bf16 %v8928, %v8927
      %v8952 = vpack.c.bf16 %v8930, %v8929
      %v8953 = vpack.c.bf16 %v8932, %v8931
      %v8954 = vpack.c.bf16 %v8933, %v8933
      %s8955 = scalar_lea.vmem %s11, 224
      %v8956 = vld [vmem:[%s8955] sm:$0xf]
      %v8957 = vld [vmem:[%s8955 + $0x4] sm:$0xf]
      %v8958 = vld [vmem:[%s8955 + $0x8] sm:$0xf]
      %v8959 = vld [vmem:[%s8955 + $0xc] sm:$0xf]
      %v8960 = vld [vmem:[%s8955 + $0x10] sm:$0xf]
      %v8961 = vld [vmem:[%s8955 + $0x14] sm:$0xf]
      %v8962 = vld [vmem:[%s8955 + $0x18] sm:$0xf]
      %v8963 = vld [vmem:[%s8955 + $0x1c] sm:$0xf]
      %v8972 = vunpack.c.l.b16 %v8956
      %v8973 = vunpack.c.l.b16 %v8957
      %v8974 = vunpack.c.l.b16 %v8958
      %v8975 = vunpack.c.l.b16 %v8959
      %v8976 = vunpack.c.l.b16 %v8960
      %v8977 = vunpack.c.l.b16 %v8961
      %v8978 = vunpack.c.l.b16 %v8962
      %v8979 = vunpack.c.l.b16 %v8963
      %v8980 = vpack.c.b16 %v8973, %v8972
      %v8981 = vpack.c.b16 %v8975, %v8974
      %v8982 = vpack.c.b16 %v8977, %v8976
      %v8983 = vpack.c.b16 %v8979, %v8978
      %v8989 = vsel %vm1234, %v8934, 0
      %v8992 = vsel %vm1234, %v8935, 0
      %v8995 = vsel %vm1234, %v8936, 0
      %v8998 = vsel %vm1234, %v8937, 0
      %v9001 = vsel %vm1234, %v8938, 0
      %v9004 = vsel %vm1234, %v8939, 0
      %v9007 = vsel %vm1234, %v8940, 0
      %v9010 = vsel %vm1234, %v8941, 0
      %v9013 = vsel %vm1234, %v8942, 0
      %v9016 = vsel %vm1234, %v8943, 0
      %v9019 = vsel %vm1234, %v8944, 0
      %v9022 = vsel %vm1234, %v8945, 0
      %v9025 = vsel %vm1234, %v8946, 0
      %v9028 = vsel %vm1234, %v8947, 0
      %v9031 = vsel %vm1234, %v8948, 0
      %v9034 = vsel %vm1234, %v8949, 0
      %v9037 = vsel %vm1234, %v8950, 0
      %v9040 = vsel %vm1234, %v8951, 0
      %v9043 = vsel %vm1234, %v8952, 0
      %v9046 = vsel %vm1234, %v8953, 0
      %v9049 = vsel %vm1234, %v8954, 0
      %9051 = vmatprep.subr.bf16.mxu0 0
      %9052 = vmatpush1.bf16.msra.mxu0 %v8980
      %9053 = vmatprep.subr.bf16.mxu0 0
      %9054 = vmatpush1.bf16.msra.mxu0 %v8981
      %9055 = vmatprep.subr.bf16.mxu0 0
      %9056 = vmatpush1.bf16.msra.mxu0 %v8982
      %9057 = vmatprep.subr.bf16.mxu0 0
      %9058 = vmatpush1.bf16.msra.mxu0 %v8983
      %9059 = vmatprep.subr.bf16.mxu0 0
      %9060 = vmatpush1.bf16.msra.mxu0 0
      %9061 = vmatprep.subr.bf16.mxu0 0
      %9062 = vmatpush1.bf16.msra.mxu0 0
      %9063 = vmatprep.subr.bf16.mxu0 0
      %9064 = vmatpush1.bf16.msra.mxu0 0
      %9065 = vmatprep.subr.bf16.mxu0 0
      %9066 = vmatpush1.bf16.msra.mxu0 0
      %9067 = vmatprep.subr.bf16.mxu0 0
      %9068 = vmatpush1.bf16.msra.mxu0 0
      %9069 = vmatprep.subr.bf16.mxu0 0
      %9070 = vmatpush1.bf16.msra.mxu0 0
      %9071 = vmatprep.subr.bf16.mxu0 0
      %9072 = vmatpush1.bf16.msra.mxu0 0
      %9073 = vmatprep.subr.bf16.mxu0 0
      %9074 = vmatpush1.bf16.msra.mxu0 0
      %9075 = vmatprep.subr.bf16.mxu0 0
      %9076 = vmatpush1.bf16.msra.mxu0 0
      %9077 = vmatprep.subr.bf16.mxu0 0
      %9078 = vmatpush1.bf16.msra.mxu0 0
      %9079 = vmatprep.subr.bf16.mxu0 0
      %9080 = vmatpush1.bf16.msra.mxu0 0
      %9081 = vmatprep.subr.bf16.mxu0 0
      %9082 = vmatpush1.bf16.msra.mxu0 0
      %9083 = vmatprep.mubr.bf16.mxu0 0
      %9084 = vmatmul.mubr.bf16.gmra.mrb[0].mxu0 %v8989
      %v9085 = vpop.f32.mrb[0].mxu0
      %v9086 = vadd.f32 0.0, %v9085
      %v9087 = vpop.f32.mrb[0].mxu0
      %v9088 = vpop.f32.mrb[0].mxu0
      %v9089 = vadd.f32 0.0, %v9088
      %v9090 = vpop.f32.mrb[0].mxu0
      %9091 = vmatprep.mubr.bf16.mxu0 0
      %9092 = vmatmul.mubr.bf16.gmra.mrb[0].mxu0 %v8992
      %v9093 = vpop.f32.mrb[0].mxu0
      %v9094 = vadd.f32 0.0, %v9093
      %v9095 = vpop.f32.mrb[0].mxu0
      %v9096 = vpop.f32.mrb[0].mxu0
      %v9097 = vadd.f32 0.0, %v9096
      %v9098 = vpop.f32.mrb[0].mxu0
      %9099 = vmatprep.mubr.bf16.mxu0 0
      %9100 = vmatmul.mubr.bf16.gmra.mrb[0].mxu0 %v8995
      %v9101 = vpop.f32.mrb[0].mxu0
      %v9102 = vadd.f32 0.0, %v9101
      %v9103 = vpop.f32.mrb[0].mxu0
      %v9104 = vpop.f32.mrb[0].mxu0
      %v9105 = vadd.f32 0.0, %v9104
      %v9106 = vpop.f32.mrb[0].mxu0
      %9107 = vmatprep.mubr.bf16.mxu0 0
      %9108 = vmatmul.mubr.bf16.gmra.mrb[0].mxu0 %v8998
      %v9109 = vpop.f32.mrb[0].mxu0
      %v9110 = vadd.f32 0.0, %v9109
      %v9111 = vpop.f32.mrb[0].mxu0
      %v9112 = vpop.f32.mrb[0].mxu0
      %v9113 = vadd.f32 0.0, %v9112
      %v9114 = vpop.f32.mrb[0].mxu0
      %9115 = vmatprep.mubr.bf16.mxu0 0
      %9116 = vmatmul.mubr.bf16.gmra.mrb[0].mxu0 %v9001
      %v9117 = vpop.f32.mrb[0].mxu0
      %v9118 = vadd.f32 0.0, %v9117
      %v9119 = vpop.f32.mrb[0].mxu0
      %v9120 = vpop.f32.mrb[0].mxu0
      %v9121 = vadd.f32 0.0, %v9120
      %v9122 = vpop.f32.mrb[0].mxu0
      %9123 = vmatprep.mubr.bf16.mxu0 0
      %9124 = vmatmul.mubr.bf16.gmra.mrb[0].mxu0 %v9004
      %v9125 = vpop.f32.mrb[0].mxu0
      %v9126 = vadd.f32 0.0, %v9125
      %v9127 = vpop.f32.mrb[0].mxu0
      %v9128 = vpop.f32.mrb[0].mxu0
      %v9129 = vadd.f32 0.0, %v9128
      %v9130 = vpop.f32.mrb[0].mxu0
      %9131 = vmatprep.mubr.bf16.mxu0 0
      %9132 = vmatmul.mubr.bf16.gmra.mrb[0].mxu0 %v9007
      %v9133 = vpop.f32.mrb[0].mxu0
      %v9134 = vadd.f32 0.0, %v9133
      %v9135 = vpop.f32.mrb[0].mxu0
      %v9136 = vpop.f32.mrb[0].mxu0
      %v9137 = vadd.f32 0.0, %v9136
      %v9138 = vpop.f32.mrb[0].mxu0
      %9139 = vmatprep.mubr.bf16.mxu0 0
      %9140 = vmatmul.mubr.bf16.gmra.mrb[0].mxu0 %v9010
      %v9141 = vpop.f32.mrb[0].mxu0
      %v9142 = vadd.f32 0.0, %v9141
      %v9143 = vpop.f32.mrb[0].mxu0
      %v9144 = vpop.f32.mrb[0].mxu0
      %v9145 = vadd.f32 0.0, %v9144
      %v9146 = vpop.f32.mrb[0].mxu0
      %9147 = vmatprep.mubr.bf16.mxu0 0
      %9148 = vmatmul.mubr.bf16.gmra.mrb[0].mxu0 %v9013
      %v9149 = vpop.f32.mrb[0].mxu0
      %v9150 = vadd.f32 0.0, %v9149
      %v9151 = vpop.f32.mrb[0].mxu0
      %v9152 = vpop.f32.mrb[0].mxu0
      %v9153 = vadd.f32 0.0, %v9152
      %v9154 = vpop.f32.mrb[0].mxu0
      %9155 = vmatprep.mubr.bf16.mxu0 0
      %9156 = vmatmul.mubr.bf16.gmra.mrb[0].mxu0 %v9016
      %v9157 = vpop.f32.mrb[0].mxu0
      %v9158 = vadd.f32 0.0, %v9157
      %v9159 = vpop.f32.mrb[0].mxu0
      %v9160 = vpop.f32.mrb[0].mxu0
      %v9161 = vadd.f32 0.0, %v9160
      %v9162 = vpop.f32.mrb[0].mxu0
      %9163 = vmatprep.mubr.bf16.mxu0 0
      %9164 = vmatmul.mubr.bf16.gmra.mrb[0].mxu0 %v9019
      %v9165 = vpop.f32.mrb[0].mxu0
      %v9166 = vadd.f32 0.0, %v9165
      %v9167 = vpop.f32.mrb[0].mxu0
      %v9168 = vpop.f32.mrb[0].mxu0
      %v9169 = vadd.f32 0.0, %v9168
      %v9170 = vpop.f32.mrb[0].mxu0
      %9171 = vmatprep.mubr.bf16.mxu0 0
      %9172 = vmatmul.mubr.bf16.gmra.mrb[0].mxu0 %v9022
      %v9173 = vpop.f32.mrb[0].mxu0
      %v9174 = vadd.f32 0.0, %v9173
      %v9175 = vpop.f32.mrb[0].mxu0
      %v9176 = vpop.f32.mrb[0].mxu0
      %v9177 = vadd.f32 0.0, %v9176
      %v9178 = vpop.f32.mrb[0].mxu0
      %9179 = vmatprep.mubr.bf16.mxu0 0
      %9180 = vmatmul.mubr.bf16.gmra.mrb[0].mxu0 %v9025
      %v9181 = vpop.f32.mrb[0].mxu0
      %v9182 = vadd.f32 0.0, %v9181
      %v9183 = vpop.f32.mrb[0].mxu0
      %v9184 = vpop.f32.mrb[0].mxu0
      %v9185 = vadd.f32 0.0, %v9184
      %v9186 = vpop.f32.mrb[0].mxu0
      %9187 = vmatprep.mubr.bf16.mxu0 0
      %9188 = vmatmul.mubr.bf16.gmra.mrb[0].mxu0 %v9028
      %v9189 = vpop.f32.mrb[0].mxu0
      %v9190 = vadd.f32 0.0, %v9189
      %v9191 = vpop.f32.mrb[0].mxu0
      %v9192 = vpop.f32.mrb[0].mxu0
      %v9193 = vadd.f32 0.0, %v9192
      %v9194 = vpop.f32.mrb[0].mxu0
      %9195 = vmatprep.mubr.bf16.mxu0 0
      %9196 = vmatmul.mubr.bf16.gmra.mrb[0].mxu0 %v9031
      %v9197 = vpop.f32.mrb[0].mxu0
      %v9198 = vadd.f32 0.0, %v9197
      %v9199 = vpop.f32.mrb[0].mxu0
      %v9200 = vpop.f32.mrb[0].mxu0
      %v9201 = vadd.f32 0.0, %v9200
      %v9202 = vpop.f32.mrb[0].mxu0
      %9203 = vmatprep.mubr.bf16.mxu0 0
      %9204 = vmatmul.mubr.bf16.gmra.mrb[0].mxu0 %v9034
      %v9205 = vpop.f32.mrb[0].mxu0
      %v9206 = vadd.f32 0.0, %v9205
      %v9207 = vpop.f32.mrb[0].mxu0
      %v9208 = vpop.f32.mrb[0].mxu0
      %v9209 = vadd.f32 0.0, %v9208
      %v9210 = vpop.f32.mrb[0].mxu0
      %9211 = vmatprep.mubr.bf16.mxu0 0
      %9212 = vmatmul.mubr.bf16.gmra.mrb[0].mxu0 %v9037
      %v9213 = vpop.f32.mrb[0].mxu0
      %v9214 = vadd.f32 0.0, %v9213
      %v9215 = vpop.f32.mrb[0].mxu0
      %v9216 = vpop.f32.mrb[0].mxu0
      %v9217 = vadd.f32 0.0, %v9216
      %v9218 = vpop.f32.mrb[0].mxu0
      %9219 = vmatprep.mubr.bf16.mxu0 0
      %9220 = vmatmul.mubr.bf16.gmra.mrb[0].mxu0 %v9040
      %v9221 = vpop.f32.mrb[0].mxu0
      %v9222 = vadd.f32 0.0, %v9221
      %v9223 = vpop.f32.mrb[0].mxu0
      %v9224 = vpop.f32.mrb[0].mxu0
      %v9225 = vadd.f32 0.0, %v9224
      %v9226 = vpop.f32.mrb[0].mxu0
      %9227 = vmatprep.mubr.bf16.mxu0 0
      %9228 = vmatmul.mubr.bf16.gmra.mrb[0].mxu0 %v9043
      %v9229 = vpop.f32.mrb[0].mxu0
      %v9230 = vadd.f32 0.0, %v9229
      %v9231 = vpop.f32.mrb[0].mxu0
      %v9232 = vpop.f32.mrb[0].mxu0
      %v9233 = vadd.f32 0.0, %v9232
      %v9234 = vpop.f32.mrb[0].mxu0
      %9235 = vmatprep.mubr.bf16.mxu0 0
      %9236 = vmatmul.mubr.bf16.gmra.mrb[0].mxu0 %v9046
      %v9237 = vpop.f32.mrb[0].mxu0
      %v9238 = vadd.f32 0.0, %v9237
      %v9239 = vpop.f32.mrb[0].mxu0
      %v9240 = vpop.f32.mrb[0].mxu0
      %v9241 = vadd.f32 0.0, %v9240
      %v9242 = vpop.f32.mrb[0].mxu0
      %9243 = vmatprep.mubr.bf16.mxu0 0
      %9244 = vmatmul.mubr.bf16.gmra.mrb[0].mxu0 %v9049
      %v9245 = vpop.f32.mrb[0].mxu0
      %v9246 = vadd.f32 0.0, %v9245
      %v9247 = vpop.f32.mrb[0].mxu0
      %v9248 = vpop.f32.mrb[0].mxu0
      %v9249 = vpop.f32.mrb[0].mxu0
      %9250 = vdwg.mxu0
      %v9251 = vadd.f32 %v8852, %v9086
      %v9252 = vadd.f32 %v8853, %v9089
      %v9253 = vadd.f32 %v8854, %v9094
      %v9254 = vadd.f32 %v8855, %v9097
      %v9255 = vadd.f32 %v8856, %v9102
      %v9256 = vadd.f32 %v8857, %v9105
      %v9257 = vadd.f32 %v8858, %v9110
      %v9258 = vadd.f32 %v8859, %v9113
      %v9259 = vadd.f32 %v8860, %v9118
      %v9260 = vadd.f32 %v8861, %v9121
      %v9261 = vadd.f32 %v8862, %v9126
      %v9262 = vadd.f32 %v8863, %v9129
      %v9263 = vadd.f32 %v8864, %v9134
      %v9264 = vadd.f32 %v8865, %v9137
      %v9265 = vadd.f32 %v8866, %v9142
      %v9266 = vadd.f32 %v8867, %v9145
      %v9267 = vadd.f32 %v8868, %v9150
      %v9268 = vadd.f32 %v8869, %v9153
      %v9269 = vadd.f32 %v8870, %v9158
      %v9270 = vadd.f32 %v8871, %v9161
      %v9271 = vadd.f32 %v8872, %v9166
      %v9272 = vadd.f32 %v8873, %v9169
      %v9273 = vadd.f32 %v8874, %v9174
      %v9274 = vadd.f32 %v8875, %v9177
      %v9275 = vadd.f32 %v8876, %v9182
      %v9276 = vadd.f32 %v8877, %v9185
      %v9277 = vadd.f32 %v8878, %v9190
      %v9278 = vadd.f32 %v8879, %v9193
      %v9279 = vadd.f32 %v8880, %v9198
      %v9280 = vadd.f32 %v8881, %v9201
      %v9281 = vadd.f32 %v8882, %v9206
      %v9282 = vadd.f32 %v8883, %v9209
      %v9283 = vadd.f32 %v8884, %v9214
      %v9284 = vadd.f32 %v8885, %v9217
      %v9285 = vadd.f32 %v8886, %v9222
      %v9286 = vadd.f32 %v8887, %v9225
      %v9287 = vadd.f32 %v8888, %v9230
      %v9288 = vadd.f32 %v8889, %v9233
      %v9289 = vadd.f32 %v8890, %v9238
      %v9290 = vadd.f32 %v8891, %v9241
      %v9291 = vadd.f32 %v8892, %v9246
      %v9292 = vld [vmem:[#allocation3 + $0x2b] sm:$0xff]
      %v9293 = vld [vmem:[#allocation3 + $0x33] sm:$0xff]
      %v9294 = vld [vmem:[#allocation3 + $0x3b] sm:$0xff]
      %v9295 = vld [vmem:[#allocation3 + $0x43] sm:$0xff]
      %v9296 = vld [vmem:[#allocation3 + $0x4b] sm:$0xff]
      %v9297 = vld [vmem:[#allocation3 + $0x53] sm:$0xff]
      %v9298 = vld [vmem:[#allocation3 + $0x5b] sm:$0xff]
      %v9299 = vld [vmem:[#allocation3 + $0x63] sm:$0xff]
      %v9300 = vld [vmem:[#allocation3 + $0x6b] sm:$0xff]
      %v9301 = vld [vmem:[#allocation3 + $0x73] sm:$0xff]
      %v9302 = vld [vmem:[#allocation3 + $0x7b] sm:$0xff]
      %v9303 = vld [vmem:[#allocation3 + $0x83] sm:$0xff]
      %v9304 = vld [vmem:[#allocation3 + $0x8b] sm:$0xff]
      %v9305 = vld [vmem:[#allocation3 + $0x93] sm:$0xff]
      %v9306 = vld [vmem:[#allocation3 + $0x9b] sm:$0xff]
      %v9307 = vld [vmem:[#allocation3 + $0xa3] sm:$0xff]
      %v9308 = vld [vmem:[#allocation3 + $0xab] sm:$0xff]
      %v9309 = vld [vmem:[#allocation3 + $0xb3] sm:$0xff]
      %v9310 = vld [vmem:[#allocation3 + $0xbb] sm:$0xff]
      %v9311 = vld [vmem:[#allocation3 + $0xc3] sm:$0xff]
      %v9312 = vld [vmem:[#allocation3 + $0xcb] sm:$0xff]
      %v9313 = vld [vmem:[#allocation3 + $0xd3] sm:$0xff]
      %v9314 = vld [vmem:[#allocation3 + $0xdb] sm:$0xff]
      %v9315 = vld [vmem:[#allocation3 + $0xe3] sm:$0xff]
      %v9316 = vld [vmem:[#allocation3 + $0xeb] sm:$0xff]
      %v9317 = vld [vmem:[#allocation3 + $0xf3] sm:$0xff]
      %v9318 = vld [vmem:[#allocation3 + $0xfb] sm:$0xff]
      %v9319 = vld [vmem:[#allocation3 + $0x103] sm:$0xff]
      %v9320 = vld [vmem:[#allocation3 + $0x10b] sm:$0xff]
      %v9321 = vld [vmem:[#allocation3 + $0x113] sm:$0xff]
      %v9322 = vld [vmem:[#allocation3 + $0x11b] sm:$0xff]
      %v9323 = vld [vmem:[#allocation3 + $0x123] sm:$0xff]
      %v9324 = vld [vmem:[#allocation3 + $0x12b] sm:$0xff]
      %v9325 = vld [vmem:[#allocation3 + $0x133] sm:$0xff]
      %v9326 = vld [vmem:[#allocation3 + $0x13b] sm:$0xff]
      %v9327 = vld [vmem:[#allocation3 + $0x143] sm:$0xff]
      %v9328 = vld [vmem:[#allocation3 + $0x14b] sm:$0xff]
      %v9329 = vld [vmem:[#allocation3 + $0x153] sm:$0xff]
      %v9330 = vld [vmem:[#allocation3 + $0x15b] sm:$0xff]
      %v9331 = vld [vmem:[#allocation3 + $0x163] sm:$0xff]
      %v9332 = vld [vmem:[#allocation3 + $0x16b] sm:$0xff]
      %v9333 = vpack.c.bf16 %v9293, %v9292
      %v9334 = vpack.c.bf16 %v9295, %v9294
      %v9335 = vpack.c.bf16 %v9297, %v9296
      %v9336 = vpack.c.bf16 %v9299, %v9298
      %v9337 = vpack.c.bf16 %v9301, %v9300
      %v9338 = vpack.c.bf16 %v9303, %v9302
      %v9339 = vpack.c.bf16 %v9305, %v9304
      %v9340 = vpack.c.bf16 %v9307, %v9306
      %v9341 = vpack.c.bf16 %v9309, %v9308
      %v9342 = vpack.c.bf16 %v9311, %v9310
      %v9343 = vpack.c.bf16 %v9313, %v9312
      %v9344 = vpack.c.bf16 %v9315, %v9314
      %v9345 = vpack.c.bf16 %v9317, %v9316
      %v9346 = vpack.c.bf16 %v9319, %v9318
      %v9347 = vpack.c.bf16 %v9321, %v9320
      %v9348 = vpack.c.bf16 %v9323, %v9322
      %v9349 = vpack.c.bf16 %v9325, %v9324
      %v9350 = vpack.c.bf16 %v9327, %v9326
      %v9351 = vpack.c.bf16 %v9329, %v9328
      %v9352 = vpack.c.bf16 %v9331, %v9330
      %v9353 = vpack.c.bf16 %v9332, %v9332
      %s9354 = scalar_lea.vmem %s11, 256
      %v9355 = vld [vmem:[%s9354] sm:$0xf]
      %v9356 = vld [vmem:[%s9354 + $0x4] sm:$0xf]
      %v9357 = vld [vmem:[%s9354 + $0x8] sm:$0xf]
      %v9358 = vld [vmem:[%s9354 + $0xc] sm:$0xf]
      %v9359 = vld [vmem:[%s9354 + $0x10] sm:$0xf]
      %v9360 = vld [vmem:[%s9354 + $0x14] sm:$0xf]
      %v9361 = vld [vmem:[%s9354 + $0x18] sm:$0xf]
      %v9362 = vld [vmem:[%s9354 + $0x1c] sm:$0xf]
      %v9371 = vunpack.c.l.b16 %v9355
      %v9372 = vunpack.c.l.b16 %v9356
      %v9373 = vunpack.c.l.b16 %v9357
      %v9374 = vunpack.c.l.b16 %v9358
      %v9375 = vunpack.c.l.b16 %v9359
      %v9376 = vunpack.c.l.b16 %v9360
      %v9377 = vunpack.c.l.b16 %v9361
      %v9378 = vunpack.c.l.b16 %v9362
      %v9379 = vpack.c.b16 %v9372, %v9371
      %v9380 = vpack.c.b16 %v9374, %v9373
      %v9381 = vpack.c.b16 %v9376, %v9375
      %v9382 = vpack.c.b16 %v9378, %v9377
      %v9388 = vsel %vm1234, %v9333, 0
      %v9391 = vsel %vm1234, %v9334, 0
      %v9394 = vsel %vm1234, %v9335, 0
      %v9397 = vsel %vm1234, %v9336, 0
      %v9400 = vsel %vm1234, %v9337, 0
      %v9403 = vsel %vm1234, %v9338, 0
      %v9406 = vsel %vm1234, %v9339, 0
      %v9409 = vsel %vm1234, %v9340, 0
      %v9412 = vsel %vm1234, %v9341, 0
      %v9415 = vsel %vm1234, %v9342, 0
      %v9418 = vsel %vm1234, %v9343, 0
      %v9421 = vsel %vm1234, %v9344, 0
      %v9424 = vsel %vm1234, %v9345, 0
      %v9427 = vsel %vm1234, %v9346, 0
      %v9430 = vsel %vm1234, %v9347, 0
      %v9433 = vsel %vm1234, %v9348, 0
      %v9436 = vsel %vm1234, %v9349, 0
      %v9439 = vsel %vm1234, %v9350, 0
      %v9442 = vsel %vm1234, %v9351, 0
      %v9445 = vsel %vm1234, %v9352, 0
      %v9448 = vsel %vm1234, %v9353, 0
      %9450 = vmatprep.subr.bf16.mxu0 0
      %9451 = vmatpush1.bf16.msra.mxu0 %v9379
      %9452 = vmatprep.subr.bf16.mxu0 0
      %9453 = vmatpush1.bf16.msra.mxu0 %v9380
      %9454 = vmatprep.subr.bf16.mxu0 0
      %9455 = vmatpush1.bf16.msra.mxu0 %v9381
      %9456 = vmatprep.subr.bf16.mxu0 0
      %9457 = vmatpush1.bf16.msra.mxu0 %v9382
      %9458 = vmatprep.subr.bf16.mxu0 0
      %9459 = vmatpush1.bf16.msra.mxu0 0
      %9460 = vmatprep.subr.bf16.mxu0 0
      %9461 = vmatpush1.bf16.msra.mxu0 0
      %9462 = vmatprep.subr.bf16.mxu0 0
      %9463 = vmatpush1.bf16.msra.mxu0 0
      %9464 = vmatprep.subr.bf16.mxu0 0
      %9465 = vmatpush1.bf16.msra.mxu0 0
      %9466 = vmatprep.subr.bf16.mxu0 0
      %9467 = vmatpush1.bf16.msra.mxu0 0
      %9468 = vmatprep.subr.bf16.mxu0 0
      %9469 = vmatpush1.bf16.msra.mxu0 0
      %9470 = vmatprep.subr.bf16.mxu0 0
      %9471 = vmatpush1.bf16.msra.mxu0 0
      %9472 = vmatprep.subr.bf16.mxu0 0
      %9473 = vmatpush1.bf16.msra.mxu0 0
      %9474 = vmatprep.subr.bf16.mxu0 0
      %9475 = vmatpush1.bf16.msra.mxu0 0
      %9476 = vmatprep.subr.bf16.mxu0 0
      %9477 = vmatpush1.bf16.msra.mxu0 0
      %9478 = vmatprep.subr.bf16.mxu0 0
      %9479 = vmatpush1.bf16.msra.mxu0 0
      %9480 = vmatprep.subr.bf16.mxu0 0
      %9481 = vmatpush1.bf16.msra.mxu0 0
      %9482 = vmatprep.mubr.bf16.mxu0 0
      %9483 = vmatmul.mubr.bf16.gmra.mrb[0].mxu0 %v9388
      %v9484 = vpop.f32.mrb[0].mxu0
      %v9485 = vadd.f32 0.0, %v9484
      %v9486 = vpop.f32.mrb[0].mxu0
      %v9487 = vpop.f32.mrb[0].mxu0
      %v9488 = vadd.f32 0.0, %v9487
      %v9489 = vpop.f32.mrb[0].mxu0
      %9490 = vmatprep.mubr.bf16.mxu0 0
      %9491 = vmatmul.mubr.bf16.gmra.mrb[0].mxu0 %v9391
      %v9492 = vpop.f32.mrb[0].mxu0
      %v9493 = vadd.f32 0.0, %v9492
      %v9494 = vpop.f32.mrb[0].mxu0
      %v9495 = vpop.f32.mrb[0].mxu0
      %v9496 = vadd.f32 0.0, %v9495
      %v9497 = vpop.f32.mrb[0].mxu0
      %9498 = vmatprep.mubr.bf16.mxu0 0
      %9499 = vmatmul.mubr.bf16.gmra.mrb[0].mxu0 %v9394
      %v9500 = vpop.f32.mrb[0].mxu0
      %v9501 = vadd.f32 0.0, %v9500
      %v9502 = vpop.f32.mrb[0].mxu0
      %v9503 = vpop.f32.mrb[0].mxu0
      %v9504 = vadd.f32 0.0, %v9503
      %v9505 = vpop.f32.mrb[0].mxu0
      %9506 = vmatprep.mubr.bf16.mxu0 0
      %9507 = vmatmul.mubr.bf16.gmra.mrb[0].mxu0 %v9397
      %v9508 = vpop.f32.mrb[0].mxu0
      %v9509 = vadd.f32 0.0, %v9508
      %v9510 = vpop.f32.mrb[0].mxu0
      %v9511 = vpop.f32.mrb[0].mxu0
      %v9512 = vadd.f32 0.0, %v9511
      %v9513 = vpop.f32.mrb[0].mxu0
      %9514 = vmatprep.mubr.bf16.mxu0 0
      %9515 = vmatmul.mubr.bf16.gmra.mrb[0].mxu0 %v9400
      %v9516 = vpop.f32.mrb[0].mxu0
      %v9517 = vadd.f32 0.0, %v9516
      %v9518 = vpop.f32.mrb[0].mxu0
      %v9519 = vpop.f32.mrb[0].mxu0
      %v9520 = vadd.f32 0.0, %v9519
      %v9521 = vpop.f32.mrb[0].mxu0
      %9522 = vmatprep.mubr.bf16.mxu0 0
      %9523 = vmatmul.mubr.bf16.gmra.mrb[0].mxu0 %v9403
      %v9524 = vpop.f32.mrb[0].mxu0
      %v9525 = vadd.f32 0.0, %v9524
      %v9526 = vpop.f32.mrb[0].mxu0
      %v9527 = vpop.f32.mrb[0].mxu0
      %v9528 = vadd.f32 0.0, %v9527
      %v9529 = vpop.f32.mrb[0].mxu0
      %9530 = vmatprep.mubr.bf16.mxu0 0
      %9531 = vmatmul.mubr.bf16.gmra.mrb[0].mxu0 %v9406
      %v9532 = vpop.f32.mrb[0].mxu0
      %v9533 = vadd.f32 0.0, %v9532
      %v9534 = vpop.f32.mrb[0].mxu0
      %v9535 = vpop.f32.mrb[0].mxu0
      %v9536 = vadd.f32 0.0, %v9535
      %v9537 = vpop.f32.mrb[0].mxu0
      %9538 = vmatprep.mubr.bf16.mxu0 0
      %9539 = vmatmul.mubr.bf16.gmra.mrb[0].mxu0 %v9409
      %v9540 = vpop.f32.mrb[0].mxu0
      %v9541 = vadd.f32 0.0, %v9540
      %v9542 = vpop.f32.mrb[0].mxu0
      %v9543 = vpop.f32.mrb[0].mxu0
      %v9544 = vadd.f32 0.0, %v9543
      %v9545 = vpop.f32.mrb[0].mxu0
      %9546 = vmatprep.mubr.bf16.mxu0 0
      %9547 = vmatmul.mubr.bf16.gmra.mrb[0].mxu0 %v9412
      %v9548 = vpop.f32.mrb[0].mxu0
      %v9549 = vadd.f32 0.0, %v9548
      %v9550 = vpop.f32.mrb[0].mxu0
      %v9551 = vpop.f32.mrb[0].mxu0
      %v9552 = vadd.f32 0.0, %v9551
      %v9553 = vpop.f32.mrb[0].mxu0
      %9554 = vmatprep.mubr.bf16.mxu0 0
      %9555 = vmatmul.mubr.bf16.gmra.mrb[0].mxu0 %v9415
      %v9556 = vpop.f32.mrb[0].mxu0
      %v9557 = vadd.f32 0.0, %v9556
      %v9558 = vpop.f32.mrb[0].mxu0
      %v9559 = vpop.f32.mrb[0].mxu0
      %v9560 = vadd.f32 0.0, %v9559
      %v9561 = vpop.f32.mrb[0].mxu0
      %9562 = vmatprep.mubr.bf16.mxu0 0
      %9563 = vmatmul.mubr.bf16.gmra.mrb[0].mxu0 %v9418
      %v9564 = vpop.f32.mrb[0].mxu0
      %v9565 = vadd.f32 0.0, %v9564
      %v9566 = vpop.f32.mrb[0].mxu0
      %v9567 = vpop.f32.mrb[0].mxu0
      %v9568 = vadd.f32 0.0, %v9567
      %v9569 = vpop.f32.mrb[0].mxu0
      %9570 = vmatprep.mubr.bf16.mxu0 0
      %9571 = vmatmul.mubr.bf16.gmra.mrb[0].mxu0 %v9421
      %v9572 = vpop.f32.mrb[0].mxu0
      %v9573 = vadd.f32 0.0, %v9572
      %v9574 = vpop.f32.mrb[0].mxu0
      %v9575 = vpop.f32.mrb[0].mxu0
      %v9576 = vadd.f32 0.0, %v9575
      %v9577 = vpop.f32.mrb[0].mxu0
      %9578 = vmatprep.mubr.bf16.mxu0 0
      %9579 = vmatmul.mubr.bf16.gmra.mrb[0].mxu0 %v9424
      %v9580 = vpop.f32.mrb[0].mxu0
      %v9581 = vadd.f32 0.0, %v9580
      %v9582 = vpop.f32.mrb[0].mxu0
      %v9583 = vpop.f32.mrb[0].mxu0
      %v9584 = vadd.f32 0.0, %v9583
      %v9585 = vpop.f32.mrb[0].mxu0
      %9586 = vmatprep.mubr.bf16.mxu0 0
      %9587 = vmatmul.mubr.bf16.gmra.mrb[0].mxu0 %v9427
      %v9588 = vpop.f32.mrb[0].mxu0
      %v9589 = vadd.f32 0.0, %v9588
      %v9590 = vpop.f32.mrb[0].mxu0
      %v9591 = vpop.f32.mrb[0].mxu0
      %v9592 = vadd.f32 0.0, %v9591
      %v9593 = vpop.f32.mrb[0].mxu0
      %9594 = vmatprep.mubr.bf16.mxu0 0
      %9595 = vmatmul.mubr.bf16.gmra.mrb[0].mxu0 %v9430
      %v9596 = vpop.f32.mrb[0].mxu0
      %v9597 = vadd.f32 0.0, %v9596
      %v9598 = vpop.f32.mrb[0].mxu0
      %v9599 = vpop.f32.mrb[0].mxu0
      %v9600 = vadd.f32 0.0, %v9599
      %v9601 = vpop.f32.mrb[0].mxu0
      %9602 = vmatprep.mubr.bf16.mxu0 0
      %9603 = vmatmul.mubr.bf16.gmra.mrb[0].mxu0 %v9433
      %v9604 = vpop.f32.mrb[0].mxu0
      %v9605 = vadd.f32 0.0, %v9604
      %v9606 = vpop.f32.mrb[0].mxu0
      %v9607 = vpop.f32.mrb[0].mxu0
      %v9608 = vadd.f32 0.0, %v9607
      %v9609 = vpop.f32.mrb[0].mxu0
      %9610 = vmatprep.mubr.bf16.mxu0 0
      %9611 = vmatmul.mubr.bf16.gmra.mrb[0].mxu0 %v9436
      %v9612 = vpop.f32.mrb[0].mxu0
      %v9613 = vadd.f32 0.0, %v9612
      %v9614 = vpop.f32.mrb[0].mxu0
      %v9615 = vpop.f32.mrb[0].mxu0
      %v9616 = vadd.f32 0.0, %v9615
      %v9617 = vpop.f32.mrb[0].mxu0
      %9618 = vmatprep.mubr.bf16.mxu0 0
      %9619 = vmatmul.mubr.bf16.gmra.mrb[0].mxu0 %v9439
      %v9620 = vpop.f32.mrb[0].mxu0
      %v9621 = vadd.f32 0.0, %v9620
      %v9622 = vpop.f32.mrb[0].mxu0
      %v9623 = vpop.f32.mrb[0].mxu0
      %v9624 = vadd.f32 0.0, %v9623
      %v9625 = vpop.f32.mrb[0].mxu0
      %9626 = vmatprep.mubr.bf16.mxu0 0
      %9627 = vmatmul.mubr.bf16.gmra.mrb[0].mxu0 %v9442
      %v9628 = vpop.f32.mrb[0].mxu0
      %v9629 = vadd.f32 0.0, %v9628
      %v9630 = vpop.f32.mrb[0].mxu0
      %v9631 = vpop.f32.mrb[0].mxu0
      %v9632 = vadd.f32 0.0, %v9631
      %v9633 = vpop.f32.mrb[0].mxu0
      %9634 = vmatprep.mubr.bf16.mxu0 0
      %9635 = vmatmul.mubr.bf16.gmra.mrb[0].mxu0 %v9445
      %v9636 = vpop.f32.mrb[0].mxu0
      %v9637 = vadd.f32 0.0, %v9636
      %v9638 = vpop.f32.mrb[0].mxu0
      %v9639 = vpop.f32.mrb[0].mxu0
      %v9640 = vadd.f32 0.0, %v9639
      %v9641 = vpop.f32.mrb[0].mxu0
      %9642 = vmatprep.mubr.bf16.mxu0 0
      %9643 = vmatmul.mubr.bf16.gmra.mrb[0].mxu0 %v9448
      %v9644 = vpop.f32.mrb[0].mxu0
      %v9645 = vadd.f32 0.0, %v9644
      %v9646 = vpop.f32.mrb[0].mxu0
      %v9647 = vpop.f32.mrb[0].mxu0
      %v9648 = vpop.f32.mrb[0].mxu0
      %9649 = vdwg.mxu0
      %v9650 = vadd.f32 %v9251, %v9485
      %v9651 = vadd.f32 %v9252, %v9488
      %v9652 = vadd.f32 %v9253, %v9493
      %v9653 = vadd.f32 %v9254, %v9496
      %v9654 = vadd.f32 %v9255, %v9501
      %v9655 = vadd.f32 %v9256, %v9504
      %v9656 = vadd.f32 %v9257, %v9509
      %v9657 = vadd.f32 %v9258, %v9512
      %v9658 = vadd.f32 %v9259, %v9517
      %v9659 = vadd.f32 %v9260, %v9520
      %v9660 = vadd.f32 %v9261, %v9525
      %v9661 = vadd.f32 %v9262, %v9528
      %v9662 = vadd.f32 %v9263, %v9533
      %v9663 = vadd.f32 %v9264, %v9536
      %v9664 = vadd.f32 %v9265, %v9541
      %v9665 = vadd.f32 %v9266, %v9544
      %v9666 = vadd.f32 %v9267, %v9549
      %v9667 = vadd.f32 %v9268, %v9552
      %v9668 = vadd.f32 %v9269, %v9557
      %v9669 = vadd.f32 %v9270, %v9560
      %v9670 = vadd.f32 %v9271, %v9565
      %v9671 = vadd.f32 %v9272, %v9568
      %v9672 = vadd.f32 %v9273, %v9573
      %v9673 = vadd.f32 %v9274, %v9576
      %v9674 = vadd.f32 %v9275, %v9581
      %v9675 = vadd.f32 %v9276, %v9584
      %v9676 = vadd.f32 %v9277, %v9589
      %v9677 = vadd.f32 %v9278, %v9592
      %v9678 = vadd.f32 %v9279, %v9597
      %v9679 = vadd.f32 %v9280, %v9600
      %v9680 = vadd.f32 %v9281, %v9605
      %v9681 = vadd.f32 %v9282, %v9608
      %v9682 = vadd.f32 %v9283, %v9613
      %v9683 = vadd.f32 %v9284, %v9616
      %v9684 = vadd.f32 %v9285, %v9621
      %v9685 = vadd.f32 %v9286, %v9624
      %v9686 = vadd.f32 %v9287, %v9629
      %v9687 = vadd.f32 %v9288, %v9632
      %v9688 = vadd.f32 %v9289, %v9637
      %v9689 = vadd.f32 %v9290, %v9640
      %v9690 = vadd.f32 %v9291, %v9645
      %v9692 = vlaneseq
      %v9693 = vshrl.u32 %v9692, 7
      %v9694 = vsub.s32 0, %v9693
      %v9695 = vrot.slane %v6182, %v9694
      %v9697 = vadd.f32 %v9650, %v9695
      %v9698 = vadd.f32 %v9651, %v9695
      %v9699 = vadd.f32 %v9652, %v9695
      %v9700 = vadd.f32 %v9653, %v9695
      %v9701 = vadd.f32 %v9654, %v9695
      %v9702 = vadd.f32 %v9655, %v9695
      %v9703 = vadd.f32 %v9656, %v9695
      %v9704 = vadd.f32 %v9657, %v9695
      %v9705 = vadd.f32 %v9658, %v9695
      %v9706 = vadd.f32 %v9659, %v9695
      %v9707 = vadd.f32 %v9660, %v9695
      %v9708 = vadd.f32 %v9661, %v9695
      %v9709 = vadd.f32 %v9662, %v9695
      %v9710 = vadd.f32 %v9663, %v9695
      %v9711 = vadd.f32 %v9664, %v9695
      %v9712 = vadd.f32 %v9665, %v9695
      %v9713 = vadd.f32 %v9666, %v9695
      %v9714 = vadd.f32 %v9667, %v9695
      %v9715 = vadd.f32 %v9668, %v9695
      %v9716 = vadd.f32 %v9669, %v9695
      %v9717 = vadd.f32 %v9670, %v9695
      %v9718 = vadd.f32 %v9671, %v9695
      %v9719 = vadd.f32 %v9672, %v9695
      %v9720 = vadd.f32 %v9673, %v9695
      %v9721 = vadd.f32 %v9674, %v9695
      %v9722 = vadd.f32 %v9675, %v9695
      %v9723 = vadd.f32 %v9676, %v9695
      %v9724 = vadd.f32 %v9677, %v9695
      %v9725 = vadd.f32 %v9678, %v9695
      %v9726 = vadd.f32 %v9679, %v9695
      %v9727 = vadd.f32 %v9680, %v9695
      %v9728 = vadd.f32 %v9681, %v9695
      %v9729 = vadd.f32 %v9682, %v9695
      %v9730 = vadd.f32 %v9683, %v9695
      %v9731 = vadd.f32 %v9684, %v9695
      %v9732 = vadd.f32 %v9685, %v9695
      %v9733 = vadd.f32 %v9686, %v9695
      %v9734 = vadd.f32 %v9687, %v9695
      %v9735 = vadd.f32 %v9688, %v9695
      %v9736 = vadd.f32 %v9689, %v9695
      %v9737 = vadd.f32 %v9690, %v9695
      %vm9738 = vcmask 31744
      %v9739 = vsel %vm9738, %v9697, -inf
      %9740 = vmax.xlane.f32.xlu0 %v9739
      %v9741 = vpop.xlane.xlu0 %9740
      %v9742 = vsel %vm9738, %v9698, -inf
      %9743 = vmax.xlane.f32.xlu0 %v9742
      %v9744 = vpop.xlane.xlu0 %9743
      %v9745 = vsel %vm9738, %v9699, -inf
      %9746 = vmax.xlane.f32.xlu0 %v9745
      %v9747 = vpop.xlane.xlu0 %9746
      %v9748 = vsel %vm9738, %v9700, -inf
      %9749 = vmax.xlane.f32.xlu0 %v9748
      %v9750 = vpop.xlane.xlu0 %9749
      %v9751 = vsel %vm9738, %v9701, -inf
      %9752 = vmax.xlane.f32.xlu0 %v9751
      %v9753 = vpop.xlane.xlu0 %9752
      %v9754 = vsel %vm9738, %v9702, -inf
      %9755 = vmax.xlane.f32.xlu0 %v9754
      %v9756 = vpop.xlane.xlu0 %9755
      %v9757 = vsel %vm9738, %v9703, -inf
      %9758 = vmax.xlane.f32.xlu0 %v9757
      %v9759 = vpop.xlane.xlu0 %9758
      %v9760 = vsel %vm9738, %v9704, -inf
      %9761 = vmax.xlane.f32.xlu0 %v9760
      %v9762 = vpop.xlane.xlu0 %9761
      %v9763 = vsel %vm9738, %v9705, -inf
      %9764 = vmax.xlane.f32.xlu0 %v9763
      %v9765 = vpop.xlane.xlu0 %9764
      %v9766 = vsel %vm9738, %v9706, -inf
      %9767 = vmax.xlane.f32.xlu0 %v9766
      %v9768 = vpop.xlane.xlu0 %9767
      %v9769 = vsel %vm9738, %v9707, -inf
      %9770 = vmax.xlane.f32.xlu0 %v9769
      %v9771 = vpop.xlane.xlu0 %9770
      %v9772 = vsel %vm9738, %v9708, -inf
      %9773 = vmax.xlane.f32.xlu0 %v9772
      %v9774 = vpop.xlane.xlu0 %9773
      %v9775 = vsel %vm9738, %v9709, -inf
      %9776 = vmax.xlane.f32.xlu0 %v9775
      %v9777 = vpop.xlane.xlu0 %9776
      %v9778 = vsel %vm9738, %v9710, -inf
      %9779 = vmax.xlane.f32.xlu0 %v9778
      %v9780 = vpop.xlane.xlu0 %9779
      %v9781 = vsel %vm9738, %v9711, -inf
      %9782 = vmax.xlane.f32.xlu0 %v9781
      %v9783 = vpop.xlane.xlu0 %9782
      %v9784 = vsel %vm9738, %v9712, -inf
      %9785 = vmax.xlane.f32.xlu0 %v9784
      %v9786 = vpop.xlane.xlu0 %9785
      %v9787 = vsel %vm9738, %v9713, -inf
      %9788 = vmax.xlane.f32.xlu0 %v9787
      %v9789 = vpop.xlane.xlu0 %9788
      %v9790 = vsel %vm9738, %v9714, -inf
      %9791 = vmax.xlane.f32.xlu0 %v9790
      %v9792 = vpop.xlane.xlu0 %9791
      %v9793 = vsel %vm9738, %v9715, -inf
      %9794 = vmax.xlane.f32.xlu0 %v9793
      %v9795 = vpop.xlane.xlu0 %9794
      %v9796 = vsel %vm9738, %v9716, -inf
      %9797 = vmax.xlane.f32.xlu0 %v9796
      %v9798 = vpop.xlane.xlu0 %9797
      %v9799 = vsel %vm9738, %v9717, -inf
      %9800 = vmax.xlane.f32.xlu0 %v9799
      %v9801 = vpop.xlane.xlu0 %9800
      %v9802 = vsel %vm9738, %v9718, -inf
      %9803 = vmax.xlane.f32.xlu0 %v9802
      %v9804 = vpop.xlane.xlu0 %9803
      %v9805 = vsel %vm9738, %v9719, -inf
      %9806 = vmax.xlane.f32.xlu0 %v9805
      %v9807 = vpop.xlane.xlu0 %9806
      %v9808 = vsel %vm9738, %v9720, -inf
      %9809 = vmax.xlane.f32.xlu0 %v9808
      %v9810 = vpop.xlane.xlu0 %9809
      %v9811 = vsel %vm9738, %v9721, -inf
      %9812 = vmax.xlane.f32.xlu0 %v9811
      %v9813 = vpop.xlane.xlu0 %9812
      %v9814 = vsel %vm9738, %v9722, -inf
      %9815 = vmax.xlane.f32.xlu0 %v9814
      %v9816 = vpop.xlane.xlu0 %9815
      %v9817 = vsel %vm9738, %v9723, -inf
      %9818 = vmax.xlane.f32.xlu0 %v9817
      %v9819 = vpop.xlane.xlu0 %9818
      %v9820 = vsel %vm9738, %v9724, -inf
      %9821 = vmax.xlane.f32.xlu0 %v9820
      %v9822 = vpop.xlane.xlu0 %9821
      %v9823 = vsel %vm9738, %v9725, -inf
      %9824 = vmax.xlane.f32.xlu0 %v9823
      %v9825 = vpop.xlane.xlu0 %9824
      %v9826 = vsel %vm9738, %v9726, -inf
      %9827 = vmax.xlane.f32.xlu0 %v9826
      %v9828 = vpop.xlane.xlu0 %9827
      %v9829 = vsel %vm9738, %v9727, -inf
      %9830 = vmax.xlane.f32.xlu0 %v9829
      %v9831 = vpop.xlane.xlu0 %9830
      %v9832 = vsel %vm9738, %v9728, -inf
      %9833 = vmax.xlane.f32.xlu0 %v9832
      %v9834 = vpop.xlane.xlu0 %9833
      %v9835 = vsel %vm9738, %v9729, -inf
      %9836 = vmax.xlane.f32.xlu0 %v9835
      %v9837 = vpop.xlane.xlu0 %9836
      %v9838 = vsel %vm9738, %v9730, -inf
      %9839 = vmax.xlane.f32.xlu0 %v9838
      %v9840 = vpop.xlane.xlu0 %9839
      %v9841 = vsel %vm9738, %v9731, -inf
      %9842 = vmax.xlane.f32.xlu0 %v9841
      %v9843 = vpop.xlane.xlu0 %9842
      %v9844 = vsel %vm9738, %v9732, -inf
      %9845 = vmax.xlane.f32.xlu0 %v9844
      %v9846 = vpop.xlane.xlu0 %9845
      %v9847 = vsel %vm9738, %v9733, -inf
      %9848 = vmax.xlane.f32.xlu0 %v9847
      %v9849 = vpop.xlane.xlu0 %9848
      %v9850 = vsel %vm9738, %v9734, -inf
      %9851 = vmax.xlane.f32.xlu0 %v9850
      %v9852 = vpop.xlane.xlu0 %9851
      %v9853 = vsel %vm9738, %v9735, -inf
      %9854 = vmax.xlane.f32.xlu0 %v9853
      %v9855 = vpop.xlane.xlu0 %9854
      %v9856 = vsel %vm9738, %v9736, -inf
      %9857 = vmax.xlane.f32.xlu0 %v9856
      %v9858 = vpop.xlane.xlu0 %9857
      %v9859 = vsel %vm9738, %v9737, -inf
      %9860 = vmax.xlane.f32.xlu0 %v9859
      %v9861 = vpop.xlane.xlu0 %9860
      %v9862 = vsub.f32 %v9697, %v9741
      %v9863 = vsub.f32 %v9698, %v9744
      %v9864 = vsub.f32 %v9699, %v9747
      %v9865 = vsub.f32 %v9700, %v9750
      %v9866 = vsub.f32 %v9701, %v9753
      %v9867 = vsub.f32 %v9702, %v9756
      %v9868 = vsub.f32 %v9703, %v9759
      %v9869 = vsub.f32 %v9704, %v9762
      %v9870 = vsub.f32 %v9705, %v9765
      %v9871 = vsub.f32 %v9706, %v9768
      %v9872 = vsub.f32 %v9707, %v9771
      %v9873 = vsub.f32 %v9708, %v9774
      %v9874 = vsub.f32 %v9709, %v9777
      %v9875 = vsub.f32 %v9710, %v9780
      %v9876 = vsub.f32 %v9711, %v9783
      %v9877 = vsub.f32 %v9712, %v9786
      %v9878 = vsub.f32 %v9713, %v9789
      %v9879 = vsub.f32 %v9714, %v9792
      %v9880 = vsub.f32 %v9715, %v9795
      %v9881 = vsub.f32 %v9716, %v9798
      %v9882 = vsub.f32 %v9717, %v9801
      %v9883 = vsub.f32 %v9718, %v9804
      %v9884 = vsub.f32 %v9719, %v9807
      %v9885 = vsub.f32 %v9720, %v9810
      %v9886 = vsub.f32 %v9721, %v9813
      %v9887 = vsub.f32 %v9722, %v9816
      %v9888 = vsub.f32 %v9723, %v9819
      %v9889 = vsub.f32 %v9724, %v9822
      %v9890 = vsub.f32 %v9725, %v9825
      %v9891 = vsub.f32 %v9726, %v9828
      %v9892 = vsub.f32 %v9727, %v9831
      %v9893 = vsub.f32 %v9728, %v9834
      %v9894 = vsub.f32 %v9729, %v9837
      %v9895 = vsub.f32 %v9730, %v9840
      %v9896 = vsub.f32 %v9731, %v9843
      %v9897 = vsub.f32 %v9732, %v9846
      %v9898 = vsub.f32 %v9733, %v9849
      %v9899 = vsub.f32 %v9734, %v9852
      %v9900 = vsub.f32 %v9735, %v9855
      %v9901 = vsub.f32 %v9736, %v9858
      %v9902 = vsub.f32 %v9737, %v9861
      %v9903 = vmul.f32 %v9862, 1.442695
      %v9904 = vpow.pop %v9903
      %v9905 = vmul.f32 %v9863, 1.442695
      %v9906 = vpow.pop %v9905
      %v9907 = vmul.f32 %v9864, 1.442695
      %v9908 = vpow.pop %v9907
      %v9909 = vmul.f32 %v9865, 1.442695
      %v9910 = vpow.pop %v9909
      %v9911 = vmul.f32 %v9866, 1.442695
      %v9912 = vpow.pop %v9911
      %v9913 = vmul.f32 %v9867, 1.442695
      %v9914 = vpow.pop %v9913
      %v9915 = vmul.f32 %v9868, 1.442695
      %v9916 = vpow.pop %v9915
      %v9917 = vmul.f32 %v9869, 1.442695
      %v9918 = vpow.pop %v9917
      %v9919 = vmul.f32 %v9870, 1.442695
      %v9920 = vpow.pop %v9919
      %v9921 = vmul.f32 %v9871, 1.442695
      %v9922 = vpow.pop %v9921
      %v9923 = vmul.f32 %v9872, 1.442695
      %v9924 = vpow.pop %v9923
      %v9925 = vmul.f32 %v9873, 1.442695
      %v9926 = vpow.pop %v9925
      %v9927 = vmul.f32 %v9874, 1.442695
      %v9928 = vpow.pop %v9927
      %v9929 = vmul.f32 %v9875, 1.442695
      %v9930 = vpow.pop %v9929
      %v9931 = vmul.f32 %v9876, 1.442695
      %v9932 = vpow.pop %v9931
      %v9933 = vmul.f32 %v9877, 1.442695
      %v9934 = vpow.pop %v9933
      %v9935 = vmul.f32 %v9878, 1.442695
      %v9936 = vpow.pop %v9935
      %v9937 = vmul.f32 %v9879, 1.442695
      %v9938 = vpow.pop %v9937
      %v9939 = vmul.f32 %v9880, 1.442695
      %v9940 = vpow.pop %v9939
      %v9941 = vmul.f32 %v9881, 1.442695
      %v9942 = vpow.pop %v9941
      %v9943 = vmul.f32 %v9882, 1.442695
      %v9944 = vpow.pop %v9943
      %v9945 = vmul.f32 %v9883, 1.442695
      %v9946 = vpow.pop %v9945
      %v9947 = vmul.f32 %v9884, 1.442695
      %v9948 = vpow.pop %v9947
      %v9949 = vmul.f32 %v9885, 1.442695
      %v9950 = vpow.pop %v9949
      %v9951 = vmul.f32 %v9886, 1.442695
      %v9952 = vpow.pop %v9951
      %v9953 = vmul.f32 %v9887, 1.442695
      %v9954 = vpow.pop %v9953
      %v9955 = vmul.f32 %v9888, 1.442695
      %v9956 = vpow.pop %v9955
      %v9957 = vmul.f32 %v9889, 1.442695
      %v9958 = vpow.pop %v9957
      %v9959 = vmul.f32 %v9890, 1.442695
      %v9960 = vpow.pop %v9959
      %v9961 = vmul.f32 %v9891, 1.442695
      %v9962 = vpow.pop %v9961
      %v9963 = vmul.f32 %v9892, 1.442695
      %v9964 = vpow.pop %v9963
      %v9965 = vmul.f32 %v9893, 1.442695
      %v9966 = vpow.pop %v9965
      %v9967 = vmul.f32 %v9894, 1.442695
      %v9968 = vpow.pop %v9967
      %v9969 = vmul.f32 %v9895, 1.442695
      %v9970 = vpow.pop %v9969
      %v9971 = vmul.f32 %v9896, 1.442695
      %v9972 = vpow.pop %v9971
      %v9973 = vmul.f32 %v9897, 1.442695
      %v9974 = vpow.pop %v9973
      %v9975 = vmul.f32 %v9898, 1.442695
      %v9976 = vpow.pop %v9975
      %v9977 = vmul.f32 %v9899, 1.442695
      %v9978 = vpow.pop %v9977
      %v9979 = vmul.f32 %v9900, 1.442695
      %v9980 = vpow.pop %v9979
      %v9981 = vmul.f32 %v9901, 1.442695
      %v9982 = vpow.pop %v9981
      %v9983 = vmul.f32 %v9902, 1.442695
      %v9984 = vpow.pop %v9983
      %v9985 = vsel %vm9738, %v9904, 0.0
      %9986 = vadd.xlane.f32.xlu0 %v9985
      %v9987 = vpop.xlane.xlu0 %9986
      %v9988 = vsel %vm9738, %v9906, 0.0
      %9989 = vadd.xlane.f32.xlu0 %v9988
      %v9990 = vpop.xlane.xlu0 %9989
      %v9991 = vsel %vm9738, %v9908, 0.0
      %9992 = vadd.xlane.f32.xlu0 %v9991
      %v9993 = vpop.xlane.xlu0 %9992
      %v9994 = vsel %vm9738, %v9910, 0.0
      %9995 = vadd.xlane.f32.xlu0 %v9994
      %v9996 = vpop.xlane.xlu0 %9995
      %v9997 = vsel %vm9738, %v9912, 0.0
      %9998 = vadd.xlane.f32.xlu0 %v9997
      %v9999 = vpop.xlane.xlu0 %9998
      %v10000 = vsel %vm9738, %v9914, 0.0
      %10001 = vadd.xlane.f32.xlu0 %v10000
      %v10002 = vpop.xlane.xlu0 %10001
      %v10003 = vsel %vm9738, %v9916, 0.0
      %10004 = vadd.xlane.f32.xlu0 %v10003
      %v10005 = vpop.xlane.xlu0 %10004
      %v10006 = vsel %vm9738, %v9918, 0.0
      %10007 = vadd.xlane.f32.xlu0 %v10006
      %v10008 = vpop.xlane.xlu0 %10007
      %v10009 = vsel %vm9738, %v9920, 0.0
      %10010 = vadd.xlane.f32.xlu0 %v10009
      %v10011 = vpop.xlane.xlu0 %10010
      %v10012 = vsel %vm9738, %v9922, 0.0
      %10013 = vadd.xlane.f32.xlu0 %v10012
      %v10014 = vpop.xlane.xlu0 %10013
      %v10015 = vsel %vm9738, %v9924, 0.0
      %10016 = vadd.xlane.f32.xlu0 %v10015
      %v10017 = vpop.xlane.xlu0 %10016
      %v10018 = vsel %vm9738, %v9926, 0.0
      %10019 = vadd.xlane.f32.xlu0 %v10018
      %v10020 = vpop.xlane.xlu0 %10019
      %v10021 = vsel %vm9738, %v9928, 0.0
      %10022 = vadd.xlane.f32.xlu0 %v10021
      %v10023 = vpop.xlane.xlu0 %10022
      %v10024 = vsel %vm9738, %v9930, 0.0
      %10025 = vadd.xlane.f32.xlu0 %v10024
      %v10026 = vpop.xlane.xlu0 %10025
      %v10027 = vsel %vm9738, %v9932, 0.0
      %10028 = vadd.xlane.f32.xlu0 %v10027
      %v10029 = vpop.xlane.xlu0 %10028
      %v10030 = vsel %vm9738, %v9934, 0.0
      %10031 = vadd.xlane.f32.xlu0 %v10030
      %v10032 = vpop.xlane.xlu0 %10031
      %v10033 = vsel %vm9738, %v9936, 0.0
      %10034 = vadd.xlane.f32.xlu0 %v10033
      %v10035 = vpop.xlane.xlu0 %10034
      %v10036 = vsel %vm9738, %v9938, 0.0
      %10037 = vadd.xlane.f32.xlu0 %v10036
      %v10038 = vpop.xlane.xlu0 %10037
      %v10039 = vsel %vm9738, %v9940, 0.0
      %10040 = vadd.xlane.f32.xlu0 %v10039
      %v10041 = vpop.xlane.xlu0 %10040
      %v10042 = vsel %vm9738, %v9942, 0.0
      %10043 = vadd.xlane.f32.xlu0 %v10042
      %v10044 = vpop.xlane.xlu0 %10043
      %v10045 = vsel %vm9738, %v9944, 0.0
      %10046 = vadd.xlane.f32.xlu0 %v10045
      %v10047 = vpop.xlane.xlu0 %10046
      %v10048 = vsel %vm9738, %v9946, 0.0
      %10049 = vadd.xlane.f32.xlu0 %v10048
      %v10050 = vpop.xlane.xlu0 %10049
      %v10051 = vsel %vm9738, %v9948, 0.0
      %10052 = vadd.xlane.f32.xlu0 %v10051
      %v10053 = vpop.xlane.xlu0 %10052
      %v10054 = vsel %vm9738, %v9950, 0.0
      %10055 = vadd.xlane.f32.xlu0 %v10054
      %v10056 = vpop.xlane.xlu0 %10055
      %v10057 = vsel %vm9738, %v9952, 0.0
      %10058 = vadd.xlane.f32.xlu0 %v10057
      %v10059 = vpop.xlane.xlu0 %10058
      %v10060 = vsel %vm9738, %v9954, 0.0
      %10061 = vadd.xlane.f32.xlu0 %v10060
      %v10062 = vpop.xlane.xlu0 %10061
      %v10063 = vsel %vm9738, %v9956, 0.0
      %10064 = vadd.xlane.f32.xlu0 %v10063
      %v10065 = vpop.xlane.xlu0 %10064
      %v10066 = vsel %vm9738, %v9958, 0.0
      %10067 = vadd.xlane.f32.xlu0 %v10066
      %v10068 = vpop.xlane.xlu0 %10067
      %v10069 = vsel %vm9738, %v9960, 0.0
      %10070 = vadd.xlane.f32.xlu0 %v10069
      %v10071 = vpop.xlane.xlu0 %10070
      %v10072 = vsel %vm9738, %v9962, 0.0
      %10073 = vadd.xlane.f32.xlu0 %v10072
      %v10074 = vpop.xlane.xlu0 %10073
      %v10075 = vsel %vm9738, %v9964, 0.0
      %10076 = vadd.xlane.f32.xlu0 %v10075
      %v10077 = vpop.xlane.xlu0 %10076
      %v10078 = vsel %vm9738, %v9966, 0.0
      %10079 = vadd.xlane.f32.xlu0 %v10078
      %v10080 = vpop.xlane.xlu0 %10079
      %v10081 = vsel %vm9738, %v9968, 0.0
      %10082 = vadd.xlane.f32.xlu0 %v10081
      %v10083 = vpop.xlane.xlu0 %10082
      %v10084 = vsel %vm9738, %v9970, 0.0
      %10085 = vadd.xlane.f32.xlu0 %v10084
      %v10086 = vpop.xlane.xlu0 %10085
      %v10087 = vsel %vm9738, %v9972, 0.0
      %10088 = vadd.xlane.f32.xlu0 %v10087
      %v10089 = vpop.xlane.xlu0 %10088
      %v10090 = vsel %vm9738, %v9974, 0.0
      %10091 = vadd.xlane.f32.xlu0 %v10090
      %v10092 = vpop.xlane.xlu0 %10091
      %v10093 = vsel %vm9738, %v9976, 0.0
      %10094 = vadd.xlane.f32.xlu0 %v10093
      %v10095 = vpop.xlane.xlu0 %10094
      %v10096 = vsel %vm9738, %v9978, 0.0
      %10097 = vadd.xlane.f32.xlu0 %v10096
      %v10098 = vpop.xlane.xlu0 %10097
      %v10099 = vsel %vm9738, %v9980, 0.0
      %10100 = vadd.xlane.f32.xlu0 %v10099
      %v10101 = vpop.xlane.xlu0 %10100
      %v10102 = vsel %vm9738, %v9982, 0.0
      %10103 = vadd.xlane.f32.xlu0 %v10102
      %v10104 = vpop.xlane.xlu0 %10103
      %v10105 = vsel %vm9738, %v9984, 0.0
      %10106 = vadd.xlane.f32.xlu0 %v10105
      %v10107 = vpop.xlane.xlu0 %10106
      %v10108 = vrcp.pop %v9987
      %v10109 = vrcp.pop %v9990
      %v10110 = vrcp.pop %v9993
      %v10111 = vrcp.pop %v9996
      %v10112 = vrcp.pop %v9999
      %v10113 = vrcp.pop %v10002
      %v10114 = vrcp.pop %v10005
      %v10115 = vrcp.pop %v10008
      %v10116 = vrcp.pop %v10011
      %v10117 = vrcp.pop %v10014
      %v10118 = vrcp.pop %v10017
      %v10119 = vrcp.pop %v10020
      %v10120 = vrcp.pop %v10023
      %v10121 = vrcp.pop %v10026
      %v10122 = vrcp.pop %v10029
      %v10123 = vrcp.pop %v10032
      %v10124 = vrcp.pop %v10035
      %v10125 = vrcp.pop %v10038
      %v10126 = vrcp.pop %v10041
      %v10127 = vrcp.pop %v10044
      %v10128 = vrcp.pop %v10047
      %v10129 = vrcp.pop %v10050
      %v10130 = vrcp.pop %v10053
      %v10131 = vrcp.pop %v10056
      %v10132 = vrcp.pop %v10059
      %v10133 = vrcp.pop %v10062
      %v10134 = vrcp.pop %v10065
      %v10135 = vrcp.pop %v10068
      %v10136 = vrcp.pop %v10071
      %v10137 = vrcp.pop %v10074
      %v10138 = vrcp.pop %v10077
      %v10139 = vrcp.pop %v10080
      %v10140 = vrcp.pop %v10083
      %v10141 = vrcp.pop %v10086
      %v10142 = vrcp.pop %v10089
      %v10143 = vrcp.pop %v10092
      %v10144 = vrcp.pop %v10095
      %v10145 = vrcp.pop %v10098
      %v10146 = vrcp.pop %v10101
      %v10147 = vrcp.pop %v10104
      %v10148 = vrcp.pop %v10107
      %v10149 = vmul.f32 %v9904, %v10108
      %v10150 = vmul.f32 %v9906, %v10109
      %v10151 = vmul.f32 %v9908, %v10110
      %v10152 = vmul.f32 %v9910, %v10111
      %v10153 = vmul.f32 %v9912, %v10112
      %v10154 = vmul.f32 %v9914, %v10113
      %v10155 = vmul.f32 %v9916, %v10114
      %v10156 = vmul.f32 %v9918, %v10115
      %v10157 = vmul.f32 %v9920, %v10116
      %v10158 = vmul.f32 %v9922, %v10117
      %v10159 = vmul.f32 %v9924, %v10118
      %v10160 = vmul.f32 %v9926, %v10119
      %v10161 = vmul.f32 %v9928, %v10120
      %v10162 = vmul.f32 %v9930, %v10121
      %v10163 = vmul.f32 %v9932, %v10122
      %v10164 = vmul.f32 %v9934, %v10123
      %v10165 = vmul.f32 %v9936, %v10124
      %v10166 = vmul.f32 %v9938, %v10125
      %v10167 = vmul.f32 %v9940, %v10126
      %v10168 = vmul.f32 %v9942, %v10127
      %v10169 = vmul.f32 %v9944, %v10128
      %v10170 = vmul.f32 %v9946, %v10129
      %v10171 = vmul.f32 %v9948, %v10130
      %v10172 = vmul.f32 %v9950, %v10131
      %v10173 = vmul.f32 %v9952, %v10132
      %v10174 = vmul.f32 %v9954, %v10133
      %v10175 = vmul.f32 %v9956, %v10134
      %v10176 = vmul.f32 %v9958, %v10135
      %v10177 = vmul.f32 %v9960, %v10136
      %v10178 = vmul.f32 %v9962, %v10137
      %v10179 = vmul.f32 %v9964, %v10138
      %v10180 = vmul.f32 %v9966, %v10139
      %v10181 = vmul.f32 %v9968, %v10140
      %v10182 = vmul.f32 %v9970, %v10141
      %v10183 = vmul.f32 %v9972, %v10142
      %v10184 = vmul.f32 %v9974, %v10143
      %v10185 = vmul.f32 %v9976, %v10144
      %v10186 = vmul.f32 %v9978, %v10145
      %v10187 = vmul.f32 %v9980, %v10146
      %v10188 = vmul.f32 %v9982, %v10147
      %v10189 = vmul.f32 %v9984, %v10148
      %10231 = vrot.lane.b32.xlu0 %v10149, 16
      %v10232 = vpop.permute.xlu0 %10231
      %10233 = vrot.lane.b32.xlu0 %v10150, 16
      %v10234 = vpop.permute.xlu0 %10233
      %10235 = vrot.lane.b32.xlu0 %v10151, 16
      %v10236 = vpop.permute.xlu0 %10235
      %10237 = vrot.lane.b32.xlu0 %v10152, 16
      %v10238 = vpop.permute.xlu0 %10237
      %10239 = vrot.lane.b32.xlu0 %v10153, 16
      %v10240 = vpop.permute.xlu0 %10239
      %10241 = vrot.lane.b32.xlu0 %v10154, 16
      %v10242 = vpop.permute.xlu0 %10241
      %10243 = vrot.lane.b32.xlu0 %v10155, 16
      %v10244 = vpop.permute.xlu0 %10243
      %10245 = vrot.lane.b32.xlu0 %v10156, 16
      %v10246 = vpop.permute.xlu0 %10245
      %10247 = vrot.lane.b32.xlu0 %v10157, 16
      %v10248 = vpop.permute.xlu0 %10247
      %10249 = vrot.lane.b32.xlu0 %v10158, 16
      %v10250 = vpop.permute.xlu0 %10249
      %10251 = vrot.lane.b32.xlu0 %v10159, 16
      %v10252 = vpop.permute.xlu0 %10251
      %10253 = vrot.lane.b32.xlu0 %v10160, 16
      %v10254 = vpop.permute.xlu0 %10253
      %10255 = vrot.lane.b32.xlu0 %v10161, 16
      %v10256 = vpop.permute.xlu0 %10255
      %10257 = vrot.lane.b32.xlu0 %v10162, 16
      %v10258 = vpop.permute.xlu0 %10257
      %10259 = vrot.lane.b32.xlu0 %v10163, 16
      %v10260 = vpop.permute.xlu0 %10259
      %10261 = vrot.lane.b32.xlu0 %v10164, 16
      %v10262 = vpop.permute.xlu0 %10261
      %10263 = vrot.lane.b32.xlu0 %v10165, 16
      %v10264 = vpop.permute.xlu0 %10263
      %10265 = vrot.lane.b32.xlu0 %v10166, 16
      %v10266 = vpop.permute.xlu0 %10265
      %10267 = vrot.lane.b32.xlu0 %v10167, 16
      %v10268 = vpop.permute.xlu0 %10267
      %10269 = vrot.lane.b32.xlu0 %v10168, 16
      %v10270 = vpop.permute.xlu0 %10269
      %10271 = vrot.lane.b32.xlu0 %v10169, 16
      %v10272 = vpop.permute.xlu0 %10271
      %10273 = vrot.lane.b32.xlu0 %v10170, 16
      %v10274 = vpop.permute.xlu0 %10273
      %10275 = vrot.lane.b32.xlu0 %v10171, 16
      %v10276 = vpop.permute.xlu0 %10275
      %10277 = vrot.lane.b32.xlu0 %v10172, 16
      %v10278 = vpop.permute.xlu0 %10277
      %10279 = vrot.lane.b32.xlu0 %v10173, 16
      %v10280 = vpop.permute.xlu0 %10279
      %10281 = vrot.lane.b32.xlu0 %v10174, 16
      %v10282 = vpop.permute.xlu0 %10281
      %10283 = vrot.lane.b32.xlu0 %v10175, 16
      %v10284 = vpop.permute.xlu0 %10283
      %10285 = vrot.lane.b32.xlu0 %v10176, 16
      %v10286 = vpop.permute.xlu0 %10285
      %10287 = vrot.lane.b32.xlu0 %v10177, 16
      %v10288 = vpop.permute.xlu0 %10287
      %10289 = vrot.lane.b32.xlu0 %v10178, 16
      %v10290 = vpop.permute.xlu0 %10289
      %10291 = vrot.lane.b32.xlu0 %v10179, 16
      %v10292 = vpop.permute.xlu0 %10291
      %10293 = vrot.lane.b32.xlu0 %v10180, 16
      %v10294 = vpop.permute.xlu0 %10293
      %10295 = vrot.lane.b32.xlu0 %v10181, 16
      %v10296 = vpop.permute.xlu0 %10295
      %10297 = vrot.lane.b32.xlu0 %v10182, 16
      %v10298 = vpop.permute.xlu0 %10297
      %10299 = vrot.lane.b32.xlu0 %v10183, 16
      %v10300 = vpop.permute.xlu0 %10299
      %10301 = vrot.lane.b32.xlu0 %v10184, 16
      %v10302 = vpop.permute.xlu0 %10301
      %10303 = vrot.lane.b32.xlu0 %v10185, 16
      %v10304 = vpop.permute.xlu0 %10303
      %10305 = vrot.lane.b32.xlu0 %v10186, 16
      %v10306 = vpop.permute.xlu0 %10305
      %10307 = vrot.lane.b32.xlu0 %v10187, 16
      %v10308 = vpop.permute.xlu0 %10307
      %10309 = vrot.lane.b32.xlu0 %v10188, 16
      %v10310 = vpop.permute.xlu0 %10309
      %10311 = vrot.lane.b32.xlu0 %v10189, 16
      %v10312 = vpop.permute.xlu0 %10311
      %v10354 = vmul.f32 %v740, %v10232
      %v10355 = vmul.f32 %v741, %v10234
      %v10356 = vmul.f32 %v742, %v10236
      %v10357 = vmul.f32 %v743, %v10238
      %v10358 = vmul.f32 %v744, %v10240
      %v10359 = vmul.f32 %v745, %v10242
      %v10360 = vmul.f32 %v746, %v10244
      %v10361 = vmul.f32 %v747, %v10246
      %v10362 = vmul.f32 %v748, %v10248
      %v10363 = vmul.f32 %v749, %v10250
      %v10364 = vmul.f32 %v750, %v10252
      %v10365 = vmul.f32 %v751, %v10254
      %v10366 = vmul.f32 %v752, %v10256
      %v10367 = vmul.f32 %v753, %v10258
      %v10368 = vmul.f32 %v754, %v10260
      %v10369 = vmul.f32 %v755, %v10262
      %v10370 = vmul.f32 %v756, %v10264
      %v10371 = vmul.f32 %v757, %v10266
      %v10372 = vmul.f32 %v758, %v10268
      %v10373 = vmul.f32 %v759, %v10270
      %v10374 = vmul.f32 %v760, %v10272
      %v10375 = vmul.f32 %v761, %v10274
      %v10376 = vmul.f32 %v762, %v10276
      %v10377 = vmul.f32 %v763, %v10278
      %v10378 = vmul.f32 %v764, %v10280
      %v10379 = vmul.f32 %v765, %v10282
      %v10380 = vmul.f32 %v766, %v10284
      %v10381 = vmul.f32 %v767, %v10286
      %v10382 = vmul.f32 %v768, %v10288
      %v10383 = vmul.f32 %v769, %v10290
      %v10384 = vmul.f32 %v770, %v10292
      %v10385 = vmul.f32 %v771, %v10294
      %v10386 = vmul.f32 %v772, %v10296
      %v10387 = vmul.f32 %v773, %v10298
      %v10388 = vmul.f32 %v774, %v10300
      %v10389 = vmul.f32 %v775, %v10302
      %v10390 = vmul.f32 %v776, %v10304
      %v10391 = vmul.f32 %v777, %v10306
      %v10392 = vmul.f32 %v778, %v10308
      %v10393 = vmul.f32 %v779, %v10310
      %v10394 = vmul.f32 %v780, %v10312
      %10436 = vrot.lane.b32.xlu0 %v10354, 112
      %v10437 = vpop.permute.xlu0 %10436
      %10438 = vrot.lane.b32.xlu0 %v10355, 112
      %v10439 = vpop.permute.xlu0 %10438
      %10440 = vrot.lane.b32.xlu0 %v10356, 112
      %v10441 = vpop.permute.xlu0 %10440
      %10442 = vrot.lane.b32.xlu0 %v10357, 112
      %v10443 = vpop.permute.xlu0 %10442
      %10444 = vrot.lane.b32.xlu0 %v10358, 112
      %v10445 = vpop.permute.xlu0 %10444
      %10446 = vrot.lane.b32.xlu0 %v10359, 112
      %v10447 = vpop.permute.xlu0 %10446
      %10448 = vrot.lane.b32.xlu0 %v10360, 112
      %v10449 = vpop.permute.xlu0 %10448
      %10450 = vrot.lane.b32.xlu0 %v10361, 112
      %v10451 = vpop.permute.xlu0 %10450
      %10452 = vrot.lane.b32.xlu0 %v10362, 112
      %v10453 = vpop.permute.xlu0 %10452
      %10454 = vrot.lane.b32.xlu0 %v10363, 112
      %v10455 = vpop.permute.xlu0 %10454
      %10456 = vrot.lane.b32.xlu0 %v10364, 112
      %v10457 = vpop.permute.xlu0 %10456
      %10458 = vrot.lane.b32.xlu0 %v10365, 112
      %v10459 = vpop.permute.xlu0 %10458
      %10460 = vrot.lane.b32.xlu0 %v10366, 112
      %v10461 = vpop.permute.xlu0 %10460
      %10462 = vrot.lane.b32.xlu0 %v10367, 112
      %v10463 = vpop.permute.xlu0 %10462
      %10464 = vrot.lane.b32.xlu0 %v10368, 112
      %v10465 = vpop.permute.xlu0 %10464
      %10466 = vrot.lane.b32.xlu0 %v10369, 112
      %v10467 = vpop.permute.xlu0 %10466
      %10468 = vrot.lane.b32.xlu0 %v10370, 112
      %v10469 = vpop.permute.xlu0 %10468
      %10470 = vrot.lane.b32.xlu0 %v10371, 112
      %v10471 = vpop.permute.xlu0 %10470
      %10472 = vrot.lane.b32.xlu0 %v10372, 112
      %v10473 = vpop.permute.xlu0 %10472
      %10474 = vrot.lane.b32.xlu0 %v10373, 112
      %v10475 = vpop.permute.xlu0 %10474
      %10476 = vrot.lane.b32.xlu0 %v10374, 112
      %v10477 = vpop.permute.xlu0 %10476
      %10478 = vrot.lane.b32.xlu0 %v10375, 112
      %v10479 = vpop.permute.xlu0 %10478
      %10480 = vrot.lane.b32.xlu0 %v10376, 112
      %v10481 = vpop.permute.xlu0 %10480
      %10482 = vrot.lane.b32.xlu0 %v10377, 112
      %v10483 = vpop.permute.xlu0 %10482
      %10484 = vrot.lane.b32.xlu0 %v10378, 112
      %v10485 = vpop.permute.xlu0 %10484
      %10486 = vrot.lane.b32.xlu0 %v10379, 112
      %v10487 = vpop.permute.xlu0 %10486
      %10488 = vrot.lane.b32.xlu0 %v10380, 112
      %v10489 = vpop.permute.xlu0 %10488
      %10490 = vrot.lane.b32.xlu0 %v10381, 112
      %v10491 = vpop.permute.xlu0 %10490
      %10492 = vrot.lane.b32.xlu0 %v10382, 112
      %v10493 = vpop.permute.xlu0 %10492
      %10494 = vrot.lane.b32.xlu0 %v10383, 112
      %v10495 = vpop.permute.xlu0 %10494
      %10496 = vrot.lane.b32.xlu0 %v10384, 112
      %v10497 = vpop.permute.xlu0 %10496
      %10498 = vrot.lane.b32.xlu0 %v10385, 112
      %v10499 = vpop.permute.xlu0 %10498
      %10500 = vrot.lane.b32.xlu0 %v10386, 112
      %v10501 = vpop.permute.xlu0 %10500
      %10502 = vrot.lane.b32.xlu0 %v10387, 112
      %v10503 = vpop.permute.xlu0 %10502
      %10504 = vrot.lane.b32.xlu0 %v10388, 112
      %v10505 = vpop.permute.xlu0 %10504
      %10506 = vrot.lane.b32.xlu0 %v10389, 112
      %v10507 = vpop.permute.xlu0 %10506
      %10508 = vrot.lane.b32.xlu0 %v10390, 112
      %v10509 = vpop.permute.xlu0 %10508
      %10510 = vrot.lane.b32.xlu0 %v10391, 112
      %v10511 = vpop.permute.xlu0 %10510
      %10512 = vrot.lane.b32.xlu0 %v10392, 112
      %v10513 = vpop.permute.xlu0 %10512
      %10514 = vrot.lane.b32.xlu0 %v10393, 112
      %v10515 = vpop.permute.xlu0 %10514
      %10516 = vrot.lane.b32.xlu0 %v10394, 112
      %v10517 = vpop.permute.xlu0 %10516
      %v10559 = vsel %vm9738, %v10437, 0.0
      %10560 = vadd.xlane.f32.xlu0 %v10559
      %v10561 = vpop.xlane.xlu0 %10560
      %v10562 = vsel %vm9738, %v10439, 0.0
      %10563 = vadd.xlane.f32.xlu0 %v10562
      %v10564 = vpop.xlane.xlu0 %10563
      %v10565 = vsel %vm9738, %v10441, 0.0
      %10566 = vadd.xlane.f32.xlu0 %v10565
      %v10567 = vpop.xlane.xlu0 %10566
      %v10568 = vsel %vm9738, %v10443, 0.0
      %10569 = vadd.xlane.f32.xlu0 %v10568
      %v10570 = vpop.xlane.xlu0 %10569
      %v10571 = vsel %vm9738, %v10445, 0.0
      %10572 = vadd.xlane.f32.xlu0 %v10571
      %v10573 = vpop.xlane.xlu0 %10572
      %v10574 = vsel %vm9738, %v10447, 0.0
      %10575 = vadd.xlane.f32.xlu0 %v10574
      %v10576 = vpop.xlane.xlu0 %10575
      %v10577 = vsel %vm9738, %v10449, 0.0
      %10578 = vadd.xlane.f32.xlu0 %v10577
      %v10579 = vpop.xlane.xlu0 %10578
      %v10580 = vsel %vm9738, %v10451, 0.0
      %10581 = vadd.xlane.f32.xlu0 %v10580
      %v10582 = vpop.xlane.xlu0 %10581
      %v10583 = vsel %vm9738, %v10453, 0.0
      %10584 = vadd.xlane.f32.xlu0 %v10583
      %v10585 = vpop.xlane.xlu0 %10584
      %v10586 = vsel %vm9738, %v10455, 0.0
      %10587 = vadd.xlane.f32.xlu0 %v10586
      %v10588 = vpop.xlane.xlu0 %10587
      %v10589 = vsel %vm9738, %v10457, 0.0
      %10590 = vadd.xlane.f32.xlu0 %v10589
      %v10591 = vpop.xlane.xlu0 %10590
      %v10592 = vsel %vm9738, %v10459, 0.0
      %10593 = vadd.xlane.f32.xlu0 %v10592
      %v10594 = vpop.xlane.xlu0 %10593
      %v10595 = vsel %vm9738, %v10461, 0.0
      %10596 = vadd.xlane.f32.xlu0 %v10595
      %v10597 = vpop.xlane.xlu0 %10596
      %v10598 = vsel %vm9738, %v10463, 0.0
      %10599 = vadd.xlane.f32.xlu0 %v10598
      %v10600 = vpop.xlane.xlu0 %10599
      %v10601 = vsel %vm9738, %v10465, 0.0
      %10602 = vadd.xlane.f32.xlu0 %v10601
      %v10603 = vpop.xlane.xlu0 %10602
      %v10604 = vsel %vm9738, %v10467, 0.0
      %10605 = vadd.xlane.f32.xlu0 %v10604
      %v10606 = vpop.xlane.xlu0 %10605
      %v10607 = vsel %vm9738, %v10469, 0.0
      %10608 = vadd.xlane.f32.xlu0 %v10607
      %v10609 = vpop.xlane.xlu0 %10608
      %v10610 = vsel %vm9738, %v10471, 0.0
      %10611 = vadd.xlane.f32.xlu0 %v10610
      %v10612 = vpop.xlane.xlu0 %10611
      %v10613 = vsel %vm9738, %v10473, 0.0
      %10614 = vadd.xlane.f32.xlu0 %v10613
      %v10615 = vpop.xlane.xlu0 %10614
      %v10616 = vsel %vm9738, %v10475, 0.0
      %10617 = vadd.xlane.f32.xlu0 %v10616
      %v10618 = vpop.xlane.xlu0 %10617
      %v10619 = vsel %vm9738, %v10477, 0.0
      %10620 = vadd.xlane.f32.xlu0 %v10619
      %v10621 = vpop.xlane.xlu0 %10620
      %v10622 = vsel %vm9738, %v10479, 0.0
      %10623 = vadd.xlane.f32.xlu0 %v10622
      %v10624 = vpop.xlane.xlu0 %10623
      %v10625 = vsel %vm9738, %v10481, 0.0
      %10626 = vadd.xlane.f32.xlu0 %v10625
      %v10627 = vpop.xlane.xlu0 %10626
      %v10628 = vsel %vm9738, %v10483, 0.0
      %10629 = vadd.xlane.f32.xlu0 %v10628
      %v10630 = vpop.xlane.xlu0 %10629
      %v10631 = vsel %vm9738, %v10485, 0.0
      %10632 = vadd.xlane.f32.xlu0 %v10631
      %v10633 = vpop.xlane.xlu0 %10632
      %v10634 = vsel %vm9738, %v10487, 0.0
      %10635 = vadd.xlane.f32.xlu0 %v10634
      %v10636 = vpop.xlane.xlu0 %10635
      %v10637 = vsel %vm9738, %v10489, 0.0
      %10638 = vadd.xlane.f32.xlu0 %v10637
      %v10639 = vpop.xlane.xlu0 %10638
      %v10640 = vsel %vm9738, %v10491, 0.0
      %10641 = vadd.xlane.f32.xlu0 %v10640
      %v10642 = vpop.xlane.xlu0 %10641
      %v10643 = vsel %vm9738, %v10493, 0.0
      %10644 = vadd.xlane.f32.xlu0 %v10643
      %v10645 = vpop.xlane.xlu0 %10644
      %v10646 = vsel %vm9738, %v10495, 0.0
      %10647 = vadd.xlane.f32.xlu0 %v10646
      %v10648 = vpop.xlane.xlu0 %10647
      %v10649 = vsel %vm9738, %v10497, 0.0
      %10650 = vadd.xlane.f32.xlu0 %v10649
      %v10651 = vpop.xlane.xlu0 %10650
      %v10652 = vsel %vm9738, %v10499, 0.0
      %10653 = vadd.xlane.f32.xlu0 %v10652
      %v10654 = vpop.xlane.xlu0 %10653
      %v10655 = vsel %vm9738, %v10501, 0.0
      %10656 = vadd.xlane.f32.xlu0 %v10655
      %v10657 = vpop.xlane.xlu0 %10656
      %v10658 = vsel %vm9738, %v10503, 0.0
      %10659 = vadd.xlane.f32.xlu0 %v10658
      %v10660 = vpop.xlane.xlu0 %10659
      %v10661 = vsel %vm9738, %v10505, 0.0
      %10662 = vadd.xlane.f32.xlu0 %v10661
      %v10663 = vpop.xlane.xlu0 %10662
      %v10664 = vsel %vm9738, %v10507, 0.0
      %10665 = vadd.xlane.f32.xlu0 %v10664
      %v10666 = vpop.xlane.xlu0 %10665
      %v10667 = vsel %vm9738, %v10509, 0.0
      %10668 = vadd.xlane.f32.xlu0 %v10667
      %v10669 = vpop.xlane.xlu0 %10668
      %v10670 = vsel %vm9738, %v10511, 0.0
      %10671 = vadd.xlane.f32.xlu0 %v10670
      %v10672 = vpop.xlane.xlu0 %10671
      %v10673 = vsel %vm9738, %v10513, 0.0
      %10674 = vadd.xlane.f32.xlu0 %v10673
      %v10675 = vpop.xlane.xlu0 %10674
      %v10676 = vsel %vm9738, %v10515, 0.0
      %10677 = vadd.xlane.f32.xlu0 %v10676
      %v10678 = vpop.xlane.xlu0 %10677
      %v10679 = vsel %vm9738, %v10517, 0.0
      %10680 = vadd.xlane.f32.xlu0 %v10679
      %v10681 = vpop.xlane.xlu0 %10680
      %v10682 = vsel %vm486, %v10561, 0.0
      %v10683 = vsel %vm487, %v10564, 0.0
      %v10684 = vsel %vm488, %v10567, 0.0
      %v10685 = vsel %vm489, %v10570, 0.0
      %v10686 = vsel %vm490, %v10573, 0.0
      %v10687 = vsel %vm491, %v10576, 0.0
      %v10688 = vsel %vm492, %v10579, 0.0
      %v10689 = vsel %vm493, %v10582, 0.0
      %v10690 = vsel %vm494, %v10585, 0.0
      %v10691 = vsel %vm495, %v10588, 0.0
      %v10692 = vsel %vm496, %v10591, 0.0
      %v10693 = vsel %vm497, %v10594, 0.0
      %v10694 = vsel %vm498, %v10597, 0.0
      %v10695 = vsel %vm499, %v10600, 0.0
      %v10696 = vsel %vm500, %v10603, 0.0
      %v10697 = vsel %vm501, %v10606, 0.0
      %v10698 = vsel %vm502, %v10609, 0.0
      %v10699 = vsel %vm503, %v10612, 0.0
      %v10700 = vsel %vm504, %v10615, 0.0
      %v10701 = vsel %vm505, %v10618, 0.0
      %v10702 = vsel %vm506, %v10621, 0.0
      %v10703 = vsel %vm507, %v10624, 0.0
      %v10704 = vsel %vm508, %v10627, 0.0
      %v10705 = vsel %vm509, %v10630, 0.0
      %v10706 = vsel %vm510, %v10633, 0.0
      %v10707 = vsel %vm511, %v10636, 0.0
      %v10708 = vsel %vm512, %v10639, 0.0
      %v10709 = vsel %vm513, %v10642, 0.0
      %v10710 = vsel %vm514, %v10645, 0.0
      %v10711 = vsel %vm515, %v10648, 0.0
      %v10712 = vsel %vm516, %v10651, 0.0
      %v10713 = vsel %vm517, %v10654, 0.0
      %v10714 = vsel %vm518, %v10657, 0.0
      %v10715 = vsel %vm519, %v10660, 0.0
      %v10716 = vsel %vm520, %v10663, 0.0
      %v10717 = vsel %vm521, %v10666, 0.0
      %v10718 = vsel %vm522, %v10669, 0.0
      %v10719 = vsel %vm523, %v10672, 0.0
      %v10720 = vsel %vm524, %v10675, 0.0
      %v10721 = vsel %vm525, %v10678, 0.0
      %v10722 = vsel %vm526, %v10681, 0.0
      %vm10723 = vcmask 7168
      %10724 = vst.msk [vmem:[%s442] sm:$0xff] %vm10723, %v10682
      %10725 = vst.msk [vmem:[%s442 + $0x8] sm:$0xff] %vm10723, %v10683
      %10726 = vst.msk [vmem:[%s442 + $0x10] sm:$0xff] %vm10723, %v10684
      %10727 = vst.msk [vmem:[%s442 + $0x18] sm:$0xff] %vm10723, %v10685
      %10728 = vst.msk [vmem:[%s442 + $0x20] sm:$0xff] %vm10723, %v10686
      %10729 = vst.msk [vmem:[%s442 + $0x28] sm:$0xff] %vm10723, %v10687
      %10730 = vst.msk [vmem:[%s442 + $0x30] sm:$0xff] %vm10723, %v10688
      %10731 = vst.msk [vmem:[%s442 + $0x38] sm:$0xff] %vm10723, %v10689
      %10732 = vst.msk [vmem:[%s442 + $0x40] sm:$0xff] %vm10723, %v10690
      %10733 = vst.msk [vmem:[%s442 + $0x48] sm:$0xff] %vm10723, %v10691
      %10734 = vst.msk [vmem:[%s442 + $0x50] sm:$0xff] %vm10723, %v10692
      %10735 = vst.msk [vmem:[%s442 + $0x58] sm:$0xff] %vm10723, %v10693
      %10736 = vst.msk [vmem:[%s442 + $0x60] sm:$0xff] %vm10723, %v10694
      %10737 = vst.msk [vmem:[%s442 + $0x68] sm:$0xff] %vm10723, %v10695
      %10738 = vst.msk [vmem:[%s442 + $0x70] sm:$0xff] %vm10723, %v10696
      %10739 = vst.msk [vmem:[%s442 + $0x78] sm:$0xff] %vm10723, %v10697
      %10740 = vst.msk [vmem:[%s442 + $0x80] sm:$0xff] %vm10723, %v10698
      %10741 = vst.msk [vmem:[%s442 + $0x88] sm:$0xff] %vm10723, %v10699
      %10742 = vst.msk [vmem:[%s442 + $0x90] sm:$0xff] %vm10723, %v10700
      %10743 = vst.msk [vmem:[%s442 + $0x98] sm:$0xff] %vm10723, %v10701
      %10744 = vst.msk [vmem:[%s442 + $0xa0] sm:$0xff] %vm10723, %v10702
      %10745 = vst.msk [vmem:[%s442 + $0xa8] sm:$0xff] %vm10723, %v10703
      %10746 = vst.msk [vmem:[%s442 + $0xb0] sm:$0xff] %vm10723, %v10704
      %10747 = vst.msk [vmem:[%s442 + $0xb8] sm:$0xff] %vm10723, %v10705
      %10748 = vst.msk [vmem:[%s442 + $0xc0] sm:$0xff] %vm10723, %v10706
      %10749 = vst.msk [vmem:[%s442 + $0xc8] sm:$0xff] %vm10723, %v10707
      %10750 = vst.msk [vmem:[%s442 + $0xd0] sm:$0xff] %vm10723, %v10708
      %10751 = vst.msk [vmem:[%s442 + $0xd8] sm:$0xff] %vm10723, %v10709
      %10752 = vst.msk [vmem:[%s442 + $0xe0] sm:$0xff] %vm10723, %v10710
      %10753 = vst.msk [vmem:[%s442 + $0xe8] sm:$0xff] %vm10723, %v10711
      %10754 = vst.msk [vmem:[%s442 + $0xf0] sm:$0xff] %vm10723, %v10712
      %10755 = vst.msk [vmem:[%s442 + $0xf8] sm:$0xff] %vm10723, %v10713
      %10756 = vst.msk [vmem:[%s442 + $0x100] sm:$0xff] %vm10723, %v10714
      %10757 = vst.msk [vmem:[%s442 + $0x108] sm:$0xff] %vm10723, %v10715
      %10758 = vst.msk [vmem:[%s442 + $0x110] sm:$0xff] %vm10723, %v10716
      %10759 = vst.msk [vmem:[%s442 + $0x118] sm:$0xff] %vm10723, %v10717
      %10760 = vst.msk [vmem:[%s442 + $0x120] sm:$0xff] %vm10723, %v10718
      %10761 = vst.msk [vmem:[%s442 + $0x128] sm:$0xff] %vm10723, %v10719
      %10762 = vst.msk [vmem:[%s442 + $0x130] sm:$0xff] %vm10723, %v10720
      %10763 = vst.msk [vmem:[%s442 + $0x138] sm:$0xff] %vm10723, %v10721
      %10764 = vst.msk [vmem:[%s442 + $0x140] sm:$0xff] %vm10723, %v10722
      %s10765 = smul.u32 41, %s24
      %p10766 = scmp.lt.s32.totalorder %s10765, 81
      %s10767 = scalar_select %p10766, %s10765, 81
      %s10768 = smul.addr %s10767, 8
      %s10769 = scalar_lea.vmem %s13, %s10768
      // Predicated region
      $region73: #{tpu_custom_call.1} parent=71 // pred_check
        %p10770 = pneg %p320
      $region74: #{tpu_custom_call.1} parent=71 // pred_check_branch
        %10772 = sbr.rel (%p10770) target = $region76
      $region75: #{tpu_custom_call.1} parent=71 // pred_region
        %s10773 = smul.u32 41, %s24
      $region76: #{tpu_custom_call.1} parent=71 // pred_fallthru
        _
    $region72: #{tpu_custom_call.1} parent=5 // pred_fallthru
      _
    %p10774 = scmp.le.s32.totalorder 2, %s19
    // Predicated region
    $region77: #{tpu_custom_call.1} parent=5 // pred_check
      %p10775 = pneg %p10774
    $region78: #{tpu_custom_call.1} parent=5 // pred_check_branch
      %10777 = sbr.rel (%p10775) target = $region80
    $region79: #{tpu_custom_call.1} parent=5 // pred_region
      %s10778 = ssub.s32 %s19, 2
      // Predicated region
      $region81: #{tpu_custom_call.1} parent=79 // pred_check
        %p10779 = pneg %p326
      $region82: #{tpu_custom_call.1} parent=79 // pred_check_branch
        %10781 = sbr.rel (%p10779) target = $region84
      $region83: #{tpu_custom_call.1} parent=79 // pred_region
        %s10782 = smul.u32 41, %s25
        %p10783 = scmp.lt.s32.totalorder %s10782, 81
        %s10784 = scalar_select %p10783, %s10782, 81
        %s10785 = smul.addr %s10784, 8
        %s10786 = scalar_lea.vmem %s13, %s10785
      $region84: #{tpu_custom_call.1} parent=79 // pred_fallthru
        _
    $region80: #{tpu_custom_call.1} parent=5 // pred_fallthru
      _
  $region6: #{tpu_custom_call.1} parent=0 // loop_footer
    %s23 = sadd.s32 1, %s19
  $region7: #{tpu_custom_call.1} parent=0 // loop_footer_branch
    %18 = sbr.rel target = $region3
  $region8: #{tpu_custom_call.1} parent=0 // loop_exit
    _

</llo_original>
